<compile_context>
chip_gen: v7x
topology: tpu7x:2x2x1
jax: 0.10.0
libtpu: 0.0.40
codegen_flags: <defaults>
</compile_context>

<pallas_src>
import functools

import jax
import jax.numpy as jnp
from jax import lax
from jax.experimental import pallas as pl
from jax.experimental.pallas import tpu as pltpu

MAX_TM = 256  # row tile: big enough to feed the MXU, small enough for v5e/v7x VMEM


def _round_up(x, m):
    return ((x + m - 1) // m) * m


# ----------------------------- Pallas kernels -----------------------------

def _conv_mm_relu_kernel(p_ref, w_ref, b_ref, o_ref):
    # (TM, Kp) bf16 @ (Kp, Coutp) bf16 -> f32 acc, + bias, ReLU -> (TM, Coutp) f32
    acc = jnp.dot(p_ref[...], w_ref[...], preferred_element_type=jnp.float32)
    o_ref[...] = jnp.maximum(acc + b_ref[...], 0.0)


def _maxpool_fused_kernel(x_ref, o_ref):
    # x_ref: (1, H+2, W+2, C) conv output with a -inf border (pad=1)
    # o_ref: (1, OH, OW, C); 9-tap max via strided loads from the VMEM block.
    _, oh, ow, c = o_ref.shape
    r = None
    for di in range(3):
        for dj in range(3):
            t = x_ref[0, pl.ds(di, oh, stride=2), pl.ds(dj, ow, stride=2), :]
            r = t if r is None else jnp.maximum(r, t)
    o_ref[0] = r


def _maxpool_stack_kernel(w_ref, o_ref):
    # Fallback: (9, TM, C) -> max over the 9 window taps -> (TM, C)
    o_ref[...] = jnp.max(w_ref[...], axis=0)


def _head_kernel(x_ref, w_ref, b_ref, h_ref, o_ref):
    # AdaptiveAvgPool2d(1) over the flattened spatial axis, then Linear.
    h = jnp.mean(x_ref[...], axis=1)                       # (N, C) f32
    h_ref[...] = h
    o_ref[...] = jnp.dot(h.astype(w_ref.dtype), w_ref[...],
                         preferred_element_type=jnp.float32) + b_ref[...]


# -------------------- strided-slice capability probe -----------------------

_STRIDED_DS = None


def _strided_ds_supported():
    """Eagerly compile a tiny kernel using strided pl.ds (same access pattern as
    the fused maxpool).  If it fails to lower (or gives wrong data) we fall back
    to the stacked-window maxpool path."""
    global _STRIDED_DS
    if _STRIDED_DS is None:
        def probe_kernel(x_ref, o_ref):
            o_ref[0] = x_ref[0, pl.ds(0, 4, stride=2), pl.ds(1, 4, stride=2), :]
        try:
            x = jnp.arange(8 * 8 * 128, dtype=jnp.float32).reshape(1, 8, 8, 128)
            out = pl.pallas_call(
                probe_kernel,
                out_shape=jax.ShapeDtypeStruct((1, 4, 4, 128), jnp.float32),
            )(x)
            expected = x[:, 0:8:2, 1:8:2, :]
            _STRIDED_DS = bool(jnp.allclose(jax.block_until_ready(out), expected))
        except Exception:
            _STRIDED_DS = False
    return _STRIDED_DS


# ------------------------------- JAX glue ---------------------------------

def _im2col(x_nhwc, kh, kw, stride, pad, pad_value=0.0):
    """Return list of kh*kw shifted/strided slices, each (N, OH, OW, C)."""
    n, h, w, c = x_nhwc.shape
    xp = jnp.pad(x_nhwc, ((0, 0), (pad, pad), (pad, pad), (0, 0)),
                 constant_values=pad_value)
    oh = (h + 2 * pad - kh) // stride + 1
    ow = (w + 2 * pad - kw) // stride + 1
    cols = []
    for di in range(kh):
        for dj in range(kw):
            cols.append(lax.slice(
                xp,
                (0, di, dj, 0),
                (n, di + stride * (oh - 1) + 1, dj + stride * (ow - 1) + 1, c),
                (1, stride, stride, 1)))
    return cols, oh, ow


def conv2d_relu(x_nhwc, w_oihw, bias, stride, pad):
    """nn.Conv2d(padding=pad, stride=stride) + ReLU via Pallas bf16 MXU matmul."""
    n, h, w, cin = x_nhwc.shape
    cout, _, kh, kw = w_oihw.shape

    # TODO(synk): a fully fused tap-accumulation conv (no materialized im2col)
    # would cut HBM traffic further; here the im2col is at least done in bf16
    # (half the bytes) and the Pallas matmul uses large lane-dense tiles.
    xb = x_nhwc.astype(jnp.bfloat16)
    cols, oh, ow = _im2col(xb, kh, kw, stride, pad)
    patches = jnp.stack(cols, axis=3).reshape(n * oh * ow, kh * kw * cin)

    rows = n * oh * ow
    k = kh * kw * cin
    kp = _round_up(k, 128)                       # lane-aligned contraction dim
    coutp = _round_up(cout, 128)                 # lane-dense output stores
    tm = min(MAX_TM, _round_up(rows, 8))
    rows_p = _round_up(rows, tm)

    if rows_p != rows or kp != k:
        patches = jnp.pad(patches, ((0, rows_p - rows), (0, kp - k)))

    # torch weight (Cout, Cin, KH, KW) -> (KH*KW*Cin, Cout), matching patch order
    w2 = jnp.transpose(w_oihw, (2, 3, 1, 0)).reshape(k, cout).astype(jnp.bfloat16)
    if kp != k or coutp != cout:
        w2 = jnp.pad(w2, ((0, kp - k), (0, coutp - cout)))
    b2 = bias.astype(jnp.float32).reshape(1, cout)
    if coutp != cout:
        b2 = jnp.pad(b2, ((0, 0), (0, coutp - cout)))

    out = pl.pallas_call(
        _conv_mm_relu_kernel,
        out_shape=jax.ShapeDtypeStruct((rows_p, coutp), jnp.float32),
        grid=(rows_p // tm,),
        in_specs=[pl.BlockSpec((tm, kp), lambda i: (i, 0)),
                  pl.BlockSpec((kp, coutp), lambda i: (0, 0)),
                  pl.BlockSpec((1, coutp), lambda i: (0, 0))],
        out_specs=pl.BlockSpec((tm, coutp), lambda i: (i, 0)),
        compiler_params=pltpu.CompilerParams(
            dimension_semantics=("parallel",)),
    )(patches, w2, b2)
    return out[:rows, :cout].reshape(n, oh, ow, cout)


def maxpool_3x3_s2_p1(x_nhwc):
    """nn.MaxPool2d(kernel_size=3, stride=2, padding=1) as one Pallas kernel."""
    n, h, w, c = x_nhwc.shape
    oh = (h - 1) // 2 + 1
    ow = (w - 1) // 2 + 1

    if _strided_ds_supported():
        # Fused path: read the -inf padded conv output once per image block and
        # reduce the 9 taps in VMEM with strided loads (no 9x window tensor).
        xp = jnp.pad(x_nhwc, ((0, 0), (1, 1), (1, 1), (0, 0)),
                     constant_values=-jnp.inf)
        hp, wp = h + 2, w + 2
        return pl.pallas_call(
            _maxpool_fused_kernel,
            out_shape=jax.ShapeDtypeStruct((n, oh, ow, c), jnp.float32),
            grid=(n,),
            in_specs=[pl.BlockSpec((1, hp, wp, c), lambda i: (i, 0, 0, 0))],
            out_specs=pl.BlockSpec((1, oh, ow, c), lambda i: (i, 0, 0, 0)),
            compiler_params=pltpu.CompilerParams(
                dimension_semantics=("parallel",)),
        )(xp)

    # Fallback path (known-good): stacked 9-tap windows, large row tiles.
    cols, oh2, ow2 = _im2col(x_nhwc, 3, 3, 2, 1, pad_value=-jnp.inf)
    wins = jnp.stack(cols, axis=0).reshape(9, n * oh2 * ow2, c)
    rows = n * oh2 * ow2
    tm = min(MAX_TM, _round_up(rows, 8))
    rows_p = _round_up(rows, tm)
    if rows_p != rows:
        wins = jnp.pad(wins, ((0, 0), (0, rows_p - rows), (0, 0)))
    out = pl.pallas_call(
        _maxpool_stack_kernel,
        out_shape=jax.ShapeDtypeStruct((rows_p, c), jnp.float32),
        grid=(rows_p // tm,),
        in_specs=[pl.BlockSpec((9, tm, c), lambda i: (0, i, 0))],
        out_specs=pl.BlockSpec((tm, c), lambda i: (i, 0)),
        compiler_params=pltpu.CompilerParams(
            dimension_semantics=("parallel",)),
    )(wins)
    return out[:rows].reshape(n, oh2, ow2, c)


def avgpool_linear(it_nhwc, w_lin, b_lin):
    """AdaptiveAvgPool2d(1) + Flatten + Linear fused in one Pallas kernel."""
    n, h, w, c = it_nhwc.shape
    x = it_nhwc.reshape(n, h * w, c)
    out_dim = w_lin.shape[0]
    odp = _round_up(out_dim, 128)                # lane-dense head output
    wk = jnp.transpose(w_lin).astype(jnp.bfloat16)        # (C, out_dim)
    wk = jnp.pad(wk, ((0, 0), (0, odp - out_dim)))
    bk = jnp.pad(b_lin.astype(jnp.float32).reshape(1, out_dim),
                 ((0, 0), (0, odp - out_dim)))

    h_out, o_out = pl.pallas_call(
        _head_kernel,
        out_shape=(jax.ShapeDtypeStruct((n, c), jnp.float32),
                   jax.ShapeDtypeStruct((n, odp), jnp.float32)),
        grid=(1,),
        in_specs=[pl.BlockSpec((n, h * w, c), lambda i: (0, 0, 0)),
                  pl.BlockSpec((c, odp), lambda i: (0, 0)),
                  pl.BlockSpec((1, odp), lambda i: (0, 0))],
        out_specs=(pl.BlockSpec((n, c), lambda i: (0, 0)),
                   pl.BlockSpec((n, odp), lambda i: (0, 0))),
    )(x, wk, bk)
    return h_out, o_out[:, :out_dim]


# --------------------------- model definition ------------------------------

def init_params(key, n_hid=512, out_img=16, out_wrd=16):
    """Deterministic synthetic init matching the module's parameter shapes."""
    specs = {'V1': (64, 3, 7), 'V2': (128, 64, 3),
             'V4': (256, 128, 3), 'IT': (512, 256, 3)}
    params = {}
    keys = jax.random.split(key, len(specs) + 1)
    for (name, (cout, cin, k)), kk in zip(specs.items(), keys[:-1]):
        kw_, kb_ = jax.random.split(kk)
        fan_in = cin * k * k
        params[name] = {
            'w': jax.random.normal(kw_, (cout, cin, k, k), jnp.float32)
                 * (2.0 / fan_in) ** 0.5,
            'b': jax.random.normal(kb_, (cout,), jnp.float32) * 0.01,
        }
    kw_, kb_ = jax.random.split(keys[-1])
    out_dim = out_img + out_wrd
    params['linear_w'] = (jax.random.normal(kw_, (out_dim, n_hid), jnp.float32)
                          * (1.0 / n_hid) ** 0.5)
    params['linear_b'] = jax.random.normal(kb_, (out_dim,), jnp.float32) * 0.01
    return params


def cornet_z_nonbiased_words_forward(params, image_nchw):
    """Equivalent of CORNet_Z_nonbiased_words.forward(image, clip=False)."""
    x = jnp.transpose(image_nchw, (0, 2, 3, 1)).astype(jnp.float32)  # -> NHWC

    def corblock(x, p, kernel_size, stride):
        x = conv2d_relu(x, p['w'], p['b'], stride, kernel_size // 2)
        x = maxpool_3x3_s2_p1(x)
        return x

    v1 = corblock(x, params['V1'], 7, 2)
    v2 = corblock(v1, params['V2'], 3, 1)
    v4 = corblock(v2, params['V4'], 3, 1)
    it = corblock(v4, params['IT'], 3, 1)
    h, out = avgpool_linear(it, params['linear_w'], params['linear_b'])

    def flat_nchw(t):  # match torch x.view(N, -1) element order on NCHW data
        return jnp.transpose(t, (0, 3, 1, 2)).reshape(t.shape[0], -1)

    # TODO(synk): clip=True branch uses hard-coded 224x224 spatial crops
    # (e.g. v1[:, :8, 24:32, 24:32]) that are out of range at small test
    # shapes; only the default clip=False path is implemented.
    return (flat_nchw(v1), flat_nchw(v2), flat_nchw(v4), flat_nchw(it), h, out)


# --------------------------------- main ------------------------------------

if __name__ == "__main__":
    key = jax.random.PRNGKey(0)
    pkey, xkey = jax.random.split(key)

    out_img, out_wrd = 16, 16
    params = init_params(pkey, n_hid=512, out_img=out_img, out_wrd=out_wrd)

    # NCHW input like the PyTorch module (3 channels required by V1 conv).
    image = jax.random.normal(xkey, (2, 3, 32, 32), jnp.float32)

    # Decide the maxpool lowering path eagerly, before tracing the forward.
    _strided_ds_supported()

    fwd = jax.jit(functools.partial(cornet_z_nonbiased_words_forward, params))
    v1f, v2f, v4f, itf, h, out = jax.block_until_ready(fwd(image))

    assert v1f.shape == (2, 64 * 8 * 8)
    assert v2f.shape == (2, 128 * 4 * 4)
    assert v4f.shape == (2, 256 * 2 * 2)
    assert itf.shape == (2, 512 * 1 * 1)
    assert h.shape == (2, 512)
    assert out.shape == (2, out_img + out_wrd)
    assert bool(jnp.all(jnp.isfinite(out)))

    print("KERNEL_OK")
</pallas_src>

<mosaic_0001>
module attributes {stable_mosaic.version = 11 : i64} {
  func.func @probe_kernel(%arg0: memref<1x8x8x128xf32, #tpu.memory_space<vmem>>, %arg1: memref<1x4x4x128xf32, #tpu.memory_space<vmem>>) attributes {dimension_semantics = [], scalar_prefetch = 0 : i64, scratch_operands = 0 : i64, tpu.core_type = #tpu.core_type<tc>} {
    %c0 = arith.constant 0 : index
    %c0_0 = arith.constant 0 : index
    %c1 = arith.constant 1 : index
    %c0_1 = arith.constant 0 : index
    %0 = tpu.strided_load %arg0[%c0, %c0_0, %c1, %c0_1] {strides = array<i32: 1, 2, 2, 1>} : memref<1x8x8x128xf32, #tpu.memory_space<vmem>>, vector<1x4x4x128xf32>
    %1 = vector.shape_cast %0 : vector<1x4x4x128xf32> to vector<4x4x128xf32>
    %c0_2 = arith.constant 0 : index
    %c0_3 = arith.constant 0 : index
    %c0_4 = arith.constant 0 : index
    %c0_5 = arith.constant 0 : index
    %2 = vector.load %arg1[%c0_2, %c0_3, %c0_4, %c0_5] : memref<1x4x4x128xf32, #tpu.memory_space<vmem>>, vector<1x4x4x128xf32>
    %3 = vector.shape_cast %2 : vector<1x4x4x128xf32> to vector<4x4x128xf32>
    %4 = vector.shape_cast %1 : vector<4x4x128xf32> to vector<1x4x4x128xf32>
    tpu.vector_store %arg1[%c0_2, %c0_3, %c0_4, %c0_5], %4 {strides = array<i32>} : memref<1x4x4x128xf32, #tpu.memory_space<vmem>>, vector<1x4x4x128xf32>,
    return
  }
}

module attributes {stable_mosaic.version = 11 : i64} {
  func.func @_conv_mm_relu_kernel(%arg0: i32, %arg1: memref<256x256xbf16, #tpu.memory_space<vmem>>, %arg2: memref<256x128xbf16, #tpu.memory_space<vmem>>, %arg3: memref<1x128xf32, #tpu.memory_space<vmem>>, %arg4: memref<256x128xf32, #tpu.memory_space<vmem>>) attributes {dimension_semantics = [#tpu.dimension_semantics<parallel>], iteration_bounds = array<i64: 2>, scalar_prefetch = 0 : i64, scratch_operands = 0 : i64, tpu.core_type = #tpu.core_type<tc>, window_params = [{transform_indices = @transform_0, window_bounds = array<i64: 256, 256>}, {pipeline_mode = #tpu.pipeline_mode<synchronous>, transform_indices = @transform_1, window_bounds = array<i64: 256, 128>}, {pipeline_mode = #tpu.pipeline_mode<synchronous>, transform_indices = @transform_2, window_bounds = array<i64: 1, 128>}, {transform_indices = @transform_3, window_bounds = array<i64: 256, 128>}]} {
    %c0 = arith.constant 0 : index
    %c0_0 = arith.constant 0 : index
    %0 = vector.load %arg1[%c0, %c0_0] : memref<256x256xbf16, #tpu.memory_space<vmem>>, vector<256x256xbf16>
    %c0_1 = arith.constant 0 : index
    %c0_2 = arith.constant 0 : index
    %1 = vector.load %arg2[%c0_1, %c0_2] : memref<256x128xbf16, #tpu.memory_space<vmem>>, vector<256x128xbf16>
    %cst = arith.constant dense<0.000000e+00> : vector<256x128xf32>
    %2 = tpu.matmul %0, %1, %cst {dimension_numbers = #tpu.dot_dimension_numbers<[1], [0], [0], [1], [0, 0, 1, 1], [], []>} : vector<256x256xbf16>, vector<256x128xbf16>, vector<256x128xf32> -> vector<256x128xf32>
    %c0_3 = arith.constant 0 : index
    %c0_4 = arith.constant 0 : index
    %3 = vector.load %arg3[%c0_3, %c0_4] : memref<1x128xf32, #tpu.memory_space<vmem>>, vector<1x128xf32>
    %4 = vector.broadcast %3 : vector<1x128xf32> to vector<256x128xf32>
    %5 = arith.addf %2, %4 : vector<256x128xf32>
    %cst_5 = arith.constant 0.000000e+00 : f32
    %6 = vector.broadcast %cst_5 : f32 to vector<256x128xf32>
    %7 = arith.maximumf %5, %6 : vector<256x128xf32>
    %c0_6 = arith.constant 0 : index
    %c0_7 = arith.constant 0 : index
    %8 = vector.load %arg4[%c0_6, %c0_7] : memref<256x128xf32, #tpu.memory_space<vmem>>, vector<256x128xf32>
    tpu.vector_store %arg4[%c0_6, %c0_7], %7 {strides = array<i32>} : memref<256x128xf32, #tpu.memory_space<vmem>>, vector<256x128xf32>,
    return
  }
  func.func @transform_0(%arg0: i32) -> (i32, i32) {
    %c0_i32 = arith.constant 0 : i32
    %c0_i32_0 = arith.constant 0 : i32
    return %arg0, %c0_i32 : i32, i32
  }
  func.func @transform_1(%arg0: i32) -> (i32, i32) {
    %c0_i32 = arith.constant 0 : i32
    %c0_i32_0 = arith.constant 0 : i32
    %c0_i32_1 = arith.constant 0 : i32
    return %c0_i32, %c0_i32_0 : i32, i32
  }
  func.func @transform_2(%arg0: i32) -> (i32, i32) {
    %c0_i32 = arith.constant 0 : i32
    %c0_i32_0 = arith.constant 0 : i32
    %c0_i32_1 = arith.constant 0 : i32
    return %c0_i32, %c0_i32_0 : i32, i32
  }
  func.func @transform_3(%arg0: i32) -> (i32, i32) {
    %c0_i32 = arith.constant 0 : i32
    %c0_i32_0 = arith.constant 0 : i32
    return %arg0, %c0_i32 : i32, i32
  }
}

module attributes {stable_mosaic.version = 11 : i64} {
  func.func @_maxpool_stack_kernel(%arg0: i32, %arg1: memref<9x128x64xf32, #tpu.memory_space<vmem>>, %arg2: memref<128x64xf32, #tpu.memory_space<vmem>>) attributes {dimension_semantics = [#tpu.dimension_semantics<parallel>], iteration_bounds = array<i64: 1>, scalar_prefetch = 0 : i64, scratch_operands = 0 : i64, tpu.core_type = #tpu.core_type<tc>, window_params = [{transform_indices = @transform_0, window_bounds = array<i64: 9, 128, 64>}, {transform_indices = @transform_1, window_bounds = array<i64: 128, 64>}]} {
    %c0 = arith.constant 0 : index
    %c0_0 = arith.constant 0 : index
    %c0_1 = arith.constant 0 : index
    %0 = vector.load %arg1[%c0, %c0_0, %c0_1] : memref<9x128x64xf32, #tpu.memory_space<vmem>>, vector<9x128x64xf32>
    %cst = arith.constant dense<0xFF800000> : vector<128x64xf32>
    %1 = vector.multi_reduction <maximumf>, %0, %cst [0] : vector<9x128x64xf32> to vector<128x64xf32>
    %c0_2 = arith.constant 0 : index
    %c0_3 = arith.constant 0 : index
    %2 = vector.load %arg2[%c0_2, %c0_3] : memref<128x64xf32, #tpu.memory_space<vmem>>, vector<128x64xf32>
    tpu.vector_store %arg2[%c0_2, %c0_3], %1 {strides = array<i32>} : memref<128x64xf32, #tpu.memory_space<vmem>>, vector<128x64xf32>,
    return
  }
  func.func @transform_0(%arg0: i32) -> (i32, i32, i32) {
    %c0_i32 = arith.constant 0 : i32
    %c0_i32_0 = arith.constant 0 : i32
    %c0_i32_1 = arith.constant 0 : i32
    return %c0_i32, %arg0, %c0_i32_0 : i32, i32, i32
  }
  func.func @transform_1(%arg0: i32) -> (i32, i32) {
    %c0_i32 = arith.constant 0 : i32
    %c0_i32_0 = arith.constant 0 : i32
    return %arg0, %c0_i32 : i32, i32
  }
}

module attributes {stable_mosaic.version = 11 : i64} {
  func.func @_conv_mm_relu_kernel(%arg0: i32, %arg1: memref<128x640xbf16, #tpu.memory_space<vmem>>, %arg2: memref<640x128xbf16, #tpu.memory_space<vmem>>, %arg3: memref<1x128xf32, #tpu.memory_space<vmem>>, %arg4: memref<128x128xf32, #tpu.memory_space<vmem>>) attributes {dimension_semantics = [#tpu.dimension_semantics<parallel>], iteration_bounds = array<i64: 1>, scalar_prefetch = 0 : i64, scratch_operands = 0 : i64, tpu.core_type = #tpu.core_type<tc>, window_params = [{transform_indices = @transform_0, window_bounds = array<i64: 128, 640>}, {pipeline_mode = #tpu.pipeline_mode<synchronous>, transform_indices = @transform_1, window_bounds = array<i64: 640, 128>}, {pipeline_mode = #tpu.pipeline_mode<synchronous>, transform_indices = @transform_2, window_bounds = array<i64: 1, 128>}, {transform_indices = @transform_3, window_bounds = array<i64: 128, 128>}]} {
    %c0 = arith.constant 0 : index
    %c0_0 = arith.constant 0 : index
    %0 = vector.load %arg1[%c0, %c0_0] : memref<128x640xbf16, #tpu.memory_space<vmem>>, vector<128x640xbf16>
    %c0_1 = arith.constant 0 : index
    %c0_2 = arith.constant 0 : index
    %1 = vector.load %arg2[%c0_1, %c0_2] : memref<640x128xbf16, #tpu.memory_space<vmem>>, vector<640x128xbf16>
    %cst = arith.constant dense<0.000000e+00> : vector<128x128xf32>
    %2 = tpu.matmul %0, %1, %cst {dimension_numbers = #tpu.dot_dimension_numbers<[1], [0], [0], [1], [0, 0, 1, 1], [], []>} : vector<128x640xbf16>, vector<640x128xbf16>, vector<128x128xf32> -> vector<128x128xf32>
    %c0_3 = arith.constant 0 : index
    %c0_4 = arith.constant 0 : index
    %3 = vector.load %arg3[%c0_3, %c0_4] : memref<1x128xf32, #tpu.memory_space<vmem>>, vector<1x128xf32>
    %4 = vector.broadcast %3 : vector<1x128xf32> to vector<128x128xf32>
    %5 = arith.addf %2, %4 : vector<128x128xf32>
    %cst_5 = arith.constant 0.000000e+00 : f32
    %6 = vector.broadcast %cst_5 : f32 to vector<128x128xf32>
    %7 = arith.maximumf %5, %6 : vector<128x128xf32>
    %c0_6 = arith.constant 0 : index
    %c0_7 = arith.constant 0 : index
    %8 = vector.load %arg4[%c0_6, %c0_7] : memref<128x128xf32, #tpu.memory_space<vmem>>, vector<128x128xf32>
    tpu.vector_store %arg4[%c0_6, %c0_7], %7 {strides = array<i32>} : memref<128x128xf32, #tpu.memory_space<vmem>>, vector<128x128xf32>,
    return
  }
  func.func @transform_0(%arg0: i32) -> (i32, i32) {
    %c0_i32 = arith.constant 0 : i32
    %c0_i32_0 = arith.constant 0 : i32
    return %arg0, %c0_i32 : i32, i32
  }
  func.func @transform_1(%arg0: i32) -> (i32, i32) {
    %c0_i32 = arith.constant 0 : i32
    %c0_i32_0 = arith.constant 0 : i32
    %c0_i32_1 = arith.constant 0 : i32
    return %c0_i32, %c0_i32_0 : i32, i32
  }
  func.func @transform_2(%arg0: i32) -> (i32, i32) {
    %c0_i32 = arith.constant 0 : i32
    %c0_i32_0 = arith.constant 0 : i32
    %c0_i32_1 = arith.constant 0 : i32
    return %c0_i32, %c0_i32_0 : i32, i32
  }
  func.func @transform_3(%arg0: i32) -> (i32, i32) {
    %c0_i32 = arith.constant 0 : i32
    %c0_i32_0 = arith.constant 0 : i32
    return %arg0, %c0_i32 : i32, i32
  }
}

module attributes {stable_mosaic.version = 11 : i64} {
  func.func @_maxpool_stack_kernel(%arg0: i32, %arg1: memref<9x32x128xf32, #tpu.memory_space<vmem>>, %arg2: memref<32x128xf32, #tpu.memory_space<vmem>>) attributes {dimension_semantics = [#tpu.dimension_semantics<parallel>], iteration_bounds = array<i64: 1>, scalar_prefetch = 0 : i64, scratch_operands = 0 : i64, tpu.core_type = #tpu.core_type<tc>, window_params = [{transform_indices = @transform_0, window_bounds = array<i64: 9, 32, 128>}, {transform_indices = @transform_1, window_bounds = array<i64: 32, 128>}]} {
    %c0 = arith.constant 0 : index
    %c0_0 = arith.constant 0 : index
    %c0_1 = arith.constant 0 : index
    %0 = vector.load %arg1[%c0, %c0_0, %c0_1] : memref<9x32x128xf32, #tpu.memory_space<vmem>>, vector<9x32x128xf32>
    %cst = arith.constant dense<0xFF800000> : vector<32x128xf32>
    %1 = vector.multi_reduction <maximumf>, %0, %cst [0] : vector<9x32x128xf32> to vector<32x128xf32>
    %c0_2 = arith.constant 0 : index
    %c0_3 = arith.constant 0 : index
    %2 = vector.load %arg2[%c0_2, %c0_3] : memref<32x128xf32, #tpu.memory_space<vmem>>, vector<32x128xf32>
    tpu.vector_store %arg2[%c0_2, %c0_3], %1 {strides = array<i32>} : memref<32x128xf32, #tpu.memory_space<vmem>>, vector<32x128xf32>,
    return
  }
  func.func @transform_0(%arg0: i32) -> (i32, i32, i32) {
    %c0_i32 = arith.constant 0 : i32
    %c0_i32_0 = arith.constant 0 : i32
    %c0_i32_1 = arith.constant 0 : i32
    return %c0_i32, %arg0, %c0_i32_0 : i32, i32, i32
  }
  func.func @transform_1(%arg0: i32) -> (i32, i32) {
    %c0_i32 = arith.constant 0 : i32
    %c0_i32_0 = arith.constant 0 : i32
    return %arg0, %c0_i32 : i32, i32
  }
}

module attributes {stable_mosaic.version = 11 : i64} {
  func.func @_conv_mm_relu_kernel(%arg0: i32, %arg1: memref<32x1152xbf16, #tpu.memory_space<vmem>>, %arg2: memref<1152x256xbf16, #tpu.memory_space<vmem>>, %arg3: memref<1x256xf32, #tpu.memory_space<vmem>>, %arg4: memref<32x256xf32, #tpu.memory_space<vmem>>) attributes {dimension_semantics = [#tpu.dimension_semantics<parallel>], iteration_bounds = array<i64: 1>, scalar_prefetch = 0 : i64, scratch_operands = 0 : i64, tpu.core_type = #tpu.core_type<tc>, window_params = [{transform_indices = @transform_0, window_bounds = array<i64: 32, 1152>}, {pipeline_mode = #tpu.pipeline_mode<synchronous>, transform_indices = @transform_1, window_bounds = array<i64: 1152, 256>}, {pipeline_mode = #tpu.pipeline_mode<synchronous>, transform_indices = @transform_2, window_bounds = array<i64: 1, 256>}, {transform_indices = @transform_3, window_bounds = array<i64: 32, 256>}]} {
    %c0 = arith.constant 0 : index
    %c0_0 = arith.constant 0 : index
    %0 = vector.load %arg1[%c0, %c0_0] : memref<32x1152xbf16, #tpu.memory_space<vmem>>, vector<32x1152xbf16>
    %c0_1 = arith.constant 0 : index
    %c0_2 = arith.constant 0 : index
    %1 = vector.load %arg2[%c0_1, %c0_2] : memref<1152x256xbf16, #tpu.memory_space<vmem>>, vector<1152x256xbf16>
    %cst = arith.constant dense<0.000000e+00> : vector<32x256xf32>
    %2 = tpu.matmul %0, %1, %cst {dimension_numbers = #tpu.dot_dimension_numbers<[1], [0], [0], [1], [0, 0, 1, 1], [], []>} : vector<32x1152xbf16>, vector<1152x256xbf16>, vector<32x256xf32> -> vector<32x256xf32>
    %c0_3 = arith.constant 0 : index
    %c0_4 = arith.constant 0 : index
    %3 = vector.load %arg3[%c0_3, %c0_4] : memref<1x256xf32, #tpu.memory_space<vmem>>, vector<1x256xf32>
    %4 = vector.broadcast %3 : vector<1x256xf32> to vector<32x256xf32>
    %5 = arith.addf %2, %4 : vector<32x256xf32>
    %cst_5 = arith.constant 0.000000e+00 : f32
    %6 = vector.broadcast %cst_5 : f32 to vector<32x256xf32>
    %7 = arith.maximumf %5, %6 : vector<32x256xf32>
    %c0_6 = arith.constant 0 : index
    %c0_7 = arith.constant 0 : index
    %8 = vector.load %arg4[%c0_6, %c0_7] : memref<32x256xf32, #tpu.memory_space<vmem>>, vector<32x256xf32>
    tpu.vector_store %arg4[%c0_6, %c0_7], %7 {strides = array<i32>} : memref<32x256xf32, #tpu.memory_space<vmem>>, vector<32x256xf32>,
    return
  }
  func.func @transform_0(%arg0: i32) -> (i32, i32) {
    %c0_i32 = arith.constant 0 : i32
    %c0_i32_0 = arith.constant 0 : i32
    return %arg0, %c0_i32 : i32, i32
  }
  func.func @transform_1(%arg0: i32) -> (i32, i32) {
    %c0_i32 = arith.constant 0 : i32
    %c0_i32_0 = arith.constant 0 : i32
    %c0_i32_1 = arith.constant 0 : i32
    return %c0_i32, %c0_i32_0 : i32, i32
  }
  func.func @transform_2(%arg0: i32) -> (i32, i32) {
    %c0_i32 = arith.constant 0 : i32
    %c0_i32_0 = arith.constant 0 : i32
    %c0_i32_1 = arith.constant 0 : i32
    return %c0_i32, %c0_i32_0 : i32, i32
  }
  func.func @transform_3(%arg0: i32) -> (i32, i32) {
    %c0_i32 = arith.constant 0 : i32
    %c0_i32_0 = arith.constant 0 : i32
    return %arg0, %c0_i32 : i32, i32
  }
}

module attributes {stable_mosaic.version = 11 : i64} {
  func.func @_maxpool_stack_kernel(%arg0: i32, %arg1: memref<9x8x256xf32, #tpu.memory_space<vmem>>, %arg2: memref<8x256xf32, #tpu.memory_space<vmem>>) attributes {dimension_semantics = [#tpu.dimension_semantics<parallel>], iteration_bounds = array<i64: 1>, scalar_prefetch = 0 : i64, scratch_operands = 0 : i64, tpu.core_type = #tpu.core_type<tc>, window_params = [{transform_indices = @transform_0, window_bounds = array<i64: 9, 8, 256>}, {transform_indices = @transform_1, window_bounds = array<i64: 8, 256>}]} {
    %c0 = arith.constant 0 : index
    %c0_0 = arith.constant 0 : index
    %c0_1 = arith.constant 0 : index
    %0 = vector.load %arg1[%c0, %c0_0, %c0_1] : memref<9x8x256xf32, #tpu.memory_space<vmem>>, vector<9x8x256xf32>
    %cst = arith.constant dense<0xFF800000> : vector<8x256xf32>
    %1 = vector.multi_reduction <maximumf>, %0, %cst [0] : vector<9x8x256xf32> to vector<8x256xf32>
    %c0_2 = arith.constant 0 : index
    %c0_3 = arith.constant 0 : index
    %2 = vector.load %arg2[%c0_2, %c0_3] : memref<8x256xf32, #tpu.memory_space<vmem>>, vector<8x256xf32>
    tpu.vector_store %arg2[%c0_2, %c0_3], %1 {strides = array<i32>} : memref<8x256xf32, #tpu.memory_space<vmem>>, vector<8x256xf32>,
    return
  }
  func.func @transform_0(%arg0: i32) -> (i32, i32, i32) {
    %c0_i32 = arith.constant 0 : i32
    %c0_i32_0 = arith.constant 0 : i32
    %c0_i32_1 = arith.constant 0 : i32
    return %c0_i32, %arg0, %c0_i32_0 : i32, i32, i32
  }
  func.func @transform_1(%arg0: i32) -> (i32, i32) {
    %c0_i32 = arith.constant 0 : i32
    %c0_i32_0 = arith.constant 0 : i32
    return %arg0, %c0_i32 : i32, i32
  }
}

module attributes {stable_mosaic.version = 11 : i64} {
  func.func @_conv_mm_relu_kernel(%arg0: i32, %arg1: memref<8x2304xbf16, #tpu.memory_space<vmem>>, %arg2: memref<2304x512xbf16, #tpu.memory_space<vmem>>, %arg3: memref<1x512xf32, #tpu.memory_space<vmem>>, %arg4: memref<8x512xf32, #tpu.memory_space<vmem>>) attributes {dimension_semantics = [#tpu.dimension_semantics<parallel>], iteration_bounds = array<i64: 1>, scalar_prefetch = 0 : i64, scratch_operands = 0 : i64, tpu.core_type = #tpu.core_type<tc>, window_params = [{transform_indices = @transform_0, window_bounds = array<i64: 8, 2304>}, {pipeline_mode = #tpu.pipeline_mode<synchronous>, transform_indices = @transform_1, window_bounds = array<i64: 2304, 512>}, {pipeline_mode = #tpu.pipeline_mode<synchronous>, transform_indices = @transform_2, window_bounds = array<i64: 1, 512>}, {transform_indices = @transform_3, window_bounds = array<i64: 8, 512>}]} {
    %c0 = arith.constant 0 : index
    %c0_0 = arith.constant 0 : index
    %0 = vector.load %arg1[%c0, %c0_0] : memref<8x2304xbf16, #tpu.memory_space<vmem>>, vector<8x2304xbf16>
    %c0_1 = arith.constant 0 : index
    %c0_2 = arith.constant 0 : index
    %1 = vector.load %arg2[%c0_1, %c0_2] : memref<2304x512xbf16, #tpu.memory_space<vmem>>, vector<2304x512xbf16>
    %cst = arith.constant dense<0.000000e+00> : vector<8x512xf32>
    %2 = tpu.matmul %0, %1, %cst {dimension_numbers = #tpu.dot_dimension_numbers<[1], [0], [0], [1], [0, 0, 1, 1], [], []>} : vector<8x2304xbf16>, vector<2304x512xbf16>, vector<8x512xf32> -> vector<8x512xf32>
    %c0_3 = arith.constant 0 : index
    %c0_4 = arith.constant 0 : index
    %3 = vector.load %arg3[%c0_3, %c0_4] : memref<1x512xf32, #tpu.memory_space<vmem>>, vector<1x512xf32>
    %4 = vector.broadcast %3 : vector<1x512xf32> to vector<8x512xf32>
    %5 = arith.addf %2, %4 : vector<8x512xf32>
    %cst_5 = arith.constant 0.000000e+00 : f32
    %6 = vector.broadcast %cst_5 : f32 to vector<8x512xf32>
    %7 = arith.maximumf %5, %6 : vector<8x512xf32>
    %c0_6 = arith.constant 0 : index
    %c0_7 = arith.constant 0 : index
    %8 = vector.load %arg4[%c0_6, %c0_7] : memref<8x512xf32, #tpu.memory_space<vmem>>, vector<8x512xf32>
    tpu.vector_store %arg4[%c0_6, %c0_7], %7 {strides = array<i32>} : memref<8x512xf32, #tpu.memory_space<vmem>>, vector<8x512xf32>,
    return
  }
  func.func @transform_0(%arg0: i32) -> (i32, i32) {
    %c0_i32 = arith.constant 0 : i32
    %c0_i32_0 = arith.constant 0 : i32
    return %arg0, %c0_i32 : i32, i32
  }
  func.func @transform_1(%arg0: i32) -> (i32, i32) {
    %c0_i32 = arith.constant 0 : i32
    %c0_i32_0 = arith.constant 0 : i32
    %c0_i32_1 = arith.constant 0 : i32
    return %c0_i32, %c0_i32_0 : i32, i32
  }
  func.func @transform_2(%arg0: i32) -> (i32, i32) {
    %c0_i32 = arith.constant 0 : i32
    %c0_i32_0 = arith.constant 0 : i32
    %c0_i32_1 = arith.constant 0 : i32
    return %c0_i32, %c0_i32_0 : i32, i32
  }
  func.func @transform_3(%arg0: i32) -> (i32, i32) {
    %c0_i32 = arith.constant 0 : i32
    %c0_i32_0 = arith.constant 0 : i32
    return %arg0, %c0_i32 : i32, i32
  }
}

module attributes {stable_mosaic.version = 11 : i64} {
  func.func @_maxpool_stack_kernel(%arg0: i32, %arg1: memref<9x8x512xf32, #tpu.memory_space<vmem>>, %arg2: memref<8x512xf32, #tpu.memory_space<vmem>>) attributes {dimension_semantics = [#tpu.dimension_semantics<parallel>], iteration_bounds = array<i64: 1>, scalar_prefetch = 0 : i64, scratch_operands = 0 : i64, tpu.core_type = #tpu.core_type<tc>, window_params = [{transform_indices = @transform_0, window_bounds = array<i64: 9, 8, 512>}, {transform_indices = @transform_1, window_bounds = array<i64: 8, 512>}]} {
    %c0 = arith.constant 0 : index
    %c0_0 = arith.constant 0 : index
    %c0_1 = arith.constant 0 : index
    %0 = vector.load %arg1[%c0, %c0_0, %c0_1] : memref<9x8x512xf32, #tpu.memory_space<vmem>>, vector<9x8x512xf32>
    %cst = arith.constant dense<0xFF800000> : vector<8x512xf32>
    %1 = vector.multi_reduction <maximumf>, %0, %cst [0] : vector<9x8x512xf32> to vector<8x512xf32>
    %c0_2 = arith.constant 0 : index
    %c0_3 = arith.constant 0 : index
    %2 = vector.load %arg2[%c0_2, %c0_3] : memref<8x512xf32, #tpu.memory_space<vmem>>, vector<8x512xf32>
    tpu.vector_store %arg2[%c0_2, %c0_3], %1 {strides = array<i32>} : memref<8x512xf32, #tpu.memory_space<vmem>>, vector<8x512xf32>,
    return
  }
  func.func @transform_0(%arg0: i32) -> (i32, i32, i32) {
    %c0_i32 = arith.constant 0 : i32
    %c0_i32_0 = arith.constant 0 : i32
    %c0_i32_1 = arith.constant 0 : i32
    return %c0_i32, %arg0, %c0_i32_0 : i32, i32, i32
  }
  func.func @transform_1(%arg0: i32) -> (i32, i32) {
    %c0_i32 = arith.constant 0 : i32
    %c0_i32_0 = arith.constant 0 : i32
    return %arg0, %c0_i32 : i32, i32
  }
}

module attributes {stable_mosaic.version = 11 : i64} {
  func.func @_head_kernel(%arg0: i32, %arg1: memref<2x1x512xf32, #tpu.memory_space<vmem>>, %arg2: memref<512x128xbf16, #tpu.memory_space<vmem>>, %arg3: memref<1x128xf32, #tpu.memory_space<vmem>>, %arg4: memref<2x512xf32, #tpu.memory_space<vmem>>, %arg5: memref<2x128xf32, #tpu.memory_space<vmem>>) attributes {dimension_semantics = [#tpu.dimension_semantics<arbitrary>], iteration_bounds = array<i64: 1>, scalar_prefetch = 0 : i64, scratch_operands = 0 : i64, tpu.core_type = #tpu.core_type<tc>, window_params = [{pipeline_mode = #tpu.pipeline_mode<synchronous>, transform_indices = @transform_0, window_bounds = array<i64: 2, 1, 512>}, {pipeline_mode = #tpu.pipeline_mode<synchronous>, transform_indices = @transform_1, window_bounds = array<i64: 512, 128>}, {pipeline_mode = #tpu.pipeline_mode<synchronous>, transform_indices = @transform_2, window_bounds = array<i64: 1, 128>}, {pipeline_mode = #tpu.pipeline_mode<synchronous>, transform_indices = @transform_3, window_bounds = array<i64: 2, 512>}, {pipeline_mode = #tpu.pipeline_mode<synchronous>, transform_indices = @transform_4, window_bounds = array<i64: 2, 128>}]} {
    %c0 = arith.constant 0 : index
    %c0_0 = arith.constant 0 : index
    %c0_1 = arith.constant 0 : index
    %0 = vector.load %arg1[%c0, %c0_0, %c0_1] : memref<2x1x512xf32, #tpu.memory_space<vmem>>, vector<2x1x512xf32>
    %cst = arith.constant dense<0.000000e+00> : vector<2x512xf32>
    %1 = vector.multi_reduction <add>, %0, %cst [1] : vector<2x1x512xf32> to vector<2x512xf32>
    %cst_2 = arith.constant 1.000000e+00 : f32
    %2 = vector.broadcast %cst_2 : f32 to vector<2x512xf32>
    %3 = arith.divf %1, %2 : vector<2x512xf32>
    %c0_3 = arith.constant 0 : index
    %c0_4 = arith.constant 0 : index
    %4 = vector.load %arg4[%c0_3, %c0_4] : memref<2x512xf32, #tpu.memory_space<vmem>>, vector<2x512xf32>
    tpu.vector_store %arg4[%c0_3, %c0_4], %3 {strides = array<i32>} : memref<2x512xf32, #tpu.memory_space<vmem>>, vector<2x512xf32>,
    %5 = arith.truncf %3 : vector<2x512xf32> to vector<2x512xbf16>
    %c0_5 = arith.constant 0 : index
    %c0_6 = arith.constant 0 : index
    %6 = vector.load %arg2[%c0_5, %c0_6] : memref<512x128xbf16, #tpu.memory_space<vmem>>, vector<512x128xbf16>
    %cst_7 = arith.constant dense<0.000000e+00> : vector<2x128xf32>
    %7 = tpu.matmul %5, %6, %cst_7 {dimension_numbers = #tpu.dot_dimension_numbers<[1], [0], [0], [1], [0, 0, 1, 1], [], []>} : vector<2x512xbf16>, vector<512x128xbf16>, vector<2x128xf32> -> vector<2x128xf32>
    %c0_8 = arith.constant 0 : index
    %c0_9 = arith.constant 0 : index
    %8 = vector.load %arg3[%c0_8, %c0_9] : memref<1x128xf32, #tpu.memory_space<vmem>>, vector<1x128xf32>
    %9 = vector.broadcast %8 : vector<1x128xf32> to vector<2x128xf32>
    %10 = arith.addf %7, %9 : vector<2x128xf32>
    %c0_10 = arith.constant 0 : index
    %c0_11 = arith.constant 0 : index
    %11 = vector.load %arg5[%c0_10, %c0_11] : memref<2x128xf32, #tpu.memory_space<vmem>>, vector<2x128xf32>
    tpu.vector_store %arg5[%c0_10, %c0_11], %10 {strides = array<i32>} : memref<2x128xf32, #tpu.memory_space<vmem>>, vector<2x128xf32>,
    return
  }
  func.func @transform_0(%arg0: i32) -> (i32, i32, i32) {
    %c0_i32 = arith.constant 0 : i32
    %c0_i32_0 = arith.constant 0 : i32
    %c0_i32_1 = arith.constant 0 : i32
    %c0_i32_2 = arith.constant 0 : i32
    return %c0_i32, %c0_i32_0, %c0_i32_1 : i32, i32, i32
  }
  func.func @transform_1(%arg0: i32) -> (i32, i32) {
    %c0_i32 = arith.constant 0 : i32
    %c0_i32_0 = arith.constant 0 : i32
    %c0_i32_1 = arith.constant 0 : i32
    return %c0_i32, %c0_i32_0 : i32, i32
  }
  func.func @transform_2(%arg0: i32) -> (i32, i32) {
    %c0_i32 = arith.constant 0 : i32
    %c0_i32_0 = arith.constant 0 : i32
    %c0_i32_1 = arith.constant 0 : i32
    return %c0_i32, %c0_i32_0 : i32, i32
  }
  func.func @transform_3(%arg0: i32) -> (i32, i32) {
    %c0_i32 = arith.constant 0 : i32
    %c0_i32_0 = arith.constant 0 : i32
    %c0_i32_1 = arith.constant 0 : i32
    return %c0_i32, %c0_i32_0 : i32, i32
  }
  func.func @transform_4(%arg0: i32) -> (i32, i32) {
    %c0_i32 = arith.constant 0 : i32
    %c0_i32_0 = arith.constant 0 : i32
    %c0_i32_1 = arith.constant 0 : i32
    return %c0_i32, %c0_i32_0 : i32, i32
  }
}

</mosaic_0001>

<llo_original>
// kernel: tpu_custom_call.1
$region0: #{tpu_custom_call.1}
  #allocation0 [shape = 'u32[]', space=smem, size = 0x4, offset = 0x4, fixed_abs, tag = 'smem constant byte address 0x4 - core index']
  #allocation1 [shape = 'u32[144,128]{1,0:T(1,128)}', space=vmem, size = 0x12000, scoped, tag = 'internal scratch']
  %s0 = inlined_call_operand.hbm [shape: f32[1,8,8,128], index: 0, kind: input, shape index: {}]
  %s1 = inlined_call_operand.hbm [shape: f32[1,4,4,128], index: 1, kind: output, shape index: {}]
  %s2 = sld [smem:[#allocation0]]
  $region18: #{tpu_custom_call.1} parent=0
    _
  %s4 = ssub.s32 1, %s2
  %s5 = scalar_select 0, %s4, %s2
  $region1: #{tpu_custom_call.1} parent=0
    #allocation2 [shape = 'u8[32768]{0}', space=vmem, size = 0x8000, scoped, tag = 'input window, operand 0, single buffered']
    #allocation3 [shape = 's32[1]{0}', space=sflag, size = 0x4, scoped, tag = 'scoped memory for tpu_custom_call.1']
    #allocation4 [shape = 's32[1]{0}', space=sflag, size = 0x4, scoped, tag = 'scoped memory for tpu_custom_call.1']
    #allocation5 [shape = 'u8[8192]{0}', space=vmem, size = 0x2000, scoped, tag = 'output window, operand 0, single buffered']
    %6 = vsyncpa [#allocation3], 0
    %7 = vsyncpa [#allocation4], 0
    // Predicated region
    $region2: #{tpu_custom_call.1} parent=1 // pred_check
      _
    $region3: #{tpu_custom_call.1} parent=1 // pred_check_branch
      %9 = sbr.rel (0) target = $region5
    $region4: #{tpu_custom_call.1} parent=1 // pred_region
      %s11 = ssub.s32 1024, 1024
      %12 = vsyncadd [#allocation3], %s11
      %s13 = sshll.u32 [#allocation2], 4
      %s14 = int_to_ptr.vmem [resolvable:$true] %s13
      %19 = dma.hbm_to_vmem [thread:$0]  %s0, 1024, %s14, [#allocation3], 128, 128, 8
    $region5: #{tpu_custom_call.1} parent=1 // pred_fallthru
      _
    // Predicated region
    $region6: #{tpu_custom_call.1} parent=1 // pred_check
      _
    $region7: #{tpu_custom_call.1} parent=1 // pred_check_branch
      %21 = sbr.rel (0) target = $region9
    $region8: #{tpu_custom_call.1} parent=1 // pred_region
      %22 = dma.done [#allocation3], 1024
    $region9: #{tpu_custom_call.1} parent=1 // pred_fallthru
      _
    %s23 = scalar_lea.vmem [#allocation2], 1
    %v24 = vld [vmem:[%s23] ss:$2 sm:$0xf]
    %s25 = scalar_lea.vmem [#allocation2], 17
    %v26 = vld [vmem:[%s25] ss:$2 sm:$0xf]
    %s27 = scalar_lea.vmem [#allocation2], 33
    %v28 = vld [vmem:[%s27] ss:$2 sm:$0xf]
    %s29 = scalar_lea.vmem [#allocation2], 49
    %v30 = vld [vmem:[%s29] ss:$2 sm:$0xf]
    %31 = vst [vmem:[#allocation5] sm:$0xf] %v24
    %32 = vst [vmem:[#allocation5 + $0x4] sm:$0xf] %v26
    %33 = vst [vmem:[#allocation5 + $0x8] sm:$0xf] %v28
    %34 = vst [vmem:[#allocation5 + $0xc] sm:$0xf] %v30
    // Predicated region
    $region10: #{tpu_custom_call.1} parent=1 // pred_check
      _
    $region11: #{tpu_custom_call.1} parent=1 // pred_check_branch
      %36 = sbr.rel (0) target = $region13
    $region12: #{tpu_custom_call.1} parent=1 // pred_region
      %s38 = ssub.s32 256, 256
      %39 = vsyncadd [#allocation4], %s38
      %s40 = sshll.u32 [#allocation5], 4
      %s41 = int_to_ptr.vmem [resolvable:$true] %s40
      %46 = dma.vmem_to_hbm [thread:$0]  %s41, 256, %s1, [#allocation4], 64, 64, 4
    $region13: #{tpu_custom_call.1} parent=1 // pred_fallthru
      _
    // Predicated region
    $region14: #{tpu_custom_call.1} parent=1 // pred_check
      _
    $region15: #{tpu_custom_call.1} parent=1 // pred_check_branch
      %48 = sbr.rel (0) target = $region17
    $region16: #{tpu_custom_call.1} parent=1 // pred_region
      %49 = dma.done [#allocation4], 256
    $region17: #{tpu_custom_call.1} parent=1 // pred_fallthru
      _
    %50 = vsyncpa [#allocation3], 1
    %51 = vsyncpa [#allocation4], 1

// kernel: cornet_z_nonbiased_words_forward.9
$region0: #{cornet_z_nonbiased_words_forward.9}
  #allocation0 [shape = 'u32[]', space=smem, size = 0x4, offset = 0x4, fixed_abs, tag = 'smem constant byte address 0x4 - core index']
  #allocation1 [shape = 'u32[144,128]{1,0:T(1,128)}', space=vmem, size = 0x12000, scoped, tag = 'internal scratch']
  %s0 = inlined_call_operand.vmem [shape: bf16[512,256], index: 0, kind: input, shape index: {}]
  %s1 = inlined_call_operand.vmem [shape: bf16[256,128], index: 1, kind: input, shape index: {}]
  %s2 = inlined_call_operand.vmem [shape: f32[1,128], index: 2, kind: input, shape index: {}]
  %s3 = inlined_call_operand.vmem [shape: f32[512,128], index: 3, kind: output, shape index: {}]
  %s4 = sld [smem:[#allocation0]]
  $region45: #{cornet_z_nonbiased_words_forward.9} parent=0
    _
  %s6 = ssub.s32 1, %s4
  %s7 = scalar_select 0, %s6, %s4
  loop: start=0, step=1, limit=4
  $region2: #{cornet_z_nonbiased_words_forward.9} parent=0 // loop_pre_header
    _
  $region3: #{cornet_z_nonbiased_words_forward.9} parent=0 // loop_header
    %s9 = sphi 0, %s13
    %p10 = scmp.ge.s32.totalorder %s9, 4
    %s19 = sphi 0, %s21
    %s22 = sphi 0, %s19
    %s23 = sphi 0, %s22
    %s39 = sphi 0, %s23
    %s43 = sphi 0, %s43
    %s45 = sphi 0, %s43
    %s46 = sphi 0, %s45
    %s60 = sphi 0, %s46
    %s64 = sphi 0, %s64
    %s66 = sphi 0, %s64
    %s67 = sphi 0, %s66
    %s81 = sphi 0, %s67
    %s87 = sphi 0, %s89
    %s90 = sphi 0, %s87
    %s91 = sphi 0, %s90
    %s107 = sphi 0, %s91
  $region4: #{cornet_z_nonbiased_words_forward.9} parent=0 // loop_header_branch
    %12 = sbr.rel (%p10) target = $region8
  $region5: #{cornet_z_nonbiased_words_forward.9} parent=0 // loop_body
    %s14 = ssub.s32 %s9, 1
    %s15 = ssub.s32 %s9, 2
    %s16 = sadd.s32 %s9, 1
    %s17 = ssub.s32 %s9, %s16
    %p18 = scmp.eq.s32.totalorder %s17, 0
    %s20 = sadd.s32 %s19, 1
    %s21 = scalar_select %p18, %s19, %s20
    %p24 = pneg %p18
    %p25 = scmp.eq.s32.totalorder %s9, 1
    %p26 = por %p24, %p25
    %p27 = scmp.ne.s32.totalorder %s19, %s22
    %p28 = scmp.eq.s32.totalorder %s9, 0
    %p29 = por %p27, %p28
    %p30 = scmp.ne.s32.totalorder %s19, %s22
    %p31 = scmp.eq.s32.totalorder %s14, 1
    %p32 = por %p30, %p31
    %p33 = scmp.ne.s32.totalorder %s22, %s23
    %p34 = scmp.eq.s32.totalorder %s14, 0
    %p35 = por %p33, %p34
    %p36 = scmp.ne.s32.totalorder %s22, %s23
    %p37 = scmp.eq.s32.totalorder %s15, 1
    %p38 = por %p36, %p37
    %p40 = scmp.ne.s32.totalorder %s23, %s39
    %p41 = scmp.eq.s32.totalorder %s15, 0
    %p42 = por %p40, %p41
    %s44 = sadd.s32 %s43, 1
    %p47 = scmp.eq.s32.totalorder %s9, 1
    %p48 = scmp.ne.s32.totalorder %s43, %s45
    %p49 = scmp.eq.s32.totalorder %s9, 0
    %p50 = por %p48, %p49
    %p51 = scmp.ne.s32.totalorder %s43, %s45
    %p52 = scmp.eq.s32.totalorder %s14, 1
    %p53 = por %p51, %p52
    %p54 = scmp.ne.s32.totalorder %s45, %s46
    %p55 = scmp.eq.s32.totalorder %s14, 0
    %p56 = por %p54, %p55
    %p57 = scmp.ne.s32.totalorder %s45, %s46
    %p58 = scmp.eq.s32.totalorder %s15, 1
    %p59 = por %p57, %p58
    %p61 = scmp.ne.s32.totalorder %s46, %s60
    %p62 = scmp.eq.s32.totalorder %s15, 0
    %p63 = por %p61, %p62
    %s65 = sadd.s32 %s64, 1
    %p68 = scmp.eq.s32.totalorder %s9, 1
    %p69 = scmp.ne.s32.totalorder %s64, %s66
    %p70 = scmp.eq.s32.totalorder %s9, 0
    %p71 = por %p69, %p70
    %p72 = scmp.ne.s32.totalorder %s64, %s66
    %p73 = scmp.eq.s32.totalorder %s14, 1
    %p74 = por %p72, %p73
    %p75 = scmp.ne.s32.totalorder %s66, %s67
    %p76 = scmp.eq.s32.totalorder %s14, 0
    %p77 = por %p75, %p76
    %p78 = scmp.ne.s32.totalorder %s66, %s67
    %p79 = scmp.eq.s32.totalorder %s15, 1
    %p80 = por %p78, %p79
    %p82 = scmp.ne.s32.totalorder %s67, %s81
    %p83 = scmp.eq.s32.totalorder %s15, 0
    %p84 = por %p82, %p83
    %s85 = ssub.s32 %s9, %s16
    %p86 = scmp.eq.s32.totalorder %s85, 0
    %s88 = sadd.s32 %s87, 1
    %s89 = scalar_select %p86, %s87, %s88
    %p92 = pneg %p86
    %p93 = scmp.eq.s32.totalorder %s9, 1
    %p94 = por %p92, %p93
    %p95 = scmp.ne.s32.totalorder %s87, %s90
    %p96 = scmp.eq.s32.totalorder %s9, 0
    %p97 = por %p95, %p96
    %p98 = scmp.ne.s32.totalorder %s87, %s90
    %p99 = scmp.eq.s32.totalorder %s14, 1
    %p100 = por %p98, %p99
    %p101 = scmp.ne.s32.totalorder %s90, %s91
    %p102 = scmp.eq.s32.totalorder %s14, 0
    %p103 = por %p101, %p102
    %p104 = scmp.ne.s32.totalorder %s90, %s91
    %p105 = scmp.eq.s32.totalorder %s15, 1
    %p106 = por %p104, %p105
    %p108 = scmp.ne.s32.totalorder %s91, %s107
    %p109 = scmp.eq.s32.totalorder %s15, 0
    %p110 = por %p108, %p109
    %p111 = scmp.le.s32.totalorder 1, %s9
    %p112 = scmp.lt.s32.totalorder %s9, 3
    %p113 = pnand %p111, %p112
    %p114 = pneg %p113
    // Predicated region
    $region9: #{cornet_z_nonbiased_words_forward.9} parent=5 // pred_check
      _
    $region10: #{cornet_z_nonbiased_words_forward.9} parent=5 // pred_check_branch
      %116 = sbr.rel (%p113) target = $region12
    $region11: #{cornet_z_nonbiased_words_forward.9} parent=5 // pred_region
      %s117 = ssub.s32 %s9, 1
      // Predicated region
      $region13: #{cornet_z_nonbiased_words_forward.9} parent=11 // pred_check
        %p118 = pneg %p56
      $region14: #{cornet_z_nonbiased_words_forward.9} parent=11 // pred_check_branch
        %120 = sbr.rel (%p118) target = $region16
      $region15: #{cornet_z_nonbiased_words_forward.9} parent=11 // pred_region
        _
      $region16: #{cornet_z_nonbiased_words_forward.9} parent=11 // pred_fallthru
        _
      // Predicated region
      $region17: #{cornet_z_nonbiased_words_forward.9} parent=11 // pred_check
        %p121 = pneg %p77
      $region18: #{cornet_z_nonbiased_words_forward.9} parent=11 // pred_check_branch
        %123 = sbr.rel (%p121) target = $region20
      $region19: #{cornet_z_nonbiased_words_forward.9} parent=11 // pred_region
        _
      $region20: #{cornet_z_nonbiased_words_forward.9} parent=11 // pred_fallthru
        _
    $region12: #{cornet_z_nonbiased_words_forward.9} parent=5 // pred_fallthru
      _
    %p124 = scmp.lt.s32.totalorder %s9, 2
    // Predicated region
    $region21: #{cornet_z_nonbiased_words_forward.9} parent=5 // pred_check
      %p125 = pneg %p124
    $region22: #{cornet_z_nonbiased_words_forward.9} parent=5 // pred_check_branch
      %127 = sbr.rel (%p125) target = $region24
    $region23: #{cornet_z_nonbiased_words_forward.9} parent=5 // pred_region
      // Predicated region
      $region25: #{cornet_z_nonbiased_words_forward.9} parent=23 // pred_check
        %p128 = pneg %p29
      $region26: #{cornet_z_nonbiased_words_forward.9} parent=23 // pred_check_branch
        %130 = sbr.rel (%p128) target = $region28
      $region27: #{cornet_z_nonbiased_words_forward.9} parent=23 // pred_region
        %s131 = smul.u32 32, %s9
        %p132 = scmp.lt.s32.totalorder %s131, 63
        %s133 = scalar_select %p132, %s131, 63
        %s134 = smul.addr %s133, 2
        %s135 = smul.addr %s134, 4
        %s136 = scalar_lea.vmem %s0, %s135
        %s137 = smul.u32 32, %s9
      $region28: #{cornet_z_nonbiased_words_forward.9} parent=23 // pred_fallthru
        _
    $region24: #{cornet_z_nonbiased_words_forward.9} parent=5 // pred_fallthru
      _
    %p138 = scmp.le.s32.totalorder 1, %s9
    %p139 = scmp.lt.s32.totalorder %s9, 3
    %p140 = pnand %p138, %p139
    %p141 = pneg %p140
    // Predicated region
    $region29: #{cornet_z_nonbiased_words_forward.9} parent=5 // pred_check
      _
    $region30: #{cornet_z_nonbiased_words_forward.9} parent=5 // pred_check_branch
      %143 = sbr.rel (%p140) target = $region32
    $region31: #{cornet_z_nonbiased_words_forward.9} parent=5 // pred_region
      %s144 = ssub.s32 %s9, 1
      %s145 = smul.u32 32, %s14
      %p146 = scmp.lt.s32.totalorder %s145, 63
      %s147 = scalar_select %p146, %s145, 63
      %s148 = smul.addr %s147, 2
      %s149 = smul.addr %s148, 4
      %s150 = scalar_lea.vmem %s0, %s149
      %p151 = pneg %p35
      %p152 = pneg %p32
      %p153 = pneg %p56
      %p154 = pneg %p53
      %p155 = pneg %p77
      %p156 = pneg %p74
      %p157 = pneg %p103
      %p158 = pneg %p100
      %s159 = smul.u32 32, %s14
      %p160 = scmp.lt.s32.totalorder %s159, 63
      %s161 = scalar_select %p160, %s159, 63
      %s162 = smul.addr %s161, 8
      %s163 = scalar_lea.vmem %s3, %s162
      %s164 = smul.u32 32, %s14
      %p165 = scmp.lt.s32.totalorder %s164, 63
      %s166 = scalar_select %p165, %s164, 63
      %s167 = smul.addr %s166, 2
      %s168 = smul.addr %s167, 4
      %s169 = scalar_lea.vmem %s0, %s168
      %s170 = smul.u32 32, %s14
      %s171 = smul.u32 32, %s14
      %p172 = scmp.lt.s32.totalorder %s171, 63
      %s173 = scalar_select %p172, %s171, 63
      %s174 = smul.addr %s173, 8
      %s175 = scalar_lea.vmem %s3, %s174
      %s176 = smul.u32 32, %s14
      %v178 = vld [vmem:[%s169] sm:$0xff]
      %v179 = vld [vmem:[%s169 + $0x8] sm:$0xff]
      %v180 = vld [vmem:[%s169 + $0x10] sm:$0xff]
      %v181 = vld [vmem:[%s169 + $0x18] sm:$0xff]
      %v182 = vld [vmem:[%s169 + $0x20] sm:$0xff]
      %v183 = vld [vmem:[%s169 + $0x28] sm:$0xff]
      %v184 = vld [vmem:[%s169 + $0x30] sm:$0xff]
      %v185 = vld [vmem:[%s169 + $0x38] sm:$0xff]
      %v186 = vld [vmem:[%s169 + $0x40] sm:$0xff]
      %v187 = vld [vmem:[%s169 + $0x48] sm:$0xff]
      %v188 = vld [vmem:[%s169 + $0x50] sm:$0xff]
      %v189 = vld [vmem:[%s169 + $0x58] sm:$0xff]
      %v190 = vld [vmem:[%s169 + $0x60] sm:$0xff]
      %v191 = vld [vmem:[%s169 + $0x68] sm:$0xff]
      %v192 = vld [vmem:[%s169 + $0x70] sm:$0xff]
      %v193 = vld [vmem:[%s169 + $0x78] sm:$0xff]
      %v194 = vld [vmem:[%s169 + $0x80] sm:$0xff]
      %v195 = vld [vmem:[%s169 + $0x88] sm:$0xff]
      %v196 = vld [vmem:[%s169 + $0x90] sm:$0xff]
      %v197 = vld [vmem:[%s169 + $0x98] sm:$0xff]
      %v198 = vld [vmem:[%s169 + $0xa0] sm:$0xff]
      %v199 = vld [vmem:[%s169 + $0xa8] sm:$0xff]
      %v200 = vld [vmem:[%s169 + $0xb0] sm:$0xff]
      %v201 = vld [vmem:[%s169 + $0xb8] sm:$0xff]
      %v202 = vld [vmem:[%s169 + $0xc0] sm:$0xff]
      %v203 = vld [vmem:[%s169 + $0xc8] sm:$0xff]
      %v204 = vld [vmem:[%s169 + $0xd0] sm:$0xff]
      %v205 = vld [vmem:[%s169 + $0xd8] sm:$0xff]
      %v206 = vld [vmem:[%s169 + $0xe0] sm:$0xff]
      %v207 = vld [vmem:[%s169 + $0xe8] sm:$0xff]
      %v208 = vld [vmem:[%s169 + $0xf0] sm:$0xff]
      %v209 = vld [vmem:[%s169 + $0xf8] sm:$0xff]
      %v210 = vld [vmem:[%s1] sm:$0xf]
      %v211 = vld [vmem:[%s1 + $0x4] sm:$0xf]
      %v212 = vld [vmem:[%s1 + $0x8] sm:$0xf]
      %v213 = vld [vmem:[%s1 + $0xc] sm:$0xf]
      %v214 = vld [vmem:[%s1 + $0x10] sm:$0xf]
      %v215 = vld [vmem:[%s1 + $0x14] sm:$0xf]
      %v216 = vld [vmem:[%s1 + $0x18] sm:$0xf]
      %v217 = vld [vmem:[%s1 + $0x1c] sm:$0xf]
      %v218 = vld [vmem:[%s1 + $0x20] sm:$0xf]
      %v219 = vld [vmem:[%s1 + $0x24] sm:$0xf]
      %v220 = vld [vmem:[%s1 + $0x28] sm:$0xf]
      %v221 = vld [vmem:[%s1 + $0x2c] sm:$0xf]
      %v222 = vld [vmem:[%s1 + $0x30] sm:$0xf]
      %v223 = vld [vmem:[%s1 + $0x34] sm:$0xf]
      %v224 = vld [vmem:[%s1 + $0x38] sm:$0xf]
      %v225 = vld [vmem:[%s1 + $0x3c] sm:$0xf]
      %v226 = vld [vmem:[%s1 + $0x40] sm:$0xf]
      %v227 = vld [vmem:[%s1 + $0x44] sm:$0xf]
      %v228 = vld [vmem:[%s1 + $0x48] sm:$0xf]
      %v229 = vld [vmem:[%s1 + $0x4c] sm:$0xf]
      %v230 = vld [vmem:[%s1 + $0x50] sm:$0xf]
      %v231 = vld [vmem:[%s1 + $0x54] sm:$0xf]
      %v232 = vld [vmem:[%s1 + $0x58] sm:$0xf]
      %v233 = vld [vmem:[%s1 + $0x5c] sm:$0xf]
      %v234 = vld [vmem:[%s1 + $0x60] sm:$0xf]
      %v235 = vld [vmem:[%s1 + $0x64] sm:$0xf]
      %v236 = vld [vmem:[%s1 + $0x68] sm:$0xf]
      %v237 = vld [vmem:[%s1 + $0x6c] sm:$0xf]
      %v238 = vld [vmem:[%s1 + $0x70] sm:$0xf]
      %v239 = vld [vmem:[%s1 + $0x74] sm:$0xf]
      %v240 = vld [vmem:[%s1 + $0x78] sm:$0xf]
      %v241 = vld [vmem:[%s1 + $0x7c] sm:$0xf]
      %v242 = vld [vmem:[%s2] sm:$0x1]
      %v244 = vlaneseq
      %v245 = vshrl.u32 %v244, 7
      %v246 = vsub.s32 0, %v245
      %v247 = vrot.slane %v242, %v246
      %v281 = vunpack.c.l.b16 %v178
      %v282 = vunpack.c.h.b16 %v178
      %v283 = vunpack.c.l.b16 %v179
      %v284 = vunpack.c.h.b16 %v179
      %v285 = vunpack.c.l.b16 %v180
      %v286 = vunpack.c.h.b16 %v180
      %v287 = vunpack.c.l.b16 %v181
      %v288 = vunpack.c.h.b16 %v181
      %v289 = vunpack.c.l.b16 %v182
      %v290 = vunpack.c.h.b16 %v182
      %v291 = vunpack.c.l.b16 %v183
      %v292 = vunpack.c.h.b16 %v183
      %v293 = vunpack.c.l.b16 %v184
      %v294 = vunpack.c.h.b16 %v184
      %v295 = vunpack.c.l.b16 %v185
      %v296 = vunpack.c.h.b16 %v185
      %v297 = vunpack.c.l.b16 %v186
      %v298 = vunpack.c.h.b16 %v186
      %v299 = vunpack.c.l.b16 %v187
      %v300 = vunpack.c.h.b16 %v187
      %v301 = vunpack.c.l.b16 %v188
      %v302 = vunpack.c.h.b16 %v188
      %v303 = vunpack.c.l.b16 %v189
      %v304 = vunpack.c.h.b16 %v189
      %v305 = vunpack.c.l.b16 %v190
      %v306 = vunpack.c.h.b16 %v190
      %v307 = vunpack.c.l.b16 %v191
      %v308 = vunpack.c.h.b16 %v191
      %v309 = vunpack.c.l.b16 %v192
      %v310 = vunpack.c.h.b16 %v192
      %v311 = vunpack.c.l.b16 %v193
      %v312 = vunpack.c.h.b16 %v193
      %v313 = vunpack.c.l.b16 %v194
      %v314 = vunpack.c.h.b16 %v194
      %v315 = vunpack.c.l.b16 %v195
      %v316 = vunpack.c.h.b16 %v195
      %v317 = vunpack.c.l.b16 %v196
      %v318 = vunpack.c.h.b16 %v196
      %v319 = vunpack.c.l.b16 %v197
      %v320 = vunpack.c.h.b16 %v197
      %v321 = vunpack.c.l.b16 %v198
      %v322 = vunpack.c.h.b16 %v198
      %v323 = vunpack.c.l.b16 %v199
      %v324 = vunpack.c.h.b16 %v199
      %v325 = vunpack.c.l.b16 %v200
      %v326 = vunpack.c.h.b16 %v200
      %v327 = vunpack.c.l.b16 %v201
      %v328 = vunpack.c.h.b16 %v201
      %v329 = vunpack.c.l.b16 %v202
      %v330 = vunpack.c.h.b16 %v202
      %v331 = vunpack.c.l.b16 %v203
      %v332 = vunpack.c.h.b16 %v203
      %v333 = vunpack.c.l.b16 %v204
      %v334 = vunpack.c.h.b16 %v204
      %v335 = vunpack.c.l.b16 %v205
      %v336 = vunpack.c.h.b16 %v205
      %v337 = vunpack.c.l.b16 %v206
      %v338 = vunpack.c.h.b16 %v206
      %v339 = vunpack.c.l.b16 %v207
      %v340 = vunpack.c.h.b16 %v207
      %v341 = vunpack.c.l.b16 %v208
      %v342 = vunpack.c.h.b16 %v208
      %v343 = vunpack.c.l.b16 %v209
      %v344 = vunpack.c.h.b16 %v209
      %v345 = vpack.c.b16 %v283, %v281
      %v346 = vpack.c.b16 %v284, %v282
      %v347 = vpack.c.b16 %v287, %v285
      %v348 = vpack.c.b16 %v288, %v286
      %v349 = vpack.c.b16 %v291, %v289
      %v350 = vpack.c.b16 %v292, %v290
      %v351 = vpack.c.b16 %v295, %v293
      %v352 = vpack.c.b16 %v296, %v294
      %v353 = vpack.c.b16 %v299, %v297
      %v354 = vpack.c.b16 %v300, %v298
      %v355 = vpack.c.b16 %v303, %v301
      %v356 = vpack.c.b16 %v304, %v302
      %v357 = vpack.c.b16 %v307, %v305
      %v358 = vpack.c.b16 %v308, %v306
      %v359 = vpack.c.b16 %v311, %v309
      %v360 = vpack.c.b16 %v312, %v310
      %v361 = vpack.c.b16 %v315, %v313
      %v362 = vpack.c.b16 %v316, %v314
      %v363 = vpack.c.b16 %v319, %v317
      %v364 = vpack.c.b16 %v320, %v318
      %v365 = vpack.c.b16 %v323, %v321
      %v366 = vpack.c.b16 %v324, %v322
      %v367 = vpack.c.b16 %v327, %v325
      %v368 = vpack.c.b16 %v328, %v326
      %v369 = vpack.c.b16 %v331, %v329
      %v370 = vpack.c.b16 %v332, %v330
      %v371 = vpack.c.b16 %v335, %v333
      %v372 = vpack.c.b16 %v336, %v334
      %v373 = vpack.c.b16 %v339, %v337
      %v374 = vpack.c.b16 %v340, %v338
      %v375 = vpack.c.b16 %v343, %v341
      %v376 = vpack.c.b16 %v344, %v342
      %v441 = vunpack.c.l.b16 %v210
      %v442 = vunpack.c.l.b16 %v211
      %v443 = vunpack.c.l.b16 %v212
      %v444 = vunpack.c.l.b16 %v213
      %v445 = vunpack.c.l.b16 %v214
      %v446 = vunpack.c.l.b16 %v215
      %v447 = vunpack.c.l.b16 %v216
      %v448 = vunpack.c.l.b16 %v217
      %v449 = vunpack.c.l.b16 %v218
      %v450 = vunpack.c.l.b16 %v219
      %v451 = vunpack.c.l.b16 %v220
      %v452 = vunpack.c.l.b16 %v221
      %v453 = vunpack.c.l.b16 %v222
      %v454 = vunpack.c.l.b16 %v223
      %v455 = vunpack.c.l.b16 %v224
      %v456 = vunpack.c.l.b16 %v225
      %v457 = vunpack.c.l.b16 %v226
      %v458 = vunpack.c.l.b16 %v227
      %v459 = vunpack.c.l.b16 %v228
      %v460 = vunpack.c.l.b16 %v229
      %v461 = vunpack.c.l.b16 %v230
      %v462 = vunpack.c.l.b16 %v231
      %v463 = vunpack.c.l.b16 %v232
      %v464 = vunpack.c.l.b16 %v233
      %v465 = vunpack.c.l.b16 %v234
      %v466 = vunpack.c.l.b16 %v235
      %v467 = vunpack.c.l.b16 %v236
      %v468 = vunpack.c.l.b16 %v237
      %v469 = vunpack.c.l.b16 %v238
      %v470 = vunpack.c.l.b16 %v239
      %v471 = vunpack.c.l.b16 %v240
      %v472 = vunpack.c.l.b16 %v241
      %v473 = vpack.c.b16 %v442, %v441
      %v474 = vpack.c.b16 %v444, %v443
      %v475 = vpack.c.b16 %v446, %v445
      %v476 = vpack.c.b16 %v448, %v447
      %v477 = vpack.c.b16 %v450, %v449
      %v478 = vpack.c.b16 %v452, %v451
      %v479 = vpack.c.b16 %v454, %v453
      %v480 = vpack.c.b16 %v456, %v455
      %v481 = vpack.c.b16 %v458, %v457
      %v482 = vpack.c.b16 %v460, %v459
      %v483 = vpack.c.b16 %v462, %v461
      %v484 = vpack.c.b16 %v464, %v463
      %v485 = vpack.c.b16 %v466, %v465
      %v486 = vpack.c.b16 %v468, %v467
      %v487 = vpack.c.b16 %v470, %v469
      %v488 = vpack.c.b16 %v472, %v471
      %505 = vmatprep.subr.bf16.mxu0 0
      %506 = vmatpush1.bf16.msra.mxu0 %v473
      %507 = vmatprep.subr.bf16.mxu0 0
      %508 = vmatpush1.bf16.msra.mxu0 %v474
      %509 = vmatprep.subr.bf16.mxu0 0
      %510 = vmatpush1.bf16.msra.mxu0 %v475
      %511 = vmatprep.subr.bf16.mxu0 0
      %512 = vmatpush1.bf16.msra.mxu0 %v476
      %513 = vmatprep.subr.bf16.mxu0 0
      %514 = vmatpush1.bf16.msra.mxu0 %v477
      %515 = vmatprep.subr.bf16.mxu0 0
      %516 = vmatpush1.bf16.msra.mxu0 %v478
      %517 = vmatprep.subr.bf16.mxu0 0
      %518 = vmatpush1.bf16.msra.mxu0 %v479
      %519 = vmatprep.subr.bf16.mxu0 0
      %520 = vmatpush1.bf16.msra.mxu0 %v480
      %521 = vmatprep.subr.bf16.mxu0 0
      %522 = vmatpush1.bf16.msra.mxu0 %v481
      %523 = vmatprep.subr.bf16.mxu0 0
      %524 = vmatpush1.bf16.msra.mxu0 %v482
      %525 = vmatprep.subr.bf16.mxu0 0
      %526 = vmatpush1.bf16.msra.mxu0 %v483
      %527 = vmatprep.subr.bf16.mxu0 0
      %528 = vmatpush1.bf16.msra.mxu0 %v484
      %529 = vmatprep.subr.bf16.mxu0 0
      %530 = vmatpush1.bf16.msra.mxu0 %v485
      %531 = vmatprep.subr.bf16.mxu0 0
      %532 = vmatpush1.bf16.msra.mxu0 %v486
      %533 = vmatprep.subr.bf16.mxu0 0
      %534 = vmatpush1.bf16.msra.mxu0 %v487
      %535 = vmatprep.subr.bf16.mxu0 0
      %536 = vmatpush1.bf16.msra.mxu0 %v488
      %537 = vmatprep.mubr.bf16.mxu0 %v346
      %538 = vmatmul.mubr.bf16.gmra.mrb[0].mxu0 %v345
      %v539 = vpop.f32.mrb[0].mxu0
      %v540 = vadd.f32 %v247, %v539
      %v541 = vpop.f32.mrb[0].mxu0
      %v542 = vpop.f32.mrb[0].mxu0
      %v543 = vadd.f32 %v247, %v542
      %v544 = vpop.f32.mrb[0].mxu0
      %545 = vmatprep.mubr.bf16.mxu0 %v348
      %546 = vmatmul.mubr.bf16.gmra.mrb[0].mxu0 %v347
      %v547 = vpop.f32.mrb[0].mxu0
      %v548 = vadd.f32 %v247, %v547
      %v549 = vpop.f32.mrb[0].mxu0
      %v550 = vpop.f32.mrb[0].mxu0
      %v551 = vadd.f32 %v247, %v550
      %v552 = vpop.f32.mrb[0].mxu0
      %553 = vmatprep.mubr.bf16.mxu0 %v350
      %554 = vmatmul.mubr.bf16.gmra.mrb[0].mxu0 %v349
      %v555 = vpop.f32.mrb[0].mxu0
      %v556 = vadd.f32 %v247, %v555
      %v557 = vpop.f32.mrb[0].mxu0
      %v558 = vpop.f32.mrb[0].mxu0
      %v559 = vadd.f32 %v247, %v558
      %v560 = vpop.f32.mrb[0].mxu0
      %561 = vmatprep.mubr.bf16.mxu0 %v352
      %562 = vmatmul.mubr.bf16.gmra.mrb[0].mxu0 %v351
      %v563 = vpop.f32.mrb[0].mxu0
      %v564 = vadd.f32 %v247, %v563
      %v565 = vpop.f32.mrb[0].mxu0
      %v566 = vpop.f32.mrb[0].mxu0
      %v567 = vadd.f32 %v247, %v566
      %v568 = vpop.f32.mrb[0].mxu0
      %569 = vmatprep.mubr.bf16.mxu0 %v354
      %570 = vmatmul.mubr.bf16.gmra.mrb[0].mxu0 %v353
      %v571 = vpop.f32.mrb[0].mxu0
      %v572 = vadd.f32 %v247, %v571
      %v573 = vpop.f32.mrb[0].mxu0
      %v574 = vpop.f32.mrb[0].mxu0
      %v575 = vadd.f32 %v247, %v574
      %v576 = vpop.f32.mrb[0].mxu0
      %577 = vmatprep.mubr.bf16.mxu0 %v356
      %578 = vmatmul.mubr.bf16.gmra.mrb[0].mxu0 %v355
      %v579 = vpop.f32.mrb[0].mxu0
      %v580 = vadd.f32 %v247, %v579
      %v581 = vpop.f32.mrb[0].mxu0
      %v582 = vpop.f32.mrb[0].mxu0
      %v583 = vadd.f32 %v247, %v582
      %v584 = vpop.f32.mrb[0].mxu0
      %585 = vmatprep.mubr.bf16.mxu0 %v358
      %586 = vmatmul.mubr.bf16.gmra.mrb[0].mxu0 %v357
      %v587 = vpop.f32.mrb[0].mxu0
      %v588 = vadd.f32 %v247, %v587
      %v589 = vpop.f32.mrb[0].mxu0
      %v590 = vpop.f32.mrb[0].mxu0
      %v591 = vadd.f32 %v247, %v590
      %v592 = vpop.f32.mrb[0].mxu0
      %593 = vmatprep.mubr.bf16.mxu0 %v360
      %594 = vmatmul.mubr.bf16.gmra.mrb[0].mxu0 %v359
      %v595 = vpop.f32.mrb[0].mxu0
      %v596 = vadd.f32 %v247, %v595
      %v597 = vpop.f32.mrb[0].mxu0
      %v598 = vpop.f32.mrb[0].mxu0
      %v599 = vadd.f32 %v247, %v598
      %v600 = vpop.f32.mrb[0].mxu0
      %601 = vmatprep.mubr.bf16.mxu0 %v362
      %602 = vmatmul.mubr.bf16.gmra.mrb[0].mxu0 %v361
      %v603 = vpop.f32.mrb[0].mxu0
      %v604 = vadd.f32 %v247, %v603
      %v605 = vpop.f32.mrb[0].mxu0
      %v606 = vpop.f32.mrb[0].mxu0
      %v607 = vadd.f32 %v247, %v606
      %v608 = vpop.f32.mrb[0].mxu0
      %609 = vmatprep.mubr.bf16.mxu0 %v364
      %610 = vmatmul.mubr.bf16.gmra.mrb[0].mxu0 %v363
      %v611 = vpop.f32.mrb[0].mxu0
      %v612 = vadd.f32 %v247, %v611
      %v613 = vpop.f32.mrb[0].mxu0
      %v614 = vpop.f32.mrb[0].mxu0
      %v615 = vadd.f32 %v247, %v614
      %v616 = vpop.f32.mrb[0].mxu0
      %617 = vmatprep.mubr.bf16.mxu0 %v366
      %618 = vmatmul.mubr.bf16.gmra.mrb[0].mxu0 %v365
      %v619 = vpop.f32.mrb[0].mxu0
      %v620 = vadd.f32 %v247, %v619
      %v621 = vpop.f32.mrb[0].mxu0
      %v622 = vpop.f32.mrb[0].mxu0
      %v623 = vadd.f32 %v247, %v622
      %v624 = vpop.f32.mrb[0].mxu0
      %625 = vmatprep.mubr.bf16.mxu0 %v368
      %626 = vmatmul.mubr.bf16.gmra.mrb[0].mxu0 %v367
      %v627 = vpop.f32.mrb[0].mxu0
      %v628 = vadd.f32 %v247, %v627
      %v629 = vpop.f32.mrb[0].mxu0
      %v630 = vpop.f32.mrb[0].mxu0
      %v631 = vadd.f32 %v247, %v630
      %v632 = vpop.f32.mrb[0].mxu0
      %633 = vmatprep.mubr.bf16.mxu0 %v370
      %634 = vmatmul.mubr.bf16.gmra.mrb[0].mxu0 %v369
      %v635 = vpop.f32.mrb[0].mxu0
      %v636 = vadd.f32 %v247, %v635
      %v637 = vpop.f32.mrb[0].mxu0
      %v638 = vpop.f32.mrb[0].mxu0
      %v639 = vadd.f32 %v247, %v638
      %v640 = vpop.f32.mrb[0].mxu0
      %641 = vmatprep.mubr.bf16.mxu0 %v372
      %642 = vmatmul.mubr.bf16.gmra.mrb[0].mxu0 %v371
      %v643 = vpop.f32.mrb[0].mxu0
      %v644 = vadd.f32 %v247, %v643
      %v645 = vpop.f32.mrb[0].mxu0
      %v646 = vpop.f32.mrb[0].mxu0
      %v647 = vadd.f32 %v247, %v646
      %v648 = vpop.f32.mrb[0].mxu0
      %649 = vmatprep.mubr.bf16.mxu0 %v374
      %650 = vmatmul.mubr.bf16.gmra.mrb[0].mxu0 %v373
      %v651 = vpop.f32.mrb[0].mxu0
      %v652 = vadd.f32 %v247, %v651
      %v653 = vpop.f32.mrb[0].mxu0
      %v654 = vpop.f32.mrb[0].mxu0
      %v655 = vadd.f32 %v247, %v654
      %v656 = vpop.f32.mrb[0].mxu0
      %657 = vmatprep.mubr.bf16.mxu0 %v376
      %658 = vmatmul.mubr.bf16.gmra.mrb[0].mxu0 %v375
      %v659 = vpop.f32.mrb[0].mxu0
      %v660 = vadd.f32 %v247, %v659
      %v661 = vpop.f32.mrb[0].mxu0
      %v662 = vpop.f32.mrb[0].mxu0
      %v663 = vadd.f32 %v247, %v662
      %v664 = vpop.f32.mrb[0].mxu0
      %665 = vdwg.mxu0
      %v666 = vmax.f32 %v540, 0.0
      %v667 = vmax.f32 %v543, 0.0
      %v668 = vmax.f32 %v548, 0.0
      %v669 = vmax.f32 %v551, 0.0
      %v670 = vmax.f32 %v556, 0.0
      %v671 = vmax.f32 %v559, 0.0
      %v672 = vmax.f32 %v564, 0.0
      %v673 = vmax.f32 %v567, 0.0
      %v674 = vmax.f32 %v572, 0.0
      %v675 = vmax.f32 %v575, 0.0
      %v676 = vmax.f32 %v580, 0.0
      %v677 = vmax.f32 %v583, 0.0
      %v678 = vmax.f32 %v588, 0.0
      %v679 = vmax.f32 %v591, 0.0
      %v680 = vmax.f32 %v596, 0.0
      %v681 = vmax.f32 %v599, 0.0
      %v682 = vmax.f32 %v604, 0.0
      %v683 = vmax.f32 %v607, 0.0
      %v684 = vmax.f32 %v612, 0.0
      %v685 = vmax.f32 %v615, 0.0
      %v686 = vmax.f32 %v620, 0.0
      %v687 = vmax.f32 %v623, 0.0
      %v688 = vmax.f32 %v628, 0.0
      %v689 = vmax.f32 %v631, 0.0
      %v690 = vmax.f32 %v636, 0.0
      %v691 = vmax.f32 %v639, 0.0
      %v692 = vmax.f32 %v644, 0.0
      %v693 = vmax.f32 %v647, 0.0
      %v694 = vmax.f32 %v652, 0.0
      %v695 = vmax.f32 %v655, 0.0
      %v696 = vmax.f32 %v660, 0.0
      %v697 = vmax.f32 %v663, 0.0
      %698 = vst [vmem:[%s175] sm:$0xff] %v666
      %699 = vst [vmem:[%s175 + $0x8] sm:$0xff] %v667
      %700 = vst [vmem:[%s175 + $0x10] sm:$0xff] %v668
      %701 = vst [vmem:[%s175 + $0x18] sm:$0xff] %v669
      %702 = vst [vmem:[%s175 + $0x20] sm:$0xff] %v670
      %703 = vst [vmem:[%s175 + $0x28] sm:$0xff] %v671
      %704 = vst [vmem:[%s175 + $0x30] sm:$0xff] %v672
      %705 = vst [vmem:[%s175 + $0x38] sm:$0xff] %v673
      %706 = vst [vmem:[%s175 + $0x40] sm:$0xff] %v674
      %707 = vst [vmem:[%s175 + $0x48] sm:$0xff] %v675
      %708 = vst [vmem:[%s175 + $0x50] sm:$0xff] %v676
      %709 = vst [vmem:[%s175 + $0x58] sm:$0xff] %v677
      %710 = vst [vmem:[%s175 + $0x60] sm:$0xff] %v678
      %711 = vst [vmem:[%s175 + $0x68] sm:$0xff] %v679
      %712 = vst [vmem:[%s175 + $0x70] sm:$0xff] %v680
      %713 = vst [vmem:[%s175 + $0x78] sm:$0xff] %v681
      %714 = vst [vmem:[%s175 + $0x80] sm:$0xff] %v682
      %715 = vst [vmem:[%s175 + $0x88] sm:$0xff] %v683
      %716 = vst [vmem:[%s175 + $0x90] sm:$0xff] %v684
      %717 = vst [vmem:[%s175 + $0x98] sm:$0xff] %v685
      %718 = vst [vmem:[%s175 + $0xa0] sm:$0xff] %v686
      %719 = vst [vmem:[%s175 + $0xa8] sm:$0xff] %v687
      %720 = vst [vmem:[%s175 + $0xb0] sm:$0xff] %v688
      %721 = vst [vmem:[%s175 + $0xb8] sm:$0xff] %v689
      %722 = vst [vmem:[%s175 + $0xc0] sm:$0xff] %v690
      %723 = vst [vmem:[%s175 + $0xc8] sm:$0xff] %v691
      %724 = vst [vmem:[%s175 + $0xd0] sm:$0xff] %v692
      %725 = vst [vmem:[%s175 + $0xd8] sm:$0xff] %v693
      %726 = vst [vmem:[%s175 + $0xe0] sm:$0xff] %v694
      %727 = vst [vmem:[%s175 + $0xe8] sm:$0xff] %v695
      %728 = vst [vmem:[%s175 + $0xf0] sm:$0xff] %v696
      %729 = vst [vmem:[%s175 + $0xf8] sm:$0xff] %v697
      %s730 = smul.u32 32, %s14
      %p731 = scmp.lt.s32.totalorder %s730, 63
      %s732 = scalar_select %p731, %s730, 63
      %s733 = smul.addr %s732, 8
      %s734 = scalar_lea.vmem %s3, %s733
      // Predicated region
      $region33: #{cornet_z_nonbiased_words_forward.9} parent=31 // pred_check
        %p735 = pneg %p100
      $region34: #{cornet_z_nonbiased_words_forward.9} parent=31 // pred_check_branch
        %737 = sbr.rel (%p735) target = $region36
      $region35: #{cornet_z_nonbiased_words_forward.9} parent=31 // pred_region
        %s738 = smul.u32 32, %s14
      $region36: #{cornet_z_nonbiased_words_forward.9} parent=31 // pred_fallthru
        _
    $region32: #{cornet_z_nonbiased_words_forward.9} parent=5 // pred_fallthru
      _
    %p739 = scmp.le.s32.totalorder 2, %s9
    // Predicated region
    $region37: #{cornet_z_nonbiased_words_forward.9} parent=5 // pred_check
      %p740 = pneg %p739
    $region38: #{cornet_z_nonbiased_words_forward.9} parent=5 // pred_check_branch
      %742 = sbr.rel (%p740) target = $region40
    $region39: #{cornet_z_nonbiased_words_forward.9} parent=5 // pred_region
      %s743 = ssub.s32 %s9, 2
      // Predicated region
      $region41: #{cornet_z_nonbiased_words_forward.9} parent=39 // pred_check
        %p744 = pneg %p106
      $region42: #{cornet_z_nonbiased_words_forward.9} parent=39 // pred_check_branch
        %746 = sbr.rel (%p744) target = $region44
      $region43: #{cornet_z_nonbiased_words_forward.9} parent=39 // pred_region
        %s747 = smul.u32 32, %s15
        %p748 = scmp.lt.s32.totalorder %s747, 63
        %s749 = scalar_select %p748, %s747, 63
        %s750 = smul.addr %s749, 8
        %s751 = scalar_lea.vmem %s3, %s750
      $region44: #{cornet_z_nonbiased_words_forward.9} parent=39 // pred_fallthru
        _
    $region40: #{cornet_z_nonbiased_words_forward.9} parent=5 // pred_fallthru
      _
  $region6: #{cornet_z_nonbiased_words_forward.9} parent=0 // loop_footer
    %s13 = sadd.s32 1, %s9
  $region7: #{cornet_z_nonbiased_words_forward.9} parent=0 // loop_footer_branch
    %8 = sbr.rel target = $region3
  $region8: #{cornet_z_nonbiased_words_forward.9} parent=0 // loop_exit
    _

// kernel: cornet_z_nonbiased_words_forward.10
$region0: #{cornet_z_nonbiased_words_forward.10}
  #allocation0 [shape = 'u32[]', space=smem, size = 0x4, offset = 0x4, fixed_abs, tag = 'smem constant byte address 0x4 - core index']
  #allocation1 [shape = 'u32[144,128]{1,0:T(1,128)}', space=vmem, size = 0x12000, scoped, tag = 'internal scratch']
  %s0 = inlined_call_operand.vmem [shape: f32[9,128,64], index: 0, kind: input, shape index: {}]
  %s1 = inlined_call_operand.vmem [shape: f32[128,64], index: 1, kind: output, shape index: {}]
  %s2 = sld [smem:[#allocation0]]
  $region14: #{cornet_z_nonbiased_words_forward.10} parent=0
    _
  %s4 = ssub.s32 1, %s2
  %s5 = scalar_select 0, %s4, %s2
  // Predicated region
  $region2: #{cornet_z_nonbiased_words_forward.10} parent=0 // pred_check
    _
  $region3: #{cornet_z_nonbiased_words_forward.10} parent=0 // pred_check_branch
    %7 = sbr.rel (0) target = $region5
  $region4: #{cornet_z_nonbiased_words_forward.10} parent=0 // pred_region
    _
  $region5: #{cornet_z_nonbiased_words_forward.10} parent=0 // pred_fallthru
    _
  %v8 = vld [vmem:[%s0] sm:$0xff]
  %v9 = vld [vmem:[%s0 + $0x8] sm:$0xff]
  %v10 = vld [vmem:[%s0 + $0x10] sm:$0xff]
  %v11 = vld [vmem:[%s0 + $0x18] sm:$0xff]
  %v12 = vld [vmem:[%s0 + $0x20] sm:$0xff]
  %v13 = vld [vmem:[%s0 + $0x28] sm:$0xff]
  %v14 = vld [vmem:[%s0 + $0x30] sm:$0xff]
  %v15 = vld [vmem:[%s0 + $0x38] sm:$0xff]
  %v16 = vld [vmem:[%s0 + $0x40] sm:$0xff]
  %v17 = vld [vmem:[%s0 + $0x48] sm:$0xff]
  %v18 = vld [vmem:[%s0 + $0x50] sm:$0xff]
  %v19 = vld [vmem:[%s0 + $0x58] sm:$0xff]
  %v20 = vld [vmem:[%s0 + $0x60] sm:$0xff]
  %v21 = vld [vmem:[%s0 + $0x68] sm:$0xff]
  %v22 = vld [vmem:[%s0 + $0x70] sm:$0xff]
  %v23 = vld [vmem:[%s0 + $0x78] sm:$0xff]
  %v24 = vld [vmem:[%s0 + $0x80] sm:$0xff]
  %v25 = vld [vmem:[%s0 + $0x88] sm:$0xff]
  %v26 = vld [vmem:[%s0 + $0x90] sm:$0xff]
  %v27 = vld [vmem:[%s0 + $0x98] sm:$0xff]
  %v28 = vld [vmem:[%s0 + $0xa0] sm:$0xff]
  %v29 = vld [vmem:[%s0 + $0xa8] sm:$0xff]
  %v30 = vld [vmem:[%s0 + $0xb0] sm:$0xff]
  %v31 = vld [vmem:[%s0 + $0xb8] sm:$0xff]
  %v32 = vld [vmem:[%s0 + $0xc0] sm:$0xff]
  %v33 = vld [vmem:[%s0 + $0xc8] sm:$0xff]
  %v34 = vld [vmem:[%s0 + $0xd0] sm:$0xff]
  %v35 = vld [vmem:[%s0 + $0xd8] sm:$0xff]
  %v36 = vld [vmem:[%s0 + $0xe0] sm:$0xff]
  %v37 = vld [vmem:[%s0 + $0xe8] sm:$0xff]
  %v38 = vld [vmem:[%s0 + $0xf0] sm:$0xff]
  %v39 = vld [vmem:[%s0 + $0xf8] sm:$0xff]
  %v40 = vld [vmem:[%s0 + $0x100] sm:$0xff]
  %v41 = vld [vmem:[%s0 + $0x108] sm:$0xff]
  %v42 = vld [vmem:[%s0 + $0x110] sm:$0xff]
  %v43 = vld [vmem:[%s0 + $0x118] sm:$0xff]
  %v44 = vld [vmem:[%s0 + $0x120] sm:$0xff]
  %v45 = vld [vmem:[%s0 + $0x128] sm:$0xff]
  %v46 = vld [vmem:[%s0 + $0x130] sm:$0xff]
  %v47 = vld [vmem:[%s0 + $0x138] sm:$0xff]
  %v48 = vld [vmem:[%s0 + $0x140] sm:$0xff]
  %v49 = vld [vmem:[%s0 + $0x148] sm:$0xff]
  %v50 = vld [vmem:[%s0 + $0x150] sm:$0xff]
  %v51 = vld [vmem:[%s0 + $0x158] sm:$0xff]
  %v52 = vld [vmem:[%s0 + $0x160] sm:$0xff]
  %v53 = vld [vmem:[%s0 + $0x168] sm:$0xff]
  %v54 = vld [vmem:[%s0 + $0x170] sm:$0xff]
  %v55 = vld [vmem:[%s0 + $0x178] sm:$0xff]
  %v56 = vld [vmem:[%s0 + $0x180] sm:$0xff]
  %v57 = vld [vmem:[%s0 + $0x188] sm:$0xff]
  %v58 = vld [vmem:[%s0 + $0x190] sm:$0xff]
  %v59 = vld [vmem:[%s0 + $0x198] sm:$0xff]
  %v60 = vld [vmem:[%s0 + $0x1a0] sm:$0xff]
  %v61 = vld [vmem:[%s0 + $0x1a8] sm:$0xff]
  %v62 = vld [vmem:[%s0 + $0x1b0] sm:$0xff]
  %v63 = vld [vmem:[%s0 + $0x1b8] sm:$0xff]
  %v64 = vld [vmem:[%s0 + $0x1c0] sm:$0xff]
  %v65 = vld [vmem:[%s0 + $0x1c8] sm:$0xff]
  %v66 = vld [vmem:[%s0 + $0x1d0] sm:$0xff]
  %v67 = vld [vmem:[%s0 + $0x1d8] sm:$0xff]
  %v68 = vld [vmem:[%s0 + $0x1e0] sm:$0xff]
  %v69 = vld [vmem:[%s0 + $0x1e8] sm:$0xff]
  %v70 = vld [vmem:[%s0 + $0x1f0] sm:$0xff]
  %v71 = vld [vmem:[%s0 + $0x1f8] sm:$0xff]
  %v72 = vld [vmem:[%s0 + $0x200] sm:$0xff]
  %v73 = vld [vmem:[%s0 + $0x208] sm:$0xff]
  %v74 = vld [vmem:[%s0 + $0x210] sm:$0xff]
  %v75 = vld [vmem:[%s0 + $0x218] sm:$0xff]
  %v76 = vld [vmem:[%s0 + $0x220] sm:$0xff]
  %v77 = vld [vmem:[%s0 + $0x228] sm:$0xff]
  %v78 = vld [vmem:[%s0 + $0x230] sm:$0xff]
  %v79 = vld [vmem:[%s0 + $0x238] sm:$0xff]
  %v80 = vld [vmem:[%s0 + $0x240] sm:$0xff]
  %v81 = vld [vmem:[%s0 + $0x248] sm:$0xff]
  %v82 = vld [vmem:[%s0 + $0x250] sm:$0xff]
  %v83 = vld [vmem:[%s0 + $0x258] sm:$0xff]
  %v84 = vld [vmem:[%s0 + $0x260] sm:$0xff]
  %v85 = vld [vmem:[%s0 + $0x268] sm:$0xff]
  %v86 = vld [vmem:[%s0 + $0x270] sm:$0xff]
  %v87 = vld [vmem:[%s0 + $0x278] sm:$0xff]
  %v88 = vld [vmem:[%s0 + $0x280] sm:$0xff]
  %v89 = vld [vmem:[%s0 + $0x288] sm:$0xff]
  %v90 = vld [vmem:[%s0 + $0x290] sm:$0xff]
  %v91 = vld [vmem:[%s0 + $0x298] sm:$0xff]
  %v92 = vld [vmem:[%s0 + $0x2a0] sm:$0xff]
  %v93 = vld [vmem:[%s0 + $0x2a8] sm:$0xff]
  %v94 = vld [vmem:[%s0 + $0x2b0] sm:$0xff]
  %v95 = vld [vmem:[%s0 + $0x2b8] sm:$0xff]
  %v96 = vld [vmem:[%s0 + $0x2c0] sm:$0xff]
  %v97 = vld [vmem:[%s0 + $0x2c8] sm:$0xff]
  %v98 = vld [vmem:[%s0 + $0x2d0] sm:$0xff]
  %v99 = vld [vmem:[%s0 + $0x2d8] sm:$0xff]
  %v100 = vld [vmem:[%s0 + $0x2e0] sm:$0xff]
  %v101 = vld [vmem:[%s0 + $0x2e8] sm:$0xff]
  %v102 = vld [vmem:[%s0 + $0x2f0] sm:$0xff]
  %v103 = vld [vmem:[%s0 + $0x2f8] sm:$0xff]
  %v104 = vld [vmem:[%s0 + $0x300] sm:$0xff]
  %v105 = vld [vmem:[%s0 + $0x308] sm:$0xff]
  %v106 = vld [vmem:[%s0 + $0x310] sm:$0xff]
  %v107 = vld [vmem:[%s0 + $0x318] sm:$0xff]
  %v108 = vld [vmem:[%s0 + $0x320] sm:$0xff]
  %v109 = vld [vmem:[%s0 + $0x328] sm:$0xff]
  %v110 = vld [vmem:[%s0 + $0x330] sm:$0xff]
  %v111 = vld [vmem:[%s0 + $0x338] sm:$0xff]
  %v112 = vld [vmem:[%s0 + $0x340] sm:$0xff]
  %v113 = vld [vmem:[%s0 + $0x348] sm:$0xff]
  %v114 = vld [vmem:[%s0 + $0x350] sm:$0xff]
  %v115 = vld [vmem:[%s0 + $0x358] sm:$0xff]
  %v116 = vld [vmem:[%s0 + $0x360] sm:$0xff]
  %v117 = vld [vmem:[%s0 + $0x368] sm:$0xff]
  %v118 = vld [vmem:[%s0 + $0x370] sm:$0xff]
  %v119 = vld [vmem:[%s0 + $0x378] sm:$0xff]
  %v120 = vld [vmem:[%s0 + $0x380] sm:$0xff]
  %v121 = vld [vmem:[%s0 + $0x388] sm:$0xff]
  %v122 = vld [vmem:[%s0 + $0x390] sm:$0xff]
  %v123 = vld [vmem:[%s0 + $0x398] sm:$0xff]
  %v124 = vld [vmem:[%s0 + $0x3a0] sm:$0xff]
  %v125 = vld [vmem:[%s0 + $0x3a8] sm:$0xff]
  %v126 = vld [vmem:[%s0 + $0x3b0] sm:$0xff]
  %v127 = vld [vmem:[%s0 + $0x3b8] sm:$0xff]
  %v128 = vld [vmem:[%s0 + $0x3c0] sm:$0xff]
  %v129 = vld [vmem:[%s0 + $0x3c8] sm:$0xff]
  %v130 = vld [vmem:[%s0 + $0x3d0] sm:$0xff]
  %v131 = vld [vmem:[%s0 + $0x3d8] sm:$0xff]
  %v132 = vld [vmem:[%s0 + $0x3e0] sm:$0xff]
  %v133 = vld [vmem:[%s0 + $0x3e8] sm:$0xff]
  %v134 = vld [vmem:[%s0 + $0x3f0] sm:$0xff]
  %v135 = vld [vmem:[%s0 + $0x3f8] sm:$0xff]
  %v136 = vld [vmem:[%s0 + $0x400] sm:$0xff]
  %v137 = vld [vmem:[%s0 + $0x408] sm:$0xff]
  %v138 = vld [vmem:[%s0 + $0x410] sm:$0xff]
  %v139 = vld [vmem:[%s0 + $0x418] sm:$0xff]
  %v140 = vld [vmem:[%s0 + $0x420] sm:$0xff]
  %v141 = vld [vmem:[%s0 + $0x428] sm:$0xff]
  %v142 = vld [vmem:[%s0 + $0x430] sm:$0xff]
  %v143 = vld [vmem:[%s0 + $0x438] sm:$0xff]
  %v144 = vld [vmem:[%s0 + $0x440] sm:$0xff]
  %v145 = vld [vmem:[%s0 + $0x448] sm:$0xff]
  %v146 = vld [vmem:[%s0 + $0x450] sm:$0xff]
  %v147 = vld [vmem:[%s0 + $0x458] sm:$0xff]
  %v148 = vld [vmem:[%s0 + $0x460] sm:$0xff]
  %v149 = vld [vmem:[%s0 + $0x468] sm:$0xff]
  %v150 = vld [vmem:[%s0 + $0x470] sm:$0xff]
  %v151 = vld [vmem:[%s0 + $0x478] sm:$0xff]
  %vm152 = vcmask 523264
  %v153 = vsel %vm152, %v8, -inf
  %v154 = vsel %vm152, %v24, -inf
  %v155 = vmax.f32 %v153, %v154
  %v156 = vsel %vm152, %v40, -inf
  %v157 = vmax.f32 %v155, %v156
  %v158 = vsel %vm152, %v56, -inf
  %v159 = vmax.f32 %v157, %v158
  %v160 = vsel %vm152, %v72, -inf
  %v161 = vmax.f32 %v159, %v160
  %v162 = vsel %vm152, %v88, -inf
  %v163 = vmax.f32 %v161, %v162
  %v164 = vsel %vm152, %v104, -inf
  %v165 = vmax.f32 %v163, %v164
  %v166 = vsel %vm152, %v120, -inf
  %v167 = vmax.f32 %v165, %v166
  %v168 = vsel %vm152, %v136, -inf
  %v169 = vmax.f32 %v167, %v168
  %v170 = vsel %vm152, %v9, -inf
  %v171 = vsel %vm152, %v25, -inf
  %v172 = vmax.f32 %v170, %v171
  %v173 = vsel %vm152, %v41, -inf
  %v174 = vmax.f32 %v172, %v173
  %v175 = vsel %vm152, %v57, -inf
  %v176 = vmax.f32 %v174, %v175
  %v177 = vsel %vm152, %v73, -inf
  %v178 = vmax.f32 %v176, %v177
  %v179 = vsel %vm152, %v89, -inf
  %v180 = vmax.f32 %v178, %v179
  %v181 = vsel %vm152, %v105, -inf
  %v182 = vmax.f32 %v180, %v181
  %v183 = vsel %vm152, %v121, -inf
  %v184 = vmax.f32 %v182, %v183
  %v185 = vsel %vm152, %v137, -inf
  %v186 = vmax.f32 %v184, %v185
  %v187 = vsel %vm152, %v10, -inf
  %v188 = vsel %vm152, %v26, -inf
  %v189 = vmax.f32 %v187, %v188
  %v190 = vsel %vm152, %v42, -inf
  %v191 = vmax.f32 %v189, %v190
  %v192 = vsel %vm152, %v58, -inf
  %v193 = vmax.f32 %v191, %v192
  %v194 = vsel %vm152, %v74, -inf
  %v195 = vmax.f32 %v193, %v194
  %v196 = vsel %vm152, %v90, -inf
  %v197 = vmax.f32 %v195, %v196
  %v198 = vsel %vm152, %v106, -inf
  %v199 = vmax.f32 %v197, %v198
  %v200 = vsel %vm152, %v122, -inf
  %v201 = vmax.f32 %v199, %v200
  %v202 = vsel %vm152, %v138, -inf
  %v203 = vmax.f32 %v201, %v202
  %v204 = vsel %vm152, %v11, -inf
  %v205 = vsel %vm152, %v27, -inf
  %v206 = vmax.f32 %v204, %v205
  %v207 = vsel %vm152, %v43, -inf
  %v208 = vmax.f32 %v206, %v207
  %v209 = vsel %vm152, %v59, -inf
  %v210 = vmax.f32 %v208, %v209
  %v211 = vsel %vm152, %v75, -inf
  %v212 = vmax.f32 %v210, %v211
  %v213 = vsel %vm152, %v91, -inf
  %v214 = vmax.f32 %v212, %v213
  %v215 = vsel %vm152, %v107, -inf
  %v216 = vmax.f32 %v214, %v215
  %v217 = vsel %vm152, %v123, -inf
  %v218 = vmax.f32 %v216, %v217
  %v219 = vsel %vm152, %v139, -inf
  %v220 = vmax.f32 %v218, %v219
  %v221 = vsel %vm152, %v12, -inf
  %v222 = vsel %vm152, %v28, -inf
  %v223 = vmax.f32 %v221, %v222
  %v224 = vsel %vm152, %v44, -inf
  %v225 = vmax.f32 %v223, %v224
  %v226 = vsel %vm152, %v60, -inf
  %v227 = vmax.f32 %v225, %v226
  %v228 = vsel %vm152, %v76, -inf
  %v229 = vmax.f32 %v227, %v228
  %v230 = vsel %vm152, %v92, -inf
  %v231 = vmax.f32 %v229, %v230
  %v232 = vsel %vm152, %v108, -inf
  %v233 = vmax.f32 %v231, %v232
  %v234 = vsel %vm152, %v124, -inf
  %v235 = vmax.f32 %v233, %v234
  %v236 = vsel %vm152, %v140, -inf
  %v237 = vmax.f32 %v235, %v236
  %v238 = vsel %vm152, %v13, -inf
  %v239 = vsel %vm152, %v29, -inf
  %v240 = vmax.f32 %v238, %v239
  %v241 = vsel %vm152, %v45, -inf
  %v242 = vmax.f32 %v240, %v241
  %v243 = vsel %vm152, %v61, -inf
  %v244 = vmax.f32 %v242, %v243
  %v245 = vsel %vm152, %v77, -inf
  %v246 = vmax.f32 %v244, %v245
  %v247 = vsel %vm152, %v93, -inf
  %v248 = vmax.f32 %v246, %v247
  %v249 = vsel %vm152, %v109, -inf
  %v250 = vmax.f32 %v248, %v249
  %v251 = vsel %vm152, %v125, -inf
  %v252 = vmax.f32 %v250, %v251
  %v253 = vsel %vm152, %v141, -inf
  %v254 = vmax.f32 %v252, %v253
  %v255 = vsel %vm152, %v14, -inf
  %v256 = vsel %vm152, %v30, -inf
  %v257 = vmax.f32 %v255, %v256
  %v258 = vsel %vm152, %v46, -inf
  %v259 = vmax.f32 %v257, %v258
  %v260 = vsel %vm152, %v62, -inf
  %v261 = vmax.f32 %v259, %v260
  %v262 = vsel %vm152, %v78, -inf
  %v263 = vmax.f32 %v261, %v262
  %v264 = vsel %vm152, %v94, -inf
  %v265 = vmax.f32 %v263, %v264
  %v266 = vsel %vm152, %v110, -inf
  %v267 = vmax.f32 %v265, %v266
  %v268 = vsel %vm152, %v126, -inf
  %v269 = vmax.f32 %v267, %v268
  %v270 = vsel %vm152, %v142, -inf
  %v271 = vmax.f32 %v269, %v270
  %v272 = vsel %vm152, %v15, -inf
  %v273 = vsel %vm152, %v31, -inf
  %v274 = vmax.f32 %v272, %v273
  %v275 = vsel %vm152, %v47, -inf
  %v276 = vmax.f32 %v274, %v275
  %v277 = vsel %vm152, %v63, -inf
  %v278 = vmax.f32 %v276, %v277
  %v279 = vsel %vm152, %v79, -inf
  %v280 = vmax.f32 %v278, %v279
  %v281 = vsel %vm152, %v95, -inf
  %v282 = vmax.f32 %v280, %v281
  %v283 = vsel %vm152, %v111, -inf
  %v284 = vmax.f32 %v282, %v283
  %v285 = vsel %vm152, %v127, -inf
  %v286 = vmax.f32 %v284, %v285
  %v287 = vsel %vm152, %v143, -inf
  %v288 = vmax.f32 %v286, %v287
  %v289 = vsel %vm152, %v16, -inf
  %v290 = vsel %vm152, %v32, -inf
  %v291 = vmax.f32 %v289, %v290
  %v292 = vsel %vm152, %v48, -inf
  %v293 = vmax.f32 %v291, %v292
  %v294 = vsel %vm152, %v64, -inf
  %v295 = vmax.f32 %v293, %v294
  %v296 = vsel %vm152, %v80, -inf
  %v297 = vmax.f32 %v295, %v296
  %v298 = vsel %vm152, %v96, -inf
  %v299 = vmax.f32 %v297, %v298
  %v300 = vsel %vm152, %v112, -inf
  %v301 = vmax.f32 %v299, %v300
  %v302 = vsel %vm152, %v128, -inf
  %v303 = vmax.f32 %v301, %v302
  %v304 = vsel %vm152, %v144, -inf
  %v305 = vmax.f32 %v303, %v304
  %v306 = vsel %vm152, %v17, -inf
  %v307 = vsel %vm152, %v33, -inf
  %v308 = vmax.f32 %v306, %v307
  %v309 = vsel %vm152, %v49, -inf
  %v310 = vmax.f32 %v308, %v309
  %v311 = vsel %vm152, %v65, -inf
  %v312 = vmax.f32 %v310, %v311
  %v313 = vsel %vm152, %v81, -inf
  %v314 = vmax.f32 %v312, %v313
  %v315 = vsel %vm152, %v97, -inf
  %v316 = vmax.f32 %v314, %v315
  %v317 = vsel %vm152, %v113, -inf
  %v318 = vmax.f32 %v316, %v317
  %v319 = vsel %vm152, %v129, -inf
  %v320 = vmax.f32 %v318, %v319
  %v321 = vsel %vm152, %v145, -inf
  %v322 = vmax.f32 %v320, %v321
  %v323 = vsel %vm152, %v18, -inf
  %v324 = vsel %vm152, %v34, -inf
  %v325 = vmax.f32 %v323, %v324
  %v326 = vsel %vm152, %v50, -inf
  %v327 = vmax.f32 %v325, %v326
  %v328 = vsel %vm152, %v66, -inf
  %v329 = vmax.f32 %v327, %v328
  %v330 = vsel %vm152, %v82, -inf
  %v331 = vmax.f32 %v329, %v330
  %v332 = vsel %vm152, %v98, -inf
  %v333 = vmax.f32 %v331, %v332
  %v334 = vsel %vm152, %v114, -inf
  %v335 = vmax.f32 %v333, %v334
  %v336 = vsel %vm152, %v130, -inf
  %v337 = vmax.f32 %v335, %v336
  %v338 = vsel %vm152, %v146, -inf
  %v339 = vmax.f32 %v337, %v338
  %v340 = vsel %vm152, %v19, -inf
  %v341 = vsel %vm152, %v35, -inf
  %v342 = vmax.f32 %v340, %v341
  %v343 = vsel %vm152, %v51, -inf
  %v344 = vmax.f32 %v342, %v343
  %v345 = vsel %vm152, %v67, -inf
  %v346 = vmax.f32 %v344, %v345
  %v347 = vsel %vm152, %v83, -inf
  %v348 = vmax.f32 %v346, %v347
  %v349 = vsel %vm152, %v99, -inf
  %v350 = vmax.f32 %v348, %v349
  %v351 = vsel %vm152, %v115, -inf
  %v352 = vmax.f32 %v350, %v351
  %v353 = vsel %vm152, %v131, -inf
  %v354 = vmax.f32 %v352, %v353
  %v355 = vsel %vm152, %v147, -inf
  %v356 = vmax.f32 %v354, %v355
  %v357 = vsel %vm152, %v20, -inf
  %v358 = vsel %vm152, %v36, -inf
  %v359 = vmax.f32 %v357, %v358
  %v360 = vsel %vm152, %v52, -inf
  %v361 = vmax.f32 %v359, %v360
  %v362 = vsel %vm152, %v68, -inf
  %v363 = vmax.f32 %v361, %v362
  %v364 = vsel %vm152, %v84, -inf
  %v365 = vmax.f32 %v363, %v364
  %v366 = vsel %vm152, %v100, -inf
  %v367 = vmax.f32 %v365, %v366
  %v368 = vsel %vm152, %v116, -inf
  %v369 = vmax.f32 %v367, %v368
  %v370 = vsel %vm152, %v132, -inf
  %v371 = vmax.f32 %v369, %v370
  %v372 = vsel %vm152, %v148, -inf
  %v373 = vmax.f32 %v371, %v372
  %v374 = vsel %vm152, %v21, -inf
  %v375 = vsel %vm152, %v37, -inf
  %v376 = vmax.f32 %v374, %v375
  %v377 = vsel %vm152, %v53, -inf
  %v378 = vmax.f32 %v376, %v377
  %v379 = vsel %vm152, %v69, -inf
  %v380 = vmax.f32 %v378, %v379
  %v381 = vsel %vm152, %v85, -inf
  %v382 = vmax.f32 %v380, %v381
  %v383 = vsel %vm152, %v101, -inf
  %v384 = vmax.f32 %v382, %v383
  %v385 = vsel %vm152, %v117, -inf
  %v386 = vmax.f32 %v384, %v385
  %v387 = vsel %vm152, %v133, -inf
  %v388 = vmax.f32 %v386, %v387
  %v389 = vsel %vm152, %v149, -inf
  %v390 = vmax.f32 %v388, %v389
  %v391 = vsel %vm152, %v22, -inf
  %v392 = vsel %vm152, %v38, -inf
  %v393 = vmax.f32 %v391, %v392
  %v394 = vsel %vm152, %v54, -inf
  %v395 = vmax.f32 %v393, %v394
  %v396 = vsel %vm152, %v70, -inf
  %v397 = vmax.f32 %v395, %v396
  %v398 = vsel %vm152, %v86, -inf
  %v399 = vmax.f32 %v397, %v398
  %v400 = vsel %vm152, %v102, -inf
  %v401 = vmax.f32 %v399, %v400
  %v402 = vsel %vm152, %v118, -inf
  %v403 = vmax.f32 %v401, %v402
  %v404 = vsel %vm152, %v134, -inf
  %v405 = vmax.f32 %v403, %v404
  %v406 = vsel %vm152, %v150, -inf
  %v407 = vmax.f32 %v405, %v406
  %v408 = vsel %vm152, %v23, -inf
  %v409 = vsel %vm152, %v39, -inf
  %v410 = vmax.f32 %v408, %v409
  %v411 = vsel %vm152, %v55, -inf
  %v412 = vmax.f32 %v410, %v411
  %v413 = vsel %vm152, %v71, -inf
  %v414 = vmax.f32 %v412, %v413
  %v415 = vsel %vm152, %v87, -inf
  %v416 = vmax.f32 %v414, %v415
  %v417 = vsel %vm152, %v103, -inf
  %v418 = vmax.f32 %v416, %v417
  %v419 = vsel %vm152, %v119, -inf
  %v420 = vmax.f32 %v418, %v419
  %v421 = vsel %vm152, %v135, -inf
  %v422 = vmax.f32 %v420, %v421
  %v423 = vsel %vm152, %v151, -inf
  %v424 = vmax.f32 %v422, %v423
  %425 = vst.msk [vmem:[%s1] sm:$0xff] %vm152, %v169
  %426 = vst.msk [vmem:[%s1 + $0x8] sm:$0xff] %vm152, %v186
  %427 = vst.msk [vmem:[%s1 + $0x10] sm:$0xff] %vm152, %v203
  %428 = vst.msk [vmem:[%s1 + $0x18] sm:$0xff] %vm152, %v220
  %429 = vst.msk [vmem:[%s1 + $0x20] sm:$0xff] %vm152, %v237
  %430 = vst.msk [vmem:[%s1 + $0x28] sm:$0xff] %vm152, %v254
  %431 = vst.msk [vmem:[%s1 + $0x30] sm:$0xff] %vm152, %v271
  %432 = vst.msk [vmem:[%s1 + $0x38] sm:$0xff] %vm152, %v288
  %433 = vst.msk [vmem:[%s1 + $0x40] sm:$0xff] %vm152, %v305
  %434 = vst.msk [vmem:[%s1 + $0x48] sm:$0xff] %vm152, %v322
  %435 = vst.msk [vmem:[%s1 + $0x50] sm:$0xff] %vm152, %v339
  %436 = vst.msk [vmem:[%s1 + $0x58] sm:$0xff] %vm152, %v356
  %437 = vst.msk [vmem:[%s1 + $0x60] sm:$0xff] %vm152, %v373
  %438 = vst.msk [vmem:[%s1 + $0x68] sm:$0xff] %vm152, %v390
  %439 = vst.msk [vmem:[%s1 + $0x70] sm:$0xff] %vm152, %v407
  %440 = vst.msk [vmem:[%s1 + $0x78] sm:$0xff] %vm152, %v424
  // Predicated region
  $region6: #{cornet_z_nonbiased_words_forward.10} parent=0 // pred_check
    _
  $region7: #{cornet_z_nonbiased_words_forward.10} parent=0 // pred_check_branch
    %442 = sbr.rel (0) target = $region9
  $region8: #{cornet_z_nonbiased_words_forward.10} parent=0 // pred_region
    _
  $region9: #{cornet_z_nonbiased_words_forward.10} parent=0 // pred_fallthru
    _
  // Predicated region
  $region10: #{cornet_z_nonbiased_words_forward.10} parent=0 // pred_check
    _
  $region11: #{cornet_z_nonbiased_words_forward.10} parent=0 // pred_check_branch
    %444 = sbr.rel (0) target = $region13
  $region12: #{cornet_z_nonbiased_words_forward.10} parent=0 // pred_region
    _
  $region13: #{cornet_z_nonbiased_words_forward.10} parent=0 // pred_fallthru
    _

// kernel: cornet_z_nonbiased_words_forward.11
$region0: #{cornet_z_nonbiased_words_forward.11}
  #allocation0 [shape = 'u32[]', space=smem, size = 0x4, offset = 0x4, fixed_abs, tag = 'smem constant byte address 0x4 - core index']
  #allocation1 [shape = 'u32[144,128]{1,0:T(1,128)}', space=vmem, size = 0x12000, scoped, tag = 'internal scratch']
  %s0 = inlined_call_operand.vmem [shape: bf16[128,640], index: 0, kind: input, shape index: {}]
  %s1 = inlined_call_operand.vmem [shape: bf16[640,128], index: 1, kind: input, shape index: {}]
  %s2 = inlined_call_operand.vmem [shape: f32[1,128], index: 2, kind: input, shape index: {}]
  %s3 = inlined_call_operand.vmem [shape: f32[128,128], index: 3, kind: output, shape index: {}]
  %s4 = sld [smem:[#allocation0]]
  $region22: #{cornet_z_nonbiased_words_forward.11} parent=0
    _
  %s6 = ssub.s32 1, %s4
  %s7 = scalar_select 0, %s6, %s4
  // Predicated region
  $region2: #{cornet_z_nonbiased_words_forward.11} parent=0 // pred_check
    _
  $region3: #{cornet_z_nonbiased_words_forward.11} parent=0 // pred_check_branch
    %9 = sbr.rel (0) target = $region5
  $region4: #{cornet_z_nonbiased_words_forward.11} parent=0 // pred_region
    _
  $region5: #{cornet_z_nonbiased_words_forward.11} parent=0 // pred_fallthru
    _
  // Predicated region
  $region6: #{cornet_z_nonbiased_words_forward.11} parent=0 // pred_check
    _
  $region7: #{cornet_z_nonbiased_words_forward.11} parent=0 // pred_check_branch
    %11 = sbr.rel (0) target = $region9
  $region8: #{cornet_z_nonbiased_words_forward.11} parent=0 // pred_region
    _
  $region9: #{cornet_z_nonbiased_words_forward.11} parent=0 // pred_fallthru
    _
  // Predicated region
  $region10: #{cornet_z_nonbiased_words_forward.11} parent=0 // pred_check
    _
  $region11: #{cornet_z_nonbiased_words_forward.11} parent=0 // pred_check_branch
    %13 = sbr.rel (0) target = $region13
  $region12: #{cornet_z_nonbiased_words_forward.11} parent=0 // pred_region
    _
  $region13: #{cornet_z_nonbiased_words_forward.11} parent=0 // pred_fallthru
    _
  %v15 = vld [vmem:[%s0] sm:$0xff]
  %v16 = vld [vmem:[%s0 + $0x8] sm:$0xff]
  %v17 = vld [vmem:[%s0 + $0x10] sm:$0xf]
  %v18 = vld [vmem:[%s0 + $0x14] sm:$0xff]
  %v19 = vld [vmem:[%s0 + $0x1c] sm:$0xff]
  %v20 = vld [vmem:[%s0 + $0x24] sm:$0xf]
  %v21 = vld [vmem:[%s0 + $0x28] sm:$0xff]
  %v22 = vld [vmem:[%s0 + $0x30] sm:$0xff]
  %v23 = vld [vmem:[%s0 + $0x38] sm:$0xf]
  %v24 = vld [vmem:[%s0 + $0x3c] sm:$0xff]
  %v25 = vld [vmem:[%s0 + $0x44] sm:$0xff]
  %v26 = vld [vmem:[%s0 + $0x4c] sm:$0xf]
  %v27 = vld [vmem:[%s0 + $0x50] sm:$0xff]
  %v28 = vld [vmem:[%s0 + $0x58] sm:$0xff]
  %v29 = vld [vmem:[%s0 + $0x60] sm:$0xf]
  %v30 = vld [vmem:[%s0 + $0x64] sm:$0xff]
  %v31 = vld [vmem:[%s0 + $0x6c] sm:$0xff]
  %v32 = vld [vmem:[%s0 + $0x74] sm:$0xf]
  %v33 = vld [vmem:[%s0 + $0x78] sm:$0xff]
  %v34 = vld [vmem:[%s0 + $0x80] sm:$0xff]
  %v35 = vld [vmem:[%s0 + $0x88] sm:$0xf]
  %v36 = vld [vmem:[%s0 + $0x8c] sm:$0xff]
  %v37 = vld [vmem:[%s0 + $0x94] sm:$0xff]
  %v38 = vld [vmem:[%s0 + $0x9c] sm:$0xf]
  %v39 = vld [vmem:[%s0 + $0xa0] sm:$0xff]
  %v40 = vld [vmem:[%s0 + $0xa8] sm:$0xff]
  %v41 = vld [vmem:[%s0 + $0xb0] sm:$0xf]
  %v42 = vld [vmem:[%s0 + $0xb4] sm:$0xff]
  %v43 = vld [vmem:[%s0 + $0xbc] sm:$0xff]
  %v44 = vld [vmem:[%s0 + $0xc4] sm:$0xf]
  %v45 = vld [vmem:[%s0 + $0xc8] sm:$0xff]
  %v46 = vld [vmem:[%s0 + $0xd0] sm:$0xff]
  %v47 = vld [vmem:[%s0 + $0xd8] sm:$0xf]
  %v48 = vld [vmem:[%s0 + $0xdc] sm:$0xff]
  %v49 = vld [vmem:[%s0 + $0xe4] sm:$0xff]
  %v50 = vld [vmem:[%s0 + $0xec] sm:$0xf]
  %v51 = vld [vmem:[%s0 + $0xf0] sm:$0xff]
  %v52 = vld [vmem:[%s0 + $0xf8] sm:$0xff]
  %v53 = vld [vmem:[%s0 + $0x100] sm:$0xf]
  %v54 = vld [vmem:[%s0 + $0x104] sm:$0xff]
  %v55 = vld [vmem:[%s0 + $0x10c] sm:$0xff]
  %v56 = vld [vmem:[%s0 + $0x114] sm:$0xf]
  %v57 = vld [vmem:[%s0 + $0x118] sm:$0xff]
  %v58 = vld [vmem:[%s0 + $0x120] sm:$0xff]
  %v59 = vld [vmem:[%s0 + $0x128] sm:$0xf]
  %v60 = vld [vmem:[%s0 + $0x12c] sm:$0xff]
  %v61 = vld [vmem:[%s0 + $0x134] sm:$0xff]
  %v62 = vld [vmem:[%s0 + $0x13c] sm:$0xf]
  %v63 = vld [vmem:[%s1] sm:$0xf]
  %v64 = vld [vmem:[%s1 + $0x4] sm:$0xf]
  %v65 = vld [vmem:[%s1 + $0x8] sm:$0xf]
  %v66 = vld [vmem:[%s1 + $0xc] sm:$0xf]
  %v67 = vld [vmem:[%s1 + $0x10] sm:$0xf]
  %v68 = vld [vmem:[%s1 + $0x14] sm:$0xf]
  %v69 = vld [vmem:[%s1 + $0x18] sm:$0xf]
  %v70 = vld [vmem:[%s1 + $0x1c] sm:$0xf]
  %v71 = vld [vmem:[%s1 + $0x20] sm:$0xf]
  %v72 = vld [vmem:[%s1 + $0x24] sm:$0xf]
  %v73 = vld [vmem:[%s1 + $0x28] sm:$0xf]
  %v74 = vld [vmem:[%s1 + $0x2c] sm:$0xf]
  %v75 = vld [vmem:[%s1 + $0x30] sm:$0xf]
  %v76 = vld [vmem:[%s1 + $0x34] sm:$0xf]
  %v77 = vld [vmem:[%s1 + $0x38] sm:$0xf]
  %v78 = vld [vmem:[%s1 + $0x3c] sm:$0xf]
  %v79 = vld [vmem:[%s1 + $0x40] sm:$0xf]
  %v80 = vld [vmem:[%s1 + $0x44] sm:$0xf]
  %v81 = vld [vmem:[%s1 + $0x48] sm:$0xf]
  %v82 = vld [vmem:[%s1 + $0x4c] sm:$0xf]
  %v83 = vld [vmem:[%s1 + $0x50] sm:$0xf]
  %v84 = vld [vmem:[%s1 + $0x54] sm:$0xf]
  %v85 = vld [vmem:[%s1 + $0x58] sm:$0xf]
  %v86 = vld [vmem:[%s1 + $0x5c] sm:$0xf]
  %v87 = vld [vmem:[%s1 + $0x60] sm:$0xf]
  %v88 = vld [vmem:[%s1 + $0x64] sm:$0xf]
  %v89 = vld [vmem:[%s1 + $0x68] sm:$0xf]
  %v90 = vld [vmem:[%s1 + $0x6c] sm:$0xf]
  %v91 = vld [vmem:[%s1 + $0x70] sm:$0xf]
  %v92 = vld [vmem:[%s1 + $0x74] sm:$0xf]
  %v93 = vld [vmem:[%s1 + $0x78] sm:$0xf]
  %v94 = vld [vmem:[%s1 + $0x7c] sm:$0xf]
  %v95 = vld [vmem:[%s1 + $0x80] sm:$0xf]
  %v96 = vld [vmem:[%s1 + $0x84] sm:$0xf]
  %v97 = vld [vmem:[%s1 + $0x88] sm:$0xf]
  %v98 = vld [vmem:[%s1 + $0x8c] sm:$0xf]
  %v99 = vld [vmem:[%s1 + $0x90] sm:$0xf]
  %v100 = vld [vmem:[%s1 + $0x94] sm:$0xf]
  %v101 = vld [vmem:[%s1 + $0x98] sm:$0xf]
  %v102 = vld [vmem:[%s1 + $0x9c] sm:$0xf]
  %v103 = vld [vmem:[%s1 + $0xa0] sm:$0xf]
  %v104 = vld [vmem:[%s1 + $0xa4] sm:$0xf]
  %v105 = vld [vmem:[%s1 + $0xa8] sm:$0xf]
  %v106 = vld [vmem:[%s1 + $0xac] sm:$0xf]
  %v107 = vld [vmem:[%s1 + $0xb0] sm:$0xf]
  %v108 = vld [vmem:[%s1 + $0xb4] sm:$0xf]
  %v109 = vld [vmem:[%s1 + $0xb8] sm:$0xf]
  %v110 = vld [vmem:[%s1 + $0xbc] sm:$0xf]
  %v111 = vld [vmem:[%s1 + $0xc0] sm:$0xf]
  %v112 = vld [vmem:[%s1 + $0xc4] sm:$0xf]
  %v113 = vld [vmem:[%s1 + $0xc8] sm:$0xf]
  %v114 = vld [vmem:[%s1 + $0xcc] sm:$0xf]
  %v115 = vld [vmem:[%s1 + $0xd0] sm:$0xf]
  %v116 = vld [vmem:[%s1 + $0xd4] sm:$0xf]
  %v117 = vld [vmem:[%s1 + $0xd8] sm:$0xf]
  %v118 = vld [vmem:[%s1 + $0xdc] sm:$0xf]
  %v119 = vld [vmem:[%s1 + $0xe0] sm:$0xf]
  %v120 = vld [vmem:[%s1 + $0xe4] sm:$0xf]
  %v121 = vld [vmem:[%s1 + $0xe8] sm:$0xf]
  %v122 = vld [vmem:[%s1 + $0xec] sm:$0xf]
  %v123 = vld [vmem:[%s1 + $0xf0] sm:$0xf]
  %v124 = vld [vmem:[%s1 + $0xf4] sm:$0xf]
  %v125 = vld [vmem:[%s1 + $0xf8] sm:$0xf]
  %v126 = vld [vmem:[%s1 + $0xfc] sm:$0xf]
  %v127 = vld [vmem:[%s1 + $0x100] sm:$0xf]
  %v128 = vld [vmem:[%s1 + $0x104] sm:$0xf]
  %v129 = vld [vmem:[%s1 + $0x108] sm:$0xf]
  %v130 = vld [vmem:[%s1 + $0x10c] sm:$0xf]
  %v131 = vld [vmem:[%s1 + $0x110] sm:$0xf]
  %v132 = vld [vmem:[%s1 + $0x114] sm:$0xf]
  %v133 = vld [vmem:[%s1 + $0x118] sm:$0xf]
  %v134 = vld [vmem:[%s1 + $0x11c] sm:$0xf]
  %v135 = vld [vmem:[%s1 + $0x120] sm:$0xf]
  %v136 = vld [vmem:[%s1 + $0x124] sm:$0xf]
  %v137 = vld [vmem:[%s1 + $0x128] sm:$0xf]
  %v138 = vld [vmem:[%s1 + $0x12c] sm:$0xf]
  %v139 = vld [vmem:[%s1 + $0x130] sm:$0xf]
  %v140 = vld [vmem:[%s1 + $0x134] sm:$0xf]
  %v141 = vld [vmem:[%s1 + $0x138] sm:$0xf]
  %v142 = vld [vmem:[%s1 + $0x13c] sm:$0xf]
  %v143 = vld [vmem:[%s2] sm:$0x1]
  %v145 = vlaneseq
  %v146 = vshrl.u32 %v145, 7
  %v147 = vsub.s32 0, %v146
  %v148 = vrot.slane %v143, %v147
  %v198 = vunpack.c.l.b16 %v15
  %v199 = vunpack.c.h.b16 %v15
  %v200 = vunpack.c.l.b16 %v16
  %v201 = vunpack.c.h.b16 %v16
  %v202 = vunpack.c.l.b16 %v17
  %v203 = vunpack.c.l.b16 %v18
  %v204 = vunpack.c.h.b16 %v18
  %v205 = vunpack.c.l.b16 %v19
  %v206 = vunpack.c.h.b16 %v19
  %v207 = vunpack.c.l.b16 %v20
  %v208 = vunpack.c.l.b16 %v21
  %v209 = vunpack.c.h.b16 %v21
  %v210 = vunpack.c.l.b16 %v22
  %v211 = vunpack.c.h.b16 %v22
  %v212 = vunpack.c.l.b16 %v23
  %v213 = vunpack.c.l.b16 %v24
  %v214 = vunpack.c.h.b16 %v24
  %v215 = vunpack.c.l.b16 %v25
  %v216 = vunpack.c.h.b16 %v25
  %v217 = vunpack.c.l.b16 %v26
  %v218 = vunpack.c.l.b16 %v27
  %v219 = vunpack.c.h.b16 %v27
  %v220 = vunpack.c.l.b16 %v28
  %v221 = vunpack.c.h.b16 %v28
  %v222 = vunpack.c.l.b16 %v29
  %v223 = vunpack.c.l.b16 %v30
  %v224 = vunpack.c.h.b16 %v30
  %v225 = vunpack.c.l.b16 %v31
  %v226 = vunpack.c.h.b16 %v31
  %v227 = vunpack.c.l.b16 %v32
  %v228 = vunpack.c.l.b16 %v33
  %v229 = vunpack.c.h.b16 %v33
  %v230 = vunpack.c.l.b16 %v34
  %v231 = vunpack.c.h.b16 %v34
  %v232 = vunpack.c.l.b16 %v35
  %v233 = vunpack.c.l.b16 %v36
  %v234 = vunpack.c.h.b16 %v36
  %v235 = vunpack.c.l.b16 %v37
  %v236 = vunpack.c.h.b16 %v37
  %v237 = vunpack.c.l.b16 %v38
  %v238 = vunpack.c.l.b16 %v39
  %v239 = vunpack.c.h.b16 %v39
  %v240 = vunpack.c.l.b16 %v40
  %v241 = vunpack.c.h.b16 %v40
  %v242 = vunpack.c.l.b16 %v41
  %v243 = vunpack.c.l.b16 %v42
  %v244 = vunpack.c.h.b16 %v42
  %v245 = vunpack.c.l.b16 %v43
  %v246 = vunpack.c.h.b16 %v43
  %v247 = vunpack.c.l.b16 %v44
  %v248 = vunpack.c.l.b16 %v45
  %v249 = vunpack.c.h.b16 %v45
  %v250 = vunpack.c.l.b16 %v46
  %v251 = vunpack.c.h.b16 %v46
  %v252 = vunpack.c.l.b16 %v47
  %v253 = vunpack.c.l.b16 %v48
  %v254 = vunpack.c.h.b16 %v48
  %v255 = vunpack.c.l.b16 %v49
  %v256 = vunpack.c.h.b16 %v49
  %v257 = vunpack.c.l.b16 %v50
  %v258 = vunpack.c.l.b16 %v51
  %v259 = vunpack.c.h.b16 %v51
  %v260 = vunpack.c.l.b16 %v52
  %v261 = vunpack.c.h.b16 %v52
  %v262 = vunpack.c.l.b16 %v53
  %v263 = vunpack.c.l.b16 %v54
  %v264 = vunpack.c.h.b16 %v54
  %v265 = vunpack.c.l.b16 %v55
  %v266 = vunpack.c.h.b16 %v55
  %v267 = vunpack.c.l.b16 %v56
  %v268 = vunpack.c.l.b16 %v57
  %v269 = vunpack.c.h.b16 %v57
  %v270 = vunpack.c.l.b16 %v58
  %v271 = vunpack.c.h.b16 %v58
  %v272 = vunpack.c.l.b16 %v59
  %v273 = vunpack.c.l.b16 %v60
  %v274 = vunpack.c.h.b16 %v60
  %v275 = vunpack.c.l.b16 %v61
  %v276 = vunpack.c.h.b16 %v61
  %v277 = vunpack.c.l.b16 %v62
  %v278 = vpack.c.b16 %v203, %v198
  %v279 = vpack.c.b16 %v204, %v199
  %v280 = vpack.c.b16 %v205, %v200
  %v281 = vpack.c.b16 %v206, %v201
  %v282 = vpack.c.b16 %v207, %v202
  %v283 = vpack.c.b16 %v213, %v208
  %v284 = vpack.c.b16 %v214, %v209
  %v285 = vpack.c.b16 %v215, %v210
  %v286 = vpack.c.b16 %v216, %v211
  %v287 = vpack.c.b16 %v217, %v212
  %v288 = vpack.c.b16 %v223, %v218
  %v289 = vpack.c.b16 %v224, %v219
  %v290 = vpack.c.b16 %v225, %v220
  %v291 = vpack.c.b16 %v226, %v221
  %v292 = vpack.c.b16 %v227, %v222
  %v293 = vpack.c.b16 %v233, %v228
  %v294 = vpack.c.b16 %v234, %v229
  %v295 = vpack.c.b16 %v235, %v230
  %v296 = vpack.c.b16 %v236, %v231
  %v297 = vpack.c.b16 %v237, %v232
  %v298 = vpack.c.b16 %v243, %v238
  %v299 = vpack.c.b16 %v244, %v239
  %v300 = vpack.c.b16 %v245, %v240
  %v301 = vpack.c.b16 %v246, %v241
  %v302 = vpack.c.b16 %v247, %v242
  %v303 = vpack.c.b16 %v253, %v248
  %v304 = vpack.c.b16 %v254, %v249
  %v305 = vpack.c.b16 %v255, %v250
  %v306 = vpack.c.b16 %v256, %v251
  %v307 = vpack.c.b16 %v257, %v252
  %v308 = vpack.c.b16 %v263, %v258
  %v309 = vpack.c.b16 %v264, %v259
  %v310 = vpack.c.b16 %v265, %v260
  %v311 = vpack.c.b16 %v266, %v261
  %v312 = vpack.c.b16 %v267, %v262
  %v313 = vpack.c.b16 %v273, %v268
  %v314 = vpack.c.b16 %v274, %v269
  %v315 = vpack.c.b16 %v275, %v270
  %v316 = vpack.c.b16 %v276, %v271
  %v317 = vpack.c.b16 %v277, %v272
  %v438 = vunpack.c.l.b16 %v63
  %v439 = vunpack.c.l.b16 %v64
  %v440 = vunpack.c.l.b16 %v65
  %v441 = vunpack.c.l.b16 %v66
  %v442 = vunpack.c.l.b16 %v67
  %v443 = vunpack.c.l.b16 %v68
  %v444 = vunpack.c.l.b16 %v69
  %v445 = vunpack.c.l.b16 %v70
  %v446 = vunpack.c.l.b16 %v71
  %v447 = vunpack.c.l.b16 %v72
  %v448 = vunpack.c.l.b16 %v73
  %v449 = vunpack.c.l.b16 %v74
  %v450 = vunpack.c.l.b16 %v75
  %v451 = vunpack.c.l.b16 %v76
  %v452 = vunpack.c.l.b16 %v77
  %v453 = vunpack.c.l.b16 %v78
  %v454 = vunpack.c.l.b16 %v79
  %v455 = vunpack.c.l.b16 %v80
  %v456 = vunpack.c.l.b16 %v81
  %v457 = vunpack.c.l.b16 %v82
  %v458 = vunpack.c.l.b16 %v83
  %v459 = vunpack.c.l.b16 %v84
  %v460 = vunpack.c.l.b16 %v85
  %v461 = vunpack.c.l.b16 %v86
  %v462 = vunpack.c.l.b16 %v87
  %v463 = vunpack.c.l.b16 %v88
  %v464 = vunpack.c.l.b16 %v89
  %v465 = vunpack.c.l.b16 %v90
  %v466 = vunpack.c.l.b16 %v91
  %v467 = vunpack.c.l.b16 %v92
  %v468 = vunpack.c.l.b16 %v93
  %v469 = vunpack.c.l.b16 %v94
  %v470 = vunpack.c.l.b16 %v95
  %v471 = vunpack.c.l.b16 %v96
  %v472 = vunpack.c.l.b16 %v97
  %v473 = vunpack.c.l.b16 %v98
  %v474 = vunpack.c.l.b16 %v99
  %v475 = vunpack.c.l.b16 %v100
  %v476 = vunpack.c.l.b16 %v101
  %v477 = vunpack.c.l.b16 %v102
  %v478 = vunpack.c.l.b16 %v103
  %v479 = vunpack.c.l.b16 %v104
  %v480 = vunpack.c.l.b16 %v105
  %v481 = vunpack.c.l.b16 %v106
  %v482 = vunpack.c.l.b16 %v107
  %v483 = vunpack.c.l.b16 %v108
  %v484 = vunpack.c.l.b16 %v109
  %v485 = vunpack.c.l.b16 %v110
  %v486 = vunpack.c.l.b16 %v111
  %v487 = vunpack.c.l.b16 %v112
  %v488 = vunpack.c.l.b16 %v113
  %v489 = vunpack.c.l.b16 %v114
  %v490 = vunpack.c.l.b16 %v115
  %v491 = vunpack.c.l.b16 %v116
  %v492 = vunpack.c.l.b16 %v117
  %v493 = vunpack.c.l.b16 %v118
  %v494 = vunpack.c.l.b16 %v119
  %v495 = vunpack.c.l.b16 %v120
  %v496 = vunpack.c.l.b16 %v121
  %v497 = vunpack.c.l.b16 %v122
  %v498 = vunpack.c.l.b16 %v123
  %v499 = vunpack.c.l.b16 %v124
  %v500 = vunpack.c.l.b16 %v125
  %v501 = vunpack.c.l.b16 %v126
  %v502 = vunpack.c.l.b16 %v127
  %v503 = vunpack.c.l.b16 %v128
  %v504 = vunpack.c.l.b16 %v129
  %v505 = vunpack.c.l.b16 %v130
  %v506 = vunpack.c.l.b16 %v131
  %v507 = vunpack.c.l.b16 %v132
  %v508 = vunpack.c.l.b16 %v133
  %v509 = vunpack.c.l.b16 %v134
  %v510 = vunpack.c.l.b16 %v135
  %v511 = vunpack.c.l.b16 %v136
  %v512 = vunpack.c.l.b16 %v137
  %v513 = vunpack.c.l.b16 %v138
  %v514 = vunpack.c.l.b16 %v139
  %v515 = vunpack.c.l.b16 %v140
  %v516 = vunpack.c.l.b16 %v141
  %v517 = vunpack.c.l.b16 %v142
  %v518 = vpack.c.b16 %v439, %v438
  %v519 = vpack.c.b16 %v441, %v440
  %v520 = vpack.c.b16 %v443, %v442
  %v521 = vpack.c.b16 %v445, %v444
  %v522 = vpack.c.b16 %v447, %v446
  %v523 = vpack.c.b16 %v449, %v448
  %v524 = vpack.c.b16 %v451, %v450
  %v525 = vpack.c.b16 %v453, %v452
  %v526 = vpack.c.b16 %v455, %v454
  %v527 = vpack.c.b16 %v457, %v456
  %v528 = vpack.c.b16 %v459, %v458
  %v529 = vpack.c.b16 %v461, %v460
  %v530 = vpack.c.b16 %v463, %v462
  %v531 = vpack.c.b16 %v465, %v464
  %v532 = vpack.c.b16 %v467, %v466
  %v533 = vpack.c.b16 %v469, %v468
  %v534 = vpack.c.b16 %v471, %v470
  %v535 = vpack.c.b16 %v473, %v472
  %v536 = vpack.c.b16 %v475, %v474
  %v537 = vpack.c.b16 %v477, %v476
  %v538 = vpack.c.b16 %v479, %v478
  %v539 = vpack.c.b16 %v481, %v480
  %v540 = vpack.c.b16 %v483, %v482
  %v541 = vpack.c.b16 %v485, %v484
  %v542 = vpack.c.b16 %v487, %v486
  %v543 = vpack.c.b16 %v489, %v488
  %v544 = vpack.c.b16 %v491, %v490
  %v545 = vpack.c.b16 %v493, %v492
  %v546 = vpack.c.b16 %v495, %v494
  %v547 = vpack.c.b16 %v497, %v496
  %v548 = vpack.c.b16 %v499, %v498
  %v549 = vpack.c.b16 %v501, %v500
  %v550 = vpack.c.b16 %v503, %v502
  %v551 = vpack.c.b16 %v505, %v504
  %v552 = vpack.c.b16 %v507, %v506
  %v553 = vpack.c.b16 %v509, %v508
  %v554 = vpack.c.b16 %v511, %v510
  %v555 = vpack.c.b16 %v513, %v512
  %v556 = vpack.c.b16 %v515, %v514
  %v557 = vpack.c.b16 %v517, %v516
  %598 = vmatprep.subr.bf16.mxu0 0
  %599 = vmatpush1.bf16.msra.mxu0 %v518
  %600 = vmatprep.subr.bf16.mxu0 0
  %601 = vmatpush1.bf16.msra.mxu0 %v519
  %602 = vmatprep.subr.bf16.mxu0 0
  %603 = vmatpush1.bf16.msra.mxu0 %v520
  %604 = vmatprep.subr.bf16.mxu0 0
  %605 = vmatpush1.bf16.msra.mxu0 %v521
  %606 = vmatprep.subr.bf16.mxu0 0
  %607 = vmatpush1.bf16.msra.mxu0 %v522
  %608 = vmatprep.subr.bf16.mxu0 0
  %609 = vmatpush1.bf16.msra.mxu0 %v523
  %610 = vmatprep.subr.bf16.mxu0 0
  %611 = vmatpush1.bf16.msra.mxu0 %v524
  %612 = vmatprep.subr.bf16.mxu0 0
  %613 = vmatpush1.bf16.msra.mxu0 %v525
  %614 = vmatprep.subr.bf16.mxu0 0
  %615 = vmatpush1.bf16.msra.mxu0 %v526
  %616 = vmatprep.subr.bf16.mxu0 0
  %617 = vmatpush1.bf16.msra.mxu0 %v527
  %618 = vmatprep.subr.bf16.mxu0 0
  %619 = vmatpush1.bf16.msra.mxu0 %v528
  %620 = vmatprep.subr.bf16.mxu0 0
  %621 = vmatpush1.bf16.msra.mxu0 %v529
  %622 = vmatprep.subr.bf16.mxu0 0
  %623 = vmatpush1.bf16.msra.mxu0 %v530
  %624 = vmatprep.subr.bf16.mxu0 0
  %625 = vmatpush1.bf16.msra.mxu0 %v531
  %626 = vmatprep.subr.bf16.mxu0 0
  %627 = vmatpush1.bf16.msra.mxu0 %v532
  %628 = vmatprep.subr.bf16.mxu0 0
  %629 = vmatpush1.bf16.msra.mxu0 %v533
  %630 = vmatprep.mubr.bf16.mxu0 %v279
  %631 = vmatmul.mubr.bf16.gmra.mrb[0].mxu0 %v278
  %v632 = vpop.f32.mrb[0].mxu0
  %v633 = vadd.f32 %v148, %v632
  %v634 = vpop.f32.mrb[0].mxu0
  %v635 = vpop.f32.mrb[0].mxu0
  %v636 = vadd.f32 %v148, %v635
  %v637 = vpop.f32.mrb[0].mxu0
  %638 = vmatprep.mubr.bf16.mxu0 %v284
  %639 = vmatmul.mubr.bf16.gmra.mrb[0].mxu0 %v283
  %v640 = vpop.f32.mrb[0].mxu0
  %v641 = vadd.f32 %v148, %v640
  %v642 = vpop.f32.mrb[0].mxu0
  %v643 = vpop.f32.mrb[0].mxu0
  %v644 = vadd.f32 %v148, %v643
  %v645 = vpop.f32.mrb[0].mxu0
  %646 = vmatprep.mubr.bf16.mxu0 %v289
  %647 = vmatmul.mubr.bf16.gmra.mrb[0].mxu0 %v288
  %v648 = vpop.f32.mrb[0].mxu0
  %v649 = vadd.f32 %v148, %v648
  %v650 = vpop.f32.mrb[0].mxu0
  %v651 = vpop.f32.mrb[0].mxu0
  %v652 = vadd.f32 %v148, %v651
  %v653 = vpop.f32.mrb[0].mxu0
  %654 = vmatprep.mubr.bf16.mxu0 %v294
  %655 = vmatmul.mubr.bf16.gmra.mrb[0].mxu0 %v293
  %v656 = vpop.f32.mrb[0].mxu0
  %v657 = vadd.f32 %v148, %v656
  %v658 = vpop.f32.mrb[0].mxu0
  %v659 = vpop.f32.mrb[0].mxu0
  %v660 = vadd.f32 %v148, %v659
  %v661 = vpop.f32.mrb[0].mxu0
  %662 = vmatprep.mubr.bf16.mxu0 %v299
  %663 = vmatmul.mubr.bf16.gmra.mrb[0].mxu0 %v298
  %v664 = vpop.f32.mrb[0].mxu0
  %v665 = vadd.f32 %v148, %v664
  %v666 = vpop.f32.mrb[0].mxu0
  %v667 = vpop.f32.mrb[0].mxu0
  %v668 = vadd.f32 %v148, %v667
  %v669 = vpop.f32.mrb[0].mxu0
  %670 = vmatprep.mubr.bf16.mxu0 %v304
  %671 = vmatmul.mubr.bf16.gmra.mrb[0].mxu0 %v303
  %v672 = vpop.f32.mrb[0].mxu0
  %v673 = vadd.f32 %v148, %v672
  %v674 = vpop.f32.mrb[0].mxu0
  %v675 = vpop.f32.mrb[0].mxu0
  %v676 = vadd.f32 %v148, %v675
  %v677 = vpop.f32.mrb[0].mxu0
  %678 = vmatprep.mubr.bf16.mxu0 %v309
  %679 = vmatmul.mubr.bf16.gmra.mrb[0].mxu0 %v308
  %v680 = vpop.f32.mrb[0].mxu0
  %v681 = vadd.f32 %v148, %v680
  %v682 = vpop.f32.mrb[0].mxu0
  %v683 = vpop.f32.mrb[0].mxu0
  %v684 = vadd.f32 %v148, %v683
  %v685 = vpop.f32.mrb[0].mxu0
  %686 = vmatprep.mubr.bf16.mxu0 %v314
  %687 = vmatmul.mubr.bf16.gmra.mrb[0].mxu0 %v313
  %v688 = vpop.f32.mrb[0].mxu0
  %v689 = vadd.f32 %v148, %v688
  %v690 = vpop.f32.mrb[0].mxu0
  %v691 = vpop.f32.mrb[0].mxu0
  %v692 = vadd.f32 %v148, %v691
  %v693 = vpop.f32.mrb[0].mxu0
  %694 = vdwg.mxu0
  %695 = vmatprep.subr.bf16.mxu0 0
  %696 = vmatpush1.bf16.msra.mxu0 %v534
  %697 = vmatprep.subr.bf16.mxu0 0
  %698 = vmatpush1.bf16.msra.mxu0 %v535
  %699 = vmatprep.subr.bf16.mxu0 0
  %700 = vmatpush1.bf16.msra.mxu0 %v536
  %701 = vmatprep.subr.bf16.mxu0 0
  %702 = vmatpush1.bf16.msra.mxu0 %v537
  %703 = vmatprep.subr.bf16.mxu0 0
  %704 = vmatpush1.bf16.msra.mxu0 %v538
  %705 = vmatprep.subr.bf16.mxu0 0
  %706 = vmatpush1.bf16.msra.mxu0 %v539
  %707 = vmatprep.subr.bf16.mxu0 0
  %708 = vmatpush1.bf16.msra.mxu0 %v540
  %709 = vmatprep.subr.bf16.mxu0 0
  %710 = vmatpush1.bf16.msra.mxu0 %v541
  %711 = vmatprep.subr.bf16.mxu0 0
  %712 = vmatpush1.bf16.msra.mxu0 %v542
  %713 = vmatprep.subr.bf16.mxu0 0
  %714 = vmatpush1.bf16.msra.mxu0 %v543
  %715 = vmatprep.subr.bf16.mxu0 0
  %716 = vmatpush1.bf16.msra.mxu0 %v544
  %717 = vmatprep.subr.bf16.mxu0 0
  %718 = vmatpush1.bf16.msra.mxu0 %v545
  %719 = vmatprep.subr.bf16.mxu0 0
  %720 = vmatpush1.bf16.msra.mxu0 %v546
  %721 = vmatprep.subr.bf16.mxu0 0
  %722 = vmatpush1.bf16.msra.mxu0 %v547
  %723 = vmatprep.subr.bf16.mxu0 0
  %724 = vmatpush1.bf16.msra.mxu0 %v548
  %725 = vmatprep.subr.bf16.mxu0 0
  %726 = vmatpush1.bf16.msra.mxu0 %v549
  %727 = vmatprep.mubr.bf16.mxu0 %v281
  %728 = vmatmul.mubr.bf16.gmra.mrb[0].mxu0 %v280
  %v729 = vpop.f32.mrb[0].mxu0
  %v730 = vadd.f32 %v633, %v729
  %v731 = vpop.f32.mrb[0].mxu0
  %v732 = vpop.f32.mrb[0].mxu0
  %v733 = vadd.f32 %v636, %v732
  %v734 = vpop.f32.mrb[0].mxu0
  %735 = vmatprep.mubr.bf16.mxu0 %v286
  %736 = vmatmul.mubr.bf16.gmra.mrb[0].mxu0 %v285
  %v737 = vpop.f32.mrb[0].mxu0
  %v738 = vadd.f32 %v641, %v737
  %v739 = vpop.f32.mrb[0].mxu0
  %v740 = vpop.f32.mrb[0].mxu0
  %v741 = vadd.f32 %v644, %v740
  %v742 = vpop.f32.mrb[0].mxu0
  %743 = vmatprep.mubr.bf16.mxu0 %v291
  %744 = vmatmul.mubr.bf16.gmra.mrb[0].mxu0 %v290
  %v745 = vpop.f32.mrb[0].mxu0
  %v746 = vadd.f32 %v649, %v745
  %v747 = vpop.f32.mrb[0].mxu0
  %v748 = vpop.f32.mrb[0].mxu0
  %v749 = vadd.f32 %v652, %v748
  %v750 = vpop.f32.mrb[0].mxu0
  %751 = vmatprep.mubr.bf16.mxu0 %v296
  %752 = vmatmul.mubr.bf16.gmra.mrb[0].mxu0 %v295
  %v753 = vpop.f32.mrb[0].mxu0
  %v754 = vadd.f32 %v657, %v753
  %v755 = vpop.f32.mrb[0].mxu0
  %v756 = vpop.f32.mrb[0].mxu0
  %v757 = vadd.f32 %v660, %v756
  %v758 = vpop.f32.mrb[0].mxu0
  %759 = vmatprep.mubr.bf16.mxu0 %v301
  %760 = vmatmul.mubr.bf16.gmra.mrb[0].mxu0 %v300
  %v761 = vpop.f32.mrb[0].mxu0
  %v762 = vadd.f32 %v665, %v761
  %v763 = vpop.f32.mrb[0].mxu0
  %v764 = vpop.f32.mrb[0].mxu0
  %v765 = vadd.f32 %v668, %v764
  %v766 = vpop.f32.mrb[0].mxu0
  %767 = vmatprep.mubr.bf16.mxu0 %v306
  %768 = vmatmul.mubr.bf16.gmra.mrb[0].mxu0 %v305
  %v769 = vpop.f32.mrb[0].mxu0
  %v770 = vadd.f32 %v673, %v769
  %v771 = vpop.f32.mrb[0].mxu0
  %v772 = vpop.f32.mrb[0].mxu0
  %v773 = vadd.f32 %v676, %v772
  %v774 = vpop.f32.mrb[0].mxu0
  %775 = vmatprep.mubr.bf16.mxu0 %v311
  %776 = vmatmul.mubr.bf16.gmra.mrb[0].mxu0 %v310
  %v777 = vpop.f32.mrb[0].mxu0
  %v778 = vadd.f32 %v681, %v777
  %v779 = vpop.f32.mrb[0].mxu0
  %v780 = vpop.f32.mrb[0].mxu0
  %v781 = vadd.f32 %v684, %v780
  %v782 = vpop.f32.mrb[0].mxu0
  %783 = vmatprep.mubr.bf16.mxu0 %v316
  %784 = vmatmul.mubr.bf16.gmra.mrb[0].mxu0 %v315
  %v785 = vpop.f32.mrb[0].mxu0
  %v786 = vadd.f32 %v689, %v785
  %v787 = vpop.f32.mrb[0].mxu0
  %v788 = vpop.f32.mrb[0].mxu0
  %v789 = vadd.f32 %v692, %v788
  %v790 = vpop.f32.mrb[0].mxu0
  %791 = vdwg.mxu0
  %792 = vmatprep.subr.bf16.mxu0 0
  %793 = vmatpush1.bf16.msra.mxu0 %v550
  %794 = vmatprep.subr.bf16.mxu0 0
  %795 = vmatpush1.bf16.msra.mxu0 %v551
  %796 = vmatprep.subr.bf16.mxu0 0
  %797 = vmatpush1.bf16.msra.mxu0 %v552
  %798 = vmatprep.subr.bf16.mxu0 0
  %799 = vmatpush1.bf16.msra.mxu0 %v553
  %800 = vmatprep.subr.bf16.mxu0 0
  %801 = vmatpush1.bf16.msra.mxu0 %v554
  %802 = vmatprep.subr.bf16.mxu0 0
  %803 = vmatpush1.bf16.msra.mxu0 %v555
  %804 = vmatprep.subr.bf16.mxu0 0
  %805 = vmatpush1.bf16.msra.mxu0 %v556
  %806 = vmatprep.subr.bf16.mxu0 0
  %807 = vmatpush1.bf16.msra.mxu0 %v557
  %808 = vmatprep.subr.bf16.mxu0 0
  %809 = vmatpush1.bf16.msra.mxu0 0
  %810 = vmatprep.subr.bf16.mxu0 0
  %811 = vmatpush1.bf16.msra.mxu0 0
  %812 = vmatprep.subr.bf16.mxu0 0
  %813 = vmatpush1.bf16.msra.mxu0 0
  %814 = vmatprep.subr.bf16.mxu0 0
  %815 = vmatpush1.bf16.msra.mxu0 0
  %816 = vmatprep.subr.bf16.mxu0 0
  %817 = vmatpush1.bf16.msra.mxu0 0
  %818 = vmatprep.subr.bf16.mxu0 0
  %819 = vmatpush1.bf16.msra.mxu0 0
  %820 = vmatprep.subr.bf16.mxu0 0
  %821 = vmatpush1.bf16.msra.mxu0 0
  %822 = vmatprep.subr.bf16.mxu0 0
  %823 = vmatpush1.bf16.msra.mxu0 0
  %824 = vmatprep.mubr.bf16.mxu0 0
  %825 = vmatmul.mubr.bf16.gmra.mrb[0].mxu0 %v282
  %v826 = vpop.f32.mrb[0].mxu0
  %v827 = vadd.f32 %v730, %v826
  %v828 = vpop.f32.mrb[0].mxu0
  %v829 = vpop.f32.mrb[0].mxu0
  %v830 = vadd.f32 %v733, %v829
  %v831 = vpop.f32.mrb[0].mxu0
  %832 = vmatprep.mubr.bf16.mxu0 0
  %833 = vmatmul.mubr.bf16.gmra.mrb[0].mxu0 %v287
  %v834 = vpop.f32.mrb[0].mxu0
  %v835 = vadd.f32 %v738, %v834
  %v836 = vpop.f32.mrb[0].mxu0
  %v837 = vpop.f32.mrb[0].mxu0
  %v838 = vadd.f32 %v741, %v837
  %v839 = vpop.f32.mrb[0].mxu0
  %840 = vmatprep.mubr.bf16.mxu0 0
  %841 = vmatmul.mubr.bf16.gmra.mrb[0].mxu0 %v292
  %v842 = vpop.f32.mrb[0].mxu0
  %v843 = vadd.f32 %v746, %v842
  %v844 = vpop.f32.mrb[0].mxu0
  %v845 = vpop.f32.mrb[0].mxu0
  %v846 = vadd.f32 %v749, %v845
  %v847 = vpop.f32.mrb[0].mxu0
  %848 = vmatprep.mubr.bf16.mxu0 0
  %849 = vmatmul.mubr.bf16.gmra.mrb[0].mxu0 %v297
  %v850 = vpop.f32.mrb[0].mxu0
  %v851 = vadd.f32 %v754, %v850
  %v852 = vpop.f32.mrb[0].mxu0
  %v853 = vpop.f32.mrb[0].mxu0
  %v854 = vadd.f32 %v757, %v853
  %v855 = vpop.f32.mrb[0].mxu0
  %856 = vmatprep.mubr.bf16.mxu0 0
  %857 = vmatmul.mubr.bf16.gmra.mrb[0].mxu0 %v302
  %v858 = vpop.f32.mrb[0].mxu0
  %v859 = vadd.f32 %v762, %v858
  %v860 = vpop.f32.mrb[0].mxu0
  %v861 = vpop.f32.mrb[0].mxu0
  %v862 = vadd.f32 %v765, %v861
  %v863 = vpop.f32.mrb[0].mxu0
  %864 = vmatprep.mubr.bf16.mxu0 0
  %865 = vmatmul.mubr.bf16.gmra.mrb[0].mxu0 %v307
  %v866 = vpop.f32.mrb[0].mxu0
  %v867 = vadd.f32 %v770, %v866
  %v868 = vpop.f32.mrb[0].mxu0
  %v869 = vpop.f32.mrb[0].mxu0
  %v870 = vadd.f32 %v773, %v869
  %v871 = vpop.f32.mrb[0].mxu0
  %872 = vmatprep.mubr.bf16.mxu0 0
  %873 = vmatmul.mubr.bf16.gmra.mrb[0].mxu0 %v312
  %v874 = vpop.f32.mrb[0].mxu0
  %v875 = vadd.f32 %v778, %v874
  %v876 = vpop.f32.mrb[0].mxu0
  %v877 = vpop.f32.mrb[0].mxu0
  %v878 = vadd.f32 %v781, %v877
  %v879 = vpop.f32.mrb[0].mxu0
  %880 = vmatprep.mubr.bf16.mxu0 0
  %881 = vmatmul.mubr.bf16.gmra.mrb[0].mxu0 %v317
  %v882 = vpop.f32.mrb[0].mxu0
  %v883 = vadd.f32 %v786, %v882
  %v884 = vpop.f32.mrb[0].mxu0
  %v885 = vpop.f32.mrb[0].mxu0
  %v886 = vadd.f32 %v789, %v885
  %v887 = vpop.f32.mrb[0].mxu0
  %888 = vdwg.mxu0
  %v889 = vmax.f32 %v827, 0.0
  %v890 = vmax.f32 %v830, 0.0
  %v891 = vmax.f32 %v835, 0.0
  %v892 = vmax.f32 %v838, 0.0
  %v893 = vmax.f32 %v843, 0.0
  %v894 = vmax.f32 %v846, 0.0
  %v895 = vmax.f32 %v851, 0.0
  %v896 = vmax.f32 %v854, 0.0
  %v897 = vmax.f32 %v859, 0.0
  %v898 = vmax.f32 %v862, 0.0
  %v899 = vmax.f32 %v867, 0.0
  %v900 = vmax.f32 %v870, 0.0
  %v901 = vmax.f32 %v875, 0.0
  %v902 = vmax.f32 %v878, 0.0
  %v903 = vmax.f32 %v883, 0.0
  %v904 = vmax.f32 %v886, 0.0
  %905 = vst [vmem:[%s3] sm:$0xff] %v889
  %906 = vst [vmem:[%s3 + $0x8] sm:$0xff] %v890
  %907 = vst [vmem:[%s3 + $0x10] sm:$0xff] %v891
  %908 = vst [vmem:[%s3 + $0x18] sm:$0xff] %v892
  %909 = vst [vmem:[%s3 + $0x20] sm:$0xff] %v893
  %910 = vst [vmem:[%s3 + $0x28] sm:$0xff] %v894
  %911 = vst [vmem:[%s3 + $0x30] sm:$0xff] %v895
  %912 = vst [vmem:[%s3 + $0x38] sm:$0xff] %v896
  %913 = vst [vmem:[%s3 + $0x40] sm:$0xff] %v897
  %914 = vst [vmem:[%s3 + $0x48] sm:$0xff] %v898
  %915 = vst [vmem:[%s3 + $0x50] sm:$0xff] %v899
  %916 = vst [vmem:[%s3 + $0x58] sm:$0xff] %v900
  %917 = vst [vmem:[%s3 + $0x60] sm:$0xff] %v901
  %918 = vst [vmem:[%s3 + $0x68] sm:$0xff] %v902
  %919 = vst [vmem:[%s3 + $0x70] sm:$0xff] %v903
  %920 = vst [vmem:[%s3 + $0x78] sm:$0xff] %v904
  // Predicated region
  $region14: #{cornet_z_nonbiased_words_forward.11} parent=0 // pred_check
    _
  $region15: #{cornet_z_nonbiased_words_forward.11} parent=0 // pred_check_branch
    %922 = sbr.rel (0) target = $region17
  $region16: #{cornet_z_nonbiased_words_forward.11} parent=0 // pred_region
    _
  $region17: #{cornet_z_nonbiased_words_forward.11} parent=0 // pred_fallthru
    _
  // Predicated region
  $region18: #{cornet_z_nonbiased_words_forward.11} parent=0 // pred_check
    _
  $region19: #{cornet_z_nonbiased_words_forward.11} parent=0 // pred_check_branch
    %924 = sbr.rel (0) target = $region21
  $region20: #{cornet_z_nonbiased_words_forward.11} parent=0 // pred_region
    _
  $region21: #{cornet_z_nonbiased_words_forward.11} parent=0 // pred_fallthru
    _

// kernel: cornet_z_nonbiased_words_forward.12
$region0: #{cornet_z_nonbiased_words_forward.12}
  #allocation0 [shape = 'u32[]', space=smem, size = 0x4, offset = 0x4, fixed_abs, tag = 'smem constant byte address 0x4 - core index']
  #allocation1 [shape = 'u32[144,128]{1,0:T(1,128)}', space=vmem, size = 0x12000, scoped, tag = 'internal scratch']
  %s0 = inlined_call_operand.vmem [shape: f32[9,32,128], index: 0, kind: input, shape index: {}]
  %s1 = inlined_call_operand.vmem [shape: f32[32,128], index: 1, kind: output, shape index: {}]
  %s2 = sld [smem:[#allocation0]]
  $region14: #{cornet_z_nonbiased_words_forward.12} parent=0
    _
  %s4 = ssub.s32 1, %s2
  %s5 = scalar_select 0, %s4, %s2
  // Predicated region
  $region2: #{cornet_z_nonbiased_words_forward.12} parent=0 // pred_check
    _
  $region3: #{cornet_z_nonbiased_words_forward.12} parent=0 // pred_check_branch
    %7 = sbr.rel (0) target = $region5
  $region4: #{cornet_z_nonbiased_words_forward.12} parent=0 // pred_region
    _
  $region5: #{cornet_z_nonbiased_words_forward.12} parent=0 // pred_fallthru
    _
  %v8 = vld [vmem:[%s0] sm:$0xff]
  %v9 = vld [vmem:[%s0 + $0x8] sm:$0xff]
  %v10 = vld [vmem:[%s0 + $0x10] sm:$0xff]
  %v11 = vld [vmem:[%s0 + $0x18] sm:$0xff]
  %v12 = vld [vmem:[%s0 + $0x20] sm:$0xff]
  %v13 = vld [vmem:[%s0 + $0x28] sm:$0xff]
  %v14 = vld [vmem:[%s0 + $0x30] sm:$0xff]
  %v15 = vld [vmem:[%s0 + $0x38] sm:$0xff]
  %v16 = vld [vmem:[%s0 + $0x40] sm:$0xff]
  %v17 = vld [vmem:[%s0 + $0x48] sm:$0xff]
  %v18 = vld [vmem:[%s0 + $0x50] sm:$0xff]
  %v19 = vld [vmem:[%s0 + $0x58] sm:$0xff]
  %v20 = vld [vmem:[%s0 + $0x60] sm:$0xff]
  %v21 = vld [vmem:[%s0 + $0x68] sm:$0xff]
  %v22 = vld [vmem:[%s0 + $0x70] sm:$0xff]
  %v23 = vld [vmem:[%s0 + $0x78] sm:$0xff]
  %v24 = vld [vmem:[%s0 + $0x80] sm:$0xff]
  %v25 = vld [vmem:[%s0 + $0x88] sm:$0xff]
  %v26 = vld [vmem:[%s0 + $0x90] sm:$0xff]
  %v27 = vld [vmem:[%s0 + $0x98] sm:$0xff]
  %v28 = vld [vmem:[%s0 + $0xa0] sm:$0xff]
  %v29 = vld [vmem:[%s0 + $0xa8] sm:$0xff]
  %v30 = vld [vmem:[%s0 + $0xb0] sm:$0xff]
  %v31 = vld [vmem:[%s0 + $0xb8] sm:$0xff]
  %v32 = vld [vmem:[%s0 + $0xc0] sm:$0xff]
  %v33 = vld [vmem:[%s0 + $0xc8] sm:$0xff]
  %v34 = vld [vmem:[%s0 + $0xd0] sm:$0xff]
  %v35 = vld [vmem:[%s0 + $0xd8] sm:$0xff]
  %v36 = vld [vmem:[%s0 + $0xe0] sm:$0xff]
  %v37 = vld [vmem:[%s0 + $0xe8] sm:$0xff]
  %v38 = vld [vmem:[%s0 + $0xf0] sm:$0xff]
  %v39 = vld [vmem:[%s0 + $0xf8] sm:$0xff]
  %v40 = vld [vmem:[%s0 + $0x100] sm:$0xff]
  %v41 = vld [vmem:[%s0 + $0x108] sm:$0xff]
  %v42 = vld [vmem:[%s0 + $0x110] sm:$0xff]
  %v43 = vld [vmem:[%s0 + $0x118] sm:$0xff]
  %v44 = vmax.f32 %v8, %v12
  %v45 = vmax.f32 %v44, %v16
  %v46 = vmax.f32 %v45, %v20
  %v47 = vmax.f32 %v46, %v24
  %v48 = vmax.f32 %v47, %v28
  %v49 = vmax.f32 %v48, %v32
  %v50 = vmax.f32 %v49, %v36
  %v51 = vmax.f32 %v50, %v40
  %v52 = vmax.f32 %v9, %v13
  %v53 = vmax.f32 %v52, %v17
  %v54 = vmax.f32 %v53, %v21
  %v55 = vmax.f32 %v54, %v25
  %v56 = vmax.f32 %v55, %v29
  %v57 = vmax.f32 %v56, %v33
  %v58 = vmax.f32 %v57, %v37
  %v59 = vmax.f32 %v58, %v41
  %v60 = vmax.f32 %v10, %v14
  %v61 = vmax.f32 %v60, %v18
  %v62 = vmax.f32 %v61, %v22
  %v63 = vmax.f32 %v62, %v26
  %v64 = vmax.f32 %v63, %v30
  %v65 = vmax.f32 %v64, %v34
  %v66 = vmax.f32 %v65, %v38
  %v67 = vmax.f32 %v66, %v42
  %v68 = vmax.f32 %v11, %v15
  %v69 = vmax.f32 %v68, %v19
  %v70 = vmax.f32 %v69, %v23
  %v71 = vmax.f32 %v70, %v27
  %v72 = vmax.f32 %v71, %v31
  %v73 = vmax.f32 %v72, %v35
  %v74 = vmax.f32 %v73, %v39
  %v75 = vmax.f32 %v74, %v43
  %76 = vst [vmem:[%s1] sm:$0xff] %v51
  %77 = vst [vmem:[%s1 + $0x8] sm:$0xff] %v59
  %78 = vst [vmem:[%s1 + $0x10] sm:$0xff] %v67
  %79 = vst [vmem:[%s1 + $0x18] sm:$0xff] %v75
  // Predicated region
  $region6: #{cornet_z_nonbiased_words_forward.12} parent=0 // pred_check
    _
  $region7: #{cornet_z_nonbiased_words_forward.12} parent=0 // pred_check_branch
    %81 = sbr.rel (0) target = $region9
  $region8: #{cornet_z_nonbiased_words_forward.12} parent=0 // pred_region
    _
  $region9: #{cornet_z_nonbiased_words_forward.12} parent=0 // pred_fallthru
    _
  // Predicated region
  $region10: #{cornet_z_nonbiased_words_forward.12} parent=0 // pred_check
    _
  $region11: #{cornet_z_nonbiased_words_forward.12} parent=0 // pred_check_branch
    %83 = sbr.rel (0) target = $region13
  $region12: #{cornet_z_nonbiased_words_forward.12} parent=0 // pred_region
    _
  $region13: #{cornet_z_nonbiased_words_forward.12} parent=0 // pred_fallthru
    _

// kernel: cornet_z_nonbiased_words_forward.13
$region0: #{cornet_z_nonbiased_words_forward.13}
  #allocation0 [shape = 'u32[]', space=smem, size = 0x4, offset = 0x4, fixed_abs, tag = 'smem constant byte address 0x4 - core index']
  #allocation1 [shape = 'u32[144,128]{1,0:T(1,128)}', space=vmem, size = 0x12000, scoped, tag = 'internal scratch']
  %s0 = inlined_call_operand.vmem [shape: bf16[32,1152], index: 0, kind: input, shape index: {}]
  %s1 = inlined_call_operand.vmem [shape: bf16[1152,256], index: 1, kind: input, shape index: {}]
  %s2 = inlined_call_operand.vmem [shape: f32[1,256], index: 2, kind: input, shape index: {}]
  %s3 = inlined_call_operand.vmem [shape: f32[32,256], index: 3, kind: output, shape index: {}]
  %s4 = sld [smem:[#allocation0]]
  $region22: #{cornet_z_nonbiased_words_forward.13} parent=0
    _
  %s6 = ssub.s32 1, %s4
  %s7 = scalar_select 0, %s6, %s4
  // Predicated region
  $region2: #{cornet_z_nonbiased_words_forward.13} parent=0 // pred_check
    _
  $region3: #{cornet_z_nonbiased_words_forward.13} parent=0 // pred_check_branch
    %9 = sbr.rel (0) target = $region5
  $region4: #{cornet_z_nonbiased_words_forward.13} parent=0 // pred_region
    _
  $region5: #{cornet_z_nonbiased_words_forward.13} parent=0 // pred_fallthru
    _
  // Predicated region
  $region6: #{cornet_z_nonbiased_words_forward.13} parent=0 // pred_check
    _
  $region7: #{cornet_z_nonbiased_words_forward.13} parent=0 // pred_check_branch
    %11 = sbr.rel (0) target = $region9
  $region8: #{cornet_z_nonbiased_words_forward.13} parent=0 // pred_region
    _
  $region9: #{cornet_z_nonbiased_words_forward.13} parent=0 // pred_fallthru
    _
  // Predicated region
  $region10: #{cornet_z_nonbiased_words_forward.13} parent=0 // pred_check
    _
  $region11: #{cornet_z_nonbiased_words_forward.13} parent=0 // pred_check_branch
    %13 = sbr.rel (0) target = $region13
  $region12: #{cornet_z_nonbiased_words_forward.13} parent=0 // pred_region
    _
  $region13: #{cornet_z_nonbiased_words_forward.13} parent=0 // pred_fallthru
    _
  %v15 = vld [vmem:[%s0] sm:$0xff]
  %v16 = vld [vmem:[%s0 + $0x8] sm:$0xff]
  %v17 = vld [vmem:[%s0 + $0x10] sm:$0xff]
  %v18 = vld [vmem:[%s0 + $0x18] sm:$0xff]
  %v19 = vld [vmem:[%s0 + $0x20] sm:$0xf]
  %v20 = vld [vmem:[%s0 + $0x24] sm:$0xff]
  %v21 = vld [vmem:[%s0 + $0x2c] sm:$0xff]
  %v22 = vld [vmem:[%s0 + $0x34] sm:$0xff]
  %v23 = vld [vmem:[%s0 + $0x3c] sm:$0xff]
  %v24 = vld [vmem:[%s0 + $0x44] sm:$0xf]
  %v25 = vld [vmem:[%s0 + $0x48] sm:$0xff]
  %v26 = vld [vmem:[%s0 + $0x50] sm:$0xff]
  %v27 = vld [vmem:[%s0 + $0x58] sm:$0xff]
  %v28 = vld [vmem:[%s0 + $0x60] sm:$0xff]
  %v29 = vld [vmem:[%s0 + $0x68] sm:$0xf]
  %v30 = vld [vmem:[%s0 + $0x6c] sm:$0xff]
  %v31 = vld [vmem:[%s0 + $0x74] sm:$0xff]
  %v32 = vld [vmem:[%s0 + $0x7c] sm:$0xff]
  %v33 = vld [vmem:[%s0 + $0x84] sm:$0xff]
  %v34 = vld [vmem:[%s0 + $0x8c] sm:$0xf]
  %v35 = vld [vmem:[%s1] sm:$0xff]
  %v36 = vld [vmem:[%s1 + $0x8] sm:$0xff]
  %v37 = vld [vmem:[%s1 + $0x10] sm:$0xff]
  %v38 = vld [vmem:[%s1 + $0x18] sm:$0xff]
  %v39 = vld [vmem:[%s1 + $0x20] sm:$0xff]
  %v40 = vld [vmem:[%s1 + $0x28] sm:$0xff]
  %v41 = vld [vmem:[%s1 + $0x30] sm:$0xff]
  %v42 = vld [vmem:[%s1 + $0x38] sm:$0xff]
  %v43 = vld [vmem:[%s1 + $0x40] sm:$0xff]
  %v44 = vld [vmem:[%s1 + $0x48] sm:$0xff]
  %v45 = vld [vmem:[%s1 + $0x50] sm:$0xff]
  %v46 = vld [vmem:[%s1 + $0x58] sm:$0xff]
  %v47 = vld [vmem:[%s1 + $0x60] sm:$0xff]
  %v48 = vld [vmem:[%s1 + $0x68] sm:$0xff]
  %v49 = vld [vmem:[%s1 + $0x70] sm:$0xff]
  %v50 = vld [vmem:[%s1 + $0x78] sm:$0xff]
  %v51 = vld [vmem:[%s1 + $0x80] sm:$0xff]
  %v52 = vld [vmem:[%s1 + $0x88] sm:$0xff]
  %v53 = vld [vmem:[%s1 + $0x90] sm:$0xff]
  %v54 = vld [vmem:[%s1 + $0x98] sm:$0xff]
  %v55 = vld [vmem:[%s1 + $0xa0] sm:$0xff]
  %v56 = vld [vmem:[%s1 + $0xa8] sm:$0xff]
  %v57 = vld [vmem:[%s1 + $0xb0] sm:$0xff]
  %v58 = vld [vmem:[%s1 + $0xb8] sm:$0xff]
  %v59 = vld [vmem:[%s1 + $0xc0] sm:$0xff]
  %v60 = vld [vmem:[%s1 + $0xc8] sm:$0xff]
  %v61 = vld [vmem:[%s1 + $0xd0] sm:$0xff]
  %v62 = vld [vmem:[%s1 + $0xd8] sm:$0xff]
  %v63 = vld [vmem:[%s1 + $0xe0] sm:$0xff]
  %v64 = vld [vmem:[%s1 + $0xe8] sm:$0xff]
  %v65 = vld [vmem:[%s1 + $0xf0] sm:$0xff]
  %v66 = vld [vmem:[%s1 + $0xf8] sm:$0xff]
  %v67 = vld [vmem:[%s1 + $0x100] sm:$0xff]
  %v68 = vld [vmem:[%s1 + $0x108] sm:$0xff]
  %v69 = vld [vmem:[%s1 + $0x110] sm:$0xff]
  %v70 = vld [vmem:[%s1 + $0x118] sm:$0xff]
  %v71 = vld [vmem:[%s1 + $0x120] sm:$0xff]
  %v72 = vld [vmem:[%s1 + $0x128] sm:$0xff]
  %v73 = vld [vmem:[%s1 + $0x130] sm:$0xff]
  %v74 = vld [vmem:[%s1 + $0x138] sm:$0xff]
  %v75 = vld [vmem:[%s1 + $0x140] sm:$0xff]
  %v76 = vld [vmem:[%s1 + $0x148] sm:$0xff]
  %v77 = vld [vmem:[%s1 + $0x150] sm:$0xff]
  %v78 = vld [vmem:[%s1 + $0x158] sm:$0xff]
  %v79 = vld [vmem:[%s1 + $0x160] sm:$0xff]
  %v80 = vld [vmem:[%s1 + $0x168] sm:$0xff]
  %v81 = vld [vmem:[%s1 + $0x170] sm:$0xff]
  %v82 = vld [vmem:[%s1 + $0x178] sm:$0xff]
  %v83 = vld [vmem:[%s1 + $0x180] sm:$0xff]
  %v84 = vld [vmem:[%s1 + $0x188] sm:$0xff]
  %v85 = vld [vmem:[%s1 + $0x190] sm:$0xff]
  %v86 = vld [vmem:[%s1 + $0x198] sm:$0xff]
  %v87 = vld [vmem:[%s1 + $0x1a0] sm:$0xff]
  %v88 = vld [vmem:[%s1 + $0x1a8] sm:$0xff]
  %v89 = vld [vmem:[%s1 + $0x1b0] sm:$0xff]
  %v90 = vld [vmem:[%s1 + $0x1b8] sm:$0xff]
  %v91 = vld [vmem:[%s1 + $0x1c0] sm:$0xff]
  %v92 = vld [vmem:[%s1 + $0x1c8] sm:$0xff]
  %v93 = vld [vmem:[%s1 + $0x1d0] sm:$0xff]
  %v94 = vld [vmem:[%s1 + $0x1d8] sm:$0xff]
  %v95 = vld [vmem:[%s1 + $0x1e0] sm:$0xff]
  %v96 = vld [vmem:[%s1 + $0x1e8] sm:$0xff]
  %v97 = vld [vmem:[%s1 + $0x1f0] sm:$0xff]
  %v98 = vld [vmem:[%s1 + $0x1f8] sm:$0xff]
  %v99 = vld [vmem:[%s1 + $0x200] sm:$0xff]
  %v100 = vld [vmem:[%s1 + $0x208] sm:$0xff]
  %v101 = vld [vmem:[%s1 + $0x210] sm:$0xff]
  %v102 = vld [vmem:[%s1 + $0x218] sm:$0xff]
  %v103 = vld [vmem:[%s1 + $0x220] sm:$0xff]
  %v104 = vld [vmem:[%s1 + $0x228] sm:$0xff]
  %v105 = vld [vmem:[%s1 + $0x230] sm:$0xff]
  %v106 = vld [vmem:[%s1 + $0x238] sm:$0xff]
  %v107 = vld [vmem:[%s1 + $0x240] sm:$0xff]
  %v108 = vld [vmem:[%s1 + $0x248] sm:$0xff]
  %v109 = vld [vmem:[%s1 + $0x250] sm:$0xff]
  %v110 = vld [vmem:[%s1 + $0x258] sm:$0xff]
  %v111 = vld [vmem:[%s1 + $0x260] sm:$0xff]
  %v112 = vld [vmem:[%s1 + $0x268] sm:$0xff]
  %v113 = vld [vmem:[%s1 + $0x270] sm:$0xff]
  %v114 = vld [vmem:[%s1 + $0x278] sm:$0xff]
  %v115 = vld [vmem:[%s1 + $0x280] sm:$0xff]
  %v116 = vld [vmem:[%s1 + $0x288] sm:$0xff]
  %v117 = vld [vmem:[%s1 + $0x290] sm:$0xff]
  %v118 = vld [vmem:[%s1 + $0x298] sm:$0xff]
  %v119 = vld [vmem:[%s1 + $0x2a0] sm:$0xff]
  %v120 = vld [vmem:[%s1 + $0x2a8] sm:$0xff]
  %v121 = vld [vmem:[%s1 + $0x2b0] sm:$0xff]
  %v122 = vld [vmem:[%s1 + $0x2b8] sm:$0xff]
  %v123 = vld [vmem:[%s1 + $0x2c0] sm:$0xff]
  %v124 = vld [vmem:[%s1 + $0x2c8] sm:$0xff]
  %v125 = vld [vmem:[%s1 + $0x2d0] sm:$0xff]
  %v126 = vld [vmem:[%s1 + $0x2d8] sm:$0xff]
  %v127 = vld [vmem:[%s1 + $0x2e0] sm:$0xff]
  %v128 = vld [vmem:[%s1 + $0x2e8] sm:$0xff]
  %v129 = vld [vmem:[%s1 + $0x2f0] sm:$0xff]
  %v130 = vld [vmem:[%s1 + $0x2f8] sm:$0xff]
  %v131 = vld [vmem:[%s1 + $0x300] sm:$0xff]
  %v132 = vld [vmem:[%s1 + $0x308] sm:$0xff]
  %v133 = vld [vmem:[%s1 + $0x310] sm:$0xff]
  %v134 = vld [vmem:[%s1 + $0x318] sm:$0xff]
  %v135 = vld [vmem:[%s1 + $0x320] sm:$0xff]
  %v136 = vld [vmem:[%s1 + $0x328] sm:$0xff]
  %v137 = vld [vmem:[%s1 + $0x330] sm:$0xff]
  %v138 = vld [vmem:[%s1 + $0x338] sm:$0xff]
  %v139 = vld [vmem:[%s1 + $0x340] sm:$0xff]
  %v140 = vld [vmem:[%s1 + $0x348] sm:$0xff]
  %v141 = vld [vmem:[%s1 + $0x350] sm:$0xff]
  %v142 = vld [vmem:[%s1 + $0x358] sm:$0xff]
  %v143 = vld [vmem:[%s1 + $0x360] sm:$0xff]
  %v144 = vld [vmem:[%s1 + $0x368] sm:$0xff]
  %v145 = vld [vmem:[%s1 + $0x370] sm:$0xff]
  %v146 = vld [vmem:[%s1 + $0x378] sm:$0xff]
  %v147 = vld [vmem:[%s1 + $0x380] sm:$0xff]
  %v148 = vld [vmem:[%s1 + $0x388] sm:$0xff]
  %v149 = vld [vmem:[%s1 + $0x390] sm:$0xff]
  %v150 = vld [vmem:[%s1 + $0x398] sm:$0xff]
  %v151 = vld [vmem:[%s1 + $0x3a0] sm:$0xff]
  %v152 = vld [vmem:[%s1 + $0x3a8] sm:$0xff]
  %v153 = vld [vmem:[%s1 + $0x3b0] sm:$0xff]
  %v154 = vld [vmem:[%s1 + $0x3b8] sm:$0xff]
  %v155 = vld [vmem:[%s1 + $0x3c0] sm:$0xff]
  %v156 = vld [vmem:[%s1 + $0x3c8] sm:$0xff]
  %v157 = vld [vmem:[%s1 + $0x3d0] sm:$0xff]
  %v158 = vld [vmem:[%s1 + $0x3d8] sm:$0xff]
  %v159 = vld [vmem:[%s1 + $0x3e0] sm:$0xff]
  %v160 = vld [vmem:[%s1 + $0x3e8] sm:$0xff]
  %v161 = vld [vmem:[%s1 + $0x3f0] sm:$0xff]
  %v162 = vld [vmem:[%s1 + $0x3f8] sm:$0xff]
  %v163 = vld [vmem:[%s1 + $0x400] sm:$0xff]
  %v164 = vld [vmem:[%s1 + $0x408] sm:$0xff]
  %v165 = vld [vmem:[%s1 + $0x410] sm:$0xff]
  %v166 = vld [vmem:[%s1 + $0x418] sm:$0xff]
  %v167 = vld [vmem:[%s1 + $0x420] sm:$0xff]
  %v168 = vld [vmem:[%s1 + $0x428] sm:$0xff]
  %v169 = vld [vmem:[%s1 + $0x430] sm:$0xff]
  %v170 = vld [vmem:[%s1 + $0x438] sm:$0xff]
  %v171 = vld [vmem:[%s1 + $0x440] sm:$0xff]
  %v172 = vld [vmem:[%s1 + $0x448] sm:$0xff]
  %v173 = vld [vmem:[%s1 + $0x450] sm:$0xff]
  %v174 = vld [vmem:[%s1 + $0x458] sm:$0xff]
  %v175 = vld [vmem:[%s1 + $0x460] sm:$0xff]
  %v176 = vld [vmem:[%s1 + $0x468] sm:$0xff]
  %v177 = vld [vmem:[%s1 + $0x470] sm:$0xff]
  %v178 = vld [vmem:[%s1 + $0x478] sm:$0xff]
  %v179 = vld [vmem:[%s2] sm:$0x3]
  %v181 = vlaneseq
  %v182 = vshrl.u32 %v181, 7
  %v183 = vsub.s32 0, %v182
  %v184 = vrot.slane %v179, %v183
  %v185 = vlaneseq
  %v186 = vshrl.u32 %v185, 7
  %v187 = vsub.s32 1, %v186
  %v188 = vrot.slane %v179, %v187
  %v211 = vunpack.c.l.b16 %v15
  %v212 = vunpack.c.h.b16 %v15
  %v213 = vunpack.c.l.b16 %v16
  %v214 = vunpack.c.h.b16 %v16
  %v215 = vunpack.c.l.b16 %v17
  %v216 = vunpack.c.h.b16 %v17
  %v217 = vunpack.c.l.b16 %v18
  %v218 = vunpack.c.h.b16 %v18
  %v219 = vunpack.c.l.b16 %v19
  %v220 = vunpack.c.l.b16 %v20
  %v221 = vunpack.c.h.b16 %v20
  %v222 = vunpack.c.l.b16 %v21
  %v223 = vunpack.c.h.b16 %v21
  %v224 = vunpack.c.l.b16 %v22
  %v225 = vunpack.c.h.b16 %v22
  %v226 = vunpack.c.l.b16 %v23
  %v227 = vunpack.c.h.b16 %v23
  %v228 = vunpack.c.l.b16 %v24
  %v229 = vunpack.c.l.b16 %v25
  %v230 = vunpack.c.h.b16 %v25
  %v231 = vunpack.c.l.b16 %v26
  %v232 = vunpack.c.h.b16 %v26
  %v233 = vunpack.c.l.b16 %v27
  %v234 = vunpack.c.h.b16 %v27
  %v235 = vunpack.c.l.b16 %v28
  %v236 = vunpack.c.h.b16 %v28
  %v237 = vunpack.c.l.b16 %v29
  %v238 = vunpack.c.l.b16 %v30
  %v239 = vunpack.c.h.b16 %v30
  %v240 = vunpack.c.l.b16 %v31
  %v241 = vunpack.c.h.b16 %v31
  %v242 = vunpack.c.l.b16 %v32
  %v243 = vunpack.c.h.b16 %v32
  %v244 = vunpack.c.l.b16 %v33
  %v245 = vunpack.c.h.b16 %v33
  %v246 = vunpack.c.l.b16 %v34
  %v247 = vpack.c.b16 %v220, %v211
  %v248 = vpack.c.b16 %v221, %v212
  %v249 = vpack.c.b16 %v222, %v213
  %v250 = vpack.c.b16 %v223, %v214
  %v251 = vpack.c.b16 %v224, %v215
  %v252 = vpack.c.b16 %v225, %v216
  %v253 = vpack.c.b16 %v226, %v217
  %v254 = vpack.c.b16 %v227, %v218
  %v255 = vpack.c.b16 %v228, %v219
  %v256 = vpack.c.b16 %v238, %v229
  %v257 = vpack.c.b16 %v239, %v230
  %v258 = vpack.c.b16 %v240, %v231
  %v259 = vpack.c.b16 %v241, %v232
  %v260 = vpack.c.b16 %v242, %v233
  %v261 = vpack.c.b16 %v243, %v234
  %v262 = vpack.c.b16 %v244, %v235
  %v263 = vpack.c.b16 %v245, %v236
  %v264 = vpack.c.b16 %v246, %v237
  %v427 = vunpack.c.l.b16 %v35
  %v428 = vunpack.c.h.b16 %v35
  %v429 = vunpack.c.l.b16 %v36
  %v430 = vunpack.c.h.b16 %v36
  %v431 = vunpack.c.l.b16 %v37
  %v432 = vunpack.c.h.b16 %v37
  %v433 = vunpack.c.l.b16 %v38
  %v434 = vunpack.c.h.b16 %v38
  %v435 = vunpack.c.l.b16 %v39
  %v436 = vunpack.c.h.b16 %v39
  %v437 = vunpack.c.l.b16 %v40
  %v438 = vunpack.c.h.b16 %v40
  %v439 = vunpack.c.l.b16 %v41
  %v440 = vunpack.c.h.b16 %v41
  %v441 = vunpack.c.l.b16 %v42
  %v442 = vunpack.c.h.b16 %v42
  %v443 = vunpack.c.l.b16 %v43
  %v444 = vunpack.c.h.b16 %v43
  %v445 = vunpack.c.l.b16 %v44
  %v446 = vunpack.c.h.b16 %v44
  %v447 = vunpack.c.l.b16 %v45
  %v448 = vunpack.c.h.b16 %v45
  %v449 = vunpack.c.l.b16 %v46
  %v450 = vunpack.c.h.b16 %v46
  %v451 = vunpack.c.l.b16 %v47
  %v452 = vunpack.c.h.b16 %v47
  %v453 = vunpack.c.l.b16 %v48
  %v454 = vunpack.c.h.b16 %v48
  %v455 = vunpack.c.l.b16 %v49
  %v456 = vunpack.c.h.b16 %v49
  %v457 = vunpack.c.l.b16 %v50
  %v458 = vunpack.c.h.b16 %v50
  %v459 = vunpack.c.l.b16 %v51
  %v460 = vunpack.c.h.b16 %v51
  %v461 = vunpack.c.l.b16 %v52
  %v462 = vunpack.c.h.b16 %v52
  %v463 = vunpack.c.l.b16 %v53
  %v464 = vunpack.c.h.b16 %v53
  %v465 = vunpack.c.l.b16 %v54
  %v466 = vunpack.c.h.b16 %v54
  %v467 = vunpack.c.l.b16 %v55
  %v468 = vunpack.c.h.b16 %v55
  %v469 = vunpack.c.l.b16 %v56
  %v470 = vunpack.c.h.b16 %v56
  %v471 = vunpack.c.l.b16 %v57
  %v472 = vunpack.c.h.b16 %v57
  %v473 = vunpack.c.l.b16 %v58
  %v474 = vunpack.c.h.b16 %v58
  %v475 = vunpack.c.l.b16 %v59
  %v476 = vunpack.c.h.b16 %v59
  %v477 = vunpack.c.l.b16 %v60
  %v478 = vunpack.c.h.b16 %v60
  %v479 = vunpack.c.l.b16 %v61
  %v480 = vunpack.c.h.b16 %v61
  %v481 = vunpack.c.l.b16 %v62
  %v482 = vunpack.c.h.b16 %v62
  %v483 = vunpack.c.l.b16 %v63
  %v484 = vunpack.c.h.b16 %v63
  %v485 = vunpack.c.l.b16 %v64
  %v486 = vunpack.c.h.b16 %v64
  %v487 = vunpack.c.l.b16 %v65
  %v488 = vunpack.c.h.b16 %v65
  %v489 = vunpack.c.l.b16 %v66
  %v490 = vunpack.c.h.b16 %v66
  %v491 = vunpack.c.l.b16 %v67
  %v492 = vunpack.c.h.b16 %v67
  %v493 = vunpack.c.l.b16 %v68
  %v494 = vunpack.c.h.b16 %v68
  %v495 = vunpack.c.l.b16 %v69
  %v496 = vunpack.c.h.b16 %v69
  %v497 = vunpack.c.l.b16 %v70
  %v498 = vunpack.c.h.b16 %v70
  %v499 = vunpack.c.l.b16 %v71
  %v500 = vunpack.c.h.b16 %v71
  %v501 = vunpack.c.l.b16 %v72
  %v502 = vunpack.c.h.b16 %v72
  %v503 = vunpack.c.l.b16 %v73
  %v504 = vunpack.c.h.b16 %v73
  %v505 = vunpack.c.l.b16 %v74
  %v506 = vunpack.c.h.b16 %v74
  %v507 = vunpack.c.l.b16 %v75
  %v508 = vunpack.c.h.b16 %v75
  %v509 = vunpack.c.l.b16 %v76
  %v510 = vunpack.c.h.b16 %v76
  %v511 = vunpack.c.l.b16 %v77
  %v512 = vunpack.c.h.b16 %v77
  %v513 = vunpack.c.l.b16 %v78
  %v514 = vunpack.c.h.b16 %v78
  %v515 = vunpack.c.l.b16 %v79
  %v516 = vunpack.c.h.b16 %v79
  %v517 = vunpack.c.l.b16 %v80
  %v518 = vunpack.c.h.b16 %v80
  %v519 = vunpack.c.l.b16 %v81
  %v520 = vunpack.c.h.b16 %v81
  %v521 = vunpack.c.l.b16 %v82
  %v522 = vunpack.c.h.b16 %v82
  %v523 = vunpack.c.l.b16 %v83
  %v524 = vunpack.c.h.b16 %v83
  %v525 = vunpack.c.l.b16 %v84
  %v526 = vunpack.c.h.b16 %v84
  %v527 = vunpack.c.l.b16 %v85
  %v528 = vunpack.c.h.b16 %v85
  %v529 = vunpack.c.l.b16 %v86
  %v530 = vunpack.c.h.b16 %v86
  %v531 = vunpack.c.l.b16 %v87
  %v532 = vunpack.c.h.b16 %v87
  %v533 = vunpack.c.l.b16 %v88
  %v534 = vunpack.c.h.b16 %v88
  %v535 = vunpack.c.l.b16 %v89
  %v536 = vunpack.c.h.b16 %v89
  %v537 = vunpack.c.l.b16 %v90
  %v538 = vunpack.c.h.b16 %v90
  %v539 = vunpack.c.l.b16 %v91
  %v540 = vunpack.c.h.b16 %v91
  %v541 = vunpack.c.l.b16 %v92
  %v542 = vunpack.c.h.b16 %v92
  %v543 = vunpack.c.l.b16 %v93
  %v544 = vunpack.c.h.b16 %v93
  %v545 = vunpack.c.l.b16 %v94
  %v546 = vunpack.c.h.b16 %v94
  %v547 = vunpack.c.l.b16 %v95
  %v548 = vunpack.c.h.b16 %v95
  %v549 = vunpack.c.l.b16 %v96
  %v550 = vunpack.c.h.b16 %v96
  %v551 = vunpack.c.l.b16 %v97
  %v552 = vunpack.c.h.b16 %v97
  %v553 = vunpack.c.l.b16 %v98
  %v554 = vunpack.c.h.b16 %v98
  %v555 = vunpack.c.l.b16 %v99
  %v556 = vunpack.c.h.b16 %v99
  %v557 = vunpack.c.l.b16 %v100
  %v558 = vunpack.c.h.b16 %v100
  %v559 = vunpack.c.l.b16 %v101
  %v560 = vunpack.c.h.b16 %v101
  %v561 = vunpack.c.l.b16 %v102
  %v562 = vunpack.c.h.b16 %v102
  %v563 = vunpack.c.l.b16 %v103
  %v564 = vunpack.c.h.b16 %v103
  %v565 = vunpack.c.l.b16 %v104
  %v566 = vunpack.c.h.b16 %v104
  %v567 = vunpack.c.l.b16 %v105
  %v568 = vunpack.c.h.b16 %v105
  %v569 = vunpack.c.l.b16 %v106
  %v570 = vunpack.c.h.b16 %v106
  %v571 = vunpack.c.l.b16 %v107
  %v572 = vunpack.c.h.b16 %v107
  %v573 = vunpack.c.l.b16 %v108
  %v574 = vunpack.c.h.b16 %v108
  %v575 = vunpack.c.l.b16 %v109
  %v576 = vunpack.c.h.b16 %v109
  %v577 = vunpack.c.l.b16 %v110
  %v578 = vunpack.c.h.b16 %v110
  %v579 = vunpack.c.l.b16 %v111
  %v580 = vunpack.c.h.b16 %v111
  %v581 = vunpack.c.l.b16 %v112
  %v582 = vunpack.c.h.b16 %v112
  %v583 = vunpack.c.l.b16 %v113
  %v584 = vunpack.c.h.b16 %v113
  %v585 = vunpack.c.l.b16 %v114
  %v586 = vunpack.c.h.b16 %v114
  %v587 = vunpack.c.l.b16 %v115
  %v588 = vunpack.c.h.b16 %v115
  %v589 = vunpack.c.l.b16 %v116
  %v590 = vunpack.c.h.b16 %v116
  %v591 = vunpack.c.l.b16 %v117
  %v592 = vunpack.c.h.b16 %v117
  %v593 = vunpack.c.l.b16 %v118
  %v594 = vunpack.c.h.b16 %v118
  %v595 = vunpack.c.l.b16 %v119
  %v596 = vunpack.c.h.b16 %v119
  %v597 = vunpack.c.l.b16 %v120
  %v598 = vunpack.c.h.b16 %v120
  %v599 = vunpack.c.l.b16 %v121
  %v600 = vunpack.c.h.b16 %v121
  %v601 = vunpack.c.l.b16 %v122
  %v602 = vunpack.c.h.b16 %v122
  %v603 = vunpack.c.l.b16 %v123
  %v604 = vunpack.c.h.b16 %v123
  %v605 = vunpack.c.l.b16 %v124
  %v606 = vunpack.c.h.b16 %v124
  %v607 = vunpack.c.l.b16 %v125
  %v608 = vunpack.c.h.b16 %v125
  %v609 = vunpack.c.l.b16 %v126
  %v610 = vunpack.c.h.b16 %v126
  %v611 = vunpack.c.l.b16 %v127
  %v612 = vunpack.c.h.b16 %v127
  %v613 = vunpack.c.l.b16 %v128
  %v614 = vunpack.c.h.b16 %v128
  %v615 = vunpack.c.l.b16 %v129
  %v616 = vunpack.c.h.b16 %v129
  %v617 = vunpack.c.l.b16 %v130
  %v618 = vunpack.c.h.b16 %v130
  %v619 = vunpack.c.l.b16 %v131
  %v620 = vunpack.c.h.b16 %v131
  %v621 = vunpack.c.l.b16 %v132
  %v622 = vunpack.c.h.b16 %v132
  %v623 = vunpack.c.l.b16 %v133
  %v624 = vunpack.c.h.b16 %v133
  %v625 = vunpack.c.l.b16 %v134
  %v626 = vunpack.c.h.b16 %v134
  %v627 = vunpack.c.l.b16 %v135
  %v628 = vunpack.c.h.b16 %v135
  %v629 = vunpack.c.l.b16 %v136
  %v630 = vunpack.c.h.b16 %v136
  %v631 = vunpack.c.l.b16 %v137
  %v632 = vunpack.c.h.b16 %v137
  %v633 = vunpack.c.l.b16 %v138
  %v634 = vunpack.c.h.b16 %v138
  %v635 = vunpack.c.l.b16 %v139
  %v636 = vunpack.c.h.b16 %v139
  %v637 = vunpack.c.l.b16 %v140
  %v638 = vunpack.c.h.b16 %v140
  %v639 = vunpack.c.l.b16 %v141
  %v640 = vunpack.c.h.b16 %v141
  %v641 = vunpack.c.l.b16 %v142
  %v642 = vunpack.c.h.b16 %v142
  %v643 = vunpack.c.l.b16 %v143
  %v644 = vunpack.c.h.b16 %v143
  %v645 = vunpack.c.l.b16 %v144
  %v646 = vunpack.c.h.b16 %v144
  %v647 = vunpack.c.l.b16 %v145
  %v648 = vunpack.c.h.b16 %v145
  %v649 = vunpack.c.l.b16 %v146
  %v650 = vunpack.c.h.b16 %v146
  %v651 = vunpack.c.l.b16 %v147
  %v652 = vunpack.c.h.b16 %v147
  %v653 = vunpack.c.l.b16 %v148
  %v654 = vunpack.c.h.b16 %v148
  %v655 = vunpack.c.l.b16 %v149
  %v656 = vunpack.c.h.b16 %v149
  %v657 = vunpack.c.l.b16 %v150
  %v658 = vunpack.c.h.b16 %v150
  %v659 = vunpack.c.l.b16 %v151
  %v660 = vunpack.c.h.b16 %v151
  %v661 = vunpack.c.l.b16 %v152
  %v662 = vunpack.c.h.b16 %v152
  %v663 = vunpack.c.l.b16 %v153
  %v664 = vunpack.c.h.b16 %v153
  %v665 = vunpack.c.l.b16 %v154
  %v666 = vunpack.c.h.b16 %v154
  %v667 = vunpack.c.l.b16 %v155
  %v668 = vunpack.c.h.b16 %v155
  %v669 = vunpack.c.l.b16 %v156
  %v670 = vunpack.c.h.b16 %v156
  %v671 = vunpack.c.l.b16 %v157
  %v672 = vunpack.c.h.b16 %v157
  %v673 = vunpack.c.l.b16 %v158
  %v674 = vunpack.c.h.b16 %v158
  %v675 = vunpack.c.l.b16 %v159
  %v676 = vunpack.c.h.b16 %v159
  %v677 = vunpack.c.l.b16 %v160
  %v678 = vunpack.c.h.b16 %v160
  %v679 = vunpack.c.l.b16 %v161
  %v680 = vunpack.c.h.b16 %v161
  %v681 = vunpack.c.l.b16 %v162
  %v682 = vunpack.c.h.b16 %v162
  %v683 = vunpack.c.l.b16 %v163
  %v684 = vunpack.c.h.b16 %v163
  %v685 = vunpack.c.l.b16 %v164
  %v686 = vunpack.c.h.b16 %v164
  %v687 = vunpack.c.l.b16 %v165
  %v688 = vunpack.c.h.b16 %v165
  %v689 = vunpack.c.l.b16 %v166
  %v690 = vunpack.c.h.b16 %v166
  %v691 = vunpack.c.l.b16 %v167
  %v692 = vunpack.c.h.b16 %v167
  %v693 = vunpack.c.l.b16 %v168
  %v694 = vunpack.c.h.b16 %v168
  %v695 = vunpack.c.l.b16 %v169
  %v696 = vunpack.c.h.b16 %v169
  %v697 = vunpack.c.l.b16 %v170
  %v698 = vunpack.c.h.b16 %v170
  %v699 = vunpack.c.l.b16 %v171
  %v700 = vunpack.c.h.b16 %v171
  %v701 = vunpack.c.l.b16 %v172
  %v702 = vunpack.c.h.b16 %v172
  %v703 = vunpack.c.l.b16 %v173
  %v704 = vunpack.c.h.b16 %v173
  %v705 = vunpack.c.l.b16 %v174
  %v706 = vunpack.c.h.b16 %v174
  %v707 = vunpack.c.l.b16 %v175
  %v708 = vunpack.c.h.b16 %v175
  %v709 = vunpack.c.l.b16 %v176
  %v710 = vunpack.c.h.b16 %v176
  %v711 = vunpack.c.l.b16 %v177
  %v712 = vunpack.c.h.b16 %v177
  %v713 = vunpack.c.l.b16 %v178
  %v714 = vunpack.c.h.b16 %v178
  %v715 = vpack.c.b16 %v429, %v427
  %v716 = vpack.c.b16 %v430, %v428
  %v717 = vpack.c.b16 %v433, %v431
  %v718 = vpack.c.b16 %v434, %v432
  %v719 = vpack.c.b16 %v437, %v435
  %v720 = vpack.c.b16 %v438, %v436
  %v721 = vpack.c.b16 %v441, %v439
  %v722 = vpack.c.b16 %v442, %v440
  %v723 = vpack.c.b16 %v445, %v443
  %v724 = vpack.c.b16 %v446, %v444
  %v725 = vpack.c.b16 %v449, %v447
  %v726 = vpack.c.b16 %v450, %v448
  %v727 = vpack.c.b16 %v453, %v451
  %v728 = vpack.c.b16 %v454, %v452
  %v729 = vpack.c.b16 %v457, %v455
  %v730 = vpack.c.b16 %v458, %v456
  %v731 = vpack.c.b16 %v461, %v459
  %v732 = vpack.c.b16 %v462, %v460
  %v733 = vpack.c.b16 %v465, %v463
  %v734 = vpack.c.b16 %v466, %v464
  %v735 = vpack.c.b16 %v469, %v467
  %v736 = vpack.c.b16 %v470, %v468
  %v737 = vpack.c.b16 %v473, %v471
  %v738 = vpack.c.b16 %v474, %v472
  %v739 = vpack.c.b16 %v477, %v475
  %v740 = vpack.c.b16 %v478, %v476
  %v741 = vpack.c.b16 %v481, %v479
  %v742 = vpack.c.b16 %v482, %v480
  %v743 = vpack.c.b16 %v485, %v483
  %v744 = vpack.c.b16 %v486, %v484
  %v745 = vpack.c.b16 %v489, %v487
  %v746 = vpack.c.b16 %v490, %v488
  %v747 = vpack.c.b16 %v493, %v491
  %v748 = vpack.c.b16 %v494, %v492
  %v749 = vpack.c.b16 %v497, %v495
  %v750 = vpack.c.b16 %v498, %v496
  %v751 = vpack.c.b16 %v501, %v499
  %v752 = vpack.c.b16 %v502, %v500
  %v753 = vpack.c.b16 %v505, %v503
  %v754 = vpack.c.b16 %v506, %v504
  %v755 = vpack.c.b16 %v509, %v507
  %v756 = vpack.c.b16 %v510, %v508
  %v757 = vpack.c.b16 %v513, %v511
  %v758 = vpack.c.b16 %v514, %v512
  %v759 = vpack.c.b16 %v517, %v515
  %v760 = vpack.c.b16 %v518, %v516
  %v761 = vpack.c.b16 %v521, %v519
  %v762 = vpack.c.b16 %v522, %v520
  %v763 = vpack.c.b16 %v525, %v523
  %v764 = vpack.c.b16 %v526, %v524
  %v765 = vpack.c.b16 %v529, %v527
  %v766 = vpack.c.b16 %v530, %v528
  %v767 = vpack.c.b16 %v533, %v531
  %v768 = vpack.c.b16 %v534, %v532
  %v769 = vpack.c.b16 %v537, %v535
  %v770 = vpack.c.b16 %v538, %v536
  %v771 = vpack.c.b16 %v541, %v539
  %v772 = vpack.c.b16 %v542, %v540
  %v773 = vpack.c.b16 %v545, %v543
  %v774 = vpack.c.b16 %v546, %v544
  %v775 = vpack.c.b16 %v549, %v547
  %v776 = vpack.c.b16 %v550, %v548
  %v777 = vpack.c.b16 %v553, %v551
  %v778 = vpack.c.b16 %v554, %v552
  %v779 = vpack.c.b16 %v557, %v555
  %v780 = vpack.c.b16 %v558, %v556
  %v781 = vpack.c.b16 %v561, %v559
  %v782 = vpack.c.b16 %v562, %v560
  %v783 = vpack.c.b16 %v565, %v563
  %v784 = vpack.c.b16 %v566, %v564
  %v785 = vpack.c.b16 %v569, %v567
  %v786 = vpack.c.b16 %v570, %v568
  %v787 = vpack.c.b16 %v573, %v571
  %v788 = vpack.c.b16 %v574, %v572
  %v789 = vpack.c.b16 %v577, %v575
  %v790 = vpack.c.b16 %v578, %v576
  %v791 = vpack.c.b16 %v581, %v579
  %v792 = vpack.c.b16 %v582, %v580
  %v793 = vpack.c.b16 %v585, %v583
  %v794 = vpack.c.b16 %v586, %v584
  %v795 = vpack.c.b16 %v589, %v587
  %v796 = vpack.c.b16 %v590, %v588
  %v797 = vpack.c.b16 %v593, %v591
  %v798 = vpack.c.b16 %v594, %v592
  %v799 = vpack.c.b16 %v597, %v595
  %v800 = vpack.c.b16 %v598, %v596
  %v801 = vpack.c.b16 %v601, %v599
  %v802 = vpack.c.b16 %v602, %v600
  %v803 = vpack.c.b16 %v605, %v603
  %v804 = vpack.c.b16 %v606, %v604
  %v805 = vpack.c.b16 %v609, %v607
  %v806 = vpack.c.b16 %v610, %v608
  %v807 = vpack.c.b16 %v613, %v611
  %v808 = vpack.c.b16 %v614, %v612
  %v809 = vpack.c.b16 %v617, %v615
  %v810 = vpack.c.b16 %v618, %v616
  %v811 = vpack.c.b16 %v621, %v619
  %v812 = vpack.c.b16 %v622, %v620
  %v813 = vpack.c.b16 %v625, %v623
  %v814 = vpack.c.b16 %v626, %v624
  %v815 = vpack.c.b16 %v629, %v627
  %v816 = vpack.c.b16 %v630, %v628
  %v817 = vpack.c.b16 %v633, %v631
  %v818 = vpack.c.b16 %v634, %v632
  %v819 = vpack.c.b16 %v637, %v635
  %v820 = vpack.c.b16 %v638, %v636
  %v821 = vpack.c.b16 %v641, %v639
  %v822 = vpack.c.b16 %v642, %v640
  %v823 = vpack.c.b16 %v645, %v643
  %v824 = vpack.c.b16 %v646, %v644
  %v825 = vpack.c.b16 %v649, %v647
  %v826 = vpack.c.b16 %v650, %v648
  %v827 = vpack.c.b16 %v653, %v651
  %v828 = vpack.c.b16 %v654, %v652
  %v829 = vpack.c.b16 %v657, %v655
  %v830 = vpack.c.b16 %v658, %v656
  %v831 = vpack.c.b16 %v661, %v659
  %v832 = vpack.c.b16 %v662, %v660
  %v833 = vpack.c.b16 %v665, %v663
  %v834 = vpack.c.b16 %v666, %v664
  %v835 = vpack.c.b16 %v669, %v667
  %v836 = vpack.c.b16 %v670, %v668
  %v837 = vpack.c.b16 %v673, %v671
  %v838 = vpack.c.b16 %v674, %v672
  %v839 = vpack.c.b16 %v677, %v675
  %v840 = vpack.c.b16 %v678, %v676
  %v841 = vpack.c.b16 %v681, %v679
  %v842 = vpack.c.b16 %v682, %v680
  %v843 = vpack.c.b16 %v685, %v683
  %v844 = vpack.c.b16 %v686, %v684
  %v845 = vpack.c.b16 %v689, %v687
  %v846 = vpack.c.b16 %v690, %v688
  %v847 = vpack.c.b16 %v693, %v691
  %v848 = vpack.c.b16 %v694, %v692
  %v849 = vpack.c.b16 %v697, %v695
  %v850 = vpack.c.b16 %v698, %v696
  %v851 = vpack.c.b16 %v701, %v699
  %v852 = vpack.c.b16 %v702, %v700
  %v853 = vpack.c.b16 %v705, %v703
  %v854 = vpack.c.b16 %v706, %v704
  %v855 = vpack.c.b16 %v709, %v707
  %v856 = vpack.c.b16 %v710, %v708
  %v857 = vpack.c.b16 %v713, %v711
  %v858 = vpack.c.b16 %v714, %v712
  %1003 = vmatprep.subr.bf16.mxu0 %v716
  %1004 = vmatpush1.bf16.msra.mxu0 %v715
  %1005 = vmatprep.subr.bf16.mxu0 %v718
  %1006 = vmatpush1.bf16.msra.mxu0 %v717
  %1007 = vmatprep.subr.bf16.mxu0 %v720
  %1008 = vmatpush1.bf16.msra.mxu0 %v719
  %1009 = vmatprep.subr.bf16.mxu0 %v722
  %1010 = vmatpush1.bf16.msra.mxu0 %v721
  %1011 = vmatprep.subr.bf16.mxu0 %v724
  %1012 = vmatpush1.bf16.msra.mxu0 %v723
  %1013 = vmatprep.subr.bf16.mxu0 %v726
  %1014 = vmatpush1.bf16.msra.mxu0 %v725
  %1015 = vmatprep.subr.bf16.mxu0 %v728
  %1016 = vmatpush1.bf16.msra.mxu0 %v727
  %1017 = vmatprep.subr.bf16.mxu0 %v730
  %1018 = vmatpush1.bf16.msra.mxu0 %v729
  %1019 = vmatprep.subr.bf16.mxu0 %v732
  %1020 = vmatpush1.bf16.msra.mxu0 %v731
  %1021 = vmatprep.subr.bf16.mxu0 %v734
  %1022 = vmatpush1.bf16.msra.mxu0 %v733
  %1023 = vmatprep.subr.bf16.mxu0 %v736
  %1024 = vmatpush1.bf16.msra.mxu0 %v735
  %1025 = vmatprep.subr.bf16.mxu0 %v738
  %1026 = vmatpush1.bf16.msra.mxu0 %v737
  %1027 = vmatprep.subr.bf16.mxu0 %v740
  %1028 = vmatpush1.bf16.msra.mxu0 %v739
  %1029 = vmatprep.subr.bf16.mxu0 %v742
  %1030 = vmatpush1.bf16.msra.mxu0 %v741
  %1031 = vmatprep.subr.bf16.mxu0 %v744
  %1032 = vmatpush1.bf16.msra.mxu0 %v743
  %1033 = vmatprep.subr.bf16.mxu0 %v746
  %1034 = vmatpush1.bf16.msra.mxu0 %v745
  %1035 = vmatprep.mubr.bf16.mxu0 %v248
  %1036 = vmatmul.mubr.bf16.gmra.mrb[0].mxu0 %v247
  %v1037 = vpop.f32.mrb[0].mxu0
  %v1038 = vadd.f32 %v184, %v1037
  %v1039 = vpop.f32.mrb[0].mxu0
  %v1040 = vadd.f32 %v188, %v1039
  %v1041 = vpop.f32.mrb[0].mxu0
  %v1042 = vadd.f32 %v184, %v1041
  %v1043 = vpop.f32.mrb[0].mxu0
  %v1044 = vadd.f32 %v188, %v1043
  %1045 = vmatprep.mubr.bf16.mxu0 %v257
  %1046 = vmatmul.mubr.bf16.gmra.mrb[0].mxu0 %v256
  %v1047 = vpop.f32.mrb[0].mxu0
  %v1048 = vadd.f32 %v184, %v1047
  %v1049 = vpop.f32.mrb[0].mxu0
  %v1050 = vadd.f32 %v188, %v1049
  %v1051 = vpop.f32.mrb[0].mxu0
  %v1052 = vadd.f32 %v184, %v1051
  %v1053 = vpop.f32.mrb[0].mxu0
  %v1054 = vadd.f32 %v188, %v1053
  %1055 = vdwg.mxu0
  %1056 = vmatprep.subr.bf16.mxu0 %v748
  %1057 = vmatpush1.bf16.msra.mxu0 %v747
  %1058 = vmatprep.subr.bf16.mxu0 %v750
  %1059 = vmatpush1.bf16.msra.mxu0 %v749
  %1060 = vmatprep.subr.bf16.mxu0 %v752
  %1061 = vmatpush1.bf16.msra.mxu0 %v751
  %1062 = vmatprep.subr.bf16.mxu0 %v754
  %1063 = vmatpush1.bf16.msra.mxu0 %v753
  %1064 = vmatprep.subr.bf16.mxu0 %v756
  %1065 = vmatpush1.bf16.msra.mxu0 %v755
  %1066 = vmatprep.subr.bf16.mxu0 %v758
  %1067 = vmatpush1.bf16.msra.mxu0 %v757
  %1068 = vmatprep.subr.bf16.mxu0 %v760
  %1069 = vmatpush1.bf16.msra.mxu0 %v759
  %1070 = vmatprep.subr.bf16.mxu0 %v762
  %1071 = vmatpush1.bf16.msra.mxu0 %v761
  %1072 = vmatprep.subr.bf16.mxu0 %v764
  %1073 = vmatpush1.bf16.msra.mxu0 %v763
  %1074 = vmatprep.subr.bf16.mxu0 %v766
  %1075 = vmatpush1.bf16.msra.mxu0 %v765
  %1076 = vmatprep.subr.bf16.mxu0 %v768
  %1077 = vmatpush1.bf16.msra.mxu0 %v767
  %1078 = vmatprep.subr.bf16.mxu0 %v770
  %1079 = vmatpush1.bf16.msra.mxu0 %v769
  %1080 = vmatprep.subr.bf16.mxu0 %v772
  %1081 = vmatpush1.bf16.msra.mxu0 %v771
  %1082 = vmatprep.subr.bf16.mxu0 %v774
  %1083 = vmatpush1.bf16.msra.mxu0 %v773
  %1084 = vmatprep.subr.bf16.mxu0 %v776
  %1085 = vmatpush1.bf16.msra.mxu0 %v775
  %1086 = vmatprep.subr.bf16.mxu0 %v778
  %1087 = vmatpush1.bf16.msra.mxu0 %v777
  %1088 = vmatprep.mubr.bf16.mxu0 %v250
  %1089 = vmatmul.mubr.bf16.gmra.mrb[0].mxu0 %v249
  %v1090 = vpop.f32.mrb[0].mxu0
  %v1091 = vadd.f32 %v1038, %v1090
  %v1092 = vpop.f32.mrb[0].mxu0
  %v1093 = vadd.f32 %v1040, %v1092
  %v1094 = vpop.f32.mrb[0].mxu0
  %v1095 = vadd.f32 %v1042, %v1094
  %v1096 = vpop.f32.mrb[0].mxu0
  %v1097 = vadd.f32 %v1044, %v1096
  %1098 = vmatprep.mubr.bf16.mxu0 %v259
  %1099 = vmatmul.mubr.bf16.gmra.mrb[0].mxu0 %v258
  %v1100 = vpop.f32.mrb[0].mxu0
  %v1101 = vadd.f32 %v1048, %v1100
  %v1102 = vpop.f32.mrb[0].mxu0
  %v1103 = vadd.f32 %v1050, %v1102
  %v1104 = vpop.f32.mrb[0].mxu0
  %v1105 = vadd.f32 %v1052, %v1104
  %v1106 = vpop.f32.mrb[0].mxu0
  %v1107 = vadd.f32 %v1054, %v1106
  %1108 = vdwg.mxu0
  %1109 = vmatprep.subr.bf16.mxu0 %v780
  %1110 = vmatpush1.bf16.msra.mxu0 %v779
  %1111 = vmatprep.subr.bf16.mxu0 %v782
  %1112 = vmatpush1.bf16.msra.mxu0 %v781
  %1113 = vmatprep.subr.bf16.mxu0 %v784
  %1114 = vmatpush1.bf16.msra.mxu0 %v783
  %1115 = vmatprep.subr.bf16.mxu0 %v786
  %1116 = vmatpush1.bf16.msra.mxu0 %v785
  %1117 = vmatprep.subr.bf16.mxu0 %v788
  %1118 = vmatpush1.bf16.msra.mxu0 %v787
  %1119 = vmatprep.subr.bf16.mxu0 %v790
  %1120 = vmatpush1.bf16.msra.mxu0 %v789
  %1121 = vmatprep.subr.bf16.mxu0 %v792
  %1122 = vmatpush1.bf16.msra.mxu0 %v791
  %1123 = vmatprep.subr.bf16.mxu0 %v794
  %1124 = vmatpush1.bf16.msra.mxu0 %v793
  %1125 = vmatprep.subr.bf16.mxu0 %v796
  %1126 = vmatpush1.bf16.msra.mxu0 %v795
  %1127 = vmatprep.subr.bf16.mxu0 %v798
  %1128 = vmatpush1.bf16.msra.mxu0 %v797
  %1129 = vmatprep.subr.bf16.mxu0 %v800
  %1130 = vmatpush1.bf16.msra.mxu0 %v799
  %1131 = vmatprep.subr.bf16.mxu0 %v802
  %1132 = vmatpush1.bf16.msra.mxu0 %v801
  %1133 = vmatprep.subr.bf16.mxu0 %v804
  %1134 = vmatpush1.bf16.msra.mxu0 %v803
  %1135 = vmatprep.subr.bf16.mxu0 %v806
  %1136 = vmatpush1.bf16.msra.mxu0 %v805
  %1137 = vmatprep.subr.bf16.mxu0 %v808
  %1138 = vmatpush1.bf16.msra.mxu0 %v807
  %1139 = vmatprep.subr.bf16.mxu0 %v810
  %1140 = vmatpush1.bf16.msra.mxu0 %v809
  %1141 = vmatprep.mubr.bf16.mxu0 %v252
  %1142 = vmatmul.mubr.bf16.gmra.mrb[0].mxu0 %v251
  %v1143 = vpop.f32.mrb[0].mxu0
  %v1144 = vadd.f32 %v1091, %v1143
  %v1145 = vpop.f32.mrb[0].mxu0
  %v1146 = vadd.f32 %v1093, %v1145
  %v1147 = vpop.f32.mrb[0].mxu0
  %v1148 = vadd.f32 %v1095, %v1147
  %v1149 = vpop.f32.mrb[0].mxu0
  %v1150 = vadd.f32 %v1097, %v1149
  %1151 = vmatprep.mubr.bf16.mxu0 %v261
  %1152 = vmatmul.mubr.bf16.gmra.mrb[0].mxu0 %v260
  %v1153 = vpop.f32.mrb[0].mxu0
  %v1154 = vadd.f32 %v1101, %v1153
  %v1155 = vpop.f32.mrb[0].mxu0
  %v1156 = vadd.f32 %v1103, %v1155
  %v1157 = vpop.f32.mrb[0].mxu0
  %v1158 = vadd.f32 %v1105, %v1157
  %v1159 = vpop.f32.mrb[0].mxu0
  %v1160 = vadd.f32 %v1107, %v1159
  %1161 = vdwg.mxu0
  %1162 = vmatprep.subr.bf16.mxu0 %v812
  %1163 = vmatpush1.bf16.msra.mxu0 %v811
  %1164 = vmatprep.subr.bf16.mxu0 %v814
  %1165 = vmatpush1.bf16.msra.mxu0 %v813
  %1166 = vmatprep.subr.bf16.mxu0 %v816
  %1167 = vmatpush1.bf16.msra.mxu0 %v815
  %1168 = vmatprep.subr.bf16.mxu0 %v818
  %1169 = vmatpush1.bf16.msra.mxu0 %v817
  %1170 = vmatprep.subr.bf16.mxu0 %v820
  %1171 = vmatpush1.bf16.msra.mxu0 %v819
  %1172 = vmatprep.subr.bf16.mxu0 %v822
  %1173 = vmatpush1.bf16.msra.mxu0 %v821
  %1174 = vmatprep.subr.bf16.mxu0 %v824
  %1175 = vmatpush1.bf16.msra.mxu0 %v823
  %1176 = vmatprep.subr.bf16.mxu0 %v826
  %1177 = vmatpush1.bf16.msra.mxu0 %v825
  %1178 = vmatprep.subr.bf16.mxu0 %v828
  %1179 = vmatpush1.bf16.msra.mxu0 %v827
  %1180 = vmatprep.subr.bf16.mxu0 %v830
  %1181 = vmatpush1.bf16.msra.mxu0 %v829
  %1182 = vmatprep.subr.bf16.mxu0 %v832
  %1183 = vmatpush1.bf16.msra.mxu0 %v831
  %1184 = vmatprep.subr.bf16.mxu0 %v834
  %1185 = vmatpush1.bf16.msra.mxu0 %v833
  %1186 = vmatprep.subr.bf16.mxu0 %v836
  %1187 = vmatpush1.bf16.msra.mxu0 %v835
  %1188 = vmatprep.subr.bf16.mxu0 %v838
  %1189 = vmatpush1.bf16.msra.mxu0 %v837
  %1190 = vmatprep.subr.bf16.mxu0 %v840
  %1191 = vmatpush1.bf16.msra.mxu0 %v839
  %1192 = vmatprep.subr.bf16.mxu0 %v842
  %1193 = vmatpush1.bf16.msra.mxu0 %v841
  %1194 = vmatprep.mubr.bf16.mxu0 %v254
  %1195 = vmatmul.mubr.bf16.gmra.mrb[0].mxu0 %v253
  %v1196 = vpop.f32.mrb[0].mxu0
  %v1197 = vadd.f32 %v1144, %v1196
  %v1198 = vpop.f32.mrb[0].mxu0
  %v1199 = vadd.f32 %v1146, %v1198
  %v1200 = vpop.f32.mrb[0].mxu0
  %v1201 = vadd.f32 %v1148, %v1200
  %v1202 = vpop.f32.mrb[0].mxu0
  %v1203 = vadd.f32 %v1150, %v1202
  %1204 = vmatprep.mubr.bf16.mxu0 %v263
  %1205 = vmatmul.mubr.bf16.gmra.mrb[0].mxu0 %v262
  %v1206 = vpop.f32.mrb[0].mxu0
  %v1207 = vadd.f32 %v1154, %v1206
  %v1208 = vpop.f32.mrb[0].mxu0
  %v1209 = vadd.f32 %v1156, %v1208
  %v1210 = vpop.f32.mrb[0].mxu0
  %v1211 = vadd.f32 %v1158, %v1210
  %v1212 = vpop.f32.mrb[0].mxu0
  %v1213 = vadd.f32 %v1160, %v1212
  %1214 = vdwg.mxu0
  %1215 = vmatprep.subr.bf16.mxu0 %v844
  %1216 = vmatpush1.bf16.msra.mxu0 %v843
  %1217 = vmatprep.subr.bf16.mxu0 %v846
  %1218 = vmatpush1.bf16.msra.mxu0 %v845
  %1219 = vmatprep.subr.bf16.mxu0 %v848
  %1220 = vmatpush1.bf16.msra.mxu0 %v847
  %1221 = vmatprep.subr.bf16.mxu0 %v850
  %1222 = vmatpush1.bf16.msra.mxu0 %v849
  %1223 = vmatprep.subr.bf16.mxu0 %v852
  %1224 = vmatpush1.bf16.msra.mxu0 %v851
  %1225 = vmatprep.subr.bf16.mxu0 %v854
  %1226 = vmatpush1.bf16.msra.mxu0 %v853
  %1227 = vmatprep.subr.bf16.mxu0 %v856
  %1228 = vmatpush1.bf16.msra.mxu0 %v855
  %1229 = vmatprep.subr.bf16.mxu0 %v858
  %1230 = vmatpush1.bf16.msra.mxu0 %v857
  %1231 = vmatprep.subr.bf16.mxu0 0
  %1232 = vmatpush1.bf16.msra.mxu0 0
  %1233 = vmatprep.subr.bf16.mxu0 0
  %1234 = vmatpush1.bf16.msra.mxu0 0
  %1235 = vmatprep.subr.bf16.mxu0 0
  %1236 = vmatpush1.bf16.msra.mxu0 0
  %1237 = vmatprep.subr.bf16.mxu0 0
  %1238 = vmatpush1.bf16.msra.mxu0 0
  %1239 = vmatprep.subr.bf16.mxu0 0
  %1240 = vmatpush1.bf16.msra.mxu0 0
  %1241 = vmatprep.subr.bf16.mxu0 0
  %1242 = vmatpush1.bf16.msra.mxu0 0
  %1243 = vmatprep.subr.bf16.mxu0 0
  %1244 = vmatpush1.bf16.msra.mxu0 0
  %1245 = vmatprep.subr.bf16.mxu0 0
  %1246 = vmatpush1.bf16.msra.mxu0 0
  %1247 = vmatprep.mubr.bf16.mxu0 0
  %1248 = vmatmul.mubr.bf16.gmra.mrb[0].mxu0 %v255
  %v1249 = vpop.f32.mrb[0].mxu0
  %v1250 = vadd.f32 %v1197, %v1249
  %v1251 = vpop.f32.mrb[0].mxu0
  %v1252 = vadd.f32 %v1199, %v1251
  %v1253 = vpop.f32.mrb[0].mxu0
  %v1254 = vadd.f32 %v1201, %v1253
  %v1255 = vpop.f32.mrb[0].mxu0
  %v1256 = vadd.f32 %v1203, %v1255
  %1257 = vmatprep.mubr.bf16.mxu0 0
  %1258 = vmatmul.mubr.bf16.gmra.mrb[0].mxu0 %v264
  %v1259 = vpop.f32.mrb[0].mxu0
  %v1260 = vadd.f32 %v1207, %v1259
  %v1261 = vpop.f32.mrb[0].mxu0
  %v1262 = vadd.f32 %v1209, %v1261
  %v1263 = vpop.f32.mrb[0].mxu0
  %v1264 = vadd.f32 %v1211, %v1263
  %v1265 = vpop.f32.mrb[0].mxu0
  %v1266 = vadd.f32 %v1213, %v1265
  %1267 = vdwg.mxu0
  %v1268 = vmax.f32 %v1250, 0.0
  %v1269 = vmax.f32 %v1252, 0.0
  %v1270 = vmax.f32 %v1254, 0.0
  %v1271 = vmax.f32 %v1256, 0.0
  %v1272 = vmax.f32 %v1260, 0.0
  %v1273 = vmax.f32 %v1262, 0.0
  %v1274 = vmax.f32 %v1264, 0.0
  %v1275 = vmax.f32 %v1266, 0.0
  %1276 = vst [vmem:[%s3] sm:$0xff] %v1268
  %1277 = vst [vmem:[%s3 + $0x8] sm:$0xff] %v1269
  %1278 = vst [vmem:[%s3 + $0x10] sm:$0xff] %v1270
  %1279 = vst [vmem:[%s3 + $0x18] sm:$0xff] %v1271
  %1280 = vst [vmem:[%s3 + $0x20] sm:$0xff] %v1272
  %1281 = vst [vmem:[%s3 + $0x28] sm:$0xff] %v1273
  %1282 = vst [vmem:[%s3 + $0x30] sm:$0xff] %v1274
  %1283 = vst [vmem:[%s3 + $0x38] sm:$0xff] %v1275
  // Predicated region
  $region14: #{cornet_z_nonbiased_words_forward.13} parent=0 // pred_check
    _
  $region15: #{cornet_z_nonbiased_words_forward.13} parent=0 // pred_check_branch
    %1285 = sbr.rel (0) target = $region17
  $region16: #{cornet_z_nonbiased_words_forward.13} parent=0 // pred_region
    _
  $region17: #{cornet_z_nonbiased_words_forward.13} parent=0 // pred_fallthru
    _
  // Predicated region
  $region18: #{cornet_z_nonbiased_words_forward.13} parent=0 // pred_check
    _
  $region19: #{cornet_z_nonbiased_words_forward.13} parent=0 // pred_check_branch
    %1287 = sbr.rel (0) target = $region21
  $region20: #{cornet_z_nonbiased_words_forward.13} parent=0 // pred_region
    _
  $region21: #{cornet_z_nonbiased_words_forward.13} parent=0 // pred_fallthru
    _

// kernel: cornet_z_nonbiased_words_forward.14
$region0: #{cornet_z_nonbiased_words_forward.14}
  #allocation0 [shape = 'u32[]', space=smem, size = 0x4, offset = 0x4, fixed_abs, tag = 'smem constant byte address 0x4 - core index']
  #allocation1 [shape = 'u32[144,128]{1,0:T(1,128)}', space=vmem, size = 0x12000, scoped, tag = 'internal scratch']
  %s0 = inlined_call_operand.vmem [shape: f32[9,8,256], index: 0, kind: input, shape index: {}]
  %s1 = inlined_call_operand.vmem [shape: f32[8,256], index: 1, kind: output, shape index: {}]
  %s2 = sld [smem:[#allocation0]]
  $region14: #{cornet_z_nonbiased_words_forward.14} parent=0
    _
  %s4 = ssub.s32 1, %s2
  %s5 = scalar_select 0, %s4, %s2
  // Predicated region
  $region2: #{cornet_z_nonbiased_words_forward.14} parent=0 // pred_check
    _
  $region3: #{cornet_z_nonbiased_words_forward.14} parent=0 // pred_check_branch
    %7 = sbr.rel (0) target = $region5
  $region4: #{cornet_z_nonbiased_words_forward.14} parent=0 // pred_region
    _
  $region5: #{cornet_z_nonbiased_words_forward.14} parent=0 // pred_fallthru
    _
  %v8 = vld [vmem:[%s0] sm:$0xff]
  %v9 = vld [vmem:[%s0 + $0x8] sm:$0xff]
  %v10 = vld [vmem:[%s0 + $0x10] sm:$0xff]
  %v11 = vld [vmem:[%s0 + $0x18] sm:$0xff]
  %v12 = vld [vmem:[%s0 + $0x20] sm:$0xff]
  %v13 = vld [vmem:[%s0 + $0x28] sm:$0xff]
  %v14 = vld [vmem:[%s0 + $0x30] sm:$0xff]
  %v15 = vld [vmem:[%s0 + $0x38] sm:$0xff]
  %v16 = vld [vmem:[%s0 + $0x40] sm:$0xff]
  %v17 = vld [vmem:[%s0 + $0x48] sm:$0xff]
  %v18 = vld [vmem:[%s0 + $0x50] sm:$0xff]
  %v19 = vld [vmem:[%s0 + $0x58] sm:$0xff]
  %v20 = vld [vmem:[%s0 + $0x60] sm:$0xff]
  %v21 = vld [vmem:[%s0 + $0x68] sm:$0xff]
  %v22 = vld [vmem:[%s0 + $0x70] sm:$0xff]
  %v23 = vld [vmem:[%s0 + $0x78] sm:$0xff]
  %v24 = vld [vmem:[%s0 + $0x80] sm:$0xff]
  %v25 = vld [vmem:[%s0 + $0x88] sm:$0xff]
  %v26 = vmax.f32 %v8, %v12
  %v27 = vmax.f32 %v10, %v14
  %v28 = vmax.f32 %v26, %v16
  %v29 = vmax.f32 %v27, %v18
  %v30 = vmax.f32 %v28, %v20
  %v31 = vmax.f32 %v29, %v22
  %v32 = vmax.f32 %v30, %v24
  %v33 = vmax.f32 %v32, %v31
  %v34 = vmax.f32 %v9, %v13
  %v35 = vmax.f32 %v11, %v15
  %v36 = vmax.f32 %v34, %v17
  %v37 = vmax.f32 %v35, %v19
  %v38 = vmax.f32 %v36, %v21
  %v39 = vmax.f32 %v37, %v23
  %v40 = vmax.f32 %v38, %v25
  %v41 = vmax.f32 %v40, %v39
  %42 = vst [vmem:[%s1] sm:$0xff] %v33
  %43 = vst [vmem:[%s1 + $0x8] sm:$0xff] %v41
  // Predicated region
  $region6: #{cornet_z_nonbiased_words_forward.14} parent=0 // pred_check
    _
  $region7: #{cornet_z_nonbiased_words_forward.14} parent=0 // pred_check_branch
    %45 = sbr.rel (0) target = $region9
  $region8: #{cornet_z_nonbiased_words_forward.14} parent=0 // pred_region
    _
  $region9: #{cornet_z_nonbiased_words_forward.14} parent=0 // pred_fallthru
    _
  // Predicated region
  $region10: #{cornet_z_nonbiased_words_forward.14} parent=0 // pred_check
    _
  $region11: #{cornet_z_nonbiased_words_forward.14} parent=0 // pred_check_branch
    %47 = sbr.rel (0) target = $region13
  $region12: #{cornet_z_nonbiased_words_forward.14} parent=0 // pred_region
    _
  $region13: #{cornet_z_nonbiased_words_forward.14} parent=0 // pred_fallthru
    _

// kernel: cornet_z_nonbiased_words_forward.16
$region0: #{cornet_z_nonbiased_words_forward.16}
  #allocation0 [shape = 'u32[]', space=smem, size = 0x4, offset = 0x4, fixed_abs, tag = 'smem constant byte address 0x4 - core index']
  #allocation1 [shape = 'u32[144,128]{1,0:T(1,128)}', space=vmem, size = 0x12000, scoped, tag = 'internal scratch']
  %s0 = inlined_call_operand.vmem [shape: f32[9,8,512], index: 0, kind: input, shape index: {}]
  %s1 = inlined_call_operand.vmem [shape: f32[8,512], index: 1, kind: output, shape index: {}]
  %s2 = sld [smem:[#allocation0]]
  $region14: #{cornet_z_nonbiased_words_forward.16} parent=0
    _
  %s4 = ssub.s32 1, %s2
  %s5 = scalar_select 0, %s4, %s2
  // Predicated region
  $region2: #{cornet_z_nonbiased_words_forward.16} parent=0 // pred_check
    _
  $region3: #{cornet_z_nonbiased_words_forward.16} parent=0 // pred_check_branch
    %7 = sbr.rel (0) target = $region5
  $region4: #{cornet_z_nonbiased_words_forward.16} parent=0 // pred_region
    _
  $region5: #{cornet_z_nonbiased_words_forward.16} parent=0 // pred_fallthru
    _
  %v8 = vld [vmem:[%s0] sm:$0xff]
  %v9 = vld [vmem:[%s0 + $0x8] sm:$0xff]
  %v10 = vld [vmem:[%s0 + $0x10] sm:$0xff]
  %v11 = vld [vmem:[%s0 + $0x18] sm:$0xff]
  %v12 = vld [vmem:[%s0 + $0x20] sm:$0xff]
  %v13 = vld [vmem:[%s0 + $0x28] sm:$0xff]
  %v14 = vld [vmem:[%s0 + $0x30] sm:$0xff]
  %v15 = vld [vmem:[%s0 + $0x38] sm:$0xff]
  %v16 = vld [vmem:[%s0 + $0x40] sm:$0xff]
  %v17 = vld [vmem:[%s0 + $0x48] sm:$0xff]
  %v18 = vld [vmem:[%s0 + $0x50] sm:$0xff]
  %v19 = vld [vmem:[%s0 + $0x58] sm:$0xff]
  %v20 = vld [vmem:[%s0 + $0x60] sm:$0xff]
  %v21 = vld [vmem:[%s0 + $0x68] sm:$0xff]
  %v22 = vld [vmem:[%s0 + $0x70] sm:$0xff]
  %v23 = vld [vmem:[%s0 + $0x78] sm:$0xff]
  %v24 = vld [vmem:[%s0 + $0x80] sm:$0xff]
  %v25 = vld [vmem:[%s0 + $0x88] sm:$0xff]
  %v26 = vld [vmem:[%s0 + $0x90] sm:$0xff]
  %v27 = vld [vmem:[%s0 + $0x98] sm:$0xff]
  %v28 = vld [vmem:[%s0 + $0xa0] sm:$0xff]
  %v29 = vld [vmem:[%s0 + $0xa8] sm:$0xff]
  %v30 = vld [vmem:[%s0 + $0xb0] sm:$0xff]
  %v31 = vld [vmem:[%s0 + $0xb8] sm:$0xff]
  %v32 = vld [vmem:[%s0 + $0xc0] sm:$0xff]
  %v33 = vld [vmem:[%s0 + $0xc8] sm:$0xff]
  %v34 = vld [vmem:[%s0 + $0xd0] sm:$0xff]
  %v35 = vld [vmem:[%s0 + $0xd8] sm:$0xff]
  %v36 = vld [vmem:[%s0 + $0xe0] sm:$0xff]
  %v37 = vld [vmem:[%s0 + $0xe8] sm:$0xff]
  %v38 = vld [vmem:[%s0 + $0xf0] sm:$0xff]
  %v39 = vld [vmem:[%s0 + $0xf8] sm:$0xff]
  %v40 = vld [vmem:[%s0 + $0x100] sm:$0xff]
  %v41 = vld [vmem:[%s0 + $0x108] sm:$0xff]
  %v42 = vld [vmem:[%s0 + $0x110] sm:$0xff]
  %v43 = vld [vmem:[%s0 + $0x118] sm:$0xff]
  %v44 = vmax.f32 %v8, %v12
  %v45 = vmax.f32 %v44, %v16
  %v46 = vmax.f32 %v45, %v20
  %v47 = vmax.f32 %v46, %v24
  %v48 = vmax.f32 %v47, %v28
  %v49 = vmax.f32 %v48, %v32
  %v50 = vmax.f32 %v49, %v36
  %v51 = vmax.f32 %v50, %v40
  %v52 = vmax.f32 %v9, %v13
  %v53 = vmax.f32 %v52, %v17
  %v54 = vmax.f32 %v53, %v21
  %v55 = vmax.f32 %v54, %v25
  %v56 = vmax.f32 %v55, %v29
  %v57 = vmax.f32 %v56, %v33
  %v58 = vmax.f32 %v57, %v37
  %v59 = vmax.f32 %v58, %v41
  %v60 = vmax.f32 %v10, %v14
  %v61 = vmax.f32 %v60, %v18
  %v62 = vmax.f32 %v61, %v22
  %v63 = vmax.f32 %v62, %v26
  %v64 = vmax.f32 %v63, %v30
  %v65 = vmax.f32 %v64, %v34
  %v66 = vmax.f32 %v65, %v38
  %v67 = vmax.f32 %v66, %v42
  %v68 = vmax.f32 %v11, %v15
  %v69 = vmax.f32 %v68, %v19
  %v70 = vmax.f32 %v69, %v23
  %v71 = vmax.f32 %v70, %v27
  %v72 = vmax.f32 %v71, %v31
  %v73 = vmax.f32 %v72, %v35
  %v74 = vmax.f32 %v73, %v39
  %v75 = vmax.f32 %v74, %v43
  %76 = vst [vmem:[%s1] sm:$0xff] %v51
  %77 = vst [vmem:[%s1 + $0x8] sm:$0xff] %v59
  %78 = vst [vmem:[%s1 + $0x10] sm:$0xff] %v67
  %79 = vst [vmem:[%s1 + $0x18] sm:$0xff] %v75
  // Predicated region
  $region6: #{cornet_z_nonbiased_words_forward.16} parent=0 // pred_check
    _
  $region7: #{cornet_z_nonbiased_words_forward.16} parent=0 // pred_check_branch
    %81 = sbr.rel (0) target = $region9
  $region8: #{cornet_z_nonbiased_words_forward.16} parent=0 // pred_region
    _
  $region9: #{cornet_z_nonbiased_words_forward.16} parent=0 // pred_fallthru
    _
  // Predicated region
  $region10: #{cornet_z_nonbiased_words_forward.16} parent=0 // pred_check
    _
  $region11: #{cornet_z_nonbiased_words_forward.16} parent=0 // pred_check_branch
    %83 = sbr.rel (0) target = $region13
  $region12: #{cornet_z_nonbiased_words_forward.16} parent=0 // pred_region
    _
  $region13: #{cornet_z_nonbiased_words_forward.16} parent=0 // pred_fallthru
    _

// kernel: cornet_z_nonbiased_words_forward.17
$region0: #{cornet_z_nonbiased_words_forward.17}
  #allocation0 [shape = 'u32[]', space=smem, size = 0x4, offset = 0x4, fixed_abs, tag = 'smem constant byte address 0x4 - core index']
  #allocation1 [shape = 'u32[144,128]{1,0:T(1,128)}', space=vmem, size = 0x12000, scoped, tag = 'internal scratch']
  %s0 = inlined_call_operand.vmem [shape: f32[2,1,512], index: 0, kind: input, shape index: {}]
  %s1 = inlined_call_operand.vmem [shape: bf16[512,128], index: 1, kind: input, shape index: {}]
  %s2 = inlined_call_operand.vmem [shape: f32[1,128], index: 2, kind: input, shape index: {}]
  %s3 = inlined_call_operand.hbm [shape: f32[2,512], index: 3, kind: output, shape index: {0}]
  %s4 = inlined_call_operand.hbm [shape: f32[2,128], index: 4, kind: output, shape index: {1}]
  %5 = xla_tuple %s3, %s4
  %s6 = sld [smem:[#allocation0]]
  $region30: #{cornet_z_nonbiased_words_forward.17} parent=0
    _
  %s8 = ssub.s32 1, %s6
  %s9 = scalar_select 0, %s8, %s6
  $region1: #{cornet_z_nonbiased_words_forward.17} parent=0
    #allocation2 [shape = 'u8[4096]{0}', space=vmem, size = 0x1000, scoped, tag = 'output window, operand 0, single buffered']
    #allocation3 [shape = 's32[1]{0}', space=sflag, size = 0x4, scoped, tag = 'scoped memory for cornet_z_nonbiased_words_forward.17']
    #allocation4 [shape = 'u8[1024]{0}', space=vmem, size = 0x400, scoped, tag = 'output window, operand 1, single buffered']
    #allocation5 [shape = 's32[1]{0}', space=sflag, size = 0x4, scoped, tag = 'scoped memory for cornet_z_nonbiased_words_forward.17']
    %10 = vsyncpa [#allocation3], 0
    %11 = vsyncpa [#allocation5], 0
    // Predicated region
    $region2: #{cornet_z_nonbiased_words_forward.17} parent=1 // pred_check
      _
    $region3: #{cornet_z_nonbiased_words_forward.17} parent=1 // pred_check_branch
      %13 = sbr.rel (0) target = $region5
    $region4: #{cornet_z_nonbiased_words_forward.17} parent=1 // pred_region
      _
    $region5: #{cornet_z_nonbiased_words_forward.17} parent=1 // pred_fallthru
      _
    // Predicated region
    $region6: #{cornet_z_nonbiased_words_forward.17} parent=1 // pred_check
      _
    $region7: #{cornet_z_nonbiased_words_forward.17} parent=1 // pred_check_branch
      %15 = sbr.rel (0) target = $region9
    $region8: #{cornet_z_nonbiased_words_forward.17} parent=1 // pred_region
      _
    $region9: #{cornet_z_nonbiased_words_forward.17} parent=1 // pred_fallthru
      _
    // Predicated region
    $region10: #{cornet_z_nonbiased_words_forward.17} parent=1 // pred_check
      _
    $region11: #{cornet_z_nonbiased_words_forward.17} parent=1 // pred_check_branch
      %17 = sbr.rel (0) target = $region13
    $region12: #{cornet_z_nonbiased_words_forward.17} parent=1 // pred_region
      _
    $region13: #{cornet_z_nonbiased_words_forward.17} parent=1 // pred_fallthru
      _
    %v19 = vld [vmem:[%s0] sm:$0xf]
    %v20 = vld [vmem:[%s0 + $0x4] sm:$0xf]
    %v21 = vadd.f32 %v19, 0.0
    %v22 = vadd.f32 %v20, 0.0
    %v25 = vcombine.low %v21, %v22
    %v27 = vunpack.c.l.s4 1935823168
    %v28 = vunpack.c.0.s8 %v27
    %v29 = vlaneseq
    %v30 = vshrl.u32 %v29, 7
    %v31 = vsub.s32 %v28, %v30
    %v32 = vrot.slane %v25, %v31
    %34 = vst [vmem:[#allocation2] sm:$0xff] %v32
    %v35 = vlaneseq
    %v36 = vshrl.u32 %v35, 7
    %v37 = vsub.s32 0, %v36
    %v38 = vrot.slane %v21, %v37
    %v39 = vlaneseq
    %v40 = vshrl.u32 %v39, 7
    %v41 = vsub.s32 1, %v40
    %v42 = vrot.slane %v21, %v41
    %v43 = vlaneseq
    %v44 = vshrl.u32 %v43, 7
    %v45 = vsub.s32 2, %v44
    %v46 = vrot.slane %v21, %v45
    %v47 = vlaneseq
    %v48 = vshrl.u32 %v47, 7
    %v49 = vsub.s32 3, %v48
    %v50 = vrot.slane %v21, %v49
    %v51 = vlaneseq
    %v52 = vshrl.u32 %v51, 7
    %v53 = vsub.s32 0, %v52
    %v54 = vrot.slane %v22, %v53
    %v55 = vlaneseq
    %v56 = vshrl.u32 %v55, 7
    %v57 = vsub.s32 1, %v56
    %v58 = vrot.slane %v22, %v57
    %v59 = vlaneseq
    %v60 = vshrl.u32 %v59, 7
    %v61 = vsub.s32 2, %v60
    %v62 = vrot.slane %v22, %v61
    %v63 = vlaneseq
    %v64 = vshrl.u32 %v63, 7
    %v65 = vsub.s32 3, %v64
    %v66 = vrot.slane %v22, %v65
    %v75 = vpack.c.bf16 %v38, %v38
    %v76 = vpack.c.bf16 %v42, %v42
    %v77 = vpack.c.bf16 %v46, %v46
    %v78 = vpack.c.bf16 %v50, %v50
    %v79 = vpack.c.bf16 %v54, %v54
    %v80 = vpack.c.bf16 %v58, %v58
    %v81 = vpack.c.bf16 %v62, %v62
    %v82 = vpack.c.bf16 %v66, %v66
    %v83 = vld [vmem:[%s1] sm:$0xf]
    %v84 = vld [vmem:[%s1 + $0x4] sm:$0xf]
    %v85 = vld [vmem:[%s1 + $0x8] sm:$0xf]
    %v86 = vld [vmem:[%s1 + $0xc] sm:$0xf]
    %v87 = vld [vmem:[%s1 + $0x10] sm:$0xf]
    %v88 = vld [vmem:[%s1 + $0x14] sm:$0xf]
    %v89 = vld [vmem:[%s1 + $0x18] sm:$0xf]
    %v90 = vld [vmem:[%s1 + $0x1c] sm:$0xf]
    %v91 = vld [vmem:[%s1 + $0x20] sm:$0xf]
    %v92 = vld [vmem:[%s1 + $0x24] sm:$0xf]
    %v93 = vld [vmem:[%s1 + $0x28] sm:$0xf]
    %v94 = vld [vmem:[%s1 + $0x2c] sm:$0xf]
    %v95 = vld [vmem:[%s1 + $0x30] sm:$0xf]
    %v96 = vld [vmem:[%s1 + $0x34] sm:$0xf]
    %v97 = vld [vmem:[%s1 + $0x38] sm:$0xf]
    %v98 = vld [vmem:[%s1 + $0x3c] sm:$0xf]
    %v99 = vld [vmem:[%s1 + $0x40] sm:$0xf]
    %v100 = vld [vmem:[%s1 + $0x44] sm:$0xf]
    %v101 = vld [vmem:[%s1 + $0x48] sm:$0xf]
    %v102 = vld [vmem:[%s1 + $0x4c] sm:$0xf]
    %v103 = vld [vmem:[%s1 + $0x50] sm:$0xf]
    %v104 = vld [vmem:[%s1 + $0x54] sm:$0xf]
    %v105 = vld [vmem:[%s1 + $0x58] sm:$0xf]
    %v106 = vld [vmem:[%s1 + $0x5c] sm:$0xf]
    %v107 = vld [vmem:[%s1 + $0x60] sm:$0xf]
    %v108 = vld [vmem:[%s1 + $0x64] sm:$0xf]
    %v109 = vld [vmem:[%s1 + $0x68] sm:$0xf]
    %v110 = vld [vmem:[%s1 + $0x6c] sm:$0xf]
    %v111 = vld [vmem:[%s1 + $0x70] sm:$0xf]
    %v112 = vld [vmem:[%s1 + $0x74] sm:$0xf]
    %v113 = vld [vmem:[%s1 + $0x78] sm:$0xf]
    %v114 = vld [vmem:[%s1 + $0x7c] sm:$0xf]
    %v115 = vld [vmem:[%s1 + $0x80] sm:$0xf]
    %v116 = vld [vmem:[%s1 + $0x84] sm:$0xf]
    %v117 = vld [vmem:[%s1 + $0x88] sm:$0xf]
    %v118 = vld [vmem:[%s1 + $0x8c] sm:$0xf]
    %v119 = vld [vmem:[%s1 + $0x90] sm:$0xf]
    %v120 = vld [vmem:[%s1 + $0x94] sm:$0xf]
    %v121 = vld [vmem:[%s1 + $0x98] sm:$0xf]
    %v122 = vld [vmem:[%s1 + $0x9c] sm:$0xf]
    %v123 = vld [vmem:[%s1 + $0xa0] sm:$0xf]
    %v124 = vld [vmem:[%s1 + $0xa4] sm:$0xf]
    %v125 = vld [vmem:[%s1 + $0xa8] sm:$0xf]
    %v126 = vld [vmem:[%s1 + $0xac] sm:$0xf]
    %v127 = vld [vmem:[%s1 + $0xb0] sm:$0xf]
    %v128 = vld [vmem:[%s1 + $0xb4] sm:$0xf]
    %v129 = vld [vmem:[%s1 + $0xb8] sm:$0xf]
    %v130 = vld [vmem:[%s1 + $0xbc] sm:$0xf]
    %v131 = vld [vmem:[%s1 + $0xc0] sm:$0xf]
    %v132 = vld [vmem:[%s1 + $0xc4] sm:$0xf]
    %v133 = vld [vmem:[%s1 + $0xc8] sm:$0xf]
    %v134 = vld [vmem:[%s1 + $0xcc] sm:$0xf]
    %v135 = vld [vmem:[%s1 + $0xd0] sm:$0xf]
    %v136 = vld [vmem:[%s1 + $0xd4] sm:$0xf]
    %v137 = vld [vmem:[%s1 + $0xd8] sm:$0xf]
    %v138 = vld [vmem:[%s1 + $0xdc] sm:$0xf]
    %v139 = vld [vmem:[%s1 + $0xe0] sm:$0xf]
    %v140 = vld [vmem:[%s1 + $0xe4] sm:$0xf]
    %v141 = vld [vmem:[%s1 + $0xe8] sm:$0xf]
    %v142 = vld [vmem:[%s1 + $0xec] sm:$0xf]
    %v143 = vld [vmem:[%s1 + $0xf0] sm:$0xf]
    %v144 = vld [vmem:[%s1 + $0xf4] sm:$0xf]
    %v145 = vld [vmem:[%s1 + $0xf8] sm:$0xf]
    %v146 = vld [vmem:[%s1 + $0xfc] sm:$0xf]
    %v147 = vld [vmem:[%s2] sm:$0x1]
    %v149 = vlaneseq
    %v150 = vshrl.u32 %v149, 7
    %v151 = vsub.s32 0, %v150
    %v152 = vrot.slane %v147, %v151
    %v162 = vunpack.c.l.b16 %v75
    %v163 = vunpack.c.l.b16 %v76
    %v164 = vunpack.c.l.b16 %v77
    %v165 = vunpack.c.l.b16 %v78
    %v166 = vunpack.c.l.b16 %v79
    %v167 = vunpack.c.l.b16 %v80
    %v168 = vunpack.c.l.b16 %v81
    %v169 = vunpack.c.l.b16 %v82
    %v170 = vrot.slane %v166, 7
    %vm171 = vcmask 1041409
    %v172 = vsel %vm171, %v170, %v162
    %v173 = vrot.slane %v167, 7
    %v174 = vsel %vm171, %v173, %v163
    %v175 = vrot.slane %v168, 7
    %v176 = vsel %vm171, %v175, %v164
    %v177 = vrot.slane %v169, 7
    %v178 = vsel %vm171, %v177, %v165
    %v179 = vpack.c.b16 %v172, %v172
    %v180 = vpack.c.b16 %v174, %v174
    %v181 = vpack.c.b16 %v176, %v176
    %v182 = vpack.c.b16 %v178, %v178
    %v251 = vunpack.c.l.b16 %v83
    %v252 = vunpack.c.l.b16 %v84
    %v253 = vunpack.c.l.b16 %v85
    %v254 = vunpack.c.l.b16 %v86
    %v255 = vunpack.c.l.b16 %v87
    %v256 = vunpack.c.l.b16 %v88
    %v257 = vunpack.c.l.b16 %v89
    %v258 = vunpack.c.l.b16 %v90
    %v259 = vunpack.c.l.b16 %v91
    %v260 = vunpack.c.l.b16 %v92
    %v261 = vunpack.c.l.b16 %v93
    %v262 = vunpack.c.l.b16 %v94
    %v263 = vunpack.c.l.b16 %v95
    %v264 = vunpack.c.l.b16 %v96
    %v265 = vunpack.c.l.b16 %v97
    %v266 = vunpack.c.l.b16 %v98
    %v267 = vunpack.c.l.b16 %v99
    %v268 = vunpack.c.l.b16 %v100
    %v269 = vunpack.c.l.b16 %v101
    %v270 = vunpack.c.l.b16 %v102
    %v271 = vunpack.c.l.b16 %v103
    %v272 = vunpack.c.l.b16 %v104
    %v273 = vunpack.c.l.b16 %v105
    %v274 = vunpack.c.l.b16 %v106
    %v275 = vunpack.c.l.b16 %v107
    %v276 = vunpack.c.l.b16 %v108
    %v277 = vunpack.c.l.b16 %v109
    %v278 = vunpack.c.l.b16 %v110
    %v279 = vunpack.c.l.b16 %v111
    %v280 = vunpack.c.l.b16 %v112
    %v281 = vunpack.c.l.b16 %v113
    %v282 = vunpack.c.l.b16 %v114
    %v283 = vunpack.c.l.b16 %v115
    %v284 = vunpack.c.l.b16 %v116
    %v285 = vunpack.c.l.b16 %v117
    %v286 = vunpack.c.l.b16 %v118
    %v287 = vunpack.c.l.b16 %v119
    %v288 = vunpack.c.l.b16 %v120
    %v289 = vunpack.c.l.b16 %v121
    %v290 = vunpack.c.l.b16 %v122
    %v291 = vunpack.c.l.b16 %v123
    %v292 = vunpack.c.l.b16 %v124
    %v293 = vunpack.c.l.b16 %v125
    %v294 = vunpack.c.l.b16 %v126
    %v295 = vunpack.c.l.b16 %v127
    %v296 = vunpack.c.l.b16 %v128
    %v297 = vunpack.c.l.b16 %v129
    %v298 = vunpack.c.l.b16 %v130
    %v299 = vunpack.c.l.b16 %v131
    %v300 = vunpack.c.l.b16 %v132
    %v301 = vunpack.c.l.b16 %v133
    %v302 = vunpack.c.l.b16 %v134
    %v303 = vunpack.c.l.b16 %v135
    %v304 = vunpack.c.l.b16 %v136
    %v305 = vunpack.c.l.b16 %v137
    %v306 = vunpack.c.l.b16 %v138
    %v307 = vunpack.c.l.b16 %v139
    %v308 = vunpack.c.l.b16 %v140
    %v309 = vunpack.c.l.b16 %v141
    %v310 = vunpack.c.l.b16 %v142
    %v311 = vunpack.c.l.b16 %v143
    %v312 = vunpack.c.l.b16 %v144
    %v313 = vunpack.c.l.b16 %v145
    %v314 = vunpack.c.l.b16 %v146
    %v315 = vpack.c.b16 %v252, %v251
    %v316 = vpack.c.b16 %v254, %v253
    %v317 = vpack.c.b16 %v256, %v255
    %v318 = vpack.c.b16 %v258, %v257
    %v319 = vpack.c.b16 %v260, %v259
    %v320 = vpack.c.b16 %v262, %v261
    %v321 = vpack.c.b16 %v264, %v263
    %v322 = vpack.c.b16 %v266, %v265
    %v323 = vpack.c.b16 %v268, %v267
    %v324 = vpack.c.b16 %v270, %v269
    %v325 = vpack.c.b16 %v272, %v271
    %v326 = vpack.c.b16 %v274, %v273
    %v327 = vpack.c.b16 %v276, %v275
    %v328 = vpack.c.b16 %v278, %v277
    %v329 = vpack.c.b16 %v280, %v279
    %v330 = vpack.c.b16 %v282, %v281
    %v331 = vpack.c.b16 %v284, %v283
    %v332 = vpack.c.b16 %v286, %v285
    %v333 = vpack.c.b16 %v288, %v287
    %v334 = vpack.c.b16 %v290, %v289
    %v335 = vpack.c.b16 %v292, %v291
    %v336 = vpack.c.b16 %v294, %v293
    %v337 = vpack.c.b16 %v296, %v295
    %v338 = vpack.c.b16 %v298, %v297
    %v339 = vpack.c.b16 %v300, %v299
    %v340 = vpack.c.b16 %v302, %v301
    %v341 = vpack.c.b16 %v304, %v303
    %v342 = vpack.c.b16 %v306, %v305
    %v343 = vpack.c.b16 %v308, %v307
    %v344 = vpack.c.b16 %v310, %v309
    %v345 = vpack.c.b16 %v312, %v311
    %v346 = vpack.c.b16 %v314, %v313
    %379 = vmatprep.subr.bf16.mxu0 0
    %380 = vmatpush1.bf16.msra.mxu0 %v315
    %381 = vmatprep.subr.bf16.mxu0 0
    %382 = vmatpush1.bf16.msra.mxu0 %v316
    %383 = vmatprep.subr.bf16.mxu0 0
    %384 = vmatpush1.bf16.msra.mxu0 %v317
    %385 = vmatprep.subr.bf16.mxu0 0
    %386 = vmatpush1.bf16.msra.mxu0 %v318
    %387 = vmatprep.subr.bf16.mxu0 0
    %388 = vmatpush1.bf16.msra.mxu0 %v319
    %389 = vmatprep.subr.bf16.mxu0 0
    %390 = vmatpush1.bf16.msra.mxu0 %v320
    %391 = vmatprep.subr.bf16.mxu0 0
    %392 = vmatpush1.bf16.msra.mxu0 %v321
    %393 = vmatprep.subr.bf16.mxu0 0
    %394 = vmatpush1.bf16.msra.mxu0 %v322
    %395 = vmatprep.subr.bf16.mxu0 0
    %396 = vmatpush1.bf16.msra.mxu0 %v323
    %397 = vmatprep.subr.bf16.mxu0 0
    %398 = vmatpush1.bf16.msra.mxu0 %v324
    %399 = vmatprep.subr.bf16.mxu0 0
    %400 = vmatpush1.bf16.msra.mxu0 %v325
    %401 = vmatprep.subr.bf16.mxu0 0
    %402 = vmatpush1.bf16.msra.mxu0 %v326
    %403 = vmatprep.subr.bf16.mxu0 0
    %404 = vmatpush1.bf16.msra.mxu0 %v327
    %405 = vmatprep.subr.bf16.mxu0 0
    %406 = vmatpush1.bf16.msra.mxu0 %v328
    %407 = vmatprep.subr.bf16.mxu0 0
    %408 = vmatpush1.bf16.msra.mxu0 %v329
    %409 = vmatprep.subr.bf16.mxu0 0
    %410 = vmatpush1.bf16.msra.mxu0 %v330
    %411 = vmatprep.mubr.bf16.mxu0 %v180
    %412 = vmatmul.mubr.bf16.gmra.mrb[0].mxu0 %v179
    %v413 = vpop.f32.mrb[0].mxu0
    %v414 = vadd.f32 %v152, %v413
    %v415 = vpop.f32.mrb[0].mxu0
    %v416 = vpop.f32.mrb[0].mxu0
    %v417 = vpop.f32.mrb[0].mxu0
    %418 = vdwg.mxu0
    %419 = vmatprep.subr.bf16.mxu0 0
    %420 = vmatpush1.bf16.msra.mxu0 %v331
    %421 = vmatprep.subr.bf16.mxu0 0
    %422 = vmatpush1.bf16.msra.mxu0 %v332
    %423 = vmatprep.subr.bf16.mxu0 0
    %424 = vmatpush1.bf16.msra.mxu0 %v333
    %425 = vmatprep.subr.bf16.mxu0 0
    %426 = vmatpush1.bf16.msra.mxu0 %v334
    %427 = vmatprep.subr.bf16.mxu0 0
    %428 = vmatpush1.bf16.msra.mxu0 %v335
    %429 = vmatprep.subr.bf16.mxu0 0
    %430 = vmatpush1.bf16.msra.mxu0 %v336
    %431 = vmatprep.subr.bf16.mxu0 0
    %432 = vmatpush1.bf16.msra.mxu0 %v337
    %433 = vmatprep.subr.bf16.mxu0 0
    %434 = vmatpush1.bf16.msra.mxu0 %v338
    %435 = vmatprep.subr.bf16.mxu0 0
    %436 = vmatpush1.bf16.msra.mxu0 %v339
    %437 = vmatprep.subr.bf16.mxu0 0
    %438 = vmatpush1.bf16.msra.mxu0 %v340
    %439 = vmatprep.subr.bf16.mxu0 0
    %440 = vmatpush1.bf16.msra.mxu0 %v341
    %441 = vmatprep.subr.bf16.mxu0 0
    %442 = vmatpush1.bf16.msra.mxu0 %v342
    %443 = vmatprep.subr.bf16.mxu0 0
    %444 = vmatpush1.bf16.msra.mxu0 %v343
    %445 = vmatprep.subr.bf16.mxu0 0
    %446 = vmatpush1.bf16.msra.mxu0 %v344
    %447 = vmatprep.subr.bf16.mxu0 0
    %448 = vmatpush1.bf16.msra.mxu0 %v345
    %449 = vmatprep.subr.bf16.mxu0 0
    %450 = vmatpush1.bf16.msra.mxu0 %v346
    %451 = vmatprep.mubr.bf16.mxu0 %v182
    %452 = vmatmul.mubr.bf16.gmra.mrb[0].mxu0 %v181
    %v453 = vpop.f32.mrb[0].mxu0
    %v454 = vadd.f32 %v414, %v453
    %v455 = vpop.f32.mrb[0].mxu0
    %v456 = vpop.f32.mrb[0].mxu0
    %v457 = vpop.f32.mrb[0].mxu0
    %458 = vdwg.mxu0
    %459 = vst [vmem:[#allocation4] sm:$0x3] %v454
    // Predicated region
    $region14: #{cornet_z_nonbiased_words_forward.17} parent=1 // pred_check
      _
    $region15: #{cornet_z_nonbiased_words_forward.17} parent=1 // pred_check_branch
      %461 = sbr.rel (0) target = $region17
    $region16: #{cornet_z_nonbiased_words_forward.17} parent=1 // pred_region
      %s463 = ssub.s32 128, 128
      %464 = vsyncadd [#allocation3], %s463
      %s466 = sshll.u32 [#allocation2], 4
      %s467 = int_to_ptr.vmem [resolvable:$true] %s466
      %469 = dma.vmem_to_hbm [thread:$0]  %s467, 128, %s3, [#allocation3]
    $region17: #{cornet_z_nonbiased_words_forward.17} parent=1 // pred_fallthru
      _
    // Predicated region
    $region18: #{cornet_z_nonbiased_words_forward.17} parent=1 // pred_check
      _
    $region19: #{cornet_z_nonbiased_words_forward.17} parent=1 // pred_check_branch
      %471 = sbr.rel (0) target = $region21
    $region20: #{cornet_z_nonbiased_words_forward.17} parent=1 // pred_region
      %s473 = ssub.s32 32, 32
      %474 = vsyncadd [#allocation5], %s473
      %s476 = sshll.u32 [#allocation4], 4
      %s477 = int_to_ptr.vmem [resolvable:$true] %s476
      %479 = dma.vmem_to_hbm [thread:$0]  %s477, 32, %s4, [#allocation5]
    $region21: #{cornet_z_nonbiased_words_forward.17} parent=1 // pred_fallthru
      _
    // Predicated region
    $region22: #{cornet_z_nonbiased_words_forward.17} parent=1 // pred_check
      _
    $region23: #{cornet_z_nonbiased_words_forward.17} parent=1 // pred_check_branch
      %481 = sbr.rel (0) target = $region25
    $region24: #{cornet_z_nonbiased_words_forward.17} parent=1 // pred_region
      %482 = dma.done [#allocation3], 128
    $region25: #{cornet_z_nonbiased_words_forward.17} parent=1 // pred_fallthru
      _
    // Predicated region
    $region26: #{cornet_z_nonbiased_words_forward.17} parent=1 // pred_check
      _
    $region27: #{cornet_z_nonbiased_words_forward.17} parent=1 // pred_check_branch
      %484 = sbr.rel (0) target = $region29
    $region28: #{cornet_z_nonbiased_words_forward.17} parent=1 // pred_region
      %485 = dma.done [#allocation5], 32
    $region29: #{cornet_z_nonbiased_words_forward.17} parent=1 // pred_fallthru
      _
    %486 = vsyncpa [#allocation3], 1
    %487 = vsyncpa [#allocation5], 1

// kernel: cornet_z_nonbiased_words_forward.15
$region0: #{cornet_z_nonbiased_words_forward.15}
  #allocation0 [shape = 'u32[]', space=smem, size = 0x4, offset = 0x4, fixed_abs, tag = 'smem constant byte address 0x4 - core index']
  #allocation1 [shape = 'u32[144,128]{1,0:T(1,128)}', space=vmem, size = 0x12000, scoped, tag = 'internal scratch']
  %s0 = inlined_call_operand.vmem [shape: bf16[8,2304], index: 0, kind: input, shape index: {}]
  %s1 = inlined_call_operand.vmem [shape: bf16[2304,512], index: 1, kind: input, shape index: {}]
  %s2 = inlined_call_operand.vmem [shape: f32[1,512], index: 2, kind: input, shape index: {}]
  %s3 = inlined_call_operand.vmem [shape: f32[8,512], index: 3, kind: output, shape index: {}]
  %s4 = sld [smem:[#allocation0]]
  $region22: #{cornet_z_nonbiased_words_forward.15} parent=0
    _
  %s6 = ssub.s32 1, %s4
  %s7 = scalar_select 0, %s6, %s4
  // Predicated region
  $region2: #{cornet_z_nonbiased_words_forward.15} parent=0 // pred_check
    _
  $region3: #{cornet_z_nonbiased_words_forward.15} parent=0 // pred_check_branch
    %9 = sbr.rel (0) target = $region5
  $region4: #{cornet_z_nonbiased_words_forward.15} parent=0 // pred_region
    _
  $region5: #{cornet_z_nonbiased_words_forward.15} parent=0 // pred_fallthru
    _
  // Predicated region
  $region6: #{cornet_z_nonbiased_words_forward.15} parent=0 // pred_check
    _
  $region7: #{cornet_z_nonbiased_words_forward.15} parent=0 // pred_check_branch
    %11 = sbr.rel (0) target = $region9
  $region8: #{cornet_z_nonbiased_words_forward.15} parent=0 // pred_region
    _
  $region9: #{cornet_z_nonbiased_words_forward.15} parent=0 // pred_fallthru
    _
  // Predicated region
  $region10: #{cornet_z_nonbiased_words_forward.15} parent=0 // pred_check
    _
  $region11: #{cornet_z_nonbiased_words_forward.15} parent=0 // pred_check_branch
    %13 = sbr.rel (0) target = $region13
  $region12: #{cornet_z_nonbiased_words_forward.15} parent=0 // pred_region
    _
  $region13: #{cornet_z_nonbiased_words_forward.15} parent=0 // pred_fallthru
    _
  %v14 = vld [vmem:[%s0] sm:$0xff]
  %v15 = vld [vmem:[%s0 + $0x8] sm:$0xff]
  %v16 = vld [vmem:[%s0 + $0x10] sm:$0xff]
  %v17 = vld [vmem:[%s0 + $0x18] sm:$0xff]
  %v18 = vld [vmem:[%s0 + $0x20] sm:$0xff]
  %v19 = vld [vmem:[%s0 + $0x28] sm:$0xff]
  %v20 = vld [vmem:[%s0 + $0x30] sm:$0xff]
  %v21 = vld [vmem:[%s0 + $0x38] sm:$0xff]
  %v22 = vld [vmem:[%s0 + $0x40] sm:$0xff]
  %v23 = vld [vmem:[%s1] sm:$0xff]
  %v24 = vld [vmem:[%s1 + $0x8] sm:$0xff]
  %v25 = vld [vmem:[%s1 + $0x10] sm:$0xff]
  %v26 = vld [vmem:[%s1 + $0x18] sm:$0xff]
  %v27 = vld [vmem:[%s1 + $0x20] sm:$0xff]
  %v28 = vld [vmem:[%s1 + $0x28] sm:$0xff]
  %v29 = vld [vmem:[%s1 + $0x30] sm:$0xff]
  %v30 = vld [vmem:[%s1 + $0x38] sm:$0xff]
  %v31 = vld [vmem:[%s1 + $0x40] sm:$0xff]
  %v32 = vld [vmem:[%s1 + $0x48] sm:$0xff]
  %v33 = vld [vmem:[%s1 + $0x50] sm:$0xff]
  %v34 = vld [vmem:[%s1 + $0x58] sm:$0xff]
  %v35 = vld [vmem:[%s1 + $0x60] sm:$0xff]
  %v36 = vld [vmem:[%s1 + $0x68] sm:$0xff]
  %v37 = vld [vmem:[%s1 + $0x70] sm:$0xff]
  %v38 = vld [vmem:[%s1 + $0x78] sm:$0xff]
  %v39 = vld [vmem:[%s1 + $0x80] sm:$0xff]
  %v40 = vld [vmem:[%s1 + $0x88] sm:$0xff]
  %v41 = vld [vmem:[%s1 + $0x90] sm:$0xff]
  %v42 = vld [vmem:[%s1 + $0x98] sm:$0xff]
  %v43 = vld [vmem:[%s1 + $0xa0] sm:$0xff]
  %v44 = vld [vmem:[%s1 + $0xa8] sm:$0xff]
  %v45 = vld [vmem:[%s1 + $0xb0] sm:$0xff]
  %v46 = vld [vmem:[%s1 + $0xb8] sm:$0xff]
  %v47 = vld [vmem:[%s1 + $0xc0] sm:$0xff]
  %v48 = vld [vmem:[%s1 + $0xc8] sm:$0xff]
  %v49 = vld [vmem:[%s1 + $0xd0] sm:$0xff]
  %v50 = vld [vmem:[%s1 + $0xd8] sm:$0xff]
  %v51 = vld [vmem:[%s1 + $0xe0] sm:$0xff]
  %v52 = vld [vmem:[%s1 + $0xe8] sm:$0xff]
  %v53 = vld [vmem:[%s1 + $0xf0] sm:$0xff]
  %v54 = vld [vmem:[%s1 + $0xf8] sm:$0xff]
  %v55 = vld [vmem:[%s1 + $0x100] sm:$0xff]
  %v56 = vld [vmem:[%s1 + $0x108] sm:$0xff]
  %v57 = vld [vmem:[%s1 + $0x110] sm:$0xff]
  %v58 = vld [vmem:[%s1 + $0x118] sm:$0xff]
  %v59 = vld [vmem:[%s1 + $0x120] sm:$0xff]
  %v60 = vld [vmem:[%s1 + $0x128] sm:$0xff]
  %v61 = vld [vmem:[%s1 + $0x130] sm:$0xff]
  %v62 = vld [vmem:[%s1 + $0x138] sm:$0xff]
  %v63 = vld [vmem:[%s1 + $0x140] sm:$0xff]
  %v64 = vld [vmem:[%s1 + $0x148] sm:$0xff]
  %v65 = vld [vmem:[%s1 + $0x150] sm:$0xff]
  %v66 = vld [vmem:[%s1 + $0x158] sm:$0xff]
  %v67 = vld [vmem:[%s1 + $0x160] sm:$0xff]
  %v68 = vld [vmem:[%s1 + $0x168] sm:$0xff]
  %v69 = vld [vmem:[%s1 + $0x170] sm:$0xff]
  %v70 = vld [vmem:[%s1 + $0x178] sm:$0xff]
  %v71 = vld [vmem:[%s1 + $0x180] sm:$0xff]
  %v72 = vld [vmem:[%s1 + $0x188] sm:$0xff]
  %v73 = vld [vmem:[%s1 + $0x190] sm:$0xff]
  %v74 = vld [vmem:[%s1 + $0x198] sm:$0xff]
  %v75 = vld [vmem:[%s1 + $0x1a0] sm:$0xff]
  %v76 = vld [vmem:[%s1 + $0x1a8] sm:$0xff]
  %v77 = vld [vmem:[%s1 + $0x1b0] sm:$0xff]
  %v78 = vld [vmem:[%s1 + $0x1b8] sm:$0xff]
  %v79 = vld [vmem:[%s1 + $0x1c0] sm:$0xff]
  %v80 = vld [vmem:[%s1 + $0x1c8] sm:$0xff]
  %v81 = vld [vmem:[%s1 + $0x1d0] sm:$0xff]
  %v82 = vld [vmem:[%s1 + $0x1d8] sm:$0xff]
  %v83 = vld [vmem:[%s1 + $0x1e0] sm:$0xff]
  %v84 = vld [vmem:[%s1 + $0x1e8] sm:$0xff]
  %v85 = vld [vmem:[%s1 + $0x1f0] sm:$0xff]
  %v86 = vld [vmem:[%s1 + $0x1f8] sm:$0xff]
  %v87 = vld [vmem:[%s1 + $0x200] sm:$0xff]
  %v88 = vld [vmem:[%s1 + $0x208] sm:$0xff]
  %v89 = vld [vmem:[%s1 + $0x210] sm:$0xff]
  %v90 = vld [vmem:[%s1 + $0x218] sm:$0xff]
  %v91 = vld [vmem:[%s1 + $0x220] sm:$0xff]
  %v92 = vld [vmem:[%s1 + $0x228] sm:$0xff]
  %v93 = vld [vmem:[%s1 + $0x230] sm:$0xff]
  %v94 = vld [vmem:[%s1 + $0x238] sm:$0xff]
  %v95 = vld [vmem:[%s1 + $0x240] sm:$0xff]
  %v96 = vld [vmem:[%s1 + $0x248] sm:$0xff]
  %v97 = vld [vmem:[%s1 + $0x250] sm:$0xff]
  %v98 = vld [vmem:[%s1 + $0x258] sm:$0xff]
  %v99 = vld [vmem:[%s1 + $0x260] sm:$0xff]
  %v100 = vld [vmem:[%s1 + $0x268] sm:$0xff]
  %v101 = vld [vmem:[%s1 + $0x270] sm:$0xff]
  %v102 = vld [vmem:[%s1 + $0x278] sm:$0xff]
  %v103 = vld [vmem:[%s1 + $0x280] sm:$0xff]
  %v104 = vld [vmem:[%s1 + $0x288] sm:$0xff]
  %v105 = vld [vmem:[%s1 + $0x290] sm:$0xff]
  %v106 = vld [vmem:[%s1 + $0x298] sm:$0xff]
  %v107 = vld [vmem:[%s1 + $0x2a0] sm:$0xff]
  %v108 = vld [vmem:[%s1 + $0x2a8] sm:$0xff]
  %v109 = vld [vmem:[%s1 + $0x2b0] sm:$0xff]
  %v110 = vld [vmem:[%s1 + $0x2b8] sm:$0xff]
  %v111 = vld [vmem:[%s1 + $0x2c0] sm:$0xff]
  %v112 = vld [vmem:[%s1 + $0x2c8] sm:$0xff]
  %v113 = vld [vmem:[%s1 + $0x2d0] sm:$0xff]
  %v114 = vld [vmem:[%s1 + $0x2d8] sm:$0xff]
  %v115 = vld [vmem:[%s1 + $0x2e0] sm:$0xff]
  %v116 = vld [vmem:[%s1 + $0x2e8] sm:$0xff]
  %v117 = vld [vmem:[%s1 + $0x2f0] sm:$0xff]
  %v118 = vld [vmem:[%s1 + $0x2f8] sm:$0xff]
  %v119 = vld [vmem:[%s1 + $0x300] sm:$0xff]
  %v120 = vld [vmem:[%s1 + $0x308] sm:$0xff]
  %v121 = vld [vmem:[%s1 + $0x310] sm:$0xff]
  %v122 = vld [vmem:[%s1 + $0x318] sm:$0xff]
  %v123 = vld [vmem:[%s1 + $0x320] sm:$0xff]
  %v124 = vld [vmem:[%s1 + $0x328] sm:$0xff]
  %v125 = vld [vmem:[%s1 + $0x330] sm:$0xff]
  %v126 = vld [vmem:[%s1 + $0x338] sm:$0xff]
  %v127 = vld [vmem:[%s1 + $0x340] sm:$0xff]
  %v128 = vld [vmem:[%s1 + $0x348] sm:$0xff]
  %v129 = vld [vmem:[%s1 + $0x350] sm:$0xff]
  %v130 = vld [vmem:[%s1 + $0x358] sm:$0xff]
  %v131 = vld [vmem:[%s1 + $0x360] sm:$0xff]
  %v132 = vld [vmem:[%s1 + $0x368] sm:$0xff]
  %v133 = vld [vmem:[%s1 + $0x370] sm:$0xff]
  %v134 = vld [vmem:[%s1 + $0x378] sm:$0xff]
  %v135 = vld [vmem:[%s1 + $0x380] sm:$0xff]
  %v136 = vld [vmem:[%s1 + $0x388] sm:$0xff]
  %v137 = vld [vmem:[%s1 + $0x390] sm:$0xff]
  %v138 = vld [vmem:[%s1 + $0x398] sm:$0xff]
  %v139 = vld [vmem:[%s1 + $0x3a0] sm:$0xff]
  %v140 = vld [vmem:[%s1 + $0x3a8] sm:$0xff]
  %v141 = vld [vmem:[%s1 + $0x3b0] sm:$0xff]
  %v142 = vld [vmem:[%s1 + $0x3b8] sm:$0xff]
  %v143 = vld [vmem:[%s1 + $0x3c0] sm:$0xff]
  %v144 = vld [vmem:[%s1 + $0x3c8] sm:$0xff]
  %v145 = vld [vmem:[%s1 + $0x3d0] sm:$0xff]
  %v146 = vld [vmem:[%s1 + $0x3d8] sm:$0xff]
  %v147 = vld [vmem:[%s1 + $0x3e0] sm:$0xff]
  %v148 = vld [vmem:[%s1 + $0x3e8] sm:$0xff]
  %v149 = vld [vmem:[%s1 + $0x3f0] sm:$0xff]
  %v150 = vld [vmem:[%s1 + $0x3f8] sm:$0xff]
  %v151 = vld [vmem:[%s1 + $0x400] sm:$0xff]
  %v152 = vld [vmem:[%s1 + $0x408] sm:$0xff]
  %v153 = vld [vmem:[%s1 + $0x410] sm:$0xff]
  %v154 = vld [vmem:[%s1 + $0x418] sm:$0xff]
  %v155 = vld [vmem:[%s1 + $0x420] sm:$0xff]
  %v156 = vld [vmem:[%s1 + $0x428] sm:$0xff]
  %v157 = vld [vmem:[%s1 + $0x430] sm:$0xff]
  %v158 = vld [vmem:[%s1 + $0x438] sm:$0xff]
  %v159 = vld [vmem:[%s1 + $0x440] sm:$0xff]
  %v160 = vld [vmem:[%s1 + $0x448] sm:$0xff]
  %v161 = vld [vmem:[%s1 + $0x450] sm:$0xff]
  %v162 = vld [vmem:[%s1 + $0x458] sm:$0xff]
  %v163 = vld [vmem:[%s1 + $0x460] sm:$0xff]
  %v164 = vld [vmem:[%s1 + $0x468] sm:$0xff]
  %v165 = vld [vmem:[%s1 + $0x470] sm:$0xff]
  %v166 = vld [vmem:[%s1 + $0x478] sm:$0xff]
  %v167 = vld [vmem:[%s1 + $0x480] sm:$0xff]
  %v168 = vld [vmem:[%s1 + $0x488] sm:$0xff]
  %v169 = vld [vmem:[%s1 + $0x490] sm:$0xff]
  %v170 = vld [vmem:[%s1 + $0x498] sm:$0xff]
  %v171 = vld [vmem:[%s1 + $0x4a0] sm:$0xff]
  %v172 = vld [vmem:[%s1 + $0x4a8] sm:$0xff]
  %v173 = vld [vmem:[%s1 + $0x4b0] sm:$0xff]
  %v174 = vld [vmem:[%s1 + $0x4b8] sm:$0xff]
  %v175 = vld [vmem:[%s1 + $0x4c0] sm:$0xff]
  %v176 = vld [vmem:[%s1 + $0x4c8] sm:$0xff]
  %v177 = vld [vmem:[%s1 + $0x4d0] sm:$0xff]
  %v178 = vld [vmem:[%s1 + $0x4d8] sm:$0xff]
  %v179 = vld [vmem:[%s1 + $0x4e0] sm:$0xff]
  %v180 = vld [vmem:[%s1 + $0x4e8] sm:$0xff]
  %v181 = vld [vmem:[%s1 + $0x4f0] sm:$0xff]
  %v182 = vld [vmem:[%s1 + $0x4f8] sm:$0xff]
  %v183 = vld [vmem:[%s1 + $0x500] sm:$0xff]
  %v184 = vld [vmem:[%s1 + $0x508] sm:$0xff]
  %v185 = vld [vmem:[%s1 + $0x510] sm:$0xff]
  %v186 = vld [vmem:[%s1 + $0x518] sm:$0xff]
  %v187 = vld [vmem:[%s1 + $0x520] sm:$0xff]
  %v188 = vld [vmem:[%s1 + $0x528] sm:$0xff]
  %v189 = vld [vmem:[%s1 + $0x530] sm:$0xff]
  %v190 = vld [vmem:[%s1 + $0x538] sm:$0xff]
  %v191 = vld [vmem:[%s1 + $0x540] sm:$0xff]
  %v192 = vld [vmem:[%s1 + $0x548] sm:$0xff]
  %v193 = vld [vmem:[%s1 + $0x550] sm:$0xff]
  %v194 = vld [vmem:[%s1 + $0x558] sm:$0xff]
  %v195 = vld [vmem:[%s1 + $0x560] sm:$0xff]
  %v196 = vld [vmem:[%s1 + $0x568] sm:$0xff]
  %v197 = vld [vmem:[%s1 + $0x570] sm:$0xff]
  %v198 = vld [vmem:[%s1 + $0x578] sm:$0xff]
  %v199 = vld [vmem:[%s1 + $0x580] sm:$0xff]
  %v200 = vld [vmem:[%s1 + $0x588] sm:$0xff]
  %v201 = vld [vmem:[%s1 + $0x590] sm:$0xff]
  %v202 = vld [vmem:[%s1 + $0x598] sm:$0xff]
  %v203 = vld [vmem:[%s1 + $0x5a0] sm:$0xff]
  %v204 = vld [vmem:[%s1 + $0x5a8] sm:$0xff]
  %v205 = vld [vmem:[%s1 + $0x5b0] sm:$0xff]
  %v206 = vld [vmem:[%s1 + $0x5b8] sm:$0xff]
  %v207 = vld [vmem:[%s1 + $0x5c0] sm:$0xff]
  %v208 = vld [vmem:[%s1 + $0x5c8] sm:$0xff]
  %v209 = vld [vmem:[%s1 + $0x5d0] sm:$0xff]
  %v210 = vld [vmem:[%s1 + $0x5d8] sm:$0xff]
  %v211 = vld [vmem:[%s1 + $0x5e0] sm:$0xff]
  %v212 = vld [vmem:[%s1 + $0x5e8] sm:$0xff]
  %v213 = vld [vmem:[%s1 + $0x5f0] sm:$0xff]
  %v214 = vld [vmem:[%s1 + $0x5f8] sm:$0xff]
  %v215 = vld [vmem:[%s1 + $0x600] sm:$0xff]
  %v216 = vld [vmem:[%s1 + $0x608] sm:$0xff]
  %v217 = vld [vmem:[%s1 + $0x610] sm:$0xff]
  %v218 = vld [vmem:[%s1 + $0x618] sm:$0xff]
  %v219 = vld [vmem:[%s1 + $0x620] sm:$0xff]
  %v220 = vld [vmem:[%s1 + $0x628] sm:$0xff]
  %v221 = vld [vmem:[%s1 + $0x630] sm:$0xff]
  %v222 = vld [vmem:[%s1 + $0x638] sm:$0xff]
  %v223 = vld [vmem:[%s1 + $0x640] sm:$0xff]
  %v224 = vld [vmem:[%s1 + $0x648] sm:$0xff]
  %v225 = vld [vmem:[%s1 + $0x650] sm:$0xff]
  %v226 = vld [vmem:[%s1 + $0x658] sm:$0xff]
  %v227 = vld [vmem:[%s1 + $0x660] sm:$0xff]
  %v228 = vld [vmem:[%s1 + $0x668] sm:$0xff]
  %v229 = vld [vmem:[%s1 + $0x670] sm:$0xff]
  %v230 = vld [vmem:[%s1 + $0x678] sm:$0xff]
  %v231 = vld [vmem:[%s1 + $0x680] sm:$0xff]
  %v232 = vld [vmem:[%s1 + $0x688] sm:$0xff]
  %v233 = vld [vmem:[%s1 + $0x690] sm:$0xff]
  %v234 = vld [vmem:[%s1 + $0x698] sm:$0xff]
  %v235 = vld [vmem:[%s1 + $0x6a0] sm:$0xff]
  %v236 = vld [vmem:[%s1 + $0x6a8] sm:$0xff]
  %v237 = vld [vmem:[%s1 + $0x6b0] sm:$0xff]
  %v238 = vld [vmem:[%s1 + $0x6b8] sm:$0xff]
  %v239 = vld [vmem:[%s1 + $0x6c0] sm:$0xff]
  %v240 = vld [vmem:[%s1 + $0x6c8] sm:$0xff]
  %v241 = vld [vmem:[%s1 + $0x6d0] sm:$0xff]
  %v242 = vld [vmem:[%s1 + $0x6d8] sm:$0xff]
  %v243 = vld [vmem:[%s1 + $0x6e0] sm:$0xff]
  %v244 = vld [vmem:[%s1 + $0x6e8] sm:$0xff]
  %v245 = vld [vmem:[%s1 + $0x6f0] sm:$0xff]
  %v246 = vld [vmem:[%s1 + $0x6f8] sm:$0xff]
  %v247 = vld [vmem:[%s1 + $0x700] sm:$0xff]
  %v248 = vld [vmem:[%s1 + $0x708] sm:$0xff]
  %v249 = vld [vmem:[%s1 + $0x710] sm:$0xff]
  %v250 = vld [vmem:[%s1 + $0x718] sm:$0xff]
  %v251 = vld [vmem:[%s1 + $0x720] sm:$0xff]
  %v252 = vld [vmem:[%s1 + $0x728] sm:$0xff]
  %v253 = vld [vmem:[%s1 + $0x730] sm:$0xff]
  %v254 = vld [vmem:[%s1 + $0x738] sm:$0xff]
  %v255 = vld [vmem:[%s1 + $0x740] sm:$0xff]
  %v256 = vld [vmem:[%s1 + $0x748] sm:$0xff]
  %v257 = vld [vmem:[%s1 + $0x750] sm:$0xff]
  %v258 = vld [vmem:[%s1 + $0x758] sm:$0xff]
  %v259 = vld [vmem:[%s1 + $0x760] sm:$0xff]
  %v260 = vld [vmem:[%s1 + $0x768] sm:$0xff]
  %v261 = vld [vmem:[%s1 + $0x770] sm:$0xff]
  %v262 = vld [vmem:[%s1 + $0x778] sm:$0xff]
  %v263 = vld [vmem:[%s1 + $0x780] sm:$0xff]
  %v264 = vld [vmem:[%s1 + $0x788] sm:$0xff]
  %v265 = vld [vmem:[%s1 + $0x790] sm:$0xff]
  %v266 = vld [vmem:[%s1 + $0x798] sm:$0xff]
  %v267 = vld [vmem:[%s1 + $0x7a0] sm:$0xff]
  %v268 = vld [vmem:[%s1 + $0x7a8] sm:$0xff]
  %v269 = vld [vmem:[%s1 + $0x7b0] sm:$0xff]
  %v270 = vld [vmem:[%s1 + $0x7b8] sm:$0xff]
  %v271 = vld [vmem:[%s1 + $0x7c0] sm:$0xff]
  %v272 = vld [vmem:[%s1 + $0x7c8] sm:$0xff]
  %v273 = vld [vmem:[%s1 + $0x7d0] sm:$0xff]
  %v274 = vld [vmem:[%s1 + $0x7d8] sm:$0xff]
  %v275 = vld [vmem:[%s1 + $0x7e0] sm:$0xff]
  %v276 = vld [vmem:[%s1 + $0x7e8] sm:$0xff]
  %v277 = vld [vmem:[%s1 + $0x7f0] sm:$0xff]
  %v278 = vld [vmem:[%s1 + $0x7f8] sm:$0xff]
  %v279 = vld [vmem:[%s1 + $0x800] sm:$0xff]
  %v280 = vld [vmem:[%s1 + $0x808] sm:$0xff]
  %v281 = vld [vmem:[%s1 + $0x810] sm:$0xff]
  %v282 = vld [vmem:[%s1 + $0x818] sm:$0xff]
  %v283 = vld [vmem:[%s1 + $0x820] sm:$0xff]
  %v284 = vld [vmem:[%s1 + $0x828] sm:$0xff]
  %v285 = vld [vmem:[%s1 + $0x830] sm:$0xff]
  %v286 = vld [vmem:[%s1 + $0x838] sm:$0xff]
  %v287 = vld [vmem:[%s1 + $0x840] sm:$0xff]
  %v288 = vld [vmem:[%s1 + $0x848] sm:$0xff]
  %v289 = vld [vmem:[%s1 + $0x850] sm:$0xff]
  %v290 = vld [vmem:[%s1 + $0x858] sm:$0xff]
  %v291 = vld [vmem:[%s1 + $0x860] sm:$0xff]
  %v292 = vld [vmem:[%s1 + $0x868] sm:$0xff]
  %v293 = vld [vmem:[%s1 + $0x870] sm:$0xff]
  %v294 = vld [vmem:[%s1 + $0x878] sm:$0xff]
  %v295 = vld [vmem:[%s1 + $0x880] sm:$0xff]
  %v296 = vld [vmem:[%s1 + $0x888] sm:$0xff]
  %v297 = vld [vmem:[%s1 + $0x890] sm:$0xff]
  %v298 = vld [vmem:[%s1 + $0x898] sm:$0xff]
  %v299 = vld [vmem:[%s1 + $0x8a0] sm:$0xff]
  %v300 = vld [vmem:[%s1 + $0x8a8] sm:$0xff]
  %v301 = vld [vmem:[%s1 + $0x8b0] sm:$0xff]
  %v302 = vld [vmem:[%s1 + $0x8b8] sm:$0xff]
  %v303 = vld [vmem:[%s1 + $0x8c0] sm:$0xff]
  %v304 = vld [vmem:[%s1 + $0x8c8] sm:$0xff]
  %v305 = vld [vmem:[%s1 + $0x8d0] sm:$0xff]
  %v306 = vld [vmem:[%s1 + $0x8d8] sm:$0xff]
  %v307 = vld [vmem:[%s1 + $0x8e0] sm:$0xff]
  %v308 = vld [vmem:[%s1 + $0x8e8] sm:$0xff]
  %v309 = vld [vmem:[%s1 + $0x8f0] sm:$0xff]
  %v310 = vld [vmem:[%s1 + $0x8f8] sm:$0xff]
  %v311 = vld [vmem:[%s1 + $0x900] sm:$0xff]
  %v312 = vld [vmem:[%s1 + $0x908] sm:$0xff]
  %v313 = vld [vmem:[%s1 + $0x910] sm:$0xff]
  %v314 = vld [vmem:[%s1 + $0x918] sm:$0xff]
  %v315 = vld [vmem:[%s1 + $0x920] sm:$0xff]
  %v316 = vld [vmem:[%s1 + $0x928] sm:$0xff]
  %v317 = vld [vmem:[%s1 + $0x930] sm:$0xff]
  %v318 = vld [vmem:[%s1 + $0x938] sm:$0xff]
  %v319 = vld [vmem:[%s1 + $0x940] sm:$0xff]
  %v320 = vld [vmem:[%s1 + $0x948] sm:$0xff]
  %v321 = vld [vmem:[%s1 + $0x950] sm:$0xff]
  %v322 = vld [vmem:[%s1 + $0x958] sm:$0xff]
  %v323 = vld [vmem:[%s1 + $0x960] sm:$0xff]
  %v324 = vld [vmem:[%s1 + $0x968] sm:$0xff]
  %v325 = vld [vmem:[%s1 + $0x970] sm:$0xff]
  %v326 = vld [vmem:[%s1 + $0x978] sm:$0xff]
  %v327 = vld [vmem:[%s1 + $0x980] sm:$0xff]
  %v328 = vld [vmem:[%s1 + $0x988] sm:$0xff]
  %v329 = vld [vmem:[%s1 + $0x990] sm:$0xff]
  %v330 = vld [vmem:[%s1 + $0x998] sm:$0xff]
  %v331 = vld [vmem:[%s1 + $0x9a0] sm:$0xff]
  %v332 = vld [vmem:[%s1 + $0x9a8] sm:$0xff]
  %v333 = vld [vmem:[%s1 + $0x9b0] sm:$0xff]
  %v334 = vld [vmem:[%s1 + $0x9b8] sm:$0xff]
  %v335 = vld [vmem:[%s1 + $0x9c0] sm:$0xff]
  %v336 = vld [vmem:[%s1 + $0x9c8] sm:$0xff]
  %v337 = vld [vmem:[%s1 + $0x9d0] sm:$0xff]
  %v338 = vld [vmem:[%s1 + $0x9d8] sm:$0xff]
  %v339 = vld [vmem:[%s1 + $0x9e0] sm:$0xff]
  %v340 = vld [vmem:[%s1 + $0x9e8] sm:$0xff]
  %v341 = vld [vmem:[%s1 + $0x9f0] sm:$0xff]
  %v342 = vld [vmem:[%s1 + $0x9f8] sm:$0xff]
  %v343 = vld [vmem:[%s1 + $0xa00] sm:$0xff]
  %v344 = vld [vmem:[%s1 + $0xa08] sm:$0xff]
  %v345 = vld [vmem:[%s1 + $0xa10] sm:$0xff]
  %v346 = vld [vmem:[%s1 + $0xa18] sm:$0xff]
  %v347 = vld [vmem:[%s1 + $0xa20] sm:$0xff]
  %v348 = vld [vmem:[%s1 + $0xa28] sm:$0xff]
  %v349 = vld [vmem:[%s1 + $0xa30] sm:$0xff]
  %v350 = vld [vmem:[%s1 + $0xa38] sm:$0xff]
  %v351 = vld [vmem:[%s1 + $0xa40] sm:$0xff]
  %v352 = vld [vmem:[%s1 + $0xa48] sm:$0xff]
  %v353 = vld [vmem:[%s1 + $0xa50] sm:$0xff]
  %v354 = vld [vmem:[%s1 + $0xa58] sm:$0xff]
  %v355 = vld [vmem:[%s1 + $0xa60] sm:$0xff]
  %v356 = vld [vmem:[%s1 + $0xa68] sm:$0xff]
  %v357 = vld [vmem:[%s1 + $0xa70] sm:$0xff]
  %v358 = vld [vmem:[%s1 + $0xa78] sm:$0xff]
  %v359 = vld [vmem:[%s1 + $0xa80] sm:$0xff]
  %v360 = vld [vmem:[%s1 + $0xa88] sm:$0xff]
  %v361 = vld [vmem:[%s1 + $0xa90] sm:$0xff]
  %v362 = vld [vmem:[%s1 + $0xa98] sm:$0xff]
  %v363 = vld [vmem:[%s1 + $0xaa0] sm:$0xff]
  %v364 = vld [vmem:[%s1 + $0xaa8] sm:$0xff]
  %v365 = vld [vmem:[%s1 + $0xab0] sm:$0xff]
  %v366 = vld [vmem:[%s1 + $0xab8] sm:$0xff]
  %v367 = vld [vmem:[%s1 + $0xac0] sm:$0xff]
  %v368 = vld [vmem:[%s1 + $0xac8] sm:$0xff]
  %v369 = vld [vmem:[%s1 + $0xad0] sm:$0xff]
  %v370 = vld [vmem:[%s1 + $0xad8] sm:$0xff]
  %v371 = vld [vmem:[%s1 + $0xae0] sm:$0xff]
  %v372 = vld [vmem:[%s1 + $0xae8] sm:$0xff]
  %v373 = vld [vmem:[%s1 + $0xaf0] sm:$0xff]
  %v374 = vld [vmem:[%s1 + $0xaf8] sm:$0xff]
  %v375 = vld [vmem:[%s1 + $0xb00] sm:$0xff]
  %v376 = vld [vmem:[%s1 + $0xb08] sm:$0xff]
  %v377 = vld [vmem:[%s1 + $0xb10] sm:$0xff]
  %v378 = vld [vmem:[%s1 + $0xb18] sm:$0xff]
  %v379 = vld [vmem:[%s1 + $0xb20] sm:$0xff]
  %v380 = vld [vmem:[%s1 + $0xb28] sm:$0xff]
  %v381 = vld [vmem:[%s1 + $0xb30] sm:$0xff]
  %v382 = vld [vmem:[%s1 + $0xb38] sm:$0xff]
  %v383 = vld [vmem:[%s1 + $0xb40] sm:$0xff]
  %v384 = vld [vmem:[%s1 + $0xb48] sm:$0xff]
  %v385 = vld [vmem:[%s1 + $0xb50] sm:$0xff]
  %v386 = vld [vmem:[%s1 + $0xb58] sm:$0xff]
  %v387 = vld [vmem:[%s1 + $0xb60] sm:$0xff]
  %v388 = vld [vmem:[%s1 + $0xb68] sm:$0xff]
  %v389 = vld [vmem:[%s1 + $0xb70] sm:$0xff]
  %v390 = vld [vmem:[%s1 + $0xb78] sm:$0xff]
  %v391 = vld [vmem:[%s1 + $0xb80] sm:$0xff]
  %v392 = vld [vmem:[%s1 + $0xb88] sm:$0xff]
  %v393 = vld [vmem:[%s1 + $0xb90] sm:$0xff]
  %v394 = vld [vmem:[%s1 + $0xb98] sm:$0xff]
  %v395 = vld [vmem:[%s1 + $0xba0] sm:$0xff]
  %v396 = vld [vmem:[%s1 + $0xba8] sm:$0xff]
  %v397 = vld [vmem:[%s1 + $0xbb0] sm:$0xff]
  %v398 = vld [vmem:[%s1 + $0xbb8] sm:$0xff]
  %v399 = vld [vmem:[%s1 + $0xbc0] sm:$0xff]
  %v400 = vld [vmem:[%s1 + $0xbc8] sm:$0xff]
  %v401 = vld [vmem:[%s1 + $0xbd0] sm:$0xff]
  %v402 = vld [vmem:[%s1 + $0xbd8] sm:$0xff]
  %v403 = vld [vmem:[%s1 + $0xbe0] sm:$0xff]
  %v404 = vld [vmem:[%s1 + $0xbe8] sm:$0xff]
  %v405 = vld [vmem:[%s1 + $0xbf0] sm:$0xff]
  %v406 = vld [vmem:[%s1 + $0xbf8] sm:$0xff]
  %v407 = vld [vmem:[%s1 + $0xc00] sm:$0xff]
  %v408 = vld [vmem:[%s1 + $0xc08] sm:$0xff]
  %v409 = vld [vmem:[%s1 + $0xc10] sm:$0xff]
  %v410 = vld [vmem:[%s1 + $0xc18] sm:$0xff]
  %v411 = vld [vmem:[%s1 + $0xc20] sm:$0xff]
  %v412 = vld [vmem:[%s1 + $0xc28] sm:$0xff]
  %v413 = vld [vmem:[%s1 + $0xc30] sm:$0xff]
  %v414 = vld [vmem:[%s1 + $0xc38] sm:$0xff]
  %v415 = vld [vmem:[%s1 + $0xc40] sm:$0xff]
  %v416 = vld [vmem:[%s1 + $0xc48] sm:$0xff]
  %v417 = vld [vmem:[%s1 + $0xc50] sm:$0xff]
  %v418 = vld [vmem:[%s1 + $0xc58] sm:$0xff]
  %v419 = vld [vmem:[%s1 + $0xc60] sm:$0xff]
  %v420 = vld [vmem:[%s1 + $0xc68] sm:$0xff]
  %v421 = vld [vmem:[%s1 + $0xc70] sm:$0xff]
  %v422 = vld [vmem:[%s1 + $0xc78] sm:$0xff]
  %v423 = vld [vmem:[%s1 + $0xc80] sm:$0xff]
  %v424 = vld [vmem:[%s1 + $0xc88] sm:$0xff]
  %v425 = vld [vmem:[%s1 + $0xc90] sm:$0xff]
  %v426 = vld [vmem:[%s1 + $0xc98] sm:$0xff]
  %v427 = vld [vmem:[%s1 + $0xca0] sm:$0xff]
  %v428 = vld [vmem:[%s1 + $0xca8] sm:$0xff]
  %v429 = vld [vmem:[%s1 + $0xcb0] sm:$0xff]
  %v430 = vld [vmem:[%s1 + $0xcb8] sm:$0xff]
  %v431 = vld [vmem:[%s1 + $0xcc0] sm:$0xff]
  %v432 = vld [vmem:[%s1 + $0xcc8] sm:$0xff]
  %v433 = vld [vmem:[%s1 + $0xcd0] sm:$0xff]
  %v434 = vld [vmem:[%s1 + $0xcd8] sm:$0xff]
  %v435 = vld [vmem:[%s1 + $0xce0] sm:$0xff]
  %v436 = vld [vmem:[%s1 + $0xce8] sm:$0xff]
  %v437 = vld [vmem:[%s1 + $0xcf0] sm:$0xff]
  %v438 = vld [vmem:[%s1 + $0xcf8] sm:$0xff]
  %v439 = vld [vmem:[%s1 + $0xd00] sm:$0xff]
  %v440 = vld [vmem:[%s1 + $0xd08] sm:$0xff]
  %v441 = vld [vmem:[%s1 + $0xd10] sm:$0xff]
  %v442 = vld [vmem:[%s1 + $0xd18] sm:$0xff]
  %v443 = vld [vmem:[%s1 + $0xd20] sm:$0xff]
  %v444 = vld [vmem:[%s1 + $0xd28] sm:$0xff]
  %v445 = vld [vmem:[%s1 + $0xd30] sm:$0xff]
  %v446 = vld [vmem:[%s1 + $0xd38] sm:$0xff]
  %v447 = vld [vmem:[%s1 + $0xd40] sm:$0xff]
  %v448 = vld [vmem:[%s1 + $0xd48] sm:$0xff]
  %v449 = vld [vmem:[%s1 + $0xd50] sm:$0xff]
  %v450 = vld [vmem:[%s1 + $0xd58] sm:$0xff]
  %v451 = vld [vmem:[%s1 + $0xd60] sm:$0xff]
  %v452 = vld [vmem:[%s1 + $0xd68] sm:$0xff]
  %v453 = vld [vmem:[%s1 + $0xd70] sm:$0xff]
  %v454 = vld [vmem:[%s1 + $0xd78] sm:$0xff]
  %v455 = vld [vmem:[%s1 + $0xd80] sm:$0xff]
  %v456 = vld [vmem:[%s1 + $0xd88] sm:$0xff]
  %v457 = vld [vmem:[%s1 + $0xd90] sm:$0xff]
  %v458 = vld [vmem:[%s1 + $0xd98] sm:$0xff]
  %v459 = vld [vmem:[%s1 + $0xda0] sm:$0xff]
  %v460 = vld [vmem:[%s1 + $0xda8] sm:$0xff]
  %v461 = vld [vmem:[%s1 + $0xdb0] sm:$0xff]
  %v462 = vld [vmem:[%s1 + $0xdb8] sm:$0xff]
  %v463 = vld [vmem:[%s1 + $0xdc0] sm:$0xff]
  %v464 = vld [vmem:[%s1 + $0xdc8] sm:$0xff]
  %v465 = vld [vmem:[%s1 + $0xdd0] sm:$0xff]
  %v466 = vld [vmem:[%s1 + $0xdd8] sm:$0xff]
  %v467 = vld [vmem:[%s1 + $0xde0] sm:$0xff]
  %v468 = vld [vmem:[%s1 + $0xde8] sm:$0xff]
  %v469 = vld [vmem:[%s1 + $0xdf0] sm:$0xff]
  %v470 = vld [vmem:[%s1 + $0xdf8] sm:$0xff]
  %v471 = vld [vmem:[%s1 + $0xe00] sm:$0xff]
  %v472 = vld [vmem:[%s1 + $0xe08] sm:$0xff]
  %v473 = vld [vmem:[%s1 + $0xe10] sm:$0xff]
  %v474 = vld [vmem:[%s1 + $0xe18] sm:$0xff]
  %v475 = vld [vmem:[%s1 + $0xe20] sm:$0xff]
  %v476 = vld [vmem:[%s1 + $0xe28] sm:$0xff]
  %v477 = vld [vmem:[%s1 + $0xe30] sm:$0xff]
  %v478 = vld [vmem:[%s1 + $0xe38] sm:$0xff]
  %v479 = vld [vmem:[%s1 + $0xe40] sm:$0xff]
  %v480 = vld [vmem:[%s1 + $0xe48] sm:$0xff]
  %v481 = vld [vmem:[%s1 + $0xe50] sm:$0xff]
  %v482 = vld [vmem:[%s1 + $0xe58] sm:$0xff]
  %v483 = vld [vmem:[%s1 + $0xe60] sm:$0xff]
  %v484 = vld [vmem:[%s1 + $0xe68] sm:$0xff]
  %v485 = vld [vmem:[%s1 + $0xe70] sm:$0xff]
  %v486 = vld [vmem:[%s1 + $0xe78] sm:$0xff]
  %v487 = vld [vmem:[%s1 + $0xe80] sm:$0xff]
  %v488 = vld [vmem:[%s1 + $0xe88] sm:$0xff]
  %v489 = vld [vmem:[%s1 + $0xe90] sm:$0xff]
  %v490 = vld [vmem:[%s1 + $0xe98] sm:$0xff]
  %v491 = vld [vmem:[%s1 + $0xea0] sm:$0xff]
  %v492 = vld [vmem:[%s1 + $0xea8] sm:$0xff]
  %v493 = vld [vmem:[%s1 + $0xeb0] sm:$0xff]
  %v494 = vld [vmem:[%s1 + $0xeb8] sm:$0xff]
  %v495 = vld [vmem:[%s1 + $0xec0] sm:$0xff]
  %v496 = vld [vmem:[%s1 + $0xec8] sm:$0xff]
  %v497 = vld [vmem:[%s1 + $0xed0] sm:$0xff]
  %v498 = vld [vmem:[%s1 + $0xed8] sm:$0xff]
  %v499 = vld [vmem:[%s1 + $0xee0] sm:$0xff]
  %v500 = vld [vmem:[%s1 + $0xee8] sm:$0xff]
  %v501 = vld [vmem:[%s1 + $0xef0] sm:$0xff]
  %v502 = vld [vmem:[%s1 + $0xef8] sm:$0xff]
  %v503 = vld [vmem:[%s1 + $0xf00] sm:$0xff]
  %v504 = vld [vmem:[%s1 + $0xf08] sm:$0xff]
  %v505 = vld [vmem:[%s1 + $0xf10] sm:$0xff]
  %v506 = vld [vmem:[%s1 + $0xf18] sm:$0xff]
  %v507 = vld [vmem:[%s1 + $0xf20] sm:$0xff]
  %v508 = vld [vmem:[%s1 + $0xf28] sm:$0xff]
  %v509 = vld [vmem:[%s1 + $0xf30] sm:$0xff]
  %v510 = vld [vmem:[%s1 + $0xf38] sm:$0xff]
  %v511 = vld [vmem:[%s1 + $0xf40] sm:$0xff]
  %v512 = vld [vmem:[%s1 + $0xf48] sm:$0xff]
  %v513 = vld [vmem:[%s1 + $0xf50] sm:$0xff]
  %v514 = vld [vmem:[%s1 + $0xf58] sm:$0xff]
  %v515 = vld [vmem:[%s1 + $0xf60] sm:$0xff]
  %v516 = vld [vmem:[%s1 + $0xf68] sm:$0xff]
  %v517 = vld [vmem:[%s1 + $0xf70] sm:$0xff]
  %v518 = vld [vmem:[%s1 + $0xf78] sm:$0xff]
  %v519 = vld [vmem:[%s1 + $0xf80] sm:$0xff]
  %v520 = vld [vmem:[%s1 + $0xf88] sm:$0xff]
  %v521 = vld [vmem:[%s1 + $0xf90] sm:$0xff]
  %v522 = vld [vmem:[%s1 + $0xf98] sm:$0xff]
  %v523 = vld [vmem:[%s1 + $0xfa0] sm:$0xff]
  %v524 = vld [vmem:[%s1 + $0xfa8] sm:$0xff]
  %v525 = vld [vmem:[%s1 + $0xfb0] sm:$0xff]
  %v526 = vld [vmem:[%s1 + $0xfb8] sm:$0xff]
  %v527 = vld [vmem:[%s1 + $0xfc0] sm:$0xff]
  %v528 = vld [vmem:[%s1 + $0xfc8] sm:$0xff]
  %v529 = vld [vmem:[%s1 + $0xfd0] sm:$0xff]
  %v530 = vld [vmem:[%s1 + $0xfd8] sm:$0xff]
  %v531 = vld [vmem:[%s1 + $0xfe0] sm:$0xff]
  %v532 = vld [vmem:[%s1 + $0xfe8] sm:$0xff]
  %v533 = vld [vmem:[%s1 + $0xff0] sm:$0xff]
  %v534 = vld [vmem:[%s1 + $0xff8] sm:$0xff]
  %v535 = vld [vmem:[%s1 + $0x1000] sm:$0xff]
  %v536 = vld [vmem:[%s1 + $0x1008] sm:$0xff]
  %v537 = vld [vmem:[%s1 + $0x1010] sm:$0xff]
  %v538 = vld [vmem:[%s1 + $0x1018] sm:$0xff]
  %v539 = vld [vmem:[%s1 + $0x1020] sm:$0xff]
  %v540 = vld [vmem:[%s1 + $0x1028] sm:$0xff]
  %v541 = vld [vmem:[%s1 + $0x1030] sm:$0xff]
  %v542 = vld [vmem:[%s1 + $0x1038] sm:$0xff]
  %v543 = vld [vmem:[%s1 + $0x1040] sm:$0xff]
  %v544 = vld [vmem:[%s1 + $0x1048] sm:$0xff]
  %v545 = vld [vmem:[%s1 + $0x1050] sm:$0xff]
  %v546 = vld [vmem:[%s1 + $0x1058] sm:$0xff]
  %v547 = vld [vmem:[%s1 + $0x1060] sm:$0xff]
  %v548 = vld [vmem:[%s1 + $0x1068] sm:$0xff]
  %v549 = vld [vmem:[%s1 + $0x1070] sm:$0xff]
  %v550 = vld [vmem:[%s1 + $0x1078] sm:$0xff]
  %v551 = vld [vmem:[%s1 + $0x1080] sm:$0xff]
  %v552 = vld [vmem:[%s1 + $0x1088] sm:$0xff]
  %v553 = vld [vmem:[%s1 + $0x1090] sm:$0xff]
  %v554 = vld [vmem:[%s1 + $0x1098] sm:$0xff]
  %v555 = vld [vmem:[%s1 + $0x10a0] sm:$0xff]
  %v556 = vld [vmem:[%s1 + $0x10a8] sm:$0xff]
  %v557 = vld [vmem:[%s1 + $0x10b0] sm:$0xff]
  %v558 = vld [vmem:[%s1 + $0x10b8] sm:$0xff]
  %v559 = vld [vmem:[%s1 + $0x10c0] sm:$0xff]
  %v560 = vld [vmem:[%s1 + $0x10c8] sm:$0xff]
  %v561 = vld [vmem:[%s1 + $0x10d0] sm:$0xff]
  %v562 = vld [vmem:[%s1 + $0x10d8] sm:$0xff]
  %v563 = vld [vmem:[%s1 + $0x10e0] sm:$0xff]
  %v564 = vld [vmem:[%s1 + $0x10e8] sm:$0xff]
  %v565 = vld [vmem:[%s1 + $0x10f0] sm:$0xff]
  %v566 = vld [vmem:[%s1 + $0x10f8] sm:$0xff]
  %v567 = vld [vmem:[%s1 + $0x1100] sm:$0xff]
  %v568 = vld [vmem:[%s1 + $0x1108] sm:$0xff]
  %v569 = vld [vmem:[%s1 + $0x1110] sm:$0xff]
  %v570 = vld [vmem:[%s1 + $0x1118] sm:$0xff]
  %v571 = vld [vmem:[%s1 + $0x1120] sm:$0xff]
  %v572 = vld [vmem:[%s1 + $0x1128] sm:$0xff]
  %v573 = vld [vmem:[%s1 + $0x1130] sm:$0xff]
  %v574 = vld [vmem:[%s1 + $0x1138] sm:$0xff]
  %v575 = vld [vmem:[%s1 + $0x1140] sm:$0xff]
  %v576 = vld [vmem:[%s1 + $0x1148] sm:$0xff]
  %v577 = vld [vmem:[%s1 + $0x1150] sm:$0xff]
  %v578 = vld [vmem:[%s1 + $0x1158] sm:$0xff]
  %v579 = vld [vmem:[%s1 + $0x1160] sm:$0xff]
  %v580 = vld [vmem:[%s1 + $0x1168] sm:$0xff]
  %v581 = vld [vmem:[%s1 + $0x1170] sm:$0xff]
  %v582 = vld [vmem:[%s1 + $0x1178] sm:$0xff]
  %v583 = vld [vmem:[%s1 + $0x1180] sm:$0xff]
  %v584 = vld [vmem:[%s1 + $0x1188] sm:$0xff]
  %v585 = vld [vmem:[%s1 + $0x1190] sm:$0xff]
  %v586 = vld [vmem:[%s1 + $0x1198] sm:$0xff]
  %v587 = vld [vmem:[%s1 + $0x11a0] sm:$0xff]
  %v588 = vld [vmem:[%s1 + $0x11a8] sm:$0xff]
  %v589 = vld [vmem:[%s1 + $0x11b0] sm:$0xff]
  %v590 = vld [vmem:[%s1 + $0x11b8] sm:$0xff]
  %v591 = vld [vmem:[%s1 + $0x11c0] sm:$0xff]
  %v592 = vld [vmem:[%s1 + $0x11c8] sm:$0xff]
  %v593 = vld [vmem:[%s1 + $0x11d0] sm:$0xff]
  %v594 = vld [vmem:[%s1 + $0x11d8] sm:$0xff]
  %v595 = vld [vmem:[%s1 + $0x11e0] sm:$0xff]
  %v596 = vld [vmem:[%s1 + $0x11e8] sm:$0xff]
  %v597 = vld [vmem:[%s1 + $0x11f0] sm:$0xff]
  %v598 = vld [vmem:[%s1 + $0x11f8] sm:$0xff]
  %v599 = vld [vmem:[%s2] sm:$0xf]
  %v601 = vlaneseq
  %v602 = vshrl.u32 %v601, 7
  %v603 = vsub.s32 0, %v602
  %v604 = vrot.slane %v599, %v603
  %v605 = vlaneseq
  %v606 = vshrl.u32 %v605, 7
  %v607 = vsub.s32 1, %v606
  %v608 = vrot.slane %v599, %v607
  %v609 = vlaneseq
  %v610 = vshrl.u32 %v609, 7
  %v611 = vsub.s32 2, %v610
  %v612 = vrot.slane %v599, %v611
  %v613 = vlaneseq
  %v614 = vshrl.u32 %v613, 7
  %v615 = vsub.s32 3, %v614
  %v616 = vrot.slane %v599, %v615
  %v630 = vunpack.c.l.b16 %v14
  %v631 = vunpack.c.h.b16 %v14
  %v632 = vunpack.c.l.b16 %v15
  %v633 = vunpack.c.h.b16 %v15
  %v634 = vunpack.c.l.b16 %v16
  %v635 = vunpack.c.h.b16 %v16
  %v636 = vunpack.c.l.b16 %v17
  %v637 = vunpack.c.h.b16 %v17
  %v638 = vunpack.c.l.b16 %v18
  %v639 = vunpack.c.h.b16 %v18
  %v640 = vunpack.c.l.b16 %v19
  %v641 = vunpack.c.h.b16 %v19
  %v642 = vunpack.c.l.b16 %v20
  %v643 = vunpack.c.h.b16 %v20
  %v644 = vunpack.c.l.b16 %v21
  %v645 = vunpack.c.h.b16 %v21
  %v646 = vunpack.c.l.b16 %v22
  %v647 = vunpack.c.h.b16 %v22
  %v648 = vpack.c.b16 %v630, %v630
  %v649 = vpack.c.b16 %v631, %v631
  %v650 = vpack.c.b16 %v632, %v632
  %v651 = vpack.c.b16 %v633, %v633
  %v652 = vpack.c.b16 %v634, %v634
  %v653 = vpack.c.b16 %v635, %v635
  %v654 = vpack.c.b16 %v636, %v636
  %v655 = vpack.c.b16 %v637, %v637
  %v656 = vpack.c.b16 %v638, %v638
  %v657 = vpack.c.b16 %v639, %v639
  %v658 = vpack.c.b16 %v640, %v640
  %v659 = vpack.c.b16 %v641, %v641
  %v660 = vpack.c.b16 %v642, %v642
  %v661 = vpack.c.b16 %v643, %v643
  %v662 = vpack.c.b16 %v644, %v644
  %v663 = vpack.c.b16 %v645, %v645
  %v664 = vpack.c.b16 %v646, %v646
  %v665 = vpack.c.b16 %v647, %v647
  %v1260 = vunpack.c.l.b16 %v23
  %v1261 = vunpack.c.h.b16 %v23
  %v1262 = vunpack.c.l.b16 %v24
  %v1263 = vunpack.c.h.b16 %v24
  %v1264 = vunpack.c.l.b16 %v25
  %v1265 = vunpack.c.h.b16 %v25
  %v1266 = vunpack.c.l.b16 %v26
  %v1267 = vunpack.c.h.b16 %v26
  %v1268 = vunpack.c.l.b16 %v27
  %v1269 = vunpack.c.h.b16 %v27
  %v1270 = vunpack.c.l.b16 %v28
  %v1271 = vunpack.c.h.b16 %v28
  %v1272 = vunpack.c.l.b16 %v29
  %v1273 = vunpack.c.h.b16 %v29
  %v1274 = vunpack.c.l.b16 %v30
  %v1275 = vunpack.c.h.b16 %v30
  %v1276 = vunpack.c.l.b16 %v31
  %v1277 = vunpack.c.h.b16 %v31
  %v1278 = vunpack.c.l.b16 %v32
  %v1279 = vunpack.c.h.b16 %v32
  %v1280 = vunpack.c.l.b16 %v33
  %v1281 = vunpack.c.h.b16 %v33
  %v1282 = vunpack.c.l.b16 %v34
  %v1283 = vunpack.c.h.b16 %v34
  %v1284 = vunpack.c.l.b16 %v35
  %v1285 = vunpack.c.h.b16 %v35
  %v1286 = vunpack.c.l.b16 %v36
  %v1287 = vunpack.c.h.b16 %v36
  %v1288 = vunpack.c.l.b16 %v37
  %v1289 = vunpack.c.h.b16 %v37
  %v1290 = vunpack.c.l.b16 %v38
  %v1291 = vunpack.c.h.b16 %v38
  %v1292 = vunpack.c.l.b16 %v39
  %v1293 = vunpack.c.h.b16 %v39
  %v1294 = vunpack.c.l.b16 %v40
  %v1295 = vunpack.c.h.b16 %v40
  %v1296 = vunpack.c.l.b16 %v41
  %v1297 = vunpack.c.h.b16 %v41
  %v1298 = vunpack.c.l.b16 %v42
  %v1299 = vunpack.c.h.b16 %v42
  %v1300 = vunpack.c.l.b16 %v43
  %v1301 = vunpack.c.h.b16 %v43
  %v1302 = vunpack.c.l.b16 %v44
  %v1303 = vunpack.c.h.b16 %v44
  %v1304 = vunpack.c.l.b16 %v45
  %v1305 = vunpack.c.h.b16 %v45
  %v1306 = vunpack.c.l.b16 %v46
  %v1307 = vunpack.c.h.b16 %v46
  %v1308 = vunpack.c.l.b16 %v47
  %v1309 = vunpack.c.h.b16 %v47
  %v1310 = vunpack.c.l.b16 %v48
  %v1311 = vunpack.c.h.b16 %v48
  %v1312 = vunpack.c.l.b16 %v49
  %v1313 = vunpack.c.h.b16 %v49
  %v1314 = vunpack.c.l.b16 %v50
  %v1315 = vunpack.c.h.b16 %v50
  %v1316 = vunpack.c.l.b16 %v51
  %v1317 = vunpack.c.h.b16 %v51
  %v1318 = vunpack.c.l.b16 %v52
  %v1319 = vunpack.c.h.b16 %v52
  %v1320 = vunpack.c.l.b16 %v53
  %v1321 = vunpack.c.h.b16 %v53
  %v1322 = vunpack.c.l.b16 %v54
  %v1323 = vunpack.c.h.b16 %v54
  %v1324 = vunpack.c.l.b16 %v55
  %v1325 = vunpack.c.h.b16 %v55
  %v1326 = vunpack.c.l.b16 %v56
  %v1327 = vunpack.c.h.b16 %v56
  %v1328 = vunpack.c.l.b16 %v57
  %v1329 = vunpack.c.h.b16 %v57
  %v1330 = vunpack.c.l.b16 %v58
  %v1331 = vunpack.c.h.b16 %v58
  %v1332 = vunpack.c.l.b16 %v59
  %v1333 = vunpack.c.h.b16 %v59
  %v1334 = vunpack.c.l.b16 %v60
  %v1335 = vunpack.c.h.b16 %v60
  %v1336 = vunpack.c.l.b16 %v61
  %v1337 = vunpack.c.h.b16 %v61
  %v1338 = vunpack.c.l.b16 %v62
  %v1339 = vunpack.c.h.b16 %v62
  %v1340 = vunpack.c.l.b16 %v63
  %v1341 = vunpack.c.h.b16 %v63
  %v1342 = vunpack.c.l.b16 %v64
  %v1343 = vunpack.c.h.b16 %v64
  %v1344 = vunpack.c.l.b16 %v65
  %v1345 = vunpack.c.h.b16 %v65
  %v1346 = vunpack.c.l.b16 %v66
  %v1347 = vunpack.c.h.b16 %v66
  %v1348 = vunpack.c.l.b16 %v67
  %v1349 = vunpack.c.h.b16 %v67
  %v1350 = vunpack.c.l.b16 %v68
  %v1351 = vunpack.c.h.b16 %v68
  %v1352 = vunpack.c.l.b16 %v69
  %v1353 = vunpack.c.h.b16 %v69
  %v1354 = vunpack.c.l.b16 %v70
  %v1355 = vunpack.c.h.b16 %v70
  %v1356 = vunpack.c.l.b16 %v71
  %v1357 = vunpack.c.h.b16 %v71
  %v1358 = vunpack.c.l.b16 %v72
  %v1359 = vunpack.c.h.b16 %v72
  %v1360 = vunpack.c.l.b16 %v73
  %v1361 = vunpack.c.h.b16 %v73
  %v1362 = vunpack.c.l.b16 %v74
  %v1363 = vunpack.c.h.b16 %v74
  %v1364 = vunpack.c.l.b16 %v75
  %v1365 = vunpack.c.h.b16 %v75
  %v1366 = vunpack.c.l.b16 %v76
  %v1367 = vunpack.c.h.b16 %v76
  %v1368 = vunpack.c.l.b16 %v77
  %v1369 = vunpack.c.h.b16 %v77
  %v1370 = vunpack.c.l.b16 %v78
  %v1371 = vunpack.c.h.b16 %v78
  %v1372 = vunpack.c.l.b16 %v79
  %v1373 = vunpack.c.h.b16 %v79
  %v1374 = vunpack.c.l.b16 %v80
  %v1375 = vunpack.c.h.b16 %v80
  %v1376 = vunpack.c.l.b16 %v81
  %v1377 = vunpack.c.h.b16 %v81
  %v1378 = vunpack.c.l.b16 %v82
  %v1379 = vunpack.c.h.b16 %v82
  %v1380 = vunpack.c.l.b16 %v83
  %v1381 = vunpack.c.h.b16 %v83
  %v1382 = vunpack.c.l.b16 %v84
  %v1383 = vunpack.c.h.b16 %v84
  %v1384 = vunpack.c.l.b16 %v85
  %v1385 = vunpack.c.h.b16 %v85
  %v1386 = vunpack.c.l.b16 %v86
  %v1387 = vunpack.c.h.b16 %v86
  %v1388 = vunpack.c.l.b16 %v87
  %v1389 = vunpack.c.h.b16 %v87
  %v1390 = vunpack.c.l.b16 %v88
  %v1391 = vunpack.c.h.b16 %v88
  %v1392 = vunpack.c.l.b16 %v89
  %v1393 = vunpack.c.h.b16 %v89
  %v1394 = vunpack.c.l.b16 %v90
  %v1395 = vunpack.c.h.b16 %v90
  %v1396 = vunpack.c.l.b16 %v91
  %v1397 = vunpack.c.h.b16 %v91
  %v1398 = vunpack.c.l.b16 %v92
  %v1399 = vunpack.c.h.b16 %v92
  %v1400 = vunpack.c.l.b16 %v93
  %v1401 = vunpack.c.h.b16 %v93
  %v1402 = vunpack.c.l.b16 %v94
  %v1403 = vunpack.c.h.b16 %v94
  %v1404 = vunpack.c.l.b16 %v95
  %v1405 = vunpack.c.h.b16 %v95
  %v1406 = vunpack.c.l.b16 %v96
  %v1407 = vunpack.c.h.b16 %v96
  %v1408 = vunpack.c.l.b16 %v97
  %v1409 = vunpack.c.h.b16 %v97
  %v1410 = vunpack.c.l.b16 %v98
  %v1411 = vunpack.c.h.b16 %v98
  %v1412 = vunpack.c.l.b16 %v99
  %v1413 = vunpack.c.h.b16 %v99
  %v1414 = vunpack.c.l.b16 %v100
  %v1415 = vunpack.c.h.b16 %v100
  %v1416 = vunpack.c.l.b16 %v101
  %v1417 = vunpack.c.h.b16 %v101
  %v1418 = vunpack.c.l.b16 %v102
  %v1419 = vunpack.c.h.b16 %v102
  %v1420 = vunpack.c.l.b16 %v103
  %v1421 = vunpack.c.h.b16 %v103
  %v1422 = vunpack.c.l.b16 %v104
  %v1423 = vunpack.c.h.b16 %v104
  %v1424 = vunpack.c.l.b16 %v105
  %v1425 = vunpack.c.h.b16 %v105
  %v1426 = vunpack.c.l.b16 %v106
  %v1427 = vunpack.c.h.b16 %v106
  %v1428 = vunpack.c.l.b16 %v107
  %v1429 = vunpack.c.h.b16 %v107
  %v1430 = vunpack.c.l.b16 %v108
  %v1431 = vunpack.c.h.b16 %v108
  %v1432 = vunpack.c.l.b16 %v109
  %v1433 = vunpack.c.h.b16 %v109
  %v1434 = vunpack.c.l.b16 %v110
  %v1435 = vunpack.c.h.b16 %v110
  %v1436 = vunpack.c.l.b16 %v111
  %v1437 = vunpack.c.h.b16 %v111
  %v1438 = vunpack.c.l.b16 %v112
  %v1439 = vunpack.c.h.b16 %v112
  %v1440 = vunpack.c.l.b16 %v113
  %v1441 = vunpack.c.h.b16 %v113
  %v1442 = vunpack.c.l.b16 %v114
  %v1443 = vunpack.c.h.b16 %v114
  %v1444 = vunpack.c.l.b16 %v115
  %v1445 = vunpack.c.h.b16 %v115
  %v1446 = vunpack.c.l.b16 %v116
  %v1447 = vunpack.c.h.b16 %v116
  %v1448 = vunpack.c.l.b16 %v117
  %v1449 = vunpack.c.h.b16 %v117
  %v1450 = vunpack.c.l.b16 %v118
  %v1451 = vunpack.c.h.b16 %v118
  %v1452 = vunpack.c.l.b16 %v119
  %v1453 = vunpack.c.h.b16 %v119
  %v1454 = vunpack.c.l.b16 %v120
  %v1455 = vunpack.c.h.b16 %v120
  %v1456 = vunpack.c.l.b16 %v121
  %v1457 = vunpack.c.h.b16 %v121
  %v1458 = vunpack.c.l.b16 %v122
  %v1459 = vunpack.c.h.b16 %v122
  %v1460 = vunpack.c.l.b16 %v123
  %v1461 = vunpack.c.h.b16 %v123
  %v1462 = vunpack.c.l.b16 %v124
  %v1463 = vunpack.c.h.b16 %v124
  %v1464 = vunpack.c.l.b16 %v125
  %v1465 = vunpack.c.h.b16 %v125
  %v1466 = vunpack.c.l.b16 %v126
  %v1467 = vunpack.c.h.b16 %v126
  %v1468 = vunpack.c.l.b16 %v127
  %v1469 = vunpack.c.h.b16 %v127
  %v1470 = vunpack.c.l.b16 %v128
  %v1471 = vunpack.c.h.b16 %v128
  %v1472 = vunpack.c.l.b16 %v129
  %v1473 = vunpack.c.h.b16 %v129
  %v1474 = vunpack.c.l.b16 %v130
  %v1475 = vunpack.c.h.b16 %v130
  %v1476 = vunpack.c.l.b16 %v131
  %v1477 = vunpack.c.h.b16 %v131
  %v1478 = vunpack.c.l.b16 %v132
  %v1479 = vunpack.c.h.b16 %v132
  %v1480 = vunpack.c.l.b16 %v133
  %v1481 = vunpack.c.h.b16 %v133
  %v1482 = vunpack.c.l.b16 %v134
  %v1483 = vunpack.c.h.b16 %v134
  %v1484 = vunpack.c.l.b16 %v135
  %v1485 = vunpack.c.h.b16 %v135
  %v1486 = vunpack.c.l.b16 %v136
  %v1487 = vunpack.c.h.b16 %v136
  %v1488 = vunpack.c.l.b16 %v137
  %v1489 = vunpack.c.h.b16 %v137
  %v1490 = vunpack.c.l.b16 %v138
  %v1491 = vunpack.c.h.b16 %v138
  %v1492 = vunpack.c.l.b16 %v139
  %v1493 = vunpack.c.h.b16 %v139
  %v1494 = vunpack.c.l.b16 %v140
  %v1495 = vunpack.c.h.b16 %v140
  %v1496 = vunpack.c.l.b16 %v141
  %v1497 = vunpack.c.h.b16 %v141
  %v1498 = vunpack.c.l.b16 %v142
  %v1499 = vunpack.c.h.b16 %v142
  %v1500 = vunpack.c.l.b16 %v143
  %v1501 = vunpack.c.h.b16 %v143
  %v1502 = vunpack.c.l.b16 %v144
  %v1503 = vunpack.c.h.b16 %v144
  %v1504 = vunpack.c.l.b16 %v145
  %v1505 = vunpack.c.h.b16 %v145
  %v1506 = vunpack.c.l.b16 %v146
  %v1507 = vunpack.c.h.b16 %v146
  %v1508 = vunpack.c.l.b16 %v147
  %v1509 = vunpack.c.h.b16 %v147
  %v1510 = vunpack.c.l.b16 %v148
  %v1511 = vunpack.c.h.b16 %v148
  %v1512 = vunpack.c.l.b16 %v149
  %v1513 = vunpack.c.h.b16 %v149
  %v1514 = vunpack.c.l.b16 %v150
  %v1515 = vunpack.c.h.b16 %v150
  %v1516 = vunpack.c.l.b16 %v151
  %v1517 = vunpack.c.h.b16 %v151
  %v1518 = vunpack.c.l.b16 %v152
  %v1519 = vunpack.c.h.b16 %v152
  %v1520 = vunpack.c.l.b16 %v153
  %v1521 = vunpack.c.h.b16 %v153
  %v1522 = vunpack.c.l.b16 %v154
  %v1523 = vunpack.c.h.b16 %v154
  %v1524 = vunpack.c.l.b16 %v155
  %v1525 = vunpack.c.h.b16 %v155
  %v1526 = vunpack.c.l.b16 %v156
  %v1527 = vunpack.c.h.b16 %v156
  %v1528 = vunpack.c.l.b16 %v157
  %v1529 = vunpack.c.h.b16 %v157
  %v1530 = vunpack.c.l.b16 %v158
  %v1531 = vunpack.c.h.b16 %v158
  %v1532 = vunpack.c.l.b16 %v159
  %v1533 = vunpack.c.h.b16 %v159
  %v1534 = vunpack.c.l.b16 %v160
  %v1535 = vunpack.c.h.b16 %v160
  %v1536 = vunpack.c.l.b16 %v161
  %v1537 = vunpack.c.h.b16 %v161
  %v1538 = vunpack.c.l.b16 %v162
  %v1539 = vunpack.c.h.b16 %v162
  %v1540 = vunpack.c.l.b16 %v163
  %v1541 = vunpack.c.h.b16 %v163
  %v1542 = vunpack.c.l.b16 %v164
  %v1543 = vunpack.c.h.b16 %v164
  %v1544 = vunpack.c.l.b16 %v165
  %v1545 = vunpack.c.h.b16 %v165
  %v1546 = vunpack.c.l.b16 %v166
  %v1547 = vunpack.c.h.b16 %v166
  %v1548 = vunpack.c.l.b16 %v167
  %v1549 = vunpack.c.h.b16 %v167
  %v1550 = vunpack.c.l.b16 %v168
  %v1551 = vunpack.c.h.b16 %v168
  %v1552 = vunpack.c.l.b16 %v169
  %v1553 = vunpack.c.h.b16 %v169
  %v1554 = vunpack.c.l.b16 %v170
  %v1555 = vunpack.c.h.b16 %v170
  %v1556 = vunpack.c.l.b16 %v171
  %v1557 = vunpack.c.h.b16 %v171
  %v1558 = vunpack.c.l.b16 %v172
  %v1559 = vunpack.c.h.b16 %v172
  %v1560 = vunpack.c.l.b16 %v173
  %v1561 = vunpack.c.h.b16 %v173
  %v1562 = vunpack.c.l.b16 %v174
  %v1563 = vunpack.c.h.b16 %v174
  %v1564 = vunpack.c.l.b16 %v175
  %v1565 = vunpack.c.h.b16 %v175
  %v1566 = vunpack.c.l.b16 %v176
  %v1567 = vunpack.c.h.b16 %v176
  %v1568 = vunpack.c.l.b16 %v177
  %v1569 = vunpack.c.h.b16 %v177
  %v1570 = vunpack.c.l.b16 %v178
  %v1571 = vunpack.c.h.b16 %v178
  %v1572 = vunpack.c.l.b16 %v179
  %v1573 = vunpack.c.h.b16 %v179
  %v1574 = vunpack.c.l.b16 %v180
  %v1575 = vunpack.c.h.b16 %v180
  %v1576 = vunpack.c.l.b16 %v181
  %v1577 = vunpack.c.h.b16 %v181
  %v1578 = vunpack.c.l.b16 %v182
  %v1579 = vunpack.c.h.b16 %v182
  %v1580 = vunpack.c.l.b16 %v183
  %v1581 = vunpack.c.h.b16 %v183
  %v1582 = vunpack.c.l.b16 %v184
  %v1583 = vunpack.c.h.b16 %v184
  %v1584 = vunpack.c.l.b16 %v185
  %v1585 = vunpack.c.h.b16 %v185
  %v1586 = vunpack.c.l.b16 %v186
  %v1587 = vunpack.c.h.b16 %v186
  %v1588 = vunpack.c.l.b16 %v187
  %v1589 = vunpack.c.h.b16 %v187
  %v1590 = vunpack.c.l.b16 %v188
  %v1591 = vunpack.c.h.b16 %v188
  %v1592 = vunpack.c.l.b16 %v189
  %v1593 = vunpack.c.h.b16 %v189
  %v1594 = vunpack.c.l.b16 %v190
  %v1595 = vunpack.c.h.b16 %v190
  %v1596 = vunpack.c.l.b16 %v191
  %v1597 = vunpack.c.h.b16 %v191
  %v1598 = vunpack.c.l.b16 %v192
  %v1599 = vunpack.c.h.b16 %v192
  %v1600 = vunpack.c.l.b16 %v193
  %v1601 = vunpack.c.h.b16 %v193
  %v1602 = vunpack.c.l.b16 %v194
  %v1603 = vunpack.c.h.b16 %v194
  %v1604 = vunpack.c.l.b16 %v195
  %v1605 = vunpack.c.h.b16 %v195
  %v1606 = vunpack.c.l.b16 %v196
  %v1607 = vunpack.c.h.b16 %v196
  %v1608 = vunpack.c.l.b16 %v197
  %v1609 = vunpack.c.h.b16 %v197
  %v1610 = vunpack.c.l.b16 %v198
  %v1611 = vunpack.c.h.b16 %v198
  %v1612 = vunpack.c.l.b16 %v199
  %v1613 = vunpack.c.h.b16 %v199
  %v1614 = vunpack.c.l.b16 %v200
  %v1615 = vunpack.c.h.b16 %v200
  %v1616 = vunpack.c.l.b16 %v201
  %v1617 = vunpack.c.h.b16 %v201
  %v1618 = vunpack.c.l.b16 %v202
  %v1619 = vunpack.c.h.b16 %v202
  %v1620 = vunpack.c.l.b16 %v203
  %v1621 = vunpack.c.h.b16 %v203
  %v1622 = vunpack.c.l.b16 %v204
  %v1623 = vunpack.c.h.b16 %v204
  %v1624 = vunpack.c.l.b16 %v205
  %v1625 = vunpack.c.h.b16 %v205
  %v1626 = vunpack.c.l.b16 %v206
  %v1627 = vunpack.c.h.b16 %v206
  %v1628 = vunpack.c.l.b16 %v207
  %v1629 = vunpack.c.h.b16 %v207
  %v1630 = vunpack.c.l.b16 %v208
  %v1631 = vunpack.c.h.b16 %v208
  %v1632 = vunpack.c.l.b16 %v209
  %v1633 = vunpack.c.h.b16 %v209
  %v1634 = vunpack.c.l.b16 %v210
  %v1635 = vunpack.c.h.b16 %v210
  %v1636 = vunpack.c.l.b16 %v211
  %v1637 = vunpack.c.h.b16 %v211
  %v1638 = vunpack.c.l.b16 %v212
  %v1639 = vunpack.c.h.b16 %v212
  %v1640 = vunpack.c.l.b16 %v213
  %v1641 = vunpack.c.h.b16 %v213
  %v1642 = vunpack.c.l.b16 %v214
  %v1643 = vunpack.c.h.b16 %v214
  %v1644 = vunpack.c.l.b16 %v215
  %v1645 = vunpack.c.h.b16 %v215
  %v1646 = vunpack.c.l.b16 %v216
  %v1647 = vunpack.c.h.b16 %v216
  %v1648 = vunpack.c.l.b16 %v217
  %v1649 = vunpack.c.h.b16 %v217
  %v1650 = vunpack.c.l.b16 %v218
  %v1651 = vunpack.c.h.b16 %v218
  %v1652 = vunpack.c.l.b16 %v219
  %v1653 = vunpack.c.h.b16 %v219
  %v1654 = vunpack.c.l.b16 %v220
  %v1655 = vunpack.c.h.b16 %v220
  %v1656 = vunpack.c.l.b16 %v221
  %v1657 = vunpack.c.h.b16 %v221
  %v1658 = vunpack.c.l.b16 %v222
  %v1659 = vunpack.c.h.b16 %v222
  %v1660 = vunpack.c.l.b16 %v223
  %v1661 = vunpack.c.h.b16 %v223
  %v1662 = vunpack.c.l.b16 %v224
  %v1663 = vunpack.c.h.b16 %v224
  %v1664 = vunpack.c.l.b16 %v225
  %v1665 = vunpack.c.h.b16 %v225
  %v1666 = vunpack.c.l.b16 %v226
  %v1667 = vunpack.c.h.b16 %v226
  %v1668 = vunpack.c.l.b16 %v227
  %v1669 = vunpack.c.h.b16 %v227
  %v1670 = vunpack.c.l.b16 %v228
  %v1671 = vunpack.c.h.b16 %v228
  %v1672 = vunpack.c.l.b16 %v229
  %v1673 = vunpack.c.h.b16 %v229
  %v1674 = vunpack.c.l.b16 %v230
  %v1675 = vunpack.c.h.b16 %v230
  %v1676 = vunpack.c.l.b16 %v231
  %v1677 = vunpack.c.h.b16 %v231
  %v1678 = vunpack.c.l.b16 %v232
  %v1679 = vunpack.c.h.b16 %v232
  %v1680 = vunpack.c.l.b16 %v233
  %v1681 = vunpack.c.h.b16 %v233
  %v1682 = vunpack.c.l.b16 %v234
  %v1683 = vunpack.c.h.b16 %v234
  %v1684 = vunpack.c.l.b16 %v235
  %v1685 = vunpack.c.h.b16 %v235
  %v1686 = vunpack.c.l.b16 %v236
  %v1687 = vunpack.c.h.b16 %v236
  %v1688 = vunpack.c.l.b16 %v237
  %v1689 = vunpack.c.h.b16 %v237
  %v1690 = vunpack.c.l.b16 %v238
  %v1691 = vunpack.c.h.b16 %v238
  %v1692 = vunpack.c.l.b16 %v239
  %v1693 = vunpack.c.h.b16 %v239
  %v1694 = vunpack.c.l.b16 %v240
  %v1695 = vunpack.c.h.b16 %v240
  %v1696 = vunpack.c.l.b16 %v241
  %v1697 = vunpack.c.h.b16 %v241
  %v1698 = vunpack.c.l.b16 %v242
  %v1699 = vunpack.c.h.b16 %v242
  %v1700 = vunpack.c.l.b16 %v243
  %v1701 = vunpack.c.h.b16 %v243
  %v1702 = vunpack.c.l.b16 %v244
  %v1703 = vunpack.c.h.b16 %v244
  %v1704 = vunpack.c.l.b16 %v245
  %v1705 = vunpack.c.h.b16 %v245
  %v1706 = vunpack.c.l.b16 %v246
  %v1707 = vunpack.c.h.b16 %v246
  %v1708 = vunpack.c.l.b16 %v247
  %v1709 = vunpack.c.h.b16 %v247
  %v1710 = vunpack.c.l.b16 %v248
  %v1711 = vunpack.c.h.b16 %v248
  %v1712 = vunpack.c.l.b16 %v249
  %v1713 = vunpack.c.h.b16 %v249
  %v1714 = vunpack.c.l.b16 %v250
  %v1715 = vunpack.c.h.b16 %v250
  %v1716 = vunpack.c.l.b16 %v251
  %v1717 = vunpack.c.h.b16 %v251
  %v1718 = vunpack.c.l.b16 %v252
  %v1719 = vunpack.c.h.b16 %v252
  %v1720 = vunpack.c.l.b16 %v253
  %v1721 = vunpack.c.h.b16 %v253
  %v1722 = vunpack.c.l.b16 %v254
  %v1723 = vunpack.c.h.b16 %v254
  %v1724 = vunpack.c.l.b16 %v255
  %v1725 = vunpack.c.h.b16 %v255
  %v1726 = vunpack.c.l.b16 %v256
  %v1727 = vunpack.c.h.b16 %v256
  %v1728 = vunpack.c.l.b16 %v257
  %v1729 = vunpack.c.h.b16 %v257
  %v1730 = vunpack.c.l.b16 %v258
  %v1731 = vunpack.c.h.b16 %v258
  %v1732 = vunpack.c.l.b16 %v259
  %v1733 = vunpack.c.h.b16 %v259
  %v1734 = vunpack.c.l.b16 %v260
  %v1735 = vunpack.c.h.b16 %v260
  %v1736 = vunpack.c.l.b16 %v261
  %v1737 = vunpack.c.h.b16 %v261
  %v1738 = vunpack.c.l.b16 %v262
  %v1739 = vunpack.c.h.b16 %v262
  %v1740 = vunpack.c.l.b16 %v263
  %v1741 = vunpack.c.h.b16 %v263
  %v1742 = vunpack.c.l.b16 %v264
  %v1743 = vunpack.c.h.b16 %v264
  %v1744 = vunpack.c.l.b16 %v265
  %v1745 = vunpack.c.h.b16 %v265
  %v1746 = vunpack.c.l.b16 %v266
  %v1747 = vunpack.c.h.b16 %v266
  %v1748 = vunpack.c.l.b16 %v267
  %v1749 = vunpack.c.h.b16 %v267
  %v1750 = vunpack.c.l.b16 %v268
  %v1751 = vunpack.c.h.b16 %v268
  %v1752 = vunpack.c.l.b16 %v269
  %v1753 = vunpack.c.h.b16 %v269
  %v1754 = vunpack.c.l.b16 %v270
  %v1755 = vunpack.c.h.b16 %v270
  %v1756 = vunpack.c.l.b16 %v271
  %v1757 = vunpack.c.h.b16 %v271
  %v1758 = vunpack.c.l.b16 %v272
  %v1759 = vunpack.c.h.b16 %v272
  %v1760 = vunpack.c.l.b16 %v273
  %v1761 = vunpack.c.h.b16 %v273
  %v1762 = vunpack.c.l.b16 %v274
  %v1763 = vunpack.c.h.b16 %v274
  %v1764 = vunpack.c.l.b16 %v275
  %v1765 = vunpack.c.h.b16 %v275
  %v1766 = vunpack.c.l.b16 %v276
  %v1767 = vunpack.c.h.b16 %v276
  %v1768 = vunpack.c.l.b16 %v277
  %v1769 = vunpack.c.h.b16 %v277
  %v1770 = vunpack.c.l.b16 %v278
  %v1771 = vunpack.c.h.b16 %v278
  %v1772 = vunpack.c.l.b16 %v279
  %v1773 = vunpack.c.h.b16 %v279
  %v1774 = vunpack.c.l.b16 %v280
  %v1775 = vunpack.c.h.b16 %v280
  %v1776 = vunpack.c.l.b16 %v281
  %v1777 = vunpack.c.h.b16 %v281
  %v1778 = vunpack.c.l.b16 %v282
  %v1779 = vunpack.c.h.b16 %v282
  %v1780 = vunpack.c.l.b16 %v283
  %v1781 = vunpack.c.h.b16 %v283
  %v1782 = vunpack.c.l.b16 %v284
  %v1783 = vunpack.c.h.b16 %v284
  %v1784 = vunpack.c.l.b16 %v285
  %v1785 = vunpack.c.h.b16 %v285
  %v1786 = vunpack.c.l.b16 %v286
  %v1787 = vunpack.c.h.b16 %v286
  %v1788 = vunpack.c.l.b16 %v287
  %v1789 = vunpack.c.h.b16 %v287
  %v1790 = vunpack.c.l.b16 %v288
  %v1791 = vunpack.c.h.b16 %v288
  %v1792 = vunpack.c.l.b16 %v289
  %v1793 = vunpack.c.h.b16 %v289
  %v1794 = vunpack.c.l.b16 %v290
  %v1795 = vunpack.c.h.b16 %v290
  %v1796 = vunpack.c.l.b16 %v291
  %v1797 = vunpack.c.h.b16 %v291
  %v1798 = vunpack.c.l.b16 %v292
  %v1799 = vunpack.c.h.b16 %v292
  %v1800 = vunpack.c.l.b16 %v293
  %v1801 = vunpack.c.h.b16 %v293
  %v1802 = vunpack.c.l.b16 %v294
  %v1803 = vunpack.c.h.b16 %v294
  %v1804 = vunpack.c.l.b16 %v295
  %v1805 = vunpack.c.h.b16 %v295
  %v1806 = vunpack.c.l.b16 %v296
  %v1807 = vunpack.c.h.b16 %v296
  %v1808 = vunpack.c.l.b16 %v297
  %v1809 = vunpack.c.h.b16 %v297
  %v1810 = vunpack.c.l.b16 %v298
  %v1811 = vunpack.c.h.b16 %v298
  %v1812 = vunpack.c.l.b16 %v299
  %v1813 = vunpack.c.h.b16 %v299
  %v1814 = vunpack.c.l.b16 %v300
  %v1815 = vunpack.c.h.b16 %v300
  %v1816 = vunpack.c.l.b16 %v301
  %v1817 = vunpack.c.h.b16 %v301
  %v1818 = vunpack.c.l.b16 %v302
  %v1819 = vunpack.c.h.b16 %v302
  %v1820 = vunpack.c.l.b16 %v303
  %v1821 = vunpack.c.h.b16 %v303
  %v1822 = vunpack.c.l.b16 %v304
  %v1823 = vunpack.c.h.b16 %v304
  %v1824 = vunpack.c.l.b16 %v305
  %v1825 = vunpack.c.h.b16 %v305
  %v1826 = vunpack.c.l.b16 %v306
  %v1827 = vunpack.c.h.b16 %v306
  %v1828 = vunpack.c.l.b16 %v307
  %v1829 = vunpack.c.h.b16 %v307
  %v1830 = vunpack.c.l.b16 %v308
  %v1831 = vunpack.c.h.b16 %v308
  %v1832 = vunpack.c.l.b16 %v309
  %v1833 = vunpack.c.h.b16 %v309
  %v1834 = vunpack.c.l.b16 %v310
  %v1835 = vunpack.c.h.b16 %v310
  %v1836 = vunpack.c.l.b16 %v311
  %v1837 = vunpack.c.h.b16 %v311
  %v1838 = vunpack.c.l.b16 %v312
  %v1839 = vunpack.c.h.b16 %v312
  %v1840 = vunpack.c.l.b16 %v313
  %v1841 = vunpack.c.h.b16 %v313
  %v1842 = vunpack.c.l.b16 %v314
  %v1843 = vunpack.c.h.b16 %v314
  %v1844 = vunpack.c.l.b16 %v315
  %v1845 = vunpack.c.h.b16 %v315
  %v1846 = vunpack.c.l.b16 %v316
  %v1847 = vunpack.c.h.b16 %v316
  %v1848 = vunpack.c.l.b16 %v317
  %v1849 = vunpack.c.h.b16 %v317
  %v1850 = vunpack.c.l.b16 %v318
  %v1851 = vunpack.c.h.b16 %v318
  %v1852 = vunpack.c.l.b16 %v319
  %v1853 = vunpack.c.h.b16 %v319
  %v1854 = vunpack.c.l.b16 %v320
  %v1855 = vunpack.c.h.b16 %v320
  %v1856 = vunpack.c.l.b16 %v321
  %v1857 = vunpack.c.h.b16 %v321
  %v1858 = vunpack.c.l.b16 %v322
  %v1859 = vunpack.c.h.b16 %v322
  %v1860 = vunpack.c.l.b16 %v323
  %v1861 = vunpack.c.h.b16 %v323
  %v1862 = vunpack.c.l.b16 %v324
  %v1863 = vunpack.c.h.b16 %v324
  %v1864 = vunpack.c.l.b16 %v325
  %v1865 = vunpack.c.h.b16 %v325
  %v1866 = vunpack.c.l.b16 %v326
  %v1867 = vunpack.c.h.b16 %v326
  %v1868 = vunpack.c.l.b16 %v327
  %v1869 = vunpack.c.h.b16 %v327
  %v1870 = vunpack.c.l.b16 %v328
  %v1871 = vunpack.c.h.b16 %v328
  %v1872 = vunpack.c.l.b16 %v329
  %v1873 = vunpack.c.h.b16 %v329
  %v1874 = vunpack.c.l.b16 %v330
  %v1875 = vunpack.c.h.b16 %v330
  %v1876 = vunpack.c.l.b16 %v331
  %v1877 = vunpack.c.h.b16 %v331
  %v1878 = vunpack.c.l.b16 %v332
  %v1879 = vunpack.c.h.b16 %v332
  %v1880 = vunpack.c.l.b16 %v333
  %v1881 = vunpack.c.h.b16 %v333
  %v1882 = vunpack.c.l.b16 %v334
  %v1883 = vunpack.c.h.b16 %v334
  %v1884 = vunpack.c.l.b16 %v335
  %v1885 = vunpack.c.h.b16 %v335
  %v1886 = vunpack.c.l.b16 %v336
  %v1887 = vunpack.c.h.b16 %v336
  %v1888 = vunpack.c.l.b16 %v337
  %v1889 = vunpack.c.h.b16 %v337
  %v1890 = vunpack.c.l.b16 %v338
  %v1891 = vunpack.c.h.b16 %v338
  %v1892 = vunpack.c.l.b16 %v339
  %v1893 = vunpack.c.h.b16 %v339
  %v1894 = vunpack.c.l.b16 %v340
  %v1895 = vunpack.c.h.b16 %v340
  %v1896 = vunpack.c.l.b16 %v341
  %v1897 = vunpack.c.h.b16 %v341
  %v1898 = vunpack.c.l.b16 %v342
  %v1899 = vunpack.c.h.b16 %v342
  %v1900 = vunpack.c.l.b16 %v343
  %v1901 = vunpack.c.h.b16 %v343
  %v1902 = vunpack.c.l.b16 %v344
  %v1903 = vunpack.c.h.b16 %v344
  %v1904 = vunpack.c.l.b16 %v345
  %v1905 = vunpack.c.h.b16 %v345
  %v1906 = vunpack.c.l.b16 %v346
  %v1907 = vunpack.c.h.b16 %v346
  %v1908 = vunpack.c.l.b16 %v347
  %v1909 = vunpack.c.h.b16 %v347
  %v1910 = vunpack.c.l.b16 %v348
  %v1911 = vunpack.c.h.b16 %v348
  %v1912 = vunpack.c.l.b16 %v349
  %v1913 = vunpack.c.h.b16 %v349
  %v1914 = vunpack.c.l.b16 %v350
  %v1915 = vunpack.c.h.b16 %v350
  %v1916 = vunpack.c.l.b16 %v351
  %v1917 = vunpack.c.h.b16 %v351
  %v1918 = vunpack.c.l.b16 %v352
  %v1919 = vunpack.c.h.b16 %v352
  %v1920 = vunpack.c.l.b16 %v353
  %v1921 = vunpack.c.h.b16 %v353
  %v1922 = vunpack.c.l.b16 %v354
  %v1923 = vunpack.c.h.b16 %v354
  %v1924 = vunpack.c.l.b16 %v355
  %v1925 = vunpack.c.h.b16 %v355
  %v1926 = vunpack.c.l.b16 %v356
  %v1927 = vunpack.c.h.b16 %v356
  %v1928 = vunpack.c.l.b16 %v357
  %v1929 = vunpack.c.h.b16 %v357
  %v1930 = vunpack.c.l.b16 %v358
  %v1931 = vunpack.c.h.b16 %v358
  %v1932 = vunpack.c.l.b16 %v359
  %v1933 = vunpack.c.h.b16 %v359
  %v1934 = vunpack.c.l.b16 %v360
  %v1935 = vunpack.c.h.b16 %v360
  %v1936 = vunpack.c.l.b16 %v361
  %v1937 = vunpack.c.h.b16 %v361
  %v1938 = vunpack.c.l.b16 %v362
  %v1939 = vunpack.c.h.b16 %v362
  %v1940 = vunpack.c.l.b16 %v363
  %v1941 = vunpack.c.h.b16 %v363
  %v1942 = vunpack.c.l.b16 %v364
  %v1943 = vunpack.c.h.b16 %v364
  %v1944 = vunpack.c.l.b16 %v365
  %v1945 = vunpack.c.h.b16 %v365
  %v1946 = vunpack.c.l.b16 %v366
  %v1947 = vunpack.c.h.b16 %v366
  %v1948 = vunpack.c.l.b16 %v367
  %v1949 = vunpack.c.h.b16 %v367
  %v1950 = vunpack.c.l.b16 %v368
  %v1951 = vunpack.c.h.b16 %v368
  %v1952 = vunpack.c.l.b16 %v369
  %v1953 = vunpack.c.h.b16 %v369
  %v1954 = vunpack.c.l.b16 %v370
  %v1955 = vunpack.c.h.b16 %v370
  %v1956 = vunpack.c.l.b16 %v371
  %v1957 = vunpack.c.h.b16 %v371
  %v1958 = vunpack.c.l.b16 %v372
  %v1959 = vunpack.c.h.b16 %v372
  %v1960 = vunpack.c.l.b16 %v373
  %v1961 = vunpack.c.h.b16 %v373
  %v1962 = vunpack.c.l.b16 %v374
  %v1963 = vunpack.c.h.b16 %v374
  %v1964 = vunpack.c.l.b16 %v375
  %v1965 = vunpack.c.h.b16 %v375
  %v1966 = vunpack.c.l.b16 %v376
  %v1967 = vunpack.c.h.b16 %v376
  %v1968 = vunpack.c.l.b16 %v377
  %v1969 = vunpack.c.h.b16 %v377
  %v1970 = vunpack.c.l.b16 %v378
  %v1971 = vunpack.c.h.b16 %v378
  %v1972 = vunpack.c.l.b16 %v379
  %v1973 = vunpack.c.h.b16 %v379
  %v1974 = vunpack.c.l.b16 %v380
  %v1975 = vunpack.c.h.b16 %v380
  %v1976 = vunpack.c.l.b16 %v381
  %v1977 = vunpack.c.h.b16 %v381
  %v1978 = vunpack.c.l.b16 %v382
  %v1979 = vunpack.c.h.b16 %v382
  %v1980 = vunpack.c.l.b16 %v383
  %v1981 = vunpack.c.h.b16 %v383
  %v1982 = vunpack.c.l.b16 %v384
  %v1983 = vunpack.c.h.b16 %v384
  %v1984 = vunpack.c.l.b16 %v385
  %v1985 = vunpack.c.h.b16 %v385
  %v1986 = vunpack.c.l.b16 %v386
  %v1987 = vunpack.c.h.b16 %v386
  %v1988 = vunpack.c.l.b16 %v387
  %v1989 = vunpack.c.h.b16 %v387
  %v1990 = vunpack.c.l.b16 %v388
  %v1991 = vunpack.c.h.b16 %v388
  %v1992 = vunpack.c.l.b16 %v389
  %v1993 = vunpack.c.h.b16 %v389
  %v1994 = vunpack.c.l.b16 %v390
  %v1995 = vunpack.c.h.b16 %v390
  %v1996 = vunpack.c.l.b16 %v391
  %v1997 = vunpack.c.h.b16 %v391
  %v1998 = vunpack.c.l.b16 %v392
  %v1999 = vunpack.c.h.b16 %v392
  %v2000 = vunpack.c.l.b16 %v393
  %v2001 = vunpack.c.h.b16 %v393
  %v2002 = vunpack.c.l.b16 %v394
  %v2003 = vunpack.c.h.b16 %v394
  %v2004 = vunpack.c.l.b16 %v395
  %v2005 = vunpack.c.h.b16 %v395
  %v2006 = vunpack.c.l.b16 %v396
  %v2007 = vunpack.c.h.b16 %v396
  %v2008 = vunpack.c.l.b16 %v397
  %v2009 = vunpack.c.h.b16 %v397
  %v2010 = vunpack.c.l.b16 %v398
  %v2011 = vunpack.c.h.b16 %v398
  %v2012 = vunpack.c.l.b16 %v399
  %v2013 = vunpack.c.h.b16 %v399
  %v2014 = vunpack.c.l.b16 %v400
  %v2015 = vunpack.c.h.b16 %v400
  %v2016 = vunpack.c.l.b16 %v401
  %v2017 = vunpack.c.h.b16 %v401
  %v2018 = vunpack.c.l.b16 %v402
  %v2019 = vunpack.c.h.b16 %v402
  %v2020 = vunpack.c.l.b16 %v403
  %v2021 = vunpack.c.h.b16 %v403
  %v2022 = vunpack.c.l.b16 %v404
  %v2023 = vunpack.c.h.b16 %v404
  %v2024 = vunpack.c.l.b16 %v405
  %v2025 = vunpack.c.h.b16 %v405
  %v2026 = vunpack.c.l.b16 %v406
  %v2027 = vunpack.c.h.b16 %v406
  %v2028 = vunpack.c.l.b16 %v407
  %v2029 = vunpack.c.h.b16 %v407
  %v2030 = vunpack.c.l.b16 %v408
  %v2031 = vunpack.c.h.b16 %v408
  %v2032 = vunpack.c.l.b16 %v409
  %v2033 = vunpack.c.h.b16 %v409
  %v2034 = vunpack.c.l.b16 %v410
  %v2035 = vunpack.c.h.b16 %v410
  %v2036 = vunpack.c.l.b16 %v411
  %v2037 = vunpack.c.h.b16 %v411
  %v2038 = vunpack.c.l.b16 %v412
  %v2039 = vunpack.c.h.b16 %v412
  %v2040 = vunpack.c.l.b16 %v413
  %v2041 = vunpack.c.h.b16 %v413
  %v2042 = vunpack.c.l.b16 %v414
  %v2043 = vunpack.c.h.b16 %v414
  %v2044 = vunpack.c.l.b16 %v415
  %v2045 = vunpack.c.h.b16 %v415
  %v2046 = vunpack.c.l.b16 %v416
  %v2047 = vunpack.c.h.b16 %v416
  %v2048 = vunpack.c.l.b16 %v417
  %v2049 = vunpack.c.h.b16 %v417
  %v2050 = vunpack.c.l.b16 %v418
  %v2051 = vunpack.c.h.b16 %v418
  %v2052 = vunpack.c.l.b16 %v419
  %v2053 = vunpack.c.h.b16 %v419
  %v2054 = vunpack.c.l.b16 %v420
  %v2055 = vunpack.c.h.b16 %v420
  %v2056 = vunpack.c.l.b16 %v421
  %v2057 = vunpack.c.h.b16 %v421
  %v2058 = vunpack.c.l.b16 %v422
  %v2059 = vunpack.c.h.b16 %v422
  %v2060 = vunpack.c.l.b16 %v423
  %v2061 = vunpack.c.h.b16 %v423
  %v2062 = vunpack.c.l.b16 %v424
  %v2063 = vunpack.c.h.b16 %v424
  %v2064 = vunpack.c.l.b16 %v425
  %v2065 = vunpack.c.h.b16 %v425
  %v2066 = vunpack.c.l.b16 %v426
  %v2067 = vunpack.c.h.b16 %v426
  %v2068 = vunpack.c.l.b16 %v427
  %v2069 = vunpack.c.h.b16 %v427
  %v2070 = vunpack.c.l.b16 %v428
  %v2071 = vunpack.c.h.b16 %v428
  %v2072 = vunpack.c.l.b16 %v429
  %v2073 = vunpack.c.h.b16 %v429
  %v2074 = vunpack.c.l.b16 %v430
  %v2075 = vunpack.c.h.b16 %v430
  %v2076 = vunpack.c.l.b16 %v431
  %v2077 = vunpack.c.h.b16 %v431
  %v2078 = vunpack.c.l.b16 %v432
  %v2079 = vunpack.c.h.b16 %v432
  %v2080 = vunpack.c.l.b16 %v433
  %v2081 = vunpack.c.h.b16 %v433
  %v2082 = vunpack.c.l.b16 %v434
  %v2083 = vunpack.c.h.b16 %v434
  %v2084 = vunpack.c.l.b16 %v435
  %v2085 = vunpack.c.h.b16 %v435
  %v2086 = vunpack.c.l.b16 %v436
  %v2087 = vunpack.c.h.b16 %v436
  %v2088 = vunpack.c.l.b16 %v437
  %v2089 = vunpack.c.h.b16 %v437
  %v2090 = vunpack.c.l.b16 %v438
  %v2091 = vunpack.c.h.b16 %v438
  %v2092 = vunpack.c.l.b16 %v439
  %v2093 = vunpack.c.h.b16 %v439
  %v2094 = vunpack.c.l.b16 %v440
  %v2095 = vunpack.c.h.b16 %v440
  %v2096 = vunpack.c.l.b16 %v441
  %v2097 = vunpack.c.h.b16 %v441
  %v2098 = vunpack.c.l.b16 %v442
  %v2099 = vunpack.c.h.b16 %v442
  %v2100 = vunpack.c.l.b16 %v443
  %v2101 = vunpack.c.h.b16 %v443
  %v2102 = vunpack.c.l.b16 %v444
  %v2103 = vunpack.c.h.b16 %v444
  %v2104 = vunpack.c.l.b16 %v445
  %v2105 = vunpack.c.h.b16 %v445
  %v2106 = vunpack.c.l.b16 %v446
  %v2107 = vunpack.c.h.b16 %v446
  %v2108 = vunpack.c.l.b16 %v447
  %v2109 = vunpack.c.h.b16 %v447
  %v2110 = vunpack.c.l.b16 %v448
  %v2111 = vunpack.c.h.b16 %v448
  %v2112 = vunpack.c.l.b16 %v449
  %v2113 = vunpack.c.h.b16 %v449
  %v2114 = vunpack.c.l.b16 %v450
  %v2115 = vunpack.c.h.b16 %v450
  %v2116 = vunpack.c.l.b16 %v451
  %v2117 = vunpack.c.h.b16 %v451
  %v2118 = vunpack.c.l.b16 %v452
  %v2119 = vunpack.c.h.b16 %v452
  %v2120 = vunpack.c.l.b16 %v453
  %v2121 = vunpack.c.h.b16 %v453
  %v2122 = vunpack.c.l.b16 %v454
  %v2123 = vunpack.c.h.b16 %v454
  %v2124 = vunpack.c.l.b16 %v455
  %v2125 = vunpack.c.h.b16 %v455
  %v2126 = vunpack.c.l.b16 %v456
  %v2127 = vunpack.c.h.b16 %v456
  %v2128 = vunpack.c.l.b16 %v457
  %v2129 = vunpack.c.h.b16 %v457
  %v2130 = vunpack.c.l.b16 %v458
  %v2131 = vunpack.c.h.b16 %v458
  %v2132 = vunpack.c.l.b16 %v459
  %v2133 = vunpack.c.h.b16 %v459
  %v2134 = vunpack.c.l.b16 %v460
  %v2135 = vunpack.c.h.b16 %v460
  %v2136 = vunpack.c.l.b16 %v461
  %v2137 = vunpack.c.h.b16 %v461
  %v2138 = vunpack.c.l.b16 %v462
  %v2139 = vunpack.c.h.b16 %v462
  %v2140 = vunpack.c.l.b16 %v463
  %v2141 = vunpack.c.h.b16 %v463
  %v2142 = vunpack.c.l.b16 %v464
  %v2143 = vunpack.c.h.b16 %v464
  %v2144 = vunpack.c.l.b16 %v465
  %v2145 = vunpack.c.h.b16 %v465
  %v2146 = vunpack.c.l.b16 %v466
  %v2147 = vunpack.c.h.b16 %v466
  %v2148 = vunpack.c.l.b16 %v467
  %v2149 = vunpack.c.h.b16 %v467
  %v2150 = vunpack.c.l.b16 %v468
  %v2151 = vunpack.c.h.b16 %v468
  %v2152 = vunpack.c.l.b16 %v469
  %v2153 = vunpack.c.h.b16 %v469
  %v2154 = vunpack.c.l.b16 %v470
  %v2155 = vunpack.c.h.b16 %v470
  %v2156 = vunpack.c.l.b16 %v471
  %v2157 = vunpack.c.h.b16 %v471
  %v2158 = vunpack.c.l.b16 %v472
  %v2159 = vunpack.c.h.b16 %v472
  %v2160 = vunpack.c.l.b16 %v473
  %v2161 = vunpack.c.h.b16 %v473
  %v2162 = vunpack.c.l.b16 %v474
  %v2163 = vunpack.c.h.b16 %v474
  %v2164 = vunpack.c.l.b16 %v475
  %v2165 = vunpack.c.h.b16 %v475
  %v2166 = vunpack.c.l.b16 %v476
  %v2167 = vunpack.c.h.b16 %v476
  %v2168 = vunpack.c.l.b16 %v477
  %v2169 = vunpack.c.h.b16 %v477
  %v2170 = vunpack.c.l.b16 %v478
  %v2171 = vunpack.c.h.b16 %v478
  %v2172 = vunpack.c.l.b16 %v479
  %v2173 = vunpack.c.h.b16 %v479
  %v2174 = vunpack.c.l.b16 %v480
  %v2175 = vunpack.c.h.b16 %v480
  %v2176 = vunpack.c.l.b16 %v481
  %v2177 = vunpack.c.h.b16 %v481
  %v2178 = vunpack.c.l.b16 %v482
  %v2179 = vunpack.c.h.b16 %v482
  %v2180 = vunpack.c.l.b16 %v483
  %v2181 = vunpack.c.h.b16 %v483
  %v2182 = vunpack.c.l.b16 %v484
  %v2183 = vunpack.c.h.b16 %v484
  %v2184 = vunpack.c.l.b16 %v485
  %v2185 = vunpack.c.h.b16 %v485
  %v2186 = vunpack.c.l.b16 %v486
  %v2187 = vunpack.c.h.b16 %v486
  %v2188 = vunpack.c.l.b16 %v487
  %v2189 = vunpack.c.h.b16 %v487
  %v2190 = vunpack.c.l.b16 %v488
  %v2191 = vunpack.c.h.b16 %v488
  %v2192 = vunpack.c.l.b16 %v489
  %v2193 = vunpack.c.h.b16 %v489
  %v2194 = vunpack.c.l.b16 %v490
  %v2195 = vunpack.c.h.b16 %v490
  %v2196 = vunpack.c.l.b16 %v491
  %v2197 = vunpack.c.h.b16 %v491
  %v2198 = vunpack.c.l.b16 %v492
  %v2199 = vunpack.c.h.b16 %v492
  %v2200 = vunpack.c.l.b16 %v493
  %v2201 = vunpack.c.h.b16 %v493
  %v2202 = vunpack.c.l.b16 %v494
  %v2203 = vunpack.c.h.b16 %v494
  %v2204 = vunpack.c.l.b16 %v495
  %v2205 = vunpack.c.h.b16 %v495
  %v2206 = vunpack.c.l.b16 %v496
  %v2207 = vunpack.c.h.b16 %v496
  %v2208 = vunpack.c.l.b16 %v497
  %v2209 = vunpack.c.h.b16 %v497
  %v2210 = vunpack.c.l.b16 %v498
  %v2211 = vunpack.c.h.b16 %v498
  %v2212 = vunpack.c.l.b16 %v499
  %v2213 = vunpack.c.h.b16 %v499
  %v2214 = vunpack.c.l.b16 %v500
  %v2215 = vunpack.c.h.b16 %v500
  %v2216 = vunpack.c.l.b16 %v501
  %v2217 = vunpack.c.h.b16 %v501
  %v2218 = vunpack.c.l.b16 %v502
  %v2219 = vunpack.c.h.b16 %v502
  %v2220 = vunpack.c.l.b16 %v503
  %v2221 = vunpack.c.h.b16 %v503
  %v2222 = vunpack.c.l.b16 %v504
  %v2223 = vunpack.c.h.b16 %v504
  %v2224 = vunpack.c.l.b16 %v505
  %v2225 = vunpack.c.h.b16 %v505
  %v2226 = vunpack.c.l.b16 %v506
  %v2227 = vunpack.c.h.b16 %v506
  %v2228 = vunpack.c.l.b16 %v507
  %v2229 = vunpack.c.h.b16 %v507
  %v2230 = vunpack.c.l.b16 %v508
  %v2231 = vunpack.c.h.b16 %v508
  %v2232 = vunpack.c.l.b16 %v509
  %v2233 = vunpack.c.h.b16 %v509
  %v2234 = vunpack.c.l.b16 %v510
  %v2235 = vunpack.c.h.b16 %v510
  %v2236 = vunpack.c.l.b16 %v511
  %v2237 = vunpack.c.h.b16 %v511
  %v2238 = vunpack.c.l.b16 %v512
  %v2239 = vunpack.c.h.b16 %v512
  %v2240 = vunpack.c.l.b16 %v513
  %v2241 = vunpack.c.h.b16 %v513
  %v2242 = vunpack.c.l.b16 %v514
  %v2243 = vunpack.c.h.b16 %v514
  %v2244 = vunpack.c.l.b16 %v515
  %v2245 = vunpack.c.h.b16 %v515
  %v2246 = vunpack.c.l.b16 %v516
  %v2247 = vunpack.c.h.b16 %v516
  %v2248 = vunpack.c.l.b16 %v517
  %v2249 = vunpack.c.h.b16 %v517
  %v2250 = vunpack.c.l.b16 %v518
  %v2251 = vunpack.c.h.b16 %v518
  %v2252 = vunpack.c.l.b16 %v519
  %v2253 = vunpack.c.h.b16 %v519
  %v2254 = vunpack.c.l.b16 %v520
  %v2255 = vunpack.c.h.b16 %v520
  %v2256 = vunpack.c.l.b16 %v521
  %v2257 = vunpack.c.h.b16 %v521
  %v2258 = vunpack.c.l.b16 %v522
  %v2259 = vunpack.c.h.b16 %v522
  %v2260 = vunpack.c.l.b16 %v523
  %v2261 = vunpack.c.h.b16 %v523
  %v2262 = vunpack.c.l.b16 %v524
  %v2263 = vunpack.c.h.b16 %v524
  %v2264 = vunpack.c.l.b16 %v525
  %v2265 = vunpack.c.h.b16 %v525
  %v2266 = vunpack.c.l.b16 %v526
  %v2267 = vunpack.c.h.b16 %v526
  %v2268 = vunpack.c.l.b16 %v527
  %v2269 = vunpack.c.h.b16 %v527
  %v2270 = vunpack.c.l.b16 %v528
  %v2271 = vunpack.c.h.b16 %v528
  %v2272 = vunpack.c.l.b16 %v529
  %v2273 = vunpack.c.h.b16 %v529
  %v2274 = vunpack.c.l.b16 %v530
  %v2275 = vunpack.c.h.b16 %v530
  %v2276 = vunpack.c.l.b16 %v531
  %v2277 = vunpack.c.h.b16 %v531
  %v2278 = vunpack.c.l.b16 %v532
  %v2279 = vunpack.c.h.b16 %v532
  %v2280 = vunpack.c.l.b16 %v533
  %v2281 = vunpack.c.h.b16 %v533
  %v2282 = vunpack.c.l.b16 %v534
  %v2283 = vunpack.c.h.b16 %v534
  %v2284 = vunpack.c.l.b16 %v535
  %v2285 = vunpack.c.h.b16 %v535
  %v2286 = vunpack.c.l.b16 %v536
  %v2287 = vunpack.c.h.b16 %v536
  %v2288 = vunpack.c.l.b16 %v537
  %v2289 = vunpack.c.h.b16 %v537
  %v2290 = vunpack.c.l.b16 %v538
  %v2291 = vunpack.c.h.b16 %v538
  %v2292 = vunpack.c.l.b16 %v539
  %v2293 = vunpack.c.h.b16 %v539
  %v2294 = vunpack.c.l.b16 %v540
  %v2295 = vunpack.c.h.b16 %v540
  %v2296 = vunpack.c.l.b16 %v541
  %v2297 = vunpack.c.h.b16 %v541
  %v2298 = vunpack.c.l.b16 %v542
  %v2299 = vunpack.c.h.b16 %v542
  %v2300 = vunpack.c.l.b16 %v543
  %v2301 = vunpack.c.h.b16 %v543
  %v2302 = vunpack.c.l.b16 %v544
  %v2303 = vunpack.c.h.b16 %v544
  %v2304 = vunpack.c.l.b16 %v545
  %v2305 = vunpack.c.h.b16 %v545
  %v2306 = vunpack.c.l.b16 %v546
  %v2307 = vunpack.c.h.b16 %v546
  %v2308 = vunpack.c.l.b16 %v547
  %v2309 = vunpack.c.h.b16 %v547
  %v2310 = vunpack.c.l.b16 %v548
  %v2311 = vunpack.c.h.b16 %v548
  %v2312 = vunpack.c.l.b16 %v549
  %v2313 = vunpack.c.h.b16 %v549
  %v2314 = vunpack.c.l.b16 %v550
  %v2315 = vunpack.c.h.b16 %v550
  %v2316 = vunpack.c.l.b16 %v551
  %v2317 = vunpack.c.h.b16 %v551
  %v2318 = vunpack.c.l.b16 %v552
  %v2319 = vunpack.c.h.b16 %v552
  %v2320 = vunpack.c.l.b16 %v553
  %v2321 = vunpack.c.h.b16 %v553
  %v2322 = vunpack.c.l.b16 %v554
  %v2323 = vunpack.c.h.b16 %v554
  %v2324 = vunpack.c.l.b16 %v555
  %v2325 = vunpack.c.h.b16 %v555
  %v2326 = vunpack.c.l.b16 %v556
  %v2327 = vunpack.c.h.b16 %v556
  %v2328 = vunpack.c.l.b16 %v557
  %v2329 = vunpack.c.h.b16 %v557
  %v2330 = vunpack.c.l.b16 %v558
  %v2331 = vunpack.c.h.b16 %v558
  %v2332 = vunpack.c.l.b16 %v559
  %v2333 = vunpack.c.h.b16 %v559
  %v2334 = vunpack.c.l.b16 %v560
  %v2335 = vunpack.c.h.b16 %v560
  %v2336 = vunpack.c.l.b16 %v561
  %v2337 = vunpack.c.h.b16 %v561
  %v2338 = vunpack.c.l.b16 %v562
  %v2339 = vunpack.c.h.b16 %v562
  %v2340 = vunpack.c.l.b16 %v563
  %v2341 = vunpack.c.h.b16 %v563
  %v2342 = vunpack.c.l.b16 %v564
  %v2343 = vunpack.c.h.b16 %v564
  %v2344 = vunpack.c.l.b16 %v565
  %v2345 = vunpack.c.h.b16 %v565
  %v2346 = vunpack.c.l.b16 %v566
  %v2347 = vunpack.c.h.b16 %v566
  %v2348 = vunpack.c.l.b16 %v567
  %v2349 = vunpack.c.h.b16 %v567
  %v2350 = vunpack.c.l.b16 %v568
  %v2351 = vunpack.c.h.b16 %v568
  %v2352 = vunpack.c.l.b16 %v569
  %v2353 = vunpack.c.h.b16 %v569
  %v2354 = vunpack.c.l.b16 %v570
  %v2355 = vunpack.c.h.b16 %v570
  %v2356 = vunpack.c.l.b16 %v571
  %v2357 = vunpack.c.h.b16 %v571
  %v2358 = vunpack.c.l.b16 %v572
  %v2359 = vunpack.c.h.b16 %v572
  %v2360 = vunpack.c.l.b16 %v573
  %v2361 = vunpack.c.h.b16 %v573
  %v2362 = vunpack.c.l.b16 %v574
  %v2363 = vunpack.c.h.b16 %v574
  %v2364 = vunpack.c.l.b16 %v575
  %v2365 = vunpack.c.h.b16 %v575
  %v2366 = vunpack.c.l.b16 %v576
  %v2367 = vunpack.c.h.b16 %v576
  %v2368 = vunpack.c.l.b16 %v577
  %v2369 = vunpack.c.h.b16 %v577
  %v2370 = vunpack.c.l.b16 %v578
  %v2371 = vunpack.c.h.b16 %v578
  %v2372 = vunpack.c.l.b16 %v579
  %v2373 = vunpack.c.h.b16 %v579
  %v2374 = vunpack.c.l.b16 %v580
  %v2375 = vunpack.c.h.b16 %v580
  %v2376 = vunpack.c.l.b16 %v581
  %v2377 = vunpack.c.h.b16 %v581
  %v2378 = vunpack.c.l.b16 %v582
  %v2379 = vunpack.c.h.b16 %v582
  %v2380 = vunpack.c.l.b16 %v583
  %v2381 = vunpack.c.h.b16 %v583
  %v2382 = vunpack.c.l.b16 %v584
  %v2383 = vunpack.c.h.b16 %v584
  %v2384 = vunpack.c.l.b16 %v585
  %v2385 = vunpack.c.h.b16 %v585
  %v2386 = vunpack.c.l.b16 %v586
  %v2387 = vunpack.c.h.b16 %v586
  %v2388 = vunpack.c.l.b16 %v587
  %v2389 = vunpack.c.h.b16 %v587
  %v2390 = vunpack.c.l.b16 %v588
  %v2391 = vunpack.c.h.b16 %v588
  %v2392 = vunpack.c.l.b16 %v589
  %v2393 = vunpack.c.h.b16 %v589
  %v2394 = vunpack.c.l.b16 %v590
  %v2395 = vunpack.c.h.b16 %v590
  %v2396 = vunpack.c.l.b16 %v591
  %v2397 = vunpack.c.h.b16 %v591
  %v2398 = vunpack.c.l.b16 %v592
  %v2399 = vunpack.c.h.b16 %v592
  %v2400 = vunpack.c.l.b16 %v593
  %v2401 = vunpack.c.h.b16 %v593
  %v2402 = vunpack.c.l.b16 %v594
  %v2403 = vunpack.c.h.b16 %v594
  %v2404 = vunpack.c.l.b16 %v595
  %v2405 = vunpack.c.h.b16 %v595
  %v2406 = vunpack.c.l.b16 %v596
  %v2407 = vunpack.c.h.b16 %v596
  %v2408 = vunpack.c.l.b16 %v597
  %v2409 = vunpack.c.h.b16 %v597
  %v2410 = vunpack.c.l.b16 %v598
  %v2411 = vunpack.c.h.b16 %v598
  %v2412 = vpack.c.b16 %v1264, %v1260
  %v2413 = vpack.c.b16 %v1265, %v1261
  %v2414 = vpack.c.b16 %v1266, %v1262
  %v2415 = vpack.c.b16 %v1267, %v1263
  %v2416 = vpack.c.b16 %v1272, %v1268
  %v2417 = vpack.c.b16 %v1273, %v1269
  %v2418 = vpack.c.b16 %v1274, %v1270
  %v2419 = vpack.c.b16 %v1275, %v1271
  %v2420 = vpack.c.b16 %v1280, %v1276
  %v2421 = vpack.c.b16 %v1281, %v1277
  %v2422 = vpack.c.b16 %v1282, %v1278
  %v2423 = vpack.c.b16 %v1283, %v1279
  %v2424 = vpack.c.b16 %v1288, %v1284
  %v2425 = vpack.c.b16 %v1289, %v1285
  %v2426 = vpack.c.b16 %v1290, %v1286
  %v2427 = vpack.c.b16 %v1291, %v1287
  %v2428 = vpack.c.b16 %v1296, %v1292
  %v2429 = vpack.c.b16 %v1297, %v1293
  %v2430 = vpack.c.b16 %v1298, %v1294
  %v2431 = vpack.c.b16 %v1299, %v1295
  %v2432 = vpack.c.b16 %v1304, %v1300
  %v2433 = vpack.c.b16 %v1305, %v1301
  %v2434 = vpack.c.b16 %v1306, %v1302
  %v2435 = vpack.c.b16 %v1307, %v1303
  %v2436 = vpack.c.b16 %v1312, %v1308
  %v2437 = vpack.c.b16 %v1313, %v1309
  %v2438 = vpack.c.b16 %v1314, %v1310
  %v2439 = vpack.c.b16 %v1315, %v1311
  %v2440 = vpack.c.b16 %v1320, %v1316
  %v2441 = vpack.c.b16 %v1321, %v1317
  %v2442 = vpack.c.b16 %v1322, %v1318
  %v2443 = vpack.c.b16 %v1323, %v1319
  %v2444 = vpack.c.b16 %v1328, %v1324
  %v2445 = vpack.c.b16 %v1329, %v1325
  %v2446 = vpack.c.b16 %v1330, %v1326
  %v2447 = vpack.c.b16 %v1331, %v1327
  %v2448 = vpack.c.b16 %v1336, %v1332
  %v2449 = vpack.c.b16 %v1337, %v1333
  %v2450 = vpack.c.b16 %v1338, %v1334
  %v2451 = vpack.c.b16 %v1339, %v1335
  %v2452 = vpack.c.b16 %v1344, %v1340
  %v2453 = vpack.c.b16 %v1345, %v1341
  %v2454 = vpack.c.b16 %v1346, %v1342
  %v2455 = vpack.c.b16 %v1347, %v1343
  %v2456 = vpack.c.b16 %v1352, %v1348
  %v2457 = vpack.c.b16 %v1353, %v1349
  %v2458 = vpack.c.b16 %v1354, %v1350
  %v2459 = vpack.c.b16 %v1355, %v1351
  %v2460 = vpack.c.b16 %v1360, %v1356
  %v2461 = vpack.c.b16 %v1361, %v1357
  %v2462 = vpack.c.b16 %v1362, %v1358
  %v2463 = vpack.c.b16 %v1363, %v1359
  %v2464 = vpack.c.b16 %v1368, %v1364
  %v2465 = vpack.c.b16 %v1369, %v1365
  %v2466 = vpack.c.b16 %v1370, %v1366
  %v2467 = vpack.c.b16 %v1371, %v1367
  %v2468 = vpack.c.b16 %v1376, %v1372
  %v2469 = vpack.c.b16 %v1377, %v1373
  %v2470 = vpack.c.b16 %v1378, %v1374
  %v2471 = vpack.c.b16 %v1379, %v1375
  %v2472 = vpack.c.b16 %v1384, %v1380
  %v2473 = vpack.c.b16 %v1385, %v1381
  %v2474 = vpack.c.b16 %v1386, %v1382
  %v2475 = vpack.c.b16 %v1387, %v1383
  %v2476 = vpack.c.b16 %v1392, %v1388
  %v2477 = vpack.c.b16 %v1393, %v1389
  %v2478 = vpack.c.b16 %v1394, %v1390
  %v2479 = vpack.c.b16 %v1395, %v1391
  %v2480 = vpack.c.b16 %v1400, %v1396
  %v2481 = vpack.c.b16 %v1401, %v1397
  %v2482 = vpack.c.b16 %v1402, %v1398
  %v2483 = vpack.c.b16 %v1403, %v1399
  %v2484 = vpack.c.b16 %v1408, %v1404
  %v2485 = vpack.c.b16 %v1409, %v1405
  %v2486 = vpack.c.b16 %v1410, %v1406
  %v2487 = vpack.c.b16 %v1411, %v1407
  %v2488 = vpack.c.b16 %v1416, %v1412
  %v2489 = vpack.c.b16 %v1417, %v1413
  %v2490 = vpack.c.b16 %v1418, %v1414
  %v2491 = vpack.c.b16 %v1419, %v1415
  %v2492 = vpack.c.b16 %v1424, %v1420
  %v2493 = vpack.c.b16 %v1425, %v1421
  %v2494 = vpack.c.b16 %v1426, %v1422
  %v2495 = vpack.c.b16 %v1427, %v1423
  %v2496 = vpack.c.b16 %v1432, %v1428
  %v2497 = vpack.c.b16 %v1433, %v1429
  %v2498 = vpack.c.b16 %v1434, %v1430
  %v2499 = vpack.c.b16 %v1435, %v1431
  %v2500 = vpack.c.b16 %v1440, %v1436
  %v2501 = vpack.c.b16 %v1441, %v1437
  %v2502 = vpack.c.b16 %v1442, %v1438
  %v2503 = vpack.c.b16 %v1443, %v1439
  %v2504 = vpack.c.b16 %v1448, %v1444
  %v2505 = vpack.c.b16 %v1449, %v1445
  %v2506 = vpack.c.b16 %v1450, %v1446
  %v2507 = vpack.c.b16 %v1451, %v1447
  %v2508 = vpack.c.b16 %v1456, %v1452
  %v2509 = vpack.c.b16 %v1457, %v1453
  %v2510 = vpack.c.b16 %v1458, %v1454
  %v2511 = vpack.c.b16 %v1459, %v1455
  %v2512 = vpack.c.b16 %v1464, %v1460
  %v2513 = vpack.c.b16 %v1465, %v1461
  %v2514 = vpack.c.b16 %v1466, %v1462
  %v2515 = vpack.c.b16 %v1467, %v1463
  %v2516 = vpack.c.b16 %v1472, %v1468
  %v2517 = vpack.c.b16 %v1473, %v1469
  %v2518 = vpack.c.b16 %v1474, %v1470
  %v2519 = vpack.c.b16 %v1475, %v1471
  %v2520 = vpack.c.b16 %v1480, %v1476
  %v2521 = vpack.c.b16 %v1481, %v1477
  %v2522 = vpack.c.b16 %v1482, %v1478
  %v2523 = vpack.c.b16 %v1483, %v1479
  %v2524 = vpack.c.b16 %v1488, %v1484
  %v2525 = vpack.c.b16 %v1489, %v1485
  %v2526 = vpack.c.b16 %v1490, %v1486
  %v2527 = vpack.c.b16 %v1491, %v1487
  %v2528 = vpack.c.b16 %v1496, %v1492
  %v2529 = vpack.c.b16 %v1497, %v1493
  %v2530 = vpack.c.b16 %v1498, %v1494
  %v2531 = vpack.c.b16 %v1499, %v1495
  %v2532 = vpack.c.b16 %v1504, %v1500
  %v2533 = vpack.c.b16 %v1505, %v1501
  %v2534 = vpack.c.b16 %v1506, %v1502
  %v2535 = vpack.c.b16 %v1507, %v1503
  %v2536 = vpack.c.b16 %v1512, %v1508
  %v2537 = vpack.c.b16 %v1513, %v1509
  %v2538 = vpack.c.b16 %v1514, %v1510
  %v2539 = vpack.c.b16 %v1515, %v1511
  %v2540 = vpack.c.b16 %v1520, %v1516
  %v2541 = vpack.c.b16 %v1521, %v1517
  %v2542 = vpack.c.b16 %v1522, %v1518
  %v2543 = vpack.c.b16 %v1523, %v1519
  %v2544 = vpack.c.b16 %v1528, %v1524
  %v2545 = vpack.c.b16 %v1529, %v1525
  %v2546 = vpack.c.b16 %v1530, %v1526
  %v2547 = vpack.c.b16 %v1531, %v1527
  %v2548 = vpack.c.b16 %v1536, %v1532
  %v2549 = vpack.c.b16 %v1537, %v1533
  %v2550 = vpack.c.b16 %v1538, %v1534
  %v2551 = vpack.c.b16 %v1539, %v1535
  %v2552 = vpack.c.b16 %v1544, %v1540
  %v2553 = vpack.c.b16 %v1545, %v1541
  %v2554 = vpack.c.b16 %v1546, %v1542
  %v2555 = vpack.c.b16 %v1547, %v1543
  %v2556 = vpack.c.b16 %v1552, %v1548
  %v2557 = vpack.c.b16 %v1553, %v1549
  %v2558 = vpack.c.b16 %v1554, %v1550
  %v2559 = vpack.c.b16 %v1555, %v1551
  %v2560 = vpack.c.b16 %v1560, %v1556
  %v2561 = vpack.c.b16 %v1561, %v1557
  %v2562 = vpack.c.b16 %v1562, %v1558
  %v2563 = vpack.c.b16 %v1563, %v1559
  %v2564 = vpack.c.b16 %v1568, %v1564
  %v2565 = vpack.c.b16 %v1569, %v1565
  %v2566 = vpack.c.b16 %v1570, %v1566
  %v2567 = vpack.c.b16 %v1571, %v1567
  %v2568 = vpack.c.b16 %v1576, %v1572
  %v2569 = vpack.c.b16 %v1577, %v1573
  %v2570 = vpack.c.b16 %v1578, %v1574
  %v2571 = vpack.c.b16 %v1579, %v1575
  %v2572 = vpack.c.b16 %v1584, %v1580
  %v2573 = vpack.c.b16 %v1585, %v1581
  %v2574 = vpack.c.b16 %v1586, %v1582
  %v2575 = vpack.c.b16 %v1587, %v1583
  %v2576 = vpack.c.b16 %v1592, %v1588
  %v2577 = vpack.c.b16 %v1593, %v1589
  %v2578 = vpack.c.b16 %v1594, %v1590
  %v2579 = vpack.c.b16 %v1595, %v1591
  %v2580 = vpack.c.b16 %v1600, %v1596
  %v2581 = vpack.c.b16 %v1601, %v1597
  %v2582 = vpack.c.b16 %v1602, %v1598
  %v2583 = vpack.c.b16 %v1603, %v1599
  %v2584 = vpack.c.b16 %v1608, %v1604
  %v2585 = vpack.c.b16 %v1609, %v1605
  %v2586 = vpack.c.b16 %v1610, %v1606
  %v2587 = vpack.c.b16 %v1611, %v1607
  %v2588 = vpack.c.b16 %v1616, %v1612
  %v2589 = vpack.c.b16 %v1617, %v1613
  %v2590 = vpack.c.b16 %v1618, %v1614
  %v2591 = vpack.c.b16 %v1619, %v1615
  %v2592 = vpack.c.b16 %v1624, %v1620
  %v2593 = vpack.c.b16 %v1625, %v1621
  %v2594 = vpack.c.b16 %v1626, %v1622
  %v2595 = vpack.c.b16 %v1627, %v1623
  %v2596 = vpack.c.b16 %v1632, %v1628
  %v2597 = vpack.c.b16 %v1633, %v1629
  %v2598 = vpack.c.b16 %v1634, %v1630
  %v2599 = vpack.c.b16 %v1635, %v1631
  %v2600 = vpack.c.b16 %v1640, %v1636
  %v2601 = vpack.c.b16 %v1641, %v1637
  %v2602 = vpack.c.b16 %v1642, %v1638
  %v2603 = vpack.c.b16 %v1643, %v1639
  %v2604 = vpack.c.b16 %v1648, %v1644
  %v2605 = vpack.c.b16 %v1649, %v1645
  %v2606 = vpack.c.b16 %v1650, %v1646
  %v2607 = vpack.c.b16 %v1651, %v1647
  %v2608 = vpack.c.b16 %v1656, %v1652
  %v2609 = vpack.c.b16 %v1657, %v1653
  %v2610 = vpack.c.b16 %v1658, %v1654
  %v2611 = vpack.c.b16 %v1659, %v1655
  %v2612 = vpack.c.b16 %v1664, %v1660
  %v2613 = vpack.c.b16 %v1665, %v1661
  %v2614 = vpack.c.b16 %v1666, %v1662
  %v2615 = vpack.c.b16 %v1667, %v1663
  %v2616 = vpack.c.b16 %v1672, %v1668
  %v2617 = vpack.c.b16 %v1673, %v1669
  %v2618 = vpack.c.b16 %v1674, %v1670
  %v2619 = vpack.c.b16 %v1675, %v1671
  %v2620 = vpack.c.b16 %v1680, %v1676
  %v2621 = vpack.c.b16 %v1681, %v1677
  %v2622 = vpack.c.b16 %v1682, %v1678
  %v2623 = vpack.c.b16 %v1683, %v1679
  %v2624 = vpack.c.b16 %v1688, %v1684
  %v2625 = vpack.c.b16 %v1689, %v1685
  %v2626 = vpack.c.b16 %v1690, %v1686
  %v2627 = vpack.c.b16 %v1691, %v1687
  %v2628 = vpack.c.b16 %v1696, %v1692
  %v2629 = vpack.c.b16 %v1697, %v1693
  %v2630 = vpack.c.b16 %v1698, %v1694
  %v2631 = vpack.c.b16 %v1699, %v1695
  %v2632 = vpack.c.b16 %v1704, %v1700
  %v2633 = vpack.c.b16 %v1705, %v1701
  %v2634 = vpack.c.b16 %v1706, %v1702
  %v2635 = vpack.c.b16 %v1707, %v1703
  %v2636 = vpack.c.b16 %v1712, %v1708
  %v2637 = vpack.c.b16 %v1713, %v1709
  %v2638 = vpack.c.b16 %v1714, %v1710
  %v2639 = vpack.c.b16 %v1715, %v1711
  %v2640 = vpack.c.b16 %v1720, %v1716
  %v2641 = vpack.c.b16 %v1721, %v1717
  %v2642 = vpack.c.b16 %v1722, %v1718
  %v2643 = vpack.c.b16 %v1723, %v1719
  %v2644 = vpack.c.b16 %v1728, %v1724
  %v2645 = vpack.c.b16 %v1729, %v1725
  %v2646 = vpack.c.b16 %v1730, %v1726
  %v2647 = vpack.c.b16 %v1731, %v1727
  %v2648 = vpack.c.b16 %v1736, %v1732
  %v2649 = vpack.c.b16 %v1737, %v1733
  %v2650 = vpack.c.b16 %v1738, %v1734
  %v2651 = vpack.c.b16 %v1739, %v1735
  %v2652 = vpack.c.b16 %v1744, %v1740
  %v2653 = vpack.c.b16 %v1745, %v1741
  %v2654 = vpack.c.b16 %v1746, %v1742
  %v2655 = vpack.c.b16 %v1747, %v1743
  %v2656 = vpack.c.b16 %v1752, %v1748
  %v2657 = vpack.c.b16 %v1753, %v1749
  %v2658 = vpack.c.b16 %v1754, %v1750
  %v2659 = vpack.c.b16 %v1755, %v1751
  %v2660 = vpack.c.b16 %v1760, %v1756
  %v2661 = vpack.c.b16 %v1761, %v1757
  %v2662 = vpack.c.b16 %v1762, %v1758
  %v2663 = vpack.c.b16 %v1763, %v1759
  %v2664 = vpack.c.b16 %v1768, %v1764
  %v2665 = vpack.c.b16 %v1769, %v1765
  %v2666 = vpack.c.b16 %v1770, %v1766
  %v2667 = vpack.c.b16 %v1771, %v1767
  %v2668 = vpack.c.b16 %v1776, %v1772
  %v2669 = vpack.c.b16 %v1777, %v1773
  %v2670 = vpack.c.b16 %v1778, %v1774
  %v2671 = vpack.c.b16 %v1779, %v1775
  %v2672 = vpack.c.b16 %v1784, %v1780
  %v2673 = vpack.c.b16 %v1785, %v1781
  %v2674 = vpack.c.b16 %v1786, %v1782
  %v2675 = vpack.c.b16 %v1787, %v1783
  %v2676 = vpack.c.b16 %v1792, %v1788
  %v2677 = vpack.c.b16 %v1793, %v1789
  %v2678 = vpack.c.b16 %v1794, %v1790
  %v2679 = vpack.c.b16 %v1795, %v1791
  %v2680 = vpack.c.b16 %v1800, %v1796
  %v2681 = vpack.c.b16 %v1801, %v1797
  %v2682 = vpack.c.b16 %v1802, %v1798
  %v2683 = vpack.c.b16 %v1803, %v1799
  %v2684 = vpack.c.b16 %v1808, %v1804
  %v2685 = vpack.c.b16 %v1809, %v1805
  %v2686 = vpack.c.b16 %v1810, %v1806
  %v2687 = vpack.c.b16 %v1811, %v1807
  %v2688 = vpack.c.b16 %v1816, %v1812
  %v2689 = vpack.c.b16 %v1817, %v1813
  %v2690 = vpack.c.b16 %v1818, %v1814
  %v2691 = vpack.c.b16 %v1819, %v1815
  %v2692 = vpack.c.b16 %v1824, %v1820
  %v2693 = vpack.c.b16 %v1825, %v1821
  %v2694 = vpack.c.b16 %v1826, %v1822
  %v2695 = vpack.c.b16 %v1827, %v1823
  %v2696 = vpack.c.b16 %v1832, %v1828
  %v2697 = vpack.c.b16 %v1833, %v1829
  %v2698 = vpack.c.b16 %v1834, %v1830
  %v2699 = vpack.c.b16 %v1835, %v1831
  %v2700 = vpack.c.b16 %v1840, %v1836
  %v2701 = vpack.c.b16 %v1841, %v1837
  %v2702 = vpack.c.b16 %v1842, %v1838
  %v2703 = vpack.c.b16 %v1843, %v1839
  %v2704 = vpack.c.b16 %v1848, %v1844
  %v2705 = vpack.c.b16 %v1849, %v1845
  %v2706 = vpack.c.b16 %v1850, %v1846
  %v2707 = vpack.c.b16 %v1851, %v1847
  %v2708 = vpack.c.b16 %v1856, %v1852
  %v2709 = vpack.c.b16 %v1857, %v1853
  %v2710 = vpack.c.b16 %v1858, %v1854
  %v2711 = vpack.c.b16 %v1859, %v1855
  %v2712 = vpack.c.b16 %v1864, %v1860
  %v2713 = vpack.c.b16 %v1865, %v1861
  %v2714 = vpack.c.b16 %v1866, %v1862
  %v2715 = vpack.c.b16 %v1867, %v1863
  %v2716 = vpack.c.b16 %v1872, %v1868
  %v2717 = vpack.c.b16 %v1873, %v1869
  %v2718 = vpack.c.b16 %v1874, %v1870
  %v2719 = vpack.c.b16 %v1875, %v1871
  %v2720 = vpack.c.b16 %v1880, %v1876
  %v2721 = vpack.c.b16 %v1881, %v1877
  %v2722 = vpack.c.b16 %v1882, %v1878
  %v2723 = vpack.c.b16 %v1883, %v1879
  %v2724 = vpack.c.b16 %v1888, %v1884
  %v2725 = vpack.c.b16 %v1889, %v1885
  %v2726 = vpack.c.b16 %v1890, %v1886
  %v2727 = vpack.c.b16 %v1891, %v1887
  %v2728 = vpack.c.b16 %v1896, %v1892
  %v2729 = vpack.c.b16 %v1897, %v1893
  %v2730 = vpack.c.b16 %v1898, %v1894
  %v2731 = vpack.c.b16 %v1899, %v1895
  %v2732 = vpack.c.b16 %v1904, %v1900
  %v2733 = vpack.c.b16 %v1905, %v1901
  %v2734 = vpack.c.b16 %v1906, %v1902
  %v2735 = vpack.c.b16 %v1907, %v1903
  %v2736 = vpack.c.b16 %v1912, %v1908
  %v2737 = vpack.c.b16 %v1913, %v1909
  %v2738 = vpack.c.b16 %v1914, %v1910
  %v2739 = vpack.c.b16 %v1915, %v1911
  %v2740 = vpack.c.b16 %v1920, %v1916
  %v2741 = vpack.c.b16 %v1921, %v1917
  %v2742 = vpack.c.b16 %v1922, %v1918
  %v2743 = vpack.c.b16 %v1923, %v1919
  %v2744 = vpack.c.b16 %v1928, %v1924
  %v2745 = vpack.c.b16 %v1929, %v1925
  %v2746 = vpack.c.b16 %v1930, %v1926
  %v2747 = vpack.c.b16 %v1931, %v1927
  %v2748 = vpack.c.b16 %v1936, %v1932
  %v2749 = vpack.c.b16 %v1937, %v1933
  %v2750 = vpack.c.b16 %v1938, %v1934
  %v2751 = vpack.c.b16 %v1939, %v1935
  %v2752 = vpack.c.b16 %v1944, %v1940
  %v2753 = vpack.c.b16 %v1945, %v1941
  %v2754 = vpack.c.b16 %v1946, %v1942
  %v2755 = vpack.c.b16 %v1947, %v1943
  %v2756 = vpack.c.b16 %v1952, %v1948
  %v2757 = vpack.c.b16 %v1953, %v1949
  %v2758 = vpack.c.b16 %v1954, %v1950
  %v2759 = vpack.c.b16 %v1955, %v1951
  %v2760 = vpack.c.b16 %v1960, %v1956
  %v2761 = vpack.c.b16 %v1961, %v1957
  %v2762 = vpack.c.b16 %v1962, %v1958
  %v2763 = vpack.c.b16 %v1963, %v1959
  %v2764 = vpack.c.b16 %v1968, %v1964
  %v2765 = vpack.c.b16 %v1969, %v1965
  %v2766 = vpack.c.b16 %v1970, %v1966
  %v2767 = vpack.c.b16 %v1971, %v1967
  %v2768 = vpack.c.b16 %v1976, %v1972
  %v2769 = vpack.c.b16 %v1977, %v1973
  %v2770 = vpack.c.b16 %v1978, %v1974
  %v2771 = vpack.c.b16 %v1979, %v1975
  %v2772 = vpack.c.b16 %v1984, %v1980
  %v2773 = vpack.c.b16 %v1985, %v1981
  %v2774 = vpack.c.b16 %v1986, %v1982
  %v2775 = vpack.c.b16 %v1987, %v1983
  %v2776 = vpack.c.b16 %v1992, %v1988
  %v2777 = vpack.c.b16 %v1993, %v1989
  %v2778 = vpack.c.b16 %v1994, %v1990
  %v2779 = vpack.c.b16 %v1995, %v1991
  %v2780 = vpack.c.b16 %v2000, %v1996
  %v2781 = vpack.c.b16 %v2001, %v1997
  %v2782 = vpack.c.b16 %v2002, %v1998
  %v2783 = vpack.c.b16 %v2003, %v1999
  %v2784 = vpack.c.b16 %v2008, %v2004
  %v2785 = vpack.c.b16 %v2009, %v2005
  %v2786 = vpack.c.b16 %v2010, %v2006
  %v2787 = vpack.c.b16 %v2011, %v2007
  %v2788 = vpack.c.b16 %v2016, %v2012
  %v2789 = vpack.c.b16 %v2017, %v2013
  %v2790 = vpack.c.b16 %v2018, %v2014
  %v2791 = vpack.c.b16 %v2019, %v2015
  %v2792 = vpack.c.b16 %v2024, %v2020
  %v2793 = vpack.c.b16 %v2025, %v2021
  %v2794 = vpack.c.b16 %v2026, %v2022
  %v2795 = vpack.c.b16 %v2027, %v2023
  %v2796 = vpack.c.b16 %v2032, %v2028
  %v2797 = vpack.c.b16 %v2033, %v2029
  %v2798 = vpack.c.b16 %v2034, %v2030
  %v2799 = vpack.c.b16 %v2035, %v2031
  %v2800 = vpack.c.b16 %v2040, %v2036
  %v2801 = vpack.c.b16 %v2041, %v2037
  %v2802 = vpack.c.b16 %v2042, %v2038
  %v2803 = vpack.c.b16 %v2043, %v2039
  %v2804 = vpack.c.b16 %v2048, %v2044
  %v2805 = vpack.c.b16 %v2049, %v2045
  %v2806 = vpack.c.b16 %v2050, %v2046
  %v2807 = vpack.c.b16 %v2051, %v2047
  %v2808 = vpack.c.b16 %v2056, %v2052
  %v2809 = vpack.c.b16 %v2057, %v2053
  %v2810 = vpack.c.b16 %v2058, %v2054
  %v2811 = vpack.c.b16 %v2059, %v2055
  %v2812 = vpack.c.b16 %v2064, %v2060
  %v2813 = vpack.c.b16 %v2065, %v2061
  %v2814 = vpack.c.b16 %v2066, %v2062
  %v2815 = vpack.c.b16 %v2067, %v2063
  %v2816 = vpack.c.b16 %v2072, %v2068
  %v2817 = vpack.c.b16 %v2073, %v2069
  %v2818 = vpack.c.b16 %v2074, %v2070
  %v2819 = vpack.c.b16 %v2075, %v2071
  %v2820 = vpack.c.b16 %v2080, %v2076
  %v2821 = vpack.c.b16 %v2081, %v2077
  %v2822 = vpack.c.b16 %v2082, %v2078
  %v2823 = vpack.c.b16 %v2083, %v2079
  %v2824 = vpack.c.b16 %v2088, %v2084
  %v2825 = vpack.c.b16 %v2089, %v2085
  %v2826 = vpack.c.b16 %v2090, %v2086
  %v2827 = vpack.c.b16 %v2091, %v2087
  %v2828 = vpack.c.b16 %v2096, %v2092
  %v2829 = vpack.c.b16 %v2097, %v2093
  %v2830 = vpack.c.b16 %v2098, %v2094
  %v2831 = vpack.c.b16 %v2099, %v2095
  %v2832 = vpack.c.b16 %v2104, %v2100
  %v2833 = vpack.c.b16 %v2105, %v2101
  %v2834 = vpack.c.b16 %v2106, %v2102
  %v2835 = vpack.c.b16 %v2107, %v2103
  %v2836 = vpack.c.b16 %v2112, %v2108
  %v2837 = vpack.c.b16 %v2113, %v2109
  %v2838 = vpack.c.b16 %v2114, %v2110
  %v2839 = vpack.c.b16 %v2115, %v2111
  %v2840 = vpack.c.b16 %v2120, %v2116
  %v2841 = vpack.c.b16 %v2121, %v2117
  %v2842 = vpack.c.b16 %v2122, %v2118
  %v2843 = vpack.c.b16 %v2123, %v2119
  %v2844 = vpack.c.b16 %v2128, %v2124
  %v2845 = vpack.c.b16 %v2129, %v2125
  %v2846 = vpack.c.b16 %v2130, %v2126
  %v2847 = vpack.c.b16 %v2131, %v2127
  %v2848 = vpack.c.b16 %v2136, %v2132
  %v2849 = vpack.c.b16 %v2137, %v2133
  %v2850 = vpack.c.b16 %v2138, %v2134
  %v2851 = vpack.c.b16 %v2139, %v2135
  %v2852 = vpack.c.b16 %v2144, %v2140
  %v2853 = vpack.c.b16 %v2145, %v2141
  %v2854 = vpack.c.b16 %v2146, %v2142
  %v2855 = vpack.c.b16 %v2147, %v2143
  %v2856 = vpack.c.b16 %v2152, %v2148
  %v2857 = vpack.c.b16 %v2153, %v2149
  %v2858 = vpack.c.b16 %v2154, %v2150
  %v2859 = vpack.c.b16 %v2155, %v2151
  %v2860 = vpack.c.b16 %v2160, %v2156
  %v2861 = vpack.c.b16 %v2161, %v2157
  %v2862 = vpack.c.b16 %v2162, %v2158
  %v2863 = vpack.c.b16 %v2163, %v2159
  %v2864 = vpack.c.b16 %v2168, %v2164
  %v2865 = vpack.c.b16 %v2169, %v2165
  %v2866 = vpack.c.b16 %v2170, %v2166
  %v2867 = vpack.c.b16 %v2171, %v2167
  %v2868 = vpack.c.b16 %v2176, %v2172
  %v2869 = vpack.c.b16 %v2177, %v2173
  %v2870 = vpack.c.b16 %v2178, %v2174
  %v2871 = vpack.c.b16 %v2179, %v2175
  %v2872 = vpack.c.b16 %v2184, %v2180
  %v2873 = vpack.c.b16 %v2185, %v2181
  %v2874 = vpack.c.b16 %v2186, %v2182
  %v2875 = vpack.c.b16 %v2187, %v2183
  %v2876 = vpack.c.b16 %v2192, %v2188
  %v2877 = vpack.c.b16 %v2193, %v2189
  %v2878 = vpack.c.b16 %v2194, %v2190
  %v2879 = vpack.c.b16 %v2195, %v2191
  %v2880 = vpack.c.b16 %v2200, %v2196
  %v2881 = vpack.c.b16 %v2201, %v2197
  %v2882 = vpack.c.b16 %v2202, %v2198
  %v2883 = vpack.c.b16 %v2203, %v2199
  %v2884 = vpack.c.b16 %v2208, %v2204
  %v2885 = vpack.c.b16 %v2209, %v2205
  %v2886 = vpack.c.b16 %v2210, %v2206
  %v2887 = vpack.c.b16 %v2211, %v2207
  %v2888 = vpack.c.b16 %v2216, %v2212
  %v2889 = vpack.c.b16 %v2217, %v2213
  %v2890 = vpack.c.b16 %v2218, %v2214
  %v2891 = vpack.c.b16 %v2219, %v2215
  %v2892 = vpack.c.b16 %v2224, %v2220
  %v2893 = vpack.c.b16 %v2225, %v2221
  %v2894 = vpack.c.b16 %v2226, %v2222
  %v2895 = vpack.c.b16 %v2227, %v2223
  %v2896 = vpack.c.b16 %v2232, %v2228
  %v2897 = vpack.c.b16 %v2233, %v2229
  %v2898 = vpack.c.b16 %v2234, %v2230
  %v2899 = vpack.c.b16 %v2235, %v2231
  %v2900 = vpack.c.b16 %v2240, %v2236
  %v2901 = vpack.c.b16 %v2241, %v2237
  %v2902 = vpack.c.b16 %v2242, %v2238
  %v2903 = vpack.c.b16 %v2243, %v2239
  %v2904 = vpack.c.b16 %v2248, %v2244
  %v2905 = vpack.c.b16 %v2249, %v2245
  %v2906 = vpack.c.b16 %v2250, %v2246
  %v2907 = vpack.c.b16 %v2251, %v2247
  %v2908 = vpack.c.b16 %v2256, %v2252
  %v2909 = vpack.c.b16 %v2257, %v2253
  %v2910 = vpack.c.b16 %v2258, %v2254
  %v2911 = vpack.c.b16 %v2259, %v2255
  %v2912 = vpack.c.b16 %v2264, %v2260
  %v2913 = vpack.c.b16 %v2265, %v2261
  %v2914 = vpack.c.b16 %v2266, %v2262
  %v2915 = vpack.c.b16 %v2267, %v2263
  %v2916 = vpack.c.b16 %v2272, %v2268
  %v2917 = vpack.c.b16 %v2273, %v2269
  %v2918 = vpack.c.b16 %v2274, %v2270
  %v2919 = vpack.c.b16 %v2275, %v2271
  %v2920 = vpack.c.b16 %v2280, %v2276
  %v2921 = vpack.c.b16 %v2281, %v2277
  %v2922 = vpack.c.b16 %v2282, %v2278
  %v2923 = vpack.c.b16 %v2283, %v2279
  %v2924 = vpack.c.b16 %v2288, %v2284
  %v2925 = vpack.c.b16 %v2289, %v2285
  %v2926 = vpack.c.b16 %v2290, %v2286
  %v2927 = vpack.c.b16 %v2291, %v2287
  %v2928 = vpack.c.b16 %v2296, %v2292
  %v2929 = vpack.c.b16 %v2297, %v2293
  %v2930 = vpack.c.b16 %v2298, %v2294
  %v2931 = vpack.c.b16 %v2299, %v2295
  %v2932 = vpack.c.b16 %v2304, %v2300
  %v2933 = vpack.c.b16 %v2305, %v2301
  %v2934 = vpack.c.b16 %v2306, %v2302
  %v2935 = vpack.c.b16 %v2307, %v2303
  %v2936 = vpack.c.b16 %v2312, %v2308
  %v2937 = vpack.c.b16 %v2313, %v2309
  %v2938 = vpack.c.b16 %v2314, %v2310
  %v2939 = vpack.c.b16 %v2315, %v2311
  %v2940 = vpack.c.b16 %v2320, %v2316
  %v2941 = vpack.c.b16 %v2321, %v2317
  %v2942 = vpack.c.b16 %v2322, %v2318
  %v2943 = vpack.c.b16 %v2323, %v2319
  %v2944 = vpack.c.b16 %v2328, %v2324
  %v2945 = vpack.c.b16 %v2329, %v2325
  %v2946 = vpack.c.b16 %v2330, %v2326
  %v2947 = vpack.c.b16 %v2331, %v2327
  %v2948 = vpack.c.b16 %v2336, %v2332
  %v2949 = vpack.c.b16 %v2337, %v2333
  %v2950 = vpack.c.b16 %v2338, %v2334
  %v2951 = vpack.c.b16 %v2339, %v2335
  %v2952 = vpack.c.b16 %v2344, %v2340
  %v2953 = vpack.c.b16 %v2345, %v2341
  %v2954 = vpack.c.b16 %v2346, %v2342
  %v2955 = vpack.c.b16 %v2347, %v2343
  %v2956 = vpack.c.b16 %v2352, %v2348
  %v2957 = vpack.c.b16 %v2353, %v2349
  %v2958 = vpack.c.b16 %v2354, %v2350
  %v2959 = vpack.c.b16 %v2355, %v2351
  %v2960 = vpack.c.b16 %v2360, %v2356
  %v2961 = vpack.c.b16 %v2361, %v2357
  %v2962 = vpack.c.b16 %v2362, %v2358
  %v2963 = vpack.c.b16 %v2363, %v2359
  %v2964 = vpack.c.b16 %v2368, %v2364
  %v2965 = vpack.c.b16 %v2369, %v2365
  %v2966 = vpack.c.b16 %v2370, %v2366
  %v2967 = vpack.c.b16 %v2371, %v2367
  %v2968 = vpack.c.b16 %v2376, %v2372
  %v2969 = vpack.c.b16 %v2377, %v2373
  %v2970 = vpack.c.b16 %v2378, %v2374
  %v2971 = vpack.c.b16 %v2379, %v2375
  %v2972 = vpack.c.b16 %v2384, %v2380
  %v2973 = vpack.c.b16 %v2385, %v2381
  %v2974 = vpack.c.b16 %v2386, %v2382
  %v2975 = vpack.c.b16 %v2387, %v2383
  %v2976 = vpack.c.b16 %v2392, %v2388
  %v2977 = vpack.c.b16 %v2393, %v2389
  %v2978 = vpack.c.b16 %v2394, %v2390
  %v2979 = vpack.c.b16 %v2395, %v2391
  %v2980 = vpack.c.b16 %v2400, %v2396
  %v2981 = vpack.c.b16 %v2401, %v2397
  %v2982 = vpack.c.b16 %v2402, %v2398
  %v2983 = vpack.c.b16 %v2403, %v2399
  %v2984 = vpack.c.b16 %v2408, %v2404
  %v2985 = vpack.c.b16 %v2409, %v2405
  %v2986 = vpack.c.b16 %v2410, %v2406
  %v2987 = vpack.c.b16 %v2411, %v2407
  %3564 = vmatprep.subr.bf16.mxu0 %v2413
  %3565 = vmatpush1.bf16.msra.mxu0 %v2412
  %3566 = vmatprep.subr.bf16.mxu0 %v2417
  %3567 = vmatpush1.bf16.msra.mxu0 %v2416
  %3568 = vmatprep.subr.bf16.mxu0 %v2421
  %3569 = vmatpush1.bf16.msra.mxu0 %v2420
  %3570 = vmatprep.subr.bf16.mxu0 %v2425
  %3571 = vmatpush1.bf16.msra.mxu0 %v2424
  %3572 = vmatprep.subr.bf16.mxu0 %v2429
  %3573 = vmatpush1.bf16.msra.mxu0 %v2428
  %3574 = vmatprep.subr.bf16.mxu0 %v2433
  %3575 = vmatpush1.bf16.msra.mxu0 %v2432
  %3576 = vmatprep.subr.bf16.mxu0 %v2437
  %3577 = vmatpush1.bf16.msra.mxu0 %v2436
  %3578 = vmatprep.subr.bf16.mxu0 %v2441
  %3579 = vmatpush1.bf16.msra.mxu0 %v2440
  %3580 = vmatprep.subr.bf16.mxu0 %v2445
  %3581 = vmatpush1.bf16.msra.mxu0 %v2444
  %3582 = vmatprep.subr.bf16.mxu0 %v2449
  %3583 = vmatpush1.bf16.msra.mxu0 %v2448
  %3584 = vmatprep.subr.bf16.mxu0 %v2453
  %3585 = vmatpush1.bf16.msra.mxu0 %v2452
  %3586 = vmatprep.subr.bf16.mxu0 %v2457
  %3587 = vmatpush1.bf16.msra.mxu0 %v2456
  %3588 = vmatprep.subr.bf16.mxu0 %v2461
  %3589 = vmatpush1.bf16.msra.mxu0 %v2460
  %3590 = vmatprep.subr.bf16.mxu0 %v2465
  %3591 = vmatpush1.bf16.msra.mxu0 %v2464
  %3592 = vmatprep.subr.bf16.mxu0 %v2469
  %3593 = vmatpush1.bf16.msra.mxu0 %v2468
  %3594 = vmatprep.subr.bf16.mxu0 %v2473
  %3595 = vmatpush1.bf16.msra.mxu0 %v2472
  %3596 = vmatprep.mubr.bf16.mxu0 %v649
  %3597 = vmatmul.mubr.bf16.gmra.mrb[0].mxu0 %v648
  %v3598 = vpop.f32.mrb[0].mxu0
  %v3599 = vadd.f32 %v604, %v3598
  %v3600 = vpop.f32.mrb[0].mxu0
  %v3601 = vadd.f32 %v608, %v3600
  %v3602 = vpop.f32.mrb[0].mxu0
  %v3603 = vpop.f32.mrb[0].mxu0
  %3604 = vdwg.mxu0
  %3605 = vmatprep.subr.bf16.mxu0 %v2477
  %3606 = vmatpush1.bf16.msra.mxu0 %v2476
  %3607 = vmatprep.subr.bf16.mxu0 %v2481
  %3608 = vmatpush1.bf16.msra.mxu0 %v2480
  %3609 = vmatprep.subr.bf16.mxu0 %v2485
  %3610 = vmatpush1.bf16.msra.mxu0 %v2484
  %3611 = vmatprep.subr.bf16.mxu0 %v2489
  %3612 = vmatpush1.bf16.msra.mxu0 %v2488
  %3613 = vmatprep.subr.bf16.mxu0 %v2493
  %3614 = vmatpush1.bf16.msra.mxu0 %v2492
  %3615 = vmatprep.subr.bf16.mxu0 %v2497
  %3616 = vmatpush1.bf16.msra.mxu0 %v2496
  %3617 = vmatprep.subr.bf16.mxu0 %v2501
  %3618 = vmatpush1.bf16.msra.mxu0 %v2500
  %3619 = vmatprep.subr.bf16.mxu0 %v2505
  %3620 = vmatpush1.bf16.msra.mxu0 %v2504
  %3621 = vmatprep.subr.bf16.mxu0 %v2509
  %3622 = vmatpush1.bf16.msra.mxu0 %v2508
  %3623 = vmatprep.subr.bf16.mxu0 %v2513
  %3624 = vmatpush1.bf16.msra.mxu0 %v2512
  %3625 = vmatprep.subr.bf16.mxu0 %v2517
  %3626 = vmatpush1.bf16.msra.mxu0 %v2516
  %3627 = vmatprep.subr.bf16.mxu0 %v2521
  %3628 = vmatpush1.bf16.msra.mxu0 %v2520
  %3629 = vmatprep.subr.bf16.mxu0 %v2525
  %3630 = vmatpush1.bf16.msra.mxu0 %v2524
  %3631 = vmatprep.subr.bf16.mxu0 %v2529
  %3632 = vmatpush1.bf16.msra.mxu0 %v2528
  %3633 = vmatprep.subr.bf16.mxu0 %v2533
  %3634 = vmatpush1.bf16.msra.mxu0 %v2532
  %3635 = vmatprep.subr.bf16.mxu0 %v2537
  %3636 = vmatpush1.bf16.msra.mxu0 %v2536
  %3637 = vmatprep.mubr.bf16.mxu0 %v651
  %3638 = vmatmul.mubr.bf16.gmra.mrb[0].mxu0 %v650
  %v3639 = vpop.f32.mrb[0].mxu0
  %v3640 = vadd.f32 %v3599, %v3639
  %v3641 = vpop.f32.mrb[0].mxu0
  %v3642 = vadd.f32 %v3601, %v3641
  %v3643 = vpop.f32.mrb[0].mxu0
  %v3644 = vpop.f32.mrb[0].mxu0
  %3645 = vdwg.mxu0
  %3646 = vmatprep.subr.bf16.mxu0 %v2541
  %3647 = vmatpush1.bf16.msra.mxu0 %v2540
  %3648 = vmatprep.subr.bf16.mxu0 %v2545
  %3649 = vmatpush1.bf16.msra.mxu0 %v2544
  %3650 = vmatprep.subr.bf16.mxu0 %v2549
  %3651 = vmatpush1.bf16.msra.mxu0 %v2548
  %3652 = vmatprep.subr.bf16.mxu0 %v2553
  %3653 = vmatpush1.bf16.msra.mxu0 %v2552
  %3654 = vmatprep.subr.bf16.mxu0 %v2557
  %3655 = vmatpush1.bf16.msra.mxu0 %v2556
  %3656 = vmatprep.subr.bf16.mxu0 %v2561
  %3657 = vmatpush1.bf16.msra.mxu0 %v2560
  %3658 = vmatprep.subr.bf16.mxu0 %v2565
  %3659 = vmatpush1.bf16.msra.mxu0 %v2564
  %3660 = vmatprep.subr.bf16.mxu0 %v2569
  %3661 = vmatpush1.bf16.msra.mxu0 %v2568
  %3662 = vmatprep.subr.bf16.mxu0 %v2573
  %3663 = vmatpush1.bf16.msra.mxu0 %v2572
  %3664 = vmatprep.subr.bf16.mxu0 %v2577
  %3665 = vmatpush1.bf16.msra.mxu0 %v2576
  %3666 = vmatprep.subr.bf16.mxu0 %v2581
  %3667 = vmatpush1.bf16.msra.mxu0 %v2580
  %3668 = vmatprep.subr.bf16.mxu0 %v2585
  %3669 = vmatpush1.bf16.msra.mxu0 %v2584
  %3670 = vmatprep.subr.bf16.mxu0 %v2589
  %3671 = vmatpush1.bf16.msra.mxu0 %v2588
  %3672 = vmatprep.subr.bf16.mxu0 %v2593
  %3673 = vmatpush1.bf16.msra.mxu0 %v2592
  %3674 = vmatprep.subr.bf16.mxu0 %v2597
  %3675 = vmatpush1.bf16.msra.mxu0 %v2596
  %3676 = vmatprep.subr.bf16.mxu0 %v2601
  %3677 = vmatpush1.bf16.msra.mxu0 %v2600
  %3678 = vmatprep.mubr.bf16.mxu0 %v653
  %3679 = vmatmul.mubr.bf16.gmra.mrb[0].mxu0 %v652
  %v3680 = vpop.f32.mrb[0].mxu0
  %v3681 = vadd.f32 %v3640, %v3680
  %v3682 = vpop.f32.mrb[0].mxu0
  %v3683 = vadd.f32 %v3642, %v3682
  %v3684 = vpop.f32.mrb[0].mxu0
  %v3685 = vpop.f32.mrb[0].mxu0
  %3686 = vdwg.mxu0
  %3687 = vmatprep.subr.bf16.mxu0 %v2605
  %3688 = vmatpush1.bf16.msra.mxu0 %v2604
  %3689 = vmatprep.subr.bf16.mxu0 %v2609
  %3690 = vmatpush1.bf16.msra.mxu0 %v2608
  %3691 = vmatprep.subr.bf16.mxu0 %v2613
  %3692 = vmatpush1.bf16.msra.mxu0 %v2612
  %3693 = vmatprep.subr.bf16.mxu0 %v2617
  %3694 = vmatpush1.bf16.msra.mxu0 %v2616
  %3695 = vmatprep.subr.bf16.mxu0 %v2621
  %3696 = vmatpush1.bf16.msra.mxu0 %v2620
  %3697 = vmatprep.subr.bf16.mxu0 %v2625
  %3698 = vmatpush1.bf16.msra.mxu0 %v2624
  %3699 = vmatprep.subr.bf16.mxu0 %v2629
  %3700 = vmatpush1.bf16.msra.mxu0 %v2628
  %3701 = vmatprep.subr.bf16.mxu0 %v2633
  %3702 = vmatpush1.bf16.msra.mxu0 %v2632
  %3703 = vmatprep.subr.bf16.mxu0 %v2637
  %3704 = vmatpush1.bf16.msra.mxu0 %v2636
  %3705 = vmatprep.subr.bf16.mxu0 %v2641
  %3706 = vmatpush1.bf16.msra.mxu0 %v2640
  %3707 = vmatprep.subr.bf16.mxu0 %v2645
  %3708 = vmatpush1.bf16.msra.mxu0 %v2644
  %3709 = vmatprep.subr.bf16.mxu0 %v2649
  %3710 = vmatpush1.bf16.msra.mxu0 %v2648
  %3711 = vmatprep.subr.bf16.mxu0 %v2653
  %3712 = vmatpush1.bf16.msra.mxu0 %v2652
  %3713 = vmatprep.subr.bf16.mxu0 %v2657
  %3714 = vmatpush1.bf16.msra.mxu0 %v2656
  %3715 = vmatprep.subr.bf16.mxu0 %v2661
  %3716 = vmatpush1.bf16.msra.mxu0 %v2660
  %3717 = vmatprep.subr.bf16.mxu0 %v2665
  %3718 = vmatpush1.bf16.msra.mxu0 %v2664
  %3719 = vmatprep.mubr.bf16.mxu0 %v655
  %3720 = vmatmul.mubr.bf16.gmra.mrb[0].mxu0 %v654
  %v3721 = vpop.f32.mrb[0].mxu0
  %v3722 = vadd.f32 %v3681, %v3721
  %v3723 = vpop.f32.mrb[0].mxu0
  %v3724 = vadd.f32 %v3683, %v3723
  %v3725 = vpop.f32.mrb[0].mxu0
  %v3726 = vpop.f32.mrb[0].mxu0
  %3727 = vdwg.mxu0
  %3728 = vmatprep.subr.bf16.mxu0 %v2669
  %3729 = vmatpush1.bf16.msra.mxu0 %v2668
  %3730 = vmatprep.subr.bf16.mxu0 %v2673
  %3731 = vmatpush1.bf16.msra.mxu0 %v2672
  %3732 = vmatprep.subr.bf16.mxu0 %v2677
  %3733 = vmatpush1.bf16.msra.mxu0 %v2676
  %3734 = vmatprep.subr.bf16.mxu0 %v2681
  %3735 = vmatpush1.bf16.msra.mxu0 %v2680
  %3736 = vmatprep.subr.bf16.mxu0 %v2685
  %3737 = vmatpush1.bf16.msra.mxu0 %v2684
  %3738 = vmatprep.subr.bf16.mxu0 %v2689
  %3739 = vmatpush1.bf16.msra.mxu0 %v2688
  %3740 = vmatprep.subr.bf16.mxu0 %v2693
  %3741 = vmatpush1.bf16.msra.mxu0 %v2692
  %3742 = vmatprep.subr.bf16.mxu0 %v2697
  %3743 = vmatpush1.bf16.msra.mxu0 %v2696
  %3744 = vmatprep.subr.bf16.mxu0 %v2701
  %3745 = vmatpush1.bf16.msra.mxu0 %v2700
  %3746 = vmatprep.subr.bf16.mxu0 %v2705
  %3747 = vmatpush1.bf16.msra.mxu0 %v2704
  %3748 = vmatprep.subr.bf16.mxu0 %v2709
  %3749 = vmatpush1.bf16.msra.mxu0 %v2708
  %3750 = vmatprep.subr.bf16.mxu0 %v2713
  %3751 = vmatpush1.bf16.msra.mxu0 %v2712
  %3752 = vmatprep.subr.bf16.mxu0 %v2717
  %3753 = vmatpush1.bf16.msra.mxu0 %v2716
  %3754 = vmatprep.subr.bf16.mxu0 %v2721
  %3755 = vmatpush1.bf16.msra.mxu0 %v2720
  %3756 = vmatprep.subr.bf16.mxu0 %v2725
  %3757 = vmatpush1.bf16.msra.mxu0 %v2724
  %3758 = vmatprep.subr.bf16.mxu0 %v2729
  %3759 = vmatpush1.bf16.msra.mxu0 %v2728
  %3760 = vmatprep.mubr.bf16.mxu0 %v657
  %3761 = vmatmul.mubr.bf16.gmra.mrb[0].mxu0 %v656
  %v3762 = vpop.f32.mrb[0].mxu0
  %v3763 = vadd.f32 %v3722, %v3762
  %v3764 = vpop.f32.mrb[0].mxu0
  %v3765 = vadd.f32 %v3724, %v3764
  %v3766 = vpop.f32.mrb[0].mxu0
  %v3767 = vpop.f32.mrb[0].mxu0
  %3768 = vdwg.mxu0
  %3769 = vmatprep.subr.bf16.mxu0 %v2733
  %3770 = vmatpush1.bf16.msra.mxu0 %v2732
  %3771 = vmatprep.subr.bf16.mxu0 %v2737
  %3772 = vmatpush1.bf16.msra.mxu0 %v2736
  %3773 = vmatprep.subr.bf16.mxu0 %v2741
  %3774 = vmatpush1.bf16.msra.mxu0 %v2740
  %3775 = vmatprep.subr.bf16.mxu0 %v2745
  %3776 = vmatpush1.bf16.msra.mxu0 %v2744
  %3777 = vmatprep.subr.bf16.mxu0 %v2749
  %3778 = vmatpush1.bf16.msra.mxu0 %v2748
  %3779 = vmatprep.subr.bf16.mxu0 %v2753
  %3780 = vmatpush1.bf16.msra.mxu0 %v2752
  %3781 = vmatprep.subr.bf16.mxu0 %v2757
  %3782 = vmatpush1.bf16.msra.mxu0 %v2756
  %3783 = vmatprep.subr.bf16.mxu0 %v2761
  %3784 = vmatpush1.bf16.msra.mxu0 %v2760
  %3785 = vmatprep.subr.bf16.mxu0 %v2765
  %3786 = vmatpush1.bf16.msra.mxu0 %v2764
  %3787 = vmatprep.subr.bf16.mxu0 %v2769
  %3788 = vmatpush1.bf16.msra.mxu0 %v2768
  %3789 = vmatprep.subr.bf16.mxu0 %v2773
  %3790 = vmatpush1.bf16.msra.mxu0 %v2772
  %3791 = vmatprep.subr.bf16.mxu0 %v2777
  %3792 = vmatpush1.bf16.msra.mxu0 %v2776
  %3793 = vmatprep.subr.bf16.mxu0 %v2781
  %3794 = vmatpush1.bf16.msra.mxu0 %v2780
  %3795 = vmatprep.subr.bf16.mxu0 %v2785
  %3796 = vmatpush1.bf16.msra.mxu0 %v2784
  %3797 = vmatprep.subr.bf16.mxu0 %v2789
  %3798 = vmatpush1.bf16.msra.mxu0 %v2788
  %3799 = vmatprep.subr.bf16.mxu0 %v2793
  %3800 = vmatpush1.bf16.msra.mxu0 %v2792
  %3801 = vmatprep.mubr.bf16.mxu0 %v659
  %3802 = vmatmul.mubr.bf16.gmra.mrb[0].mxu0 %v658
  %v3803 = vpop.f32.mrb[0].mxu0
  %v3804 = vadd.f32 %v3763, %v3803
  %v3805 = vpop.f32.mrb[0].mxu0
  %v3806 = vadd.f32 %v3765, %v3805
  %v3807 = vpop.f32.mrb[0].mxu0
  %v3808 = vpop.f32.mrb[0].mxu0
  %3809 = vdwg.mxu0
  %3810 = vmatprep.subr.bf16.mxu0 %v2797
  %3811 = vmatpush1.bf16.msra.mxu0 %v2796
  %3812 = vmatprep.subr.bf16.mxu0 %v2801
  %3813 = vmatpush1.bf16.msra.mxu0 %v2800
  %3814 = vmatprep.subr.bf16.mxu0 %v2805
  %3815 = vmatpush1.bf16.msra.mxu0 %v2804
  %3816 = vmatprep.subr.bf16.mxu0 %v2809
  %3817 = vmatpush1.bf16.msra.mxu0 %v2808
  %3818 = vmatprep.subr.bf16.mxu0 %v2813
  %3819 = vmatpush1.bf16.msra.mxu0 %v2812
  %3820 = vmatprep.subr.bf16.mxu0 %v2817
  %3821 = vmatpush1.bf16.msra.mxu0 %v2816
  %3822 = vmatprep.subr.bf16.mxu0 %v2821
  %3823 = vmatpush1.bf16.msra.mxu0 %v2820
  %3824 = vmatprep.subr.bf16.mxu0 %v2825
  %3825 = vmatpush1.bf16.msra.mxu0 %v2824
  %3826 = vmatprep.subr.bf16.mxu0 %v2829
  %3827 = vmatpush1.bf16.msra.mxu0 %v2828
  %3828 = vmatprep.subr.bf16.mxu0 %v2833
  %3829 = vmatpush1.bf16.msra.mxu0 %v2832
  %3830 = vmatprep.subr.bf16.mxu0 %v2837
  %3831 = vmatpush1.bf16.msra.mxu0 %v2836
  %3832 = vmatprep.subr.bf16.mxu0 %v2841
  %3833 = vmatpush1.bf16.msra.mxu0 %v2840
  %3834 = vmatprep.subr.bf16.mxu0 %v2845
  %3835 = vmatpush1.bf16.msra.mxu0 %v2844
  %3836 = vmatprep.subr.bf16.mxu0 %v2849
  %3837 = vmatpush1.bf16.msra.mxu0 %v2848
  %3838 = vmatprep.subr.bf16.mxu0 %v2853
  %3839 = vmatpush1.bf16.msra.mxu0 %v2852
  %3840 = vmatprep.subr.bf16.mxu0 %v2857
  %3841 = vmatpush1.bf16.msra.mxu0 %v2856
  %3842 = vmatprep.mubr.bf16.mxu0 %v661
  %3843 = vmatmul.mubr.bf16.gmra.mrb[0].mxu0 %v660
  %v3844 = vpop.f32.mrb[0].mxu0
  %v3845 = vadd.f32 %v3804, %v3844
  %v3846 = vpop.f32.mrb[0].mxu0
  %v3847 = vadd.f32 %v3806, %v3846
  %v3848 = vpop.f32.mrb[0].mxu0
  %v3849 = vpop.f32.mrb[0].mxu0
  %3850 = vdwg.mxu0
  %3851 = vmatprep.subr.bf16.mxu0 %v2861
  %3852 = vmatpush1.bf16.msra.mxu0 %v2860
  %3853 = vmatprep.subr.bf16.mxu0 %v2865
  %3854 = vmatpush1.bf16.msra.mxu0 %v2864
  %3855 = vmatprep.subr.bf16.mxu0 %v2869
  %3856 = vmatpush1.bf16.msra.mxu0 %v2868
  %3857 = vmatprep.subr.bf16.mxu0 %v2873
  %3858 = vmatpush1.bf16.msra.mxu0 %v2872
  %3859 = vmatprep.subr.bf16.mxu0 %v2877
  %3860 = vmatpush1.bf16.msra.mxu0 %v2876
  %3861 = vmatprep.subr.bf16.mxu0 %v2881
  %3862 = vmatpush1.bf16.msra.mxu0 %v2880
  %3863 = vmatprep.subr.bf16.mxu0 %v2885
  %3864 = vmatpush1.bf16.msra.mxu0 %v2884
  %3865 = vmatprep.subr.bf16.mxu0 %v2889
  %3866 = vmatpush1.bf16.msra.mxu0 %v2888
  %3867 = vmatprep.subr.bf16.mxu0 %v2893
  %3868 = vmatpush1.bf16.msra.mxu0 %v2892
  %3869 = vmatprep.subr.bf16.mxu0 %v2897
  %3870 = vmatpush1.bf16.msra.mxu0 %v2896
  %3871 = vmatprep.subr.bf16.mxu0 %v2901
  %3872 = vmatpush1.bf16.msra.mxu0 %v2900
  %3873 = vmatprep.subr.bf16.mxu0 %v2905
  %3874 = vmatpush1.bf16.msra.mxu0 %v2904
  %3875 = vmatprep.subr.bf16.mxu0 %v2909
  %3876 = vmatpush1.bf16.msra.mxu0 %v2908
  %3877 = vmatprep.subr.bf16.mxu0 %v2913
  %3878 = vmatpush1.bf16.msra.mxu0 %v2912
  %3879 = vmatprep.subr.bf16.mxu0 %v2917
  %3880 = vmatpush1.bf16.msra.mxu0 %v2916
  %3881 = vmatprep.subr.bf16.mxu0 %v2921
  %3882 = vmatpush1.bf16.msra.mxu0 %v2920
  %3883 = vmatprep.mubr.bf16.mxu0 %v663
  %3884 = vmatmul.mubr.bf16.gmra.mrb[0].mxu0 %v662
  %v3885 = vpop.f32.mrb[0].mxu0
  %v3886 = vadd.f32 %v3845, %v3885
  %v3887 = vpop.f32.mrb[0].mxu0
  %v3888 = vadd.f32 %v3847, %v3887
  %v3889 = vpop.f32.mrb[0].mxu0
  %v3890 = vpop.f32.mrb[0].mxu0
  %3891 = vdwg.mxu0
  %3892 = vmatprep.subr.bf16.mxu0 %v2925
  %3893 = vmatpush1.bf16.msra.mxu0 %v2924
  %3894 = vmatprep.subr.bf16.mxu0 %v2929
  %3895 = vmatpush1.bf16.msra.mxu0 %v2928
  %3896 = vmatprep.subr.bf16.mxu0 %v2933
  %3897 = vmatpush1.bf16.msra.mxu0 %v2932
  %3898 = vmatprep.subr.bf16.mxu0 %v2937
  %3899 = vmatpush1.bf16.msra.mxu0 %v2936
  %3900 = vmatprep.subr.bf16.mxu0 %v2941
  %3901 = vmatpush1.bf16.msra.mxu0 %v2940
  %3902 = vmatprep.subr.bf16.mxu0 %v2945
  %3903 = vmatpush1.bf16.msra.mxu0 %v2944
  %3904 = vmatprep.subr.bf16.mxu0 %v2949
  %3905 = vmatpush1.bf16.msra.mxu0 %v2948
  %3906 = vmatprep.subr.bf16.mxu0 %v2953
  %3907 = vmatpush1.bf16.msra.mxu0 %v2952
  %3908 = vmatprep.subr.bf16.mxu0 %v2957
  %3909 = vmatpush1.bf16.msra.mxu0 %v2956
  %3910 = vmatprep.subr.bf16.mxu0 %v2961
  %3911 = vmatpush1.bf16.msra.mxu0 %v2960
  %3912 = vmatprep.subr.bf16.mxu0 %v2965
  %3913 = vmatpush1.bf16.msra.mxu0 %v2964
  %3914 = vmatprep.subr.bf16.mxu0 %v2969
  %3915 = vmatpush1.bf16.msra.mxu0 %v2968
  %3916 = vmatprep.subr.bf16.mxu0 %v2973
  %3917 = vmatpush1.bf16.msra.mxu0 %v2972
  %3918 = vmatprep.subr.bf16.mxu0 %v2977
  %3919 = vmatpush1.bf16.msra.mxu0 %v2976
  %3920 = vmatprep.subr.bf16.mxu0 %v2981
  %3921 = vmatpush1.bf16.msra.mxu0 %v2980
  %3922 = vmatprep.subr.bf16.mxu0 %v2985
  %3923 = vmatpush1.bf16.msra.mxu0 %v2984
  %3924 = vmatprep.mubr.bf16.mxu0 %v665
  %3925 = vmatmul.mubr.bf16.gmra.mrb[0].mxu0 %v664
  %v3926 = vpop.f32.mrb[0].mxu0
  %v3927 = vadd.f32 %v3886, %v3926
  %v3928 = vpop.f32.mrb[0].mxu0
  %v3929 = vadd.f32 %v3888, %v3928
  %v3930 = vpop.f32.mrb[0].mxu0
  %v3931 = vpop.f32.mrb[0].mxu0
  %3932 = vdwg.mxu0
  %3933 = vmatprep.subr.bf16.mxu0 %v2415
  %3934 = vmatpush1.bf16.msra.mxu0 %v2414
  %3935 = vmatprep.subr.bf16.mxu0 %v2419
  %3936 = vmatpush1.bf16.msra.mxu0 %v2418
  %3937 = vmatprep.subr.bf16.mxu0 %v2423
  %3938 = vmatpush1.bf16.msra.mxu0 %v2422
  %3939 = vmatprep.subr.bf16.mxu0 %v2427
  %3940 = vmatpush1.bf16.msra.mxu0 %v2426
  %3941 = vmatprep.subr.bf16.mxu0 %v2431
  %3942 = vmatpush1.bf16.msra.mxu0 %v2430
  %3943 = vmatprep.subr.bf16.mxu0 %v2435
  %3944 = vmatpush1.bf16.msra.mxu0 %v2434
  %3945 = vmatprep.subr.bf16.mxu0 %v2439
  %3946 = vmatpush1.bf16.msra.mxu0 %v2438
  %3947 = vmatprep.subr.bf16.mxu0 %v2443
  %3948 = vmatpush1.bf16.msra.mxu0 %v2442
  %3949 = vmatprep.subr.bf16.mxu0 %v2447
  %3950 = vmatpush1.bf16.msra.mxu0 %v2446
  %3951 = vmatprep.subr.bf16.mxu0 %v2451
  %3952 = vmatpush1.bf16.msra.mxu0 %v2450
  %3953 = vmatprep.subr.bf16.mxu0 %v2455
  %3954 = vmatpush1.bf16.msra.mxu0 %v2454
  %3955 = vmatprep.subr.bf16.mxu0 %v2459
  %3956 = vmatpush1.bf16.msra.mxu0 %v2458
  %3957 = vmatprep.subr.bf16.mxu0 %v2463
  %3958 = vmatpush1.bf16.msra.mxu0 %v2462
  %3959 = vmatprep.subr.bf16.mxu0 %v2467
  %3960 = vmatpush1.bf16.msra.mxu0 %v2466
  %3961 = vmatprep.subr.bf16.mxu0 %v2471
  %3962 = vmatpush1.bf16.msra.mxu0 %v2470
  %3963 = vmatprep.subr.bf16.mxu0 %v2475
  %3964 = vmatpush1.bf16.msra.mxu0 %v2474
  %3965 = vmatprep.mubr.bf16.mxu0 %v649
  %3966 = vmatmul.mubr.bf16.gmra.mrb[0].mxu0 %v648
  %v3967 = vpop.f32.mrb[0].mxu0
  %v3968 = vadd.f32 %v612, %v3967
  %v3969 = vpop.f32.mrb[0].mxu0
  %v3970 = vadd.f32 %v616, %v3969
  %v3971 = vpop.f32.mrb[0].mxu0
  %v3972 = vpop.f32.mrb[0].mxu0
  %3973 = vdwg.mxu0
  %3974 = vmatprep.subr.bf16.mxu0 %v2479
  %3975 = vmatpush1.bf16.msra.mxu0 %v2478
  %3976 = vmatprep.subr.bf16.mxu0 %v2483
  %3977 = vmatpush1.bf16.msra.mxu0 %v2482
  %3978 = vmatprep.subr.bf16.mxu0 %v2487
  %3979 = vmatpush1.bf16.msra.mxu0 %v2486
  %3980 = vmatprep.subr.bf16.mxu0 %v2491
  %3981 = vmatpush1.bf16.msra.mxu0 %v2490
  %3982 = vmatprep.subr.bf16.mxu0 %v2495
  %3983 = vmatpush1.bf16.msra.mxu0 %v2494
  %3984 = vmatprep.subr.bf16.mxu0 %v2499
  %3985 = vmatpush1.bf16.msra.mxu0 %v2498
  %3986 = vmatprep.subr.bf16.mxu0 %v2503
  %3987 = vmatpush1.bf16.msra.mxu0 %v2502
  %3988 = vmatprep.subr.bf16.mxu0 %v2507
  %3989 = vmatpush1.bf16.msra.mxu0 %v2506
  %3990 = vmatprep.subr.bf16.mxu0 %v2511
  %3991 = vmatpush1.bf16.msra.mxu0 %v2510
  %3992 = vmatprep.subr.bf16.mxu0 %v2515
  %3993 = vmatpush1.bf16.msra.mxu0 %v2514
  %3994 = vmatprep.subr.bf16.mxu0 %v2519
  %3995 = vmatpush1.bf16.msra.mxu0 %v2518
  %3996 = vmatprep.subr.bf16.mxu0 %v2523
  %3997 = vmatpush1.bf16.msra.mxu0 %v2522
  %3998 = vmatprep.subr.bf16.mxu0 %v2527
  %3999 = vmatpush1.bf16.msra.mxu0 %v2526
  %4000 = vmatprep.subr.bf16.mxu0 %v2531
  %4001 = vmatpush1.bf16.msra.mxu0 %v2530
  %4002 = vmatprep.subr.bf16.mxu0 %v2535
  %4003 = vmatpush1.bf16.msra.mxu0 %v2534
  %4004 = vmatprep.subr.bf16.mxu0 %v2539
  %4005 = vmatpush1.bf16.msra.mxu0 %v2538
  %4006 = vmatprep.mubr.bf16.mxu0 %v651
  %4007 = vmatmul.mubr.bf16.gmra.mrb[0].mxu0 %v650
  %v4008 = vpop.f32.mrb[0].mxu0
  %v4009 = vadd.f32 %v3968, %v4008
  %v4010 = vpop.f32.mrb[0].mxu0
  %v4011 = vadd.f32 %v3970, %v4010
  %v4012 = vpop.f32.mrb[0].mxu0
  %v4013 = vpop.f32.mrb[0].mxu0
  %4014 = vdwg.mxu0
  %4015 = vmatprep.subr.bf16.mxu0 %v2543
  %4016 = vmatpush1.bf16.msra.mxu0 %v2542
  %4017 = vmatprep.subr.bf16.mxu0 %v2547
  %4018 = vmatpush1.bf16.msra.mxu0 %v2546
  %4019 = vmatprep.subr.bf16.mxu0 %v2551
  %4020 = vmatpush1.bf16.msra.mxu0 %v2550
  %4021 = vmatprep.subr.bf16.mxu0 %v2555
  %4022 = vmatpush1.bf16.msra.mxu0 %v2554
  %4023 = vmatprep.subr.bf16.mxu0 %v2559
  %4024 = vmatpush1.bf16.msra.mxu0 %v2558
  %4025 = vmatprep.subr.bf16.mxu0 %v2563
  %4026 = vmatpush1.bf16.msra.mxu0 %v2562
  %4027 = vmatprep.subr.bf16.mxu0 %v2567
  %4028 = vmatpush1.bf16.msra.mxu0 %v2566
  %4029 = vmatprep.subr.bf16.mxu0 %v2571
  %4030 = vmatpush1.bf16.msra.mxu0 %v2570
  %4031 = vmatprep.subr.bf16.mxu0 %v2575
  %4032 = vmatpush1.bf16.msra.mxu0 %v2574
  %4033 = vmatprep.subr.bf16.mxu0 %v2579
  %4034 = vmatpush1.bf16.msra.mxu0 %v2578
  %4035 = vmatprep.subr.bf16.mxu0 %v2583
  %4036 = vmatpush1.bf16.msra.mxu0 %v2582
  %4037 = vmatprep.subr.bf16.mxu0 %v2587
  %4038 = vmatpush1.bf16.msra.mxu0 %v2586
  %4039 = vmatprep.subr.bf16.mxu0 %v2591
  %4040 = vmatpush1.bf16.msra.mxu0 %v2590
  %4041 = vmatprep.subr.bf16.mxu0 %v2595
  %4042 = vmatpush1.bf16.msra.mxu0 %v2594
  %4043 = vmatprep.subr.bf16.mxu0 %v2599
  %4044 = vmatpush1.bf16.msra.mxu0 %v2598
  %4045 = vmatprep.subr.bf16.mxu0 %v2603
  %4046 = vmatpush1.bf16.msra.mxu0 %v2602
  %4047 = vmatprep.mubr.bf16.mxu0 %v653
  %4048 = vmatmul.mubr.bf16.gmra.mrb[0].mxu0 %v652
  %v4049 = vpop.f32.mrb[0].mxu0
  %v4050 = vadd.f32 %v4009, %v4049
  %v4051 = vpop.f32.mrb[0].mxu0
  %v4052 = vadd.f32 %v4011, %v4051
  %v4053 = vpop.f32.mrb[0].mxu0
  %v4054 = vpop.f32.mrb[0].mxu0
  %4055 = vdwg.mxu0
  %4056 = vmatprep.subr.bf16.mxu0 %v2607
  %4057 = vmatpush1.bf16.msra.mxu0 %v2606
  %4058 = vmatprep.subr.bf16.mxu0 %v2611
  %4059 = vmatpush1.bf16.msra.mxu0 %v2610
  %4060 = vmatprep.subr.bf16.mxu0 %v2615
  %4061 = vmatpush1.bf16.msra.mxu0 %v2614
  %4062 = vmatprep.subr.bf16.mxu0 %v2619
  %4063 = vmatpush1.bf16.msra.mxu0 %v2618
  %4064 = vmatprep.subr.bf16.mxu0 %v2623
  %4065 = vmatpush1.bf16.msra.mxu0 %v2622
  %4066 = vmatprep.subr.bf16.mxu0 %v2627
  %4067 = vmatpush1.bf16.msra.mxu0 %v2626
  %4068 = vmatprep.subr.bf16.mxu0 %v2631
  %4069 = vmatpush1.bf16.msra.mxu0 %v2630
  %4070 = vmatprep.subr.bf16.mxu0 %v2635
  %4071 = vmatpush1.bf16.msra.mxu0 %v2634
  %4072 = vmatprep.subr.bf16.mxu0 %v2639
  %4073 = vmatpush1.bf16.msra.mxu0 %v2638
  %4074 = vmatprep.subr.bf16.mxu0 %v2643
  %4075 = vmatpush1.bf16.msra.mxu0 %v2642
  %4076 = vmatprep.subr.bf16.mxu0 %v2647
  %4077 = vmatpush1.bf16.msra.mxu0 %v2646
  %4078 = vmatprep.subr.bf16.mxu0 %v2651
  %4079 = vmatpush1.bf16.msra.mxu0 %v2650
  %4080 = vmatprep.subr.bf16.mxu0 %v2655
  %4081 = vmatpush1.bf16.msra.mxu0 %v2654
  %4082 = vmatprep.subr.bf16.mxu0 %v2659
  %4083 = vmatpush1.bf16.msra.mxu0 %v2658
  %4084 = vmatprep.subr.bf16.mxu0 %v2663
  %4085 = vmatpush1.bf16.msra.mxu0 %v2662
  %4086 = vmatprep.subr.bf16.mxu0 %v2667
  %4087 = vmatpush1.bf16.msra.mxu0 %v2666
  %4088 = vmatprep.mubr.bf16.mxu0 %v655
  %4089 = vmatmul.mubr.bf16.gmra.mrb[0].mxu0 %v654
  %v4090 = vpop.f32.mrb[0].mxu0
  %v4091 = vadd.f32 %v4050, %v4090
  %v4092 = vpop.f32.mrb[0].mxu0
  %v4093 = vadd.f32 %v4052, %v4092
  %v4094 = vpop.f32.mrb[0].mxu0
  %v4095 = vpop.f32.mrb[0].mxu0
  %4096 = vdwg.mxu0
  %4097 = vmatprep.subr.bf16.mxu0 %v2671
  %4098 = vmatpush1.bf16.msra.mxu0 %v2670
  %4099 = vmatprep.subr.bf16.mxu0 %v2675
  %4100 = vmatpush1.bf16.msra.mxu0 %v2674
  %4101 = vmatprep.subr.bf16.mxu0 %v2679
  %4102 = vmatpush1.bf16.msra.mxu0 %v2678
  %4103 = vmatprep.subr.bf16.mxu0 %v2683
  %4104 = vmatpush1.bf16.msra.mxu0 %v2682
  %4105 = vmatprep.subr.bf16.mxu0 %v2687
  %4106 = vmatpush1.bf16.msra.mxu0 %v2686
  %4107 = vmatprep.subr.bf16.mxu0 %v2691
  %4108 = vmatpush1.bf16.msra.mxu0 %v2690
  %4109 = vmatprep.subr.bf16.mxu0 %v2695
  %4110 = vmatpush1.bf16.msra.mxu0 %v2694
  %4111 = vmatprep.subr.bf16.mxu0 %v2699
  %4112 = vmatpush1.bf16.msra.mxu0 %v2698
  %4113 = vmatprep.subr.bf16.mxu0 %v2703
  %4114 = vmatpush1.bf16.msra.mxu0 %v2702
  %4115 = vmatprep.subr.bf16.mxu0 %v2707
  %4116 = vmatpush1.bf16.msra.mxu0 %v2706
  %4117 = vmatprep.subr.bf16.mxu0 %v2711
  %4118 = vmatpush1.bf16.msra.mxu0 %v2710
  %4119 = vmatprep.subr.bf16.mxu0 %v2715
  %4120 = vmatpush1.bf16.msra.mxu0 %v2714
  %4121 = vmatprep.subr.bf16.mxu0 %v2719
  %4122 = vmatpush1.bf16.msra.mxu0 %v2718
  %4123 = vmatprep.subr.bf16.mxu0 %v2723
  %4124 = vmatpush1.bf16.msra.mxu0 %v2722
  %4125 = vmatprep.subr.bf16.mxu0 %v2727
  %4126 = vmatpush1.bf16.msra.mxu0 %v2726
  %4127 = vmatprep.subr.bf16.mxu0 %v2731
  %4128 = vmatpush1.bf16.msra.mxu0 %v2730
  %4129 = vmatprep.mubr.bf16.mxu0 %v657
  %4130 = vmatmul.mubr.bf16.gmra.mrb[0].mxu0 %v656
  %v4131 = vpop.f32.mrb[0].mxu0
  %v4132 = vadd.f32 %v4091, %v4131
  %v4133 = vpop.f32.mrb[0].mxu0
  %v4134 = vadd.f32 %v4093, %v4133
  %v4135 = vpop.f32.mrb[0].mxu0
  %v4136 = vpop.f32.mrb[0].mxu0
  %4137 = vdwg.mxu0
  %4138 = vmatprep.subr.bf16.mxu0 %v2735
  %4139 = vmatpush1.bf16.msra.mxu0 %v2734
  %4140 = vmatprep.subr.bf16.mxu0 %v2739
  %4141 = vmatpush1.bf16.msra.mxu0 %v2738
  %4142 = vmatprep.subr.bf16.mxu0 %v2743
  %4143 = vmatpush1.bf16.msra.mxu0 %v2742
  %4144 = vmatprep.subr.bf16.mxu0 %v2747
  %4145 = vmatpush1.bf16.msra.mxu0 %v2746
  %4146 = vmatprep.subr.bf16.mxu0 %v2751
  %4147 = vmatpush1.bf16.msra.mxu0 %v2750
  %4148 = vmatprep.subr.bf16.mxu0 %v2755
  %4149 = vmatpush1.bf16.msra.mxu0 %v2754
  %4150 = vmatprep.subr.bf16.mxu0 %v2759
  %4151 = vmatpush1.bf16.msra.mxu0 %v2758
  %4152 = vmatprep.subr.bf16.mxu0 %v2763
  %4153 = vmatpush1.bf16.msra.mxu0 %v2762
  %4154 = vmatprep.subr.bf16.mxu0 %v2767
  %4155 = vmatpush1.bf16.msra.mxu0 %v2766
  %4156 = vmatprep.subr.bf16.mxu0 %v2771
  %4157 = vmatpush1.bf16.msra.mxu0 %v2770
  %4158 = vmatprep.subr.bf16.mxu0 %v2775
  %4159 = vmatpush1.bf16.msra.mxu0 %v2774
  %4160 = vmatprep.subr.bf16.mxu0 %v2779
  %4161 = vmatpush1.bf16.msra.mxu0 %v2778
  %4162 = vmatprep.subr.bf16.mxu0 %v2783
  %4163 = vmatpush1.bf16.msra.mxu0 %v2782
  %4164 = vmatprep.subr.bf16.mxu0 %v2787
  %4165 = vmatpush1.bf16.msra.mxu0 %v2786
  %4166 = vmatprep.subr.bf16.mxu0 %v2791
  %4167 = vmatpush1.bf16.msra.mxu0 %v2790
  %4168 = vmatprep.subr.bf16.mxu0 %v2795
  %4169 = vmatpush1.bf16.msra.mxu0 %v2794
  %4170 = vmatprep.mubr.bf16.mxu0 %v659
  %4171 = vmatmul.mubr.bf16.gmra.mrb[0].mxu0 %v658
  %v4172 = vpop.f32.mrb[0].mxu0
  %v4173 = vadd.f32 %v4132, %v4172
  %v4174 = vpop.f32.mrb[0].mxu0
  %v4175 = vadd.f32 %v4134, %v4174
  %v4176 = vpop.f32.mrb[0].mxu0
  %v4177 = vpop.f32.mrb[0].mxu0
  %4178 = vdwg.mxu0
  %4179 = vmatprep.subr.bf16.mxu0 %v2799
  %4180 = vmatpush1.bf16.msra.mxu0 %v2798
  %4181 = vmatprep.subr.bf16.mxu0 %v2803
  %4182 = vmatpush1.bf16.msra.mxu0 %v2802
  %4183 = vmatprep.subr.bf16.mxu0 %v2807
  %4184 = vmatpush1.bf16.msra.mxu0 %v2806
  %4185 = vmatprep.subr.bf16.mxu0 %v2811
  %4186 = vmatpush1.bf16.msra.mxu0 %v2810
  %4187 = vmatprep.subr.bf16.mxu0 %v2815
  %4188 = vmatpush1.bf16.msra.mxu0 %v2814
  %4189 = vmatprep.subr.bf16.mxu0 %v2819
  %4190 = vmatpush1.bf16.msra.mxu0 %v2818
  %4191 = vmatprep.subr.bf16.mxu0 %v2823
  %4192 = vmatpush1.bf16.msra.mxu0 %v2822
  %4193 = vmatprep.subr.bf16.mxu0 %v2827
  %4194 = vmatpush1.bf16.msra.mxu0 %v2826
  %4195 = vmatprep.subr.bf16.mxu0 %v2831
  %4196 = vmatpush1.bf16.msra.mxu0 %v2830
  %4197 = vmatprep.subr.bf16.mxu0 %v2835
  %4198 = vmatpush1.bf16.msra.mxu0 %v2834
  %4199 = vmatprep.subr.bf16.mxu0 %v2839
  %4200 = vmatpush1.bf16.msra.mxu0 %v2838
  %4201 = vmatprep.subr.bf16.mxu0 %v2843
  %4202 = vmatpush1.bf16.msra.mxu0 %v2842
  %4203 = vmatprep.subr.bf16.mxu0 %v2847
  %4204 = vmatpush1.bf16.msra.mxu0 %v2846
  %4205 = vmatprep.subr.bf16.mxu0 %v2851
  %4206 = vmatpush1.bf16.msra.mxu0 %v2850
  %4207 = vmatprep.subr.bf16.mxu0 %v2855
  %4208 = vmatpush1.bf16.msra.mxu0 %v2854
  %4209 = vmatprep.subr.bf16.mxu0 %v2859
  %4210 = vmatpush1.bf16.msra.mxu0 %v2858
  %4211 = vmatprep.mubr.bf16.mxu0 %v661
  %4212 = vmatmul.mubr.bf16.gmra.mrb[0].mxu0 %v660
  %v4213 = vpop.f32.mrb[0].mxu0
  %v4214 = vadd.f32 %v4173, %v4213
  %v4215 = vpop.f32.mrb[0].mxu0
  %v4216 = vadd.f32 %v4175, %v4215
  %v4217 = vpop.f32.mrb[0].mxu0
  %v4218 = vpop.f32.mrb[0].mxu0
  %4219 = vdwg.mxu0
  %4220 = vmatprep.subr.bf16.mxu0 %v2863
  %4221 = vmatpush1.bf16.msra.mxu0 %v2862
  %4222 = vmatprep.subr.bf16.mxu0 %v2867
  %4223 = vmatpush1.bf16.msra.mxu0 %v2866
  %4224 = vmatprep.subr.bf16.mxu0 %v2871
  %4225 = vmatpush1.bf16.msra.mxu0 %v2870
  %4226 = vmatprep.subr.bf16.mxu0 %v2875
  %4227 = vmatpush1.bf16.msra.mxu0 %v2874
  %4228 = vmatprep.subr.bf16.mxu0 %v2879
  %4229 = vmatpush1.bf16.msra.mxu0 %v2878
  %4230 = vmatprep.subr.bf16.mxu0 %v2883
  %4231 = vmatpush1.bf16.msra.mxu0 %v2882
  %4232 = vmatprep.subr.bf16.mxu0 %v2887
  %4233 = vmatpush1.bf16.msra.mxu0 %v2886
  %4234 = vmatprep.subr.bf16.mxu0 %v2891
  %4235 = vmatpush1.bf16.msra.mxu0 %v2890
  %4236 = vmatprep.subr.bf16.mxu0 %v2895
  %4237 = vmatpush1.bf16.msra.mxu0 %v2894
  %4238 = vmatprep.subr.bf16.mxu0 %v2899
  %4239 = vmatpush1.bf16.msra.mxu0 %v2898
  %4240 = vmatprep.subr.bf16.mxu0 %v2903
  %4241 = vmatpush1.bf16.msra.mxu0 %v2902
  %4242 = vmatprep.subr.bf16.mxu0 %v2907
  %4243 = vmatpush1.bf16.msra.mxu0 %v2906
  %4244 = vmatprep.subr.bf16.mxu0 %v2911
  %4245 = vmatpush1.bf16.msra.mxu0 %v2910
  %4246 = vmatprep.subr.bf16.mxu0 %v2915
  %4247 = vmatpush1.bf16.msra.mxu0 %v2914
  %4248 = vmatprep.subr.bf16.mxu0 %v2919
  %4249 = vmatpush1.bf16.msra.mxu0 %v2918
  %4250 = vmatprep.subr.bf16.mxu0 %v2923
  %4251 = vmatpush1.bf16.msra.mxu0 %v2922
  %4252 = vmatprep.mubr.bf16.mxu0 %v663
  %4253 = vmatmul.mubr.bf16.gmra.mrb[0].mxu0 %v662
  %v4254 = vpop.f32.mrb[0].mxu0
  %v4255 = vadd.f32 %v4214, %v4254
  %v4256 = vpop.f32.mrb[0].mxu0
  %v4257 = vadd.f32 %v4216, %v4256
  %v4258 = vpop.f32.mrb[0].mxu0
  %v4259 = vpop.f32.mrb[0].mxu0
  %4260 = vdwg.mxu0
  %4261 = vmatprep.subr.bf16.mxu0 %v2927
  %4262 = vmatpush1.bf16.msra.mxu0 %v2926
  %4263 = vmatprep.subr.bf16.mxu0 %v2931
  %4264 = vmatpush1.bf16.msra.mxu0 %v2930
  %4265 = vmatprep.subr.bf16.mxu0 %v2935
  %4266 = vmatpush1.bf16.msra.mxu0 %v2934
  %4267 = vmatprep.subr.bf16.mxu0 %v2939
  %4268 = vmatpush1.bf16.msra.mxu0 %v2938
  %4269 = vmatprep.subr.bf16.mxu0 %v2943
  %4270 = vmatpush1.bf16.msra.mxu0 %v2942
  %4271 = vmatprep.subr.bf16.mxu0 %v2947
  %4272 = vmatpush1.bf16.msra.mxu0 %v2946
  %4273 = vmatprep.subr.bf16.mxu0 %v2951
  %4274 = vmatpush1.bf16.msra.mxu0 %v2950
  %4275 = vmatprep.subr.bf16.mxu0 %v2955
  %4276 = vmatpush1.bf16.msra.mxu0 %v2954
  %4277 = vmatprep.subr.bf16.mxu0 %v2959
  %4278 = vmatpush1.bf16.msra.mxu0 %v2958
  %4279 = vmatprep.subr.bf16.mxu0 %v2963
  %4280 = vmatpush1.bf16.msra.mxu0 %v2962
  %4281 = vmatprep.subr.bf16.mxu0 %v2967
  %4282 = vmatpush1.bf16.msra.mxu0 %v2966
  %4283 = vmatprep.subr.bf16.mxu0 %v2971
  %4284 = vmatpush1.bf16.msra.mxu0 %v2970
  %4285 = vmatprep.subr.bf16.mxu0 %v2975
  %4286 = vmatpush1.bf16.msra.mxu0 %v2974
  %4287 = vmatprep.subr.bf16.mxu0 %v2979
  %4288 = vmatpush1.bf16.msra.mxu0 %v2978
  %4289 = vmatprep.subr.bf16.mxu0 %v2983
  %4290 = vmatpush1.bf16.msra.mxu0 %v2982
  %4291 = vmatprep.subr.bf16.mxu0 %v2987
  %4292 = vmatpush1.bf16.msra.mxu0 %v2986
  %4293 = vmatprep.mubr.bf16.mxu0 %v665
  %4294 = vmatmul.mubr.bf16.gmra.mrb[0].mxu0 %v664
  %v4295 = vpop.f32.mrb[0].mxu0
  %v4296 = vadd.f32 %v4255, %v4295
  %v4297 = vpop.f32.mrb[0].mxu0
  %v4298 = vadd.f32 %v4257, %v4297
  %v4299 = vpop.f32.mrb[0].mxu0
  %v4300 = vpop.f32.mrb[0].mxu0
  %4301 = vdwg.mxu0
  %v4302 = vmax.f32 %v3927, 0.0
  %v4303 = vmax.f32 %v3929, 0.0
  %v4304 = vmax.f32 %v4296, 0.0
  %v4305 = vmax.f32 %v4298, 0.0
  %4306 = vst [vmem:[%s3] sm:$0xff] %v4302
  %4307 = vst [vmem:[%s3 + $0x8] sm:$0xff] %v4303
  %4308 = vst [vmem:[%s3 + $0x10] sm:$0xff] %v4304
  %4309 = vst [vmem:[%s3 + $0x18] sm:$0xff] %v4305
  // Predicated region
  $region14: #{cornet_z_nonbiased_words_forward.15} parent=0 // pred_check
    _
  $region15: #{cornet_z_nonbiased_words_forward.15} parent=0 // pred_check_branch
    %4311 = sbr.rel (0) target = $region17
  $region16: #{cornet_z_nonbiased_words_forward.15} parent=0 // pred_region
    _
  $region17: #{cornet_z_nonbiased_words_forward.15} parent=0 // pred_fallthru
    _
  // Predicated region
  $region18: #{cornet_z_nonbiased_words_forward.15} parent=0 // pred_check
    _
  $region19: #{cornet_z_nonbiased_words_forward.15} parent=0 // pred_check_branch
    %4313 = sbr.rel (0) target = $region21
  $region20: #{cornet_z_nonbiased_words_forward.15} parent=0 // pred_region
    _
  $region21: #{cornet_z_nonbiased_words_forward.15} parent=0 // pred_fallthru
    _

</llo_original>
